<compile_context>
chip_gen: v5e
topology: v5e:2x2
jax: 0.10.0
libtpu: 0.0.40
codegen_flags: <defaults>
</compile_context>

<pallas_src>
import math
from functools import partial

import numpy as np
import jax
import jax.numpy as jnp
from jax import lax
from jax.experimental import pallas as pl
from jax.experimental.pallas import tpu as pltpu

EPS = 1e-5


# ----------------------------- Pallas kernels ------------------------------

def _first_kernel(p_ref, w_ref, b_ref, o_ref):
    """relu(patches @ w + b): 7x7-s2 conv as one MXU matmul (BN/bias folded)."""
    acc = jnp.dot(p_ref[...], w_ref[...], preferred_element_type=jnp.float32)
    o_ref[...] = jnp.maximum(acc + b_ref[...], 0.0).astype(o_ref.dtype)


def _block_kernel(p_ref, wA_ref, bA_ref, w2_ref, b2_ref, *rest,
                  N, H, W, C, PAD, pool):
    """One whole residual Block (optionally + adaptive avg pool) in one kernel.

    stage A : z = patches_s2 @ [w1 | wd_centre] + [b1 | bd]   (single MXU matmul)
              h = relu(z[:, :C])  (main branch),  res = z[:, C:]  (f32, in VMEM)
    stage B : 3x3 stride-1 conv of h via 9 row-shifted slices of a zero-padded
              flat copy of h held in VMEM scratch (in-kernel im2col)
    epilogue: relu(conv2 + b2 + res)  [+ AdaptiveAvgPool via a const matmul]
    """
    if pool:
        pool_ref, o_ref, hp_ref = rest
    else:
        o_ref, hp_ref = rest
    M = N * H * W
    log2w = int(math.log2(W))

    z = jnp.dot(p_ref[...], wA_ref[...],
                preferred_element_type=jnp.float32) + bA_ref[...]
    h = jnp.maximum(z[:, :C], 0.0)      # main branch after conv1+BN+ReLU (f32)
    res = z[:, C:]                      # downsample branch, no ReLU (f32)

    # zero-padded flat copy of h: rows [PAD, PAD+M) hold h, borders are zero.
    hp_ref[0:PAD, :] = jnp.zeros((PAD, C), jnp.float32)
    hp_ref[PAD:PAD + M, :] = h
    hp_ref[PAD + M:2 * PAD + M, :] = jnp.zeros((PAD, C), jnp.float32)

    # spatial validity masks from the flat row index (H, W are powers of two)
    row = lax.broadcasted_iota(jnp.int32, (M, 1), 0)
    w_pos = row & (W - 1)
    h_pos = (row >> log2w) & (H - 1)

    acc = res + b2_ref[...]
    t = 0
    for dy in (-1, 0, 1):
        for dx in (-1, 0, 1):
            d = dy * W + dx
            # out row r reads h[r + d] (zero when outside the padded copy)
            shifted = hp_ref[pl.ds(PAD + d, M), :]
            valid = ((h_pos + dy >= 0) & (h_pos + dy < H) &
                     (w_pos + dx >= 0) & (w_pos + dx < W)).astype(jnp.float32)
            tap = (shifted * valid).astype(jnp.bfloat16)
            wt = w2_ref[pl.ds(t * C, C), :]
            acc = acc + jnp.dot(tap, wt, preferred_element_type=jnp.float32)
            t += 1

    y = jnp.maximum(acc, 0.0)
    if pool:
        y = jnp.dot(pool_ref[...], y, preferred_element_type=jnp.float32)
    o_ref[...] = y.astype(o_ref.dtype)


# ----------------------------- Pallas wrappers ------------------------------

def _full_specs(args):
    return [pl.BlockSpec(a.shape, lambda i, nd=a.ndim: (0,) * nd) for a in args]


def first_layer(patches, w, b):
    M = patches.shape[0]
    C = w.shape[1]
    args = [patches, w, b]
    return pl.pallas_call(
        _first_kernel,
        out_shape=jax.ShapeDtypeStruct((M, C), jnp.bfloat16),
        grid=(1,),
        in_specs=_full_specs(args),
        out_specs=pl.BlockSpec((M, C), lambda i: (0, 0)),
    )(*args)


def block_layer(patches, wA, bA, w2, b2, *, N, H, W, C, pool_mat=None):
    assert (H & (H - 1)) == 0 and (W & (W - 1)) == 0, "bit-trick masks need pow2 H,W"
    M = N * H * W
    PAD = max(8, ((W + 1 + 7) // 8) * 8)      # >= W+1, multiple of 8 (aligned stores)
    pool = pool_mat is not None
    args = [patches, wA, bA, w2, b2]
    if pool:
        args.append(pool_mat)
        out_rows, out_dtype = pool_mat.shape[0], jnp.float32
    else:
        out_rows, out_dtype = M, jnp.bfloat16
    kernel = partial(_block_kernel, N=N, H=H, W=W, C=C, PAD=PAD, pool=pool)
    return pl.pallas_call(
        kernel,
        out_shape=jax.ShapeDtypeStruct((out_rows, C), out_dtype),
        grid=(1,),
        in_specs=_full_specs(args),
        out_specs=pl.BlockSpec((out_rows, C), lambda i: (0, 0)),
        scratch_shapes=[pltpu.VMEM((M + 2 * PAD, C), jnp.float32)],
    )(*args)


# ------------------------------- JAX glue ----------------------------------

def im2col_nhwc(x, kh, kw, stride, padding):
    """x:(N,H,W,C) -> (N*Ho*Wo, kh*kw*C); K-order = (ky, kx, c).  XLA-side,
    only used for the stride-2 convs (small tensors)."""
    N, H, W, C = x.shape
    Ho = (H + 2 * padding - kh) // stride + 1
    Wo = (W + 2 * padding - kw) // stride + 1
    xp = jnp.pad(x, ((0, 0), (padding, padding), (padding, padding), (0, 0)))
    cols = []
    for ky in range(kh):
        for kx in range(kw):
            sl = xp[:, ky:ky + stride * (Ho - 1) + 1:stride,
                       kx:kx + stride * (Wo - 1) + 1:stride, :]
            cols.append(sl.reshape(N * Ho * Wo, C))
    return jnp.concatenate(cols, axis=1), Ho, Wo


def _adaptive_pool_matrix(N, H, W, oh, ow):
    """Constant matrix P s.t. pooled = P @ y_flat implements AdaptiveAvgPool2d."""
    P = np.zeros((N * oh * ow, N * H * W), np.float32)
    for n in range(N):
        for i in range(oh):
            hs, he = (i * H) // oh, math.ceil((i + 1) * H / oh)
            for j in range(ow):
                ws, we = (j * W) // ow, math.ceil((j + 1) * W / ow)
                k = n * oh * ow + i * ow + j
                cnt = (he - hs) * (we - ws)
                for h in range(hs, he):
                    for w in range(ws, we):
                        P[k, n * H * W + h * W + w] = 1.0 / cnt
    return jnp.asarray(P)


# --------------------------- parameters & folding ---------------------------

class Config:
    dropout = 0.1        # identity in eval mode
    num_layers = 2
    adapt_pool = 4       # -> AdaptiveAvgPool2d((2, 2))


def _bn_params(key, c):
    k1, k2, k3, k4 = jax.random.split(key, 4)
    return dict(gamma=1.0 + 0.1 * jax.random.normal(k1, (c,), jnp.float32),
                beta=0.1 * jax.random.normal(k2, (c,), jnp.float32),
                mean=0.1 * jax.random.normal(k3, (c,), jnp.float32),
                var=1.0 + 0.1 * jnp.abs(jax.random.normal(k4, (c,), jnp.float32)))


def _conv_params(key, cout, cin, kh, kw):
    kw_, kb_ = jax.random.split(key)
    fan_in = cin * kh * kw
    return dict(w=jax.random.normal(kw_, (cout, cin, kh, kw), jnp.float32) / math.sqrt(fan_in),
                b=0.1 * jax.random.normal(kb_, (cout,), jnp.float32))


def init_params(key, cfg):
    params = {}
    key, k1, k2 = jax.random.split(key, 3)
    params["first_conv"] = _conv_params(k1, 64, 3, 7, 7)
    params["first_bn"] = _bn_params(k2, 64)
    blocks = []
    inn, out = 64, 128
    for _ in range(cfg.num_layers):
        key, ka, kb, kc, kd, ke, kf = jax.random.split(key, 7)
        blocks.append(dict(conv1=_conv_params(ka, out, inn, 3, 3), bn1=_bn_params(kd, out),
                           conv2=_conv_params(kb, out, out, 3, 3), bn2=_bn_params(ke, out),
                           convd=_conv_params(kc, out, inn, 1, 1), bnd=_bn_params(kf, out)))
        inn, out = out, out * 2
    params["blocks"] = blocks
    return params


def _fold(conv, bn, cin_pad=None):
    """(Conv + eval-BN) -> matmul weight (kh*kw*cin, cout) and bias (cout,)."""
    w, b = conv["w"], conv["b"]
    cout, cin, kh, kw = w.shape
    if cin_pad is not None and cin_pad > cin:
        w = jnp.pad(w, ((0, 0), (0, cin_pad - cin), (0, 0), (0, 0)))
        cin = cin_pad
    scale = bn["gamma"] / jnp.sqrt(bn["var"] + EPS)
    wm = jnp.transpose(w, (2, 3, 1, 0)).reshape(kh * kw * cin, cout) * scale[None, :]
    beff = bn["beta"] + scale * (b - bn["mean"])
    return wm, beff


def prepare_fused(params, cfg):
    """Fold BN + conv bias, fuse downsample onto the centre tap, pad lanes."""
    fused = {}
    wm, beff = _fold(params["first_conv"], params["first_bn"])        # (147, 64)
    c0, c0p = wm.shape[1], 128                                        # pad 64 -> 128 lanes
    fused["first_w"] = jnp.pad(wm, ((0, 0), (0, c0p - c0))).astype(jnp.bfloat16)
    fused["first_b"] = jnp.pad(beff, (0, c0p - c0)).reshape(1, c0p)

    blocks, cin_pad = [], c0p
    for blk in params["blocks"]:
        cout = blk["conv1"]["w"].shape[0]
        w1m, b1 = _fold(blk["conv1"], blk["bn1"], cin_pad=cin_pad)    # (9*cin_pad, cout)
        wdm, bd = _fold(blk["convd"], blk["bnd"], cin_pad=cin_pad)    # (cin_pad, cout)
        wA = jnp.zeros((9 * cin_pad, 2 * cout), jnp.float32)
        wA = wA.at[:, :cout].set(w1m)
        wA = wA.at[4 * cin_pad:5 * cin_pad, cout:].set(wdm)           # centre tap of 3x3-s2
        bA = jnp.concatenate([b1, bd]).reshape(1, 2 * cout)
        w2m, b2 = _fold(blk["conv2"], blk["bn2"])                     # (9*cout, cout)
        blocks.append(dict(wA=wA.astype(jnp.bfloat16), bA=bA,
                           w2=w2m.astype(jnp.bfloat16), b2=b2.reshape(1, cout)))
        cin_pad = cout
    fused["blocks"] = blocks
    return fused


# ------------------------------- forward -----------------------------------

def resnet_forward(fused, x, cfg):
    # NCHW f32 -> NHWC bf16 once; activations stay NHWC/(M,C) bf16 between calls.
    x = jnp.transpose(x, (0, 2, 3, 1)).astype(jnp.bfloat16)
    N = x.shape[0]

    # first: Conv(3->64,k7,s2,p3)+BN+Dropout(id)+ReLU (Cout padded to 128 lanes)
    patches, Ho, Wo = im2col_nhwc(x, 7, 7, 2, 3)
    Cp = fused["first_w"].shape[1]
    a = first_layer(patches, fused["first_w"], fused["first_b"]).reshape(N, Ho, Wo, Cp)

    oh = ow = int(math.sqrt(cfg.adapt_pool))
    nblocks = len(fused["blocks"])
    y = None
    for bi, blk in enumerate(fused["blocks"]):
        C = blk["b2"].shape[1]
        patches, Ho, Wo = im2col_nhwc(a, 3, 3, 2, 1)      # stride-2 im2col (XLA)
        last = bi == nblocks - 1
        pool_mat = _adaptive_pool_matrix(N, Ho, Wo, oh, ow) if last else None
        y = block_layer(patches, blk["wA"], blk["bA"], blk["w2"], blk["b2"],
                        N=N, H=Ho, W=Wo, C=C, pool_mat=pool_mat)
        if not last:
            a = y.reshape(N, Ho, Wo, C)

    # y: (N*oh*ow, C) f32 -> (N, C, oh*ow)  (== avgpool + Flatten(start_dim=-2))
    return jnp.transpose(y.reshape(N, oh * ow, -1), (0, 2, 1))


# -------------------------- pure-JAX f32 reference --------------------------

def reference_forward(params, x, cfg):
    def conv(x, p, stride, pad):
        y = lax.conv_general_dilated(x, p["w"], (stride, stride),
                                     [(pad, pad), (pad, pad)],
                                     dimension_numbers=("NCHW", "OIHW", "NCHW"),
                                     precision=lax.Precision.HIGHEST)
        return y + p["b"].reshape(1, -1, 1, 1)

    def bn(x, p):
        s = p["gamma"] / jnp.sqrt(p["var"] + EPS)
        return (s.reshape(1, -1, 1, 1) * (x - p["mean"].reshape(1, -1, 1, 1))
                + p["beta"].reshape(1, -1, 1, 1))

    y = jax.nn.relu(bn(conv(x, params["first_conv"], 2, 3), params["first_bn"]))
    for blk in params["blocks"]:
        res = bn(conv(y, blk["convd"], 2, 0), blk["bnd"])
        h = jax.nn.relu(bn(conv(y, blk["conv1"], 2, 1), blk["bn1"]))
        h = bn(conv(h, blk["conv2"], 1, 1), blk["bn2"])
        y = jax.nn.relu(h + res)
    N, C, H, W = y.shape
    oh = ow = int(math.sqrt(cfg.adapt_pool))
    y = y.reshape(N, C, oh, H // oh, ow, W // ow).mean(axis=(3, 5))
    return y.reshape(N, C, oh * ow)


# --------------------------------- main -------------------------------------

if __name__ == "__main__":
    cfg = Config()
    key = jax.random.PRNGKey(0)
    kp, kx = jax.random.split(key)
    params = init_params(kp, cfg)
    fused = prepare_fused(params, cfg)

    # input: batch=2, 3 channels (Conv2d(3, 64, ...)), 32x32 spatial
    x = jax.random.normal(kx, (2, 3, 32, 32), jnp.float32)

    fwd = jax.jit(partial(resnet_forward, cfg=cfg))
    out = jax.block_until_ready(fwd(fused, x))

    # 32 -> 16 (first) -> 8 (block1) -> 4 (block2); pool to 2x2; flatten -> 4
    assert out.shape == (2, 256, 4), out.shape
    assert bool(jnp.all(jnp.isfinite(out)))

    # numerics check vs f32 XLA reference (kernel path uses bf16 activations)
    ref = reference_forward(params, x.astype(jnp.float32), cfg)
    err = float(jnp.max(jnp.abs(out - ref)) / (jnp.max(jnp.abs(ref)) + 1e-6))
    assert err < 0.08, f"mismatch vs reference: rel-to-max err {err:.4f}"
    print("KERNEL_OK")
</pallas_src>

<mosaic_0001>
module attributes {stable_mosaic.version = 11 : i64} {
  func.func @_first_kernel(%arg0: i32, %arg1: memref<512x147xbf16, #tpu.memory_space<vmem>>, %arg2: memref<147x128xbf16, #tpu.memory_space<vmem>>, %arg3: memref<1x128xf32, #tpu.memory_space<vmem>>, %arg4: memref<512x128xbf16, #tpu.memory_space<vmem>>) attributes {dimension_semantics = [#tpu.dimension_semantics<arbitrary>], iteration_bounds = array<i64: 1>, scalar_prefetch = 0 : i64, scratch_operands = 0 : i64, tpu.core_type = #tpu.core_type<tc>, window_params = [{pipeline_mode = #tpu.pipeline_mode<synchronous>, transform_indices = @transform_0, window_bounds = array<i64: 512, 147>}, {pipeline_mode = #tpu.pipeline_mode<synchronous>, transform_indices = @transform_1, window_bounds = array<i64: 147, 128>}, {pipeline_mode = #tpu.pipeline_mode<synchronous>, transform_indices = @transform_2, window_bounds = array<i64: 1, 128>}, {pipeline_mode = #tpu.pipeline_mode<synchronous>, transform_indices = @transform_3, window_bounds = array<i64: 512, 128>}]} {
    %c0 = arith.constant 0 : index
    %c0_0 = arith.constant 0 : index
    %0 = vector.load %arg1[%c0, %c0_0] : memref<512x147xbf16, #tpu.memory_space<vmem>>, vector<512x147xbf16>
    %c0_1 = arith.constant 0 : index
    %c0_2 = arith.constant 0 : index
    %1 = vector.load %arg2[%c0_1, %c0_2] : memref<147x128xbf16, #tpu.memory_space<vmem>>, vector<147x128xbf16>
    %cst = arith.constant dense<0.000000e+00> : vector<512x128xf32>
    %2 = tpu.matmul %0, %1, %cst {dimension_numbers = #tpu.dot_dimension_numbers<[1], [0], [0], [1], [0, 0, 1, 1], [], []>} : vector<512x147xbf16>, vector<147x128xbf16>, vector<512x128xf32> -> vector<512x128xf32>
    %c0_3 = arith.constant 0 : index
    %c0_4 = arith.constant 0 : index
    %3 = vector.load %arg3[%c0_3, %c0_4] : memref<1x128xf32, #tpu.memory_space<vmem>>, vector<1x128xf32>
    %4 = vector.broadcast %3 : vector<1x128xf32> to vector<512x128xf32>
    %5 = arith.addf %2, %4 : vector<512x128xf32>
    %cst_5 = arith.constant 0.000000e+00 : f32
    %6 = vector.broadcast %cst_5 : f32 to vector<512x128xf32>
    %7 = arith.maximumf %5, %6 : vector<512x128xf32>
    %8 = arith.truncf %7 : vector<512x128xf32> to vector<512x128xbf16>
    %c0_6 = arith.constant 0 : index
    %c0_7 = arith.constant 0 : index
    %9 = vector.load %arg4[%c0_6, %c0_7] : memref<512x128xbf16, #tpu.memory_space<vmem>>, vector<512x128xbf16>
    tpu.vector_store %arg4[%c0_6, %c0_7], %8 {strides = array<i32>} : memref<512x128xbf16, #tpu.memory_space<vmem>>, vector<512x128xbf16>,
    return
  }
  func.func @transform_0(%arg0: i32) -> (i32, i32) {
    %c0_i32 = arith.constant 0 : i32
    %c0_i32_0 = arith.constant 0 : i32
    %c0_i32_1 = arith.constant 0 : i32
    return %c0_i32, %c0_i32_0 : i32, i32
  }
  func.func @transform_1(%arg0: i32) -> (i32, i32) {
    %c0_i32 = arith.constant 0 : i32
    %c0_i32_0 = arith.constant 0 : i32
    %c0_i32_1 = arith.constant 0 : i32
    return %c0_i32, %c0_i32_0 : i32, i32
  }
  func.func @transform_2(%arg0: i32) -> (i32, i32) {
    %c0_i32 = arith.constant 0 : i32
    %c0_i32_0 = arith.constant 0 : i32
    %c0_i32_1 = arith.constant 0 : i32
    return %c0_i32, %c0_i32_0 : i32, i32
  }
  func.func @transform_3(%arg0: i32) -> (i32, i32) {
    %c0_i32 = arith.constant 0 : i32
    %c0_i32_0 = arith.constant 0 : i32
    %c0_i32_1 = arith.constant 0 : i32
    return %c0_i32, %c0_i32_0 : i32, i32
  }
}

module attributes {stable_mosaic.version = 11 : i64} {
  func.func @_block_kernel(%arg0: i32, %arg1: memref<128x1152xbf16, #tpu.memory_space<vmem>>, %arg2: memref<1152x256xbf16, #tpu.memory_space<vmem>>, %arg3: memref<1x256xf32, #tpu.memory_space<vmem>>, %arg4: memref<1152x128xbf16, #tpu.memory_space<vmem>>, %arg5: memref<1x128xf32, #tpu.memory_space<vmem>>, %arg6: memref<128x128xbf16, #tpu.memory_space<vmem>>, %arg7: memref<160x128xf32, #tpu.memory_space<vmem>>) attributes {dimension_semantics = [#tpu.dimension_semantics<arbitrary>], iteration_bounds = array<i64: 1>, scalar_prefetch = 0 : i64, scratch_operands = 1 : i64, tpu.core_type = #tpu.core_type<tc>, window_params = [{pipeline_mode = #tpu.pipeline_mode<synchronous>, transform_indices = @transform_0, window_bounds = array<i64: 128, 1152>}, {pipeline_mode = #tpu.pipeline_mode<synchronous>, transform_indices = @transform_1, window_bounds = array<i64: 1152, 256>}, {pipeline_mode = #tpu.pipeline_mode<synchronous>, transform_indices = @transform_2, window_bounds = array<i64: 1, 256>}, {pipeline_mode = #tpu.pipeline_mode<synchronous>, transform_indices = @transform_3, window_bounds = array<i64: 1152, 128>}, {pipeline_mode = #tpu.pipeline_mode<synchronous>, transform_indices = @transform_4, window_bounds = array<i64: 1, 128>}, {pipeline_mode = #tpu.pipeline_mode<synchronous>, transform_indices = @transform_5, window_bounds = array<i64: 128, 128>}]} {
    %c0 = arith.constant 0 : index
    %c0_0 = arith.constant 0 : index
    %0 = vector.load %arg1[%c0, %c0_0] : memref<128x1152xbf16, #tpu.memory_space<vmem>>, vector<128x1152xbf16>
    %c0_1 = arith.constant 0 : index
    %c0_2 = arith.constant 0 : index
    %1 = vector.load %arg2[%c0_1, %c0_2] : memref<1152x256xbf16, #tpu.memory_space<vmem>>, vector<1152x256xbf16>
    %cst = arith.constant dense<0.000000e+00> : vector<128x256xf32>
    %2 = tpu.matmul %0, %1, %cst {dimension_numbers = #tpu.dot_dimension_numbers<[1], [0], [0], [1], [0, 0, 1, 1], [], []>} : vector<128x1152xbf16>, vector<1152x256xbf16>, vector<128x256xf32> -> vector<128x256xf32>
    %c0_3 = arith.constant 0 : index
    %c0_4 = arith.constant 0 : index
    %3 = vector.load %arg3[%c0_3, %c0_4] : memref<1x256xf32, #tpu.memory_space<vmem>>, vector<1x256xf32>
    %4 = vector.broadcast %3 : vector<1x256xf32> to vector<128x256xf32>
    %5 = arith.addf %2, %4 : vector<128x256xf32>
    %6 = vector.extract_strided_slice %5 {offsets = [0, 0], sizes = [128, 128], strides = [1, 1]} : vector<128x256xf32> to vector<128x128xf32>
    %cst_5 = arith.constant 0.000000e+00 : f32
    %7 = vector.broadcast %cst_5 : f32 to vector<128x128xf32>
    %8 = arith.maximumf %6, %7 : vector<128x128xf32>
    %9 = vector.extract_strided_slice %5 {offsets = [0, 128], sizes = [128, 128], strides = [1, 1]} : vector<128x256xf32> to vector<128x128xf32>
    %cst_6 = arith.constant 0.000000e+00 : f32
    %10 = vector.broadcast %cst_6 : f32 to vector<16x128xf32>
    %c0_7 = arith.constant 0 : index
    %c0_8 = arith.constant 0 : index
    %11 = vector.load %arg7[%c0_7, %c0_8] : memref<160x128xf32, #tpu.memory_space<vmem>>, vector<16x128xf32>
    tpu.vector_store %arg7[%c0_7, %c0_8], %10 {strides = array<i32>} : memref<160x128xf32, #tpu.memory_space<vmem>>, vector<16x128xf32>,
    %c16 = arith.constant 16 : index
    %c0_9 = arith.constant 0 : index
    %12 = vector.load %arg7[%c16, %c0_9] : memref<160x128xf32, #tpu.memory_space<vmem>>, vector<128x128xf32>
    tpu.vector_store %arg7[%c16, %c0_9], %8 {strides = array<i32>} : memref<160x128xf32, #tpu.memory_space<vmem>>, vector<128x128xf32>,
    %cst_10 = arith.constant 0.000000e+00 : f32
    %13 = vector.broadcast %cst_10 : f32 to vector<16x128xf32>
    %c144 = arith.constant 144 : index
    %c0_11 = arith.constant 0 : index
    %14 = vector.load %arg7[%c144, %c0_11] : memref<160x128xf32, #tpu.memory_space<vmem>>, vector<16x128xf32>
    tpu.vector_store %arg7[%c144, %c0_11], %13 {strides = array<i32>} : memref<160x128xf32, #tpu.memory_space<vmem>>, vector<16x128xf32>,
    %15 = tpu.iota {dimensions = array<i32: 0>} : vector<128x1xi32>
    %c7_i32 = arith.constant 7 : i32
    %16 = vector.broadcast %c7_i32 : i32 to vector<128x1xi32>
    %17 = arith.andi %15, %16 : vector<128x1xi32>
    %c3_i32 = arith.constant 3 : i32
    %18 = vector.broadcast %c3_i32 : i32 to vector<128x1xi32>
    %19 = arith.shrsi %15, %18 : vector<128x1xi32>
    %c7_i32_12 = arith.constant 7 : i32
    %20 = vector.broadcast %c7_i32_12 : i32 to vector<128x1xi32>
    %21 = arith.andi %19, %20 : vector<128x1xi32>
    %c0_13 = arith.constant 0 : index
    %c0_14 = arith.constant 0 : index
    %22 = vector.load %arg5[%c0_13, %c0_14] : memref<1x128xf32, #tpu.memory_space<vmem>>, vector<1x128xf32>
    %23 = vector.broadcast %22 : vector<1x128xf32> to vector<128x128xf32>
    %24 = arith.addf %9, %23 : vector<128x128xf32>
    %c7 = arith.constant 7 : index
    %c0_15 = arith.constant 0 : index
    %25 = vector.load %arg7[%c7, %c0_15] : memref<160x128xf32, #tpu.memory_space<vmem>>, vector<128x128xf32>
    %c-1_i32 = arith.constant -1 : i32
    %26 = vector.broadcast %c-1_i32 : i32 to vector<128x1xi32>
    %27 = arith.addi %21, %26 : vector<128x1xi32>
    %c0_i32 = arith.constant 0 : i32
    %28 = vector.broadcast %c0_i32 : i32 to vector<128x1xi32>
    %29 = arith.cmpi sge, %27, %28 : vector<128x1xi32>
    %c-1_i32_16 = arith.constant -1 : i32
    %30 = vector.broadcast %c-1_i32_16 : i32 to vector<128x1xi32>
    %31 = arith.addi %21, %30 : vector<128x1xi32>
    %c8_i32 = arith.constant 8 : i32
    %32 = vector.broadcast %c8_i32 : i32 to vector<128x1xi32>
    %33 = arith.cmpi slt, %31, %32 : vector<128x1xi32>
    %34 = arith.andi %29, %33 : vector<128x1xi1>
    %c-1_i32_17 = arith.constant -1 : i32
    %35 = vector.broadcast %c-1_i32_17 : i32 to vector<128x1xi32>
    %36 = arith.addi %17, %35 : vector<128x1xi32>
    %c0_i32_18 = arith.constant 0 : i32
    %37 = vector.broadcast %c0_i32_18 : i32 to vector<128x1xi32>
    %38 = arith.cmpi sge, %36, %37 : vector<128x1xi32>
    %39 = arith.andi %34, %38 : vector<128x1xi1>
    %c-1_i32_19 = arith.constant -1 : i32
    %40 = vector.broadcast %c-1_i32_19 : i32 to vector<128x1xi32>
    %41 = arith.addi %17, %40 : vector<128x1xi32>
    %c8_i32_20 = arith.constant 8 : i32
    %42 = vector.broadcast %c8_i32_20 : i32 to vector<128x1xi32>
    %43 = arith.cmpi slt, %41, %42 : vector<128x1xi32>
    %44 = arith.andi %39, %43 : vector<128x1xi1>
    %45 = arith.extui %44 : vector<128x1xi1> to vector<128x1xi32>
    %46 = arith.sitofp %45 : vector<128x1xi32> to vector<128x1xf32>
    %47 = vector.broadcast %46 : vector<128x1xf32> to vector<128x128xf32>
    %48 = arith.mulf %25, %47 : vector<128x128xf32>
    %49 = arith.truncf %48 : vector<128x128xf32> to vector<128x128xbf16>
    %c0_21 = arith.constant 0 : index
    %c0_22 = arith.constant 0 : index
    %50 = vector.load %arg4[%c0_21, %c0_22] : memref<1152x128xbf16, #tpu.memory_space<vmem>>, vector<128x128xbf16>
    %cst_23 = arith.constant dense<0.000000e+00> : vector<128x128xf32>
    %51 = tpu.matmul %49, %50, %cst_23 {dimension_numbers = #tpu.dot_dimension_numbers<[1], [0], [0], [1], [0, 0, 1, 1], [], []>} : vector<128x128xbf16>, vector<128x128xbf16>, vector<128x128xf32> -> vector<128x128xf32>
    %52 = arith.addf %24, %51 : vector<128x128xf32>
    %c8 = arith.constant 8 : index
    %c0_24 = arith.constant 0 : index
    %53 = vector.load %arg7[%c8, %c0_24] : memref<160x128xf32, #tpu.memory_space<vmem>>, vector<128x128xf32>
    %c-1_i32_25 = arith.constant -1 : i32
    %54 = vector.broadcast %c-1_i32_25 : i32 to vector<128x1xi32>
    %55 = arith.addi %21, %54 : vector<128x1xi32>
    %c0_i32_26 = arith.constant 0 : i32
    %56 = vector.broadcast %c0_i32_26 : i32 to vector<128x1xi32>
    %57 = arith.cmpi sge, %55, %56 : vector<128x1xi32>
    %c-1_i32_27 = arith.constant -1 : i32
    %58 = vector.broadcast %c-1_i32_27 : i32 to vector<128x1xi32>
    %59 = arith.addi %21, %58 : vector<128x1xi32>
    %c8_i32_28 = arith.constant 8 : i32
    %60 = vector.broadcast %c8_i32_28 : i32 to vector<128x1xi32>
    %61 = arith.cmpi slt, %59, %60 : vector<128x1xi32>
    %62 = arith.andi %57, %61 : vector<128x1xi1>
    %c0_i32_29 = arith.constant 0 : i32
    %63 = vector.broadcast %c0_i32_29 : i32 to vector<128x1xi32>
    %64 = arith.addi %17, %63 : vector<128x1xi32>
    %c0_i32_30 = arith.constant 0 : i32
    %65 = vector.broadcast %c0_i32_30 : i32 to vector<128x1xi32>
    %66 = arith.cmpi sge, %64, %65 : vector<128x1xi32>
    %67 = arith.andi %62, %66 : vector<128x1xi1>
    %c0_i32_31 = arith.constant 0 : i32
    %68 = vector.broadcast %c0_i32_31 : i32 to vector<128x1xi32>
    %69 = arith.addi %17, %68 : vector<128x1xi32>
    %c8_i32_32 = arith.constant 8 : i32
    %70 = vector.broadcast %c8_i32_32 : i32 to vector<128x1xi32>
    %71 = arith.cmpi slt, %69, %70 : vector<128x1xi32>
    %72 = arith.andi %67, %71 : vector<128x1xi1>
    %73 = arith.extui %72 : vector<128x1xi1> to vector<128x1xi32>
    %74 = arith.sitofp %73 : vector<128x1xi32> to vector<128x1xf32>
    %75 = vector.broadcast %74 : vector<128x1xf32> to vector<128x128xf32>
    %76 = arith.mulf %53, %75 : vector<128x128xf32>
    %77 = arith.truncf %76 : vector<128x128xf32> to vector<128x128xbf16>
    %c128 = arith.constant 128 : index
    %c0_33 = arith.constant 0 : index
    %78 = vector.load %arg4[%c128, %c0_33] : memref<1152x128xbf16, #tpu.memory_space<vmem>>, vector<128x128xbf16>
    %cst_34 = arith.constant dense<0.000000e+00> : vector<128x128xf32>
    %79 = tpu.matmul %77, %78, %cst_34 {dimension_numbers = #tpu.dot_dimension_numbers<[1], [0], [0], [1], [0, 0, 1, 1], [], []>} : vector<128x128xbf16>, vector<128x128xbf16>, vector<128x128xf32> -> vector<128x128xf32>
    %80 = arith.addf %52, %79 : vector<128x128xf32>
    %c9 = arith.constant 9 : index
    %c0_35 = arith.constant 0 : index
    %81 = vector.load %arg7[%c9, %c0_35] : memref<160x128xf32, #tpu.memory_space<vmem>>, vector<128x128xf32>
    %c-1_i32_36 = arith.constant -1 : i32
    %82 = vector.broadcast %c-1_i32_36 : i32 to vector<128x1xi32>
    %83 = arith.addi %21, %82 : vector<128x1xi32>
    %c0_i32_37 = arith.constant 0 : i32
    %84 = vector.broadcast %c0_i32_37 : i32 to vector<128x1xi32>
    %85 = arith.cmpi sge, %83, %84 : vector<128x1xi32>
    %c-1_i32_38 = arith.constant -1 : i32
    %86 = vector.broadcast %c-1_i32_38 : i32 to vector<128x1xi32>
    %87 = arith.addi %21, %86 : vector<128x1xi32>
    %c8_i32_39 = arith.constant 8 : i32
    %88 = vector.broadcast %c8_i32_39 : i32 to vector<128x1xi32>
    %89 = arith.cmpi slt, %87, %88 : vector<128x1xi32>
    %90 = arith.andi %85, %89 : vector<128x1xi1>
    %c1_i32 = arith.constant 1 : i32
    %91 = vector.broadcast %c1_i32 : i32 to vector<128x1xi32>
    %92 = arith.addi %17, %91 : vector<128x1xi32>
    %c0_i32_40 = arith.constant 0 : i32
    %93 = vector.broadcast %c0_i32_40 : i32 to vector<128x1xi32>
    %94 = arith.cmpi sge, %92, %93 : vector<128x1xi32>
    %95 = arith.andi %90, %94 : vector<128x1xi1>
    %c1_i32_41 = arith.constant 1 : i32
    %96 = vector.broadcast %c1_i32_41 : i32 to vector<128x1xi32>
    %97 = arith.addi %17, %96 : vector<128x1xi32>
    %c8_i32_42 = arith.constant 8 : i32
    %98 = vector.broadcast %c8_i32_42 : i32 to vector<128x1xi32>
    %99 = arith.cmpi slt, %97, %98 : vector<128x1xi32>
    %100 = arith.andi %95, %99 : vector<128x1xi1>
    %101 = arith.extui %100 : vector<128x1xi1> to vector<128x1xi32>
    %102 = arith.sitofp %101 : vector<128x1xi32> to vector<128x1xf32>
    %103 = vector.broadcast %102 : vector<128x1xf32> to vector<128x128xf32>
    %104 = arith.mulf %81, %103 : vector<128x128xf32>
    %105 = arith.truncf %104 : vector<128x128xf32> to vector<128x128xbf16>
    %c256 = arith.constant 256 : index
    %c0_43 = arith.constant 0 : index
    %106 = vector.load %arg4[%c256, %c0_43] : memref<1152x128xbf16, #tpu.memory_space<vmem>>, vector<128x128xbf16>
    %cst_44 = arith.constant dense<0.000000e+00> : vector<128x128xf32>
    %107 = tpu.matmul %105, %106, %cst_44 {dimension_numbers = #tpu.dot_dimension_numbers<[1], [0], [0], [1], [0, 0, 1, 1], [], []>} : vector<128x128xbf16>, vector<128x128xbf16>, vector<128x128xf32> -> vector<128x128xf32>
    %108 = arith.addf %80, %107 : vector<128x128xf32>
    %c15 = arith.constant 15 : index
    %c0_45 = arith.constant 0 : index
    %109 = vector.load %arg7[%c15, %c0_45] : memref<160x128xf32, #tpu.memory_space<vmem>>, vector<128x128xf32>
    %c0_i32_46 = arith.constant 0 : i32
    %110 = vector.broadcast %c0_i32_46 : i32 to vector<128x1xi32>
    %111 = arith.addi %21, %110 : vector<128x1xi32>
    %c0_i32_47 = arith.constant 0 : i32
    %112 = vector.broadcast %c0_i32_47 : i32 to vector<128x1xi32>
    %113 = arith.cmpi sge, %111, %112 : vector<128x1xi32>
    %c0_i32_48 = arith.constant 0 : i32
    %114 = vector.broadcast %c0_i32_48 : i32 to vector<128x1xi32>
    %115 = arith.addi %21, %114 : vector<128x1xi32>
    %c8_i32_49 = arith.constant 8 : i32
    %116 = vector.broadcast %c8_i32_49 : i32 to vector<128x1xi32>
    %117 = arith.cmpi slt, %115, %116 : vector<128x1xi32>
    %118 = arith.andi %113, %117 : vector<128x1xi1>
    %c-1_i32_50 = arith.constant -1 : i32
    %119 = vector.broadcast %c-1_i32_50 : i32 to vector<128x1xi32>
    %120 = arith.addi %17, %119 : vector<128x1xi32>
    %c0_i32_51 = arith.constant 0 : i32
    %121 = vector.broadcast %c0_i32_51 : i32 to vector<128x1xi32>
    %122 = arith.cmpi sge, %120, %121 : vector<128x1xi32>
    %123 = arith.andi %118, %122 : vector<128x1xi1>
    %c-1_i32_52 = arith.constant -1 : i32
    %124 = vector.broadcast %c-1_i32_52 : i32 to vector<128x1xi32>
    %125 = arith.addi %17, %124 : vector<128x1xi32>
    %c8_i32_53 = arith.constant 8 : i32
    %126 = vector.broadcast %c8_i32_53 : i32 to vector<128x1xi32>
    %127 = arith.cmpi slt, %125, %126 : vector<128x1xi32>
    %128 = arith.andi %123, %127 : vector<128x1xi1>
    %129 = arith.extui %128 : vector<128x1xi1> to vector<128x1xi32>
    %130 = arith.sitofp %129 : vector<128x1xi32> to vector<128x1xf32>
    %131 = vector.broadcast %130 : vector<128x1xf32> to vector<128x128xf32>
    %132 = arith.mulf %109, %131 : vector<128x128xf32>
    %133 = arith.truncf %132 : vector<128x128xf32> to vector<128x128xbf16>
    %c384 = arith.constant 384 : index
    %c0_54 = arith.constant 0 : index
    %134 = vector.load %arg4[%c384, %c0_54] : memref<1152x128xbf16, #tpu.memory_space<vmem>>, vector<128x128xbf16>
    %cst_55 = arith.constant dense<0.000000e+00> : vector<128x128xf32>
    %135 = tpu.matmul %133, %134, %cst_55 {dimension_numbers = #tpu.dot_dimension_numbers<[1], [0], [0], [1], [0, 0, 1, 1], [], []>} : vector<128x128xbf16>, vector<128x128xbf16>, vector<128x128xf32> -> vector<128x128xf32>
    %136 = arith.addf %108, %135 : vector<128x128xf32>
    %c16_56 = arith.constant 16 : index
    %c0_57 = arith.constant 0 : index
    %137 = vector.load %arg7[%c16_56, %c0_57] : memref<160x128xf32, #tpu.memory_space<vmem>>, vector<128x128xf32>
    %c0_i32_58 = arith.constant 0 : i32
    %138 = vector.broadcast %c0_i32_58 : i32 to vector<128x1xi32>
    %139 = arith.addi %21, %138 : vector<128x1xi32>
    %c0_i32_59 = arith.constant 0 : i32
    %140 = vector.broadcast %c0_i32_59 : i32 to vector<128x1xi32>
    %141 = arith.cmpi sge, %139, %140 : vector<128x1xi32>
    %c0_i32_60 = arith.constant 0 : i32
    %142 = vector.broadcast %c0_i32_60 : i32 to vector<128x1xi32>
    %143 = arith.addi %21, %142 : vector<128x1xi32>
    %c8_i32_61 = arith.constant 8 : i32
    %144 = vector.broadcast %c8_i32_61 : i32 to vector<128x1xi32>
    %145 = arith.cmpi slt, %143, %144 : vector<128x1xi32>
    %146 = arith.andi %141, %145 : vector<128x1xi1>
    %c0_i32_62 = arith.constant 0 : i32
    %147 = vector.broadcast %c0_i32_62 : i32 to vector<128x1xi32>
    %148 = arith.addi %17, %147 : vector<128x1xi32>
    %c0_i32_63 = arith.constant 0 : i32
    %149 = vector.broadcast %c0_i32_63 : i32 to vector<128x1xi32>
    %150 = arith.cmpi sge, %148, %149 : vector<128x1xi32>
    %151 = arith.andi %146, %150 : vector<128x1xi1>
    %c0_i32_64 = arith.constant 0 : i32
    %152 = vector.broadcast %c0_i32_64 : i32 to vector<128x1xi32>
    %153 = arith.addi %17, %152 : vector<128x1xi32>
    %c8_i32_65 = arith.constant 8 : i32
    %154 = vector.broadcast %c8_i32_65 : i32 to vector<128x1xi32>
    %155 = arith.cmpi slt, %153, %154 : vector<128x1xi32>
    %156 = arith.andi %151, %155 : vector<128x1xi1>
    %157 = arith.extui %156 : vector<128x1xi1> to vector<128x1xi32>
    %158 = arith.sitofp %157 : vector<128x1xi32> to vector<128x1xf32>
    %159 = vector.broadcast %158 : vector<128x1xf32> to vector<128x128xf32>
    %160 = arith.mulf %137, %159 : vector<128x128xf32>
    %161 = arith.truncf %160 : vector<128x128xf32> to vector<128x128xbf16>
    %c512 = arith.constant 512 : index
    %c0_66 = arith.constant 0 : index
    %162 = vector.load %arg4[%c512, %c0_66] : memref<1152x128xbf16, #tpu.memory_space<vmem>>, vector<128x128xbf16>
    %cst_67 = arith.constant dense<0.000000e+00> : vector<128x128xf32>
    %163 = tpu.matmul %161, %162, %cst_67 {dimension_numbers = #tpu.dot_dimension_numbers<[1], [0], [0], [1], [0, 0, 1, 1], [], []>} : vector<128x128xbf16>, vector<128x128xbf16>, vector<128x128xf32> -> vector<128x128xf32>
    %164 = arith.addf %136, %163 : vector<128x128xf32>
    %c17 = arith.constant 17 : index
    %c0_68 = arith.constant 0 : index
    %165 = vector.load %arg7[%c17, %c0_68] : memref<160x128xf32, #tpu.memory_space<vmem>>, vector<128x128xf32>
    %c0_i32_69 = arith.constant 0 : i32
    %166 = vector.broadcast %c0_i32_69 : i32 to vector<128x1xi32>
    %167 = arith.addi %21, %166 : vector<128x1xi32>
    %c0_i32_70 = arith.constant 0 : i32
    %168 = vector.broadcast %c0_i32_70 : i32 to vector<128x1xi32>
    %169 = arith.cmpi sge, %167, %168 : vector<128x1xi32>
    %c0_i32_71 = arith.constant 0 : i32
    %170 = vector.broadcast %c0_i32_71 : i32 to vector<128x1xi32>
    %171 = arith.addi %21, %170 : vector<128x1xi32>
    %c8_i32_72 = arith.constant 8 : i32
    %172 = vector.broadcast %c8_i32_72 : i32 to vector<128x1xi32>
    %173 = arith.cmpi slt, %171, %172 : vector<128x1xi32>
    %174 = arith.andi %169, %173 : vector<128x1xi1>
    %c1_i32_73 = arith.constant 1 : i32
    %175 = vector.broadcast %c1_i32_73 : i32 to vector<128x1xi32>
    %176 = arith.addi %17, %175 : vector<128x1xi32>
    %c0_i32_74 = arith.constant 0 : i32
    %177 = vector.broadcast %c0_i32_74 : i32 to vector<128x1xi32>
    %178 = arith.cmpi sge, %176, %177 : vector<128x1xi32>
    %179 = arith.andi %174, %178 : vector<128x1xi1>
    %c1_i32_75 = arith.constant 1 : i32
    %180 = vector.broadcast %c1_i32_75 : i32 to vector<128x1xi32>
    %181 = arith.addi %17, %180 : vector<128x1xi32>
    %c8_i32_76 = arith.constant 8 : i32
    %182 = vector.broadcast %c8_i32_76 : i32 to vector<128x1xi32>
    %183 = arith.cmpi slt, %181, %182 : vector<128x1xi32>
    %184 = arith.andi %179, %183 : vector<128x1xi1>
    %185 = arith.extui %184 : vector<128x1xi1> to vector<128x1xi32>
    %186 = arith.sitofp %185 : vector<128x1xi32> to vector<128x1xf32>
    %187 = vector.broadcast %186 : vector<128x1xf32> to vector<128x128xf32>
    %188 = arith.mulf %165, %187 : vector<128x128xf32>
    %189 = arith.truncf %188 : vector<128x128xf32> to vector<128x128xbf16>
    %c640 = arith.constant 640 : index
    %c0_77 = arith.constant 0 : index
    %190 = vector.load %arg4[%c640, %c0_77] : memref<1152x128xbf16, #tpu.memory_space<vmem>>, vector<128x128xbf16>
    %cst_78 = arith.constant dense<0.000000e+00> : vector<128x128xf32>
    %191 = tpu.matmul %189, %190, %cst_78 {dimension_numbers = #tpu.dot_dimension_numbers<[1], [0], [0], [1], [0, 0, 1, 1], [], []>} : vector<128x128xbf16>, vector<128x128xbf16>, vector<128x128xf32> -> vector<128x128xf32>
    %192 = arith.addf %164, %191 : vector<128x128xf32>
    %c23 = arith.constant 23 : index
    %c0_79 = arith.constant 0 : index
    %193 = vector.load %arg7[%c23, %c0_79] : memref<160x128xf32, #tpu.memory_space<vmem>>, vector<128x128xf32>
    %c1_i32_80 = arith.constant 1 : i32
    %194 = vector.broadcast %c1_i32_80 : i32 to vector<128x1xi32>
    %195 = arith.addi %21, %194 : vector<128x1xi32>
    %c0_i32_81 = arith.constant 0 : i32
    %196 = vector.broadcast %c0_i32_81 : i32 to vector<128x1xi32>
    %197 = arith.cmpi sge, %195, %196 : vector<128x1xi32>
    %c1_i32_82 = arith.constant 1 : i32
    %198 = vector.broadcast %c1_i32_82 : i32 to vector<128x1xi32>
    %199 = arith.addi %21, %198 : vector<128x1xi32>
    %c8_i32_83 = arith.constant 8 : i32
    %200 = vector.broadcast %c8_i32_83 : i32 to vector<128x1xi32>
    %201 = arith.cmpi slt, %199, %200 : vector<128x1xi32>
    %202 = arith.andi %197, %201 : vector<128x1xi1>
    %c-1_i32_84 = arith.constant -1 : i32
    %203 = vector.broadcast %c-1_i32_84 : i32 to vector<128x1xi32>
    %204 = arith.addi %17, %203 : vector<128x1xi32>
    %c0_i32_85 = arith.constant 0 : i32
    %205 = vector.broadcast %c0_i32_85 : i32 to vector<128x1xi32>
    %206 = arith.cmpi sge, %204, %205 : vector<128x1xi32>
    %207 = arith.andi %202, %206 : vector<128x1xi1>
    %c-1_i32_86 = arith.constant -1 : i32
    %208 = vector.broadcast %c-1_i32_86 : i32 to vector<128x1xi32>
    %209 = arith.addi %17, %208 : vector<128x1xi32>
    %c8_i32_87 = arith.constant 8 : i32
    %210 = vector.broadcast %c8_i32_87 : i32 to vector<128x1xi32>
    %211 = arith.cmpi slt, %209, %210 : vector<128x1xi32>
    %212 = arith.andi %207, %211 : vector<128x1xi1>
    %213 = arith.extui %212 : vector<128x1xi1> to vector<128x1xi32>
    %214 = arith.sitofp %213 : vector<128x1xi32> to vector<128x1xf32>
    %215 = vector.broadcast %214 : vector<128x1xf32> to vector<128x128xf32>
    %216 = arith.mulf %193, %215 : vector<128x128xf32>
    %217 = arith.truncf %216 : vector<128x128xf32> to vector<128x128xbf16>
    %c768 = arith.constant 768 : index
    %c0_88 = arith.constant 0 : index
    %218 = vector.load %arg4[%c768, %c0_88] : memref<1152x128xbf16, #tpu.memory_space<vmem>>, vector<128x128xbf16>
    %cst_89 = arith.constant dense<0.000000e+00> : vector<128x128xf32>
    %219 = tpu.matmul %217, %218, %cst_89 {dimension_numbers = #tpu.dot_dimension_numbers<[1], [0], [0], [1], [0, 0, 1, 1], [], []>} : vector<128x128xbf16>, vector<128x128xbf16>, vector<128x128xf32> -> vector<128x128xf32>
    %220 = arith.addf %192, %219 : vector<128x128xf32>
    %c24 = arith.constant 24 : index
    %c0_90 = arith.constant 0 : index
    %221 = vector.load %arg7[%c24, %c0_90] : memref<160x128xf32, #tpu.memory_space<vmem>>, vector<128x128xf32>
    %c1_i32_91 = arith.constant 1 : i32
    %222 = vector.broadcast %c1_i32_91 : i32 to vector<128x1xi32>
    %223 = arith.addi %21, %222 : vector<128x1xi32>
    %c0_i32_92 = arith.constant 0 : i32
    %224 = vector.broadcast %c0_i32_92 : i32 to vector<128x1xi32>
    %225 = arith.cmpi sge, %223, %224 : vector<128x1xi32>
    %c1_i32_93 = arith.constant 1 : i32
    %226 = vector.broadcast %c1_i32_93 : i32 to vector<128x1xi32>
    %227 = arith.addi %21, %226 : vector<128x1xi32>
    %c8_i32_94 = arith.constant 8 : i32
    %228 = vector.broadcast %c8_i32_94 : i32 to vector<128x1xi32>
    %229 = arith.cmpi slt, %227, %228 : vector<128x1xi32>
    %230 = arith.andi %225, %229 : vector<128x1xi1>
    %c0_i32_95 = arith.constant 0 : i32
    %231 = vector.broadcast %c0_i32_95 : i32 to vector<128x1xi32>
    %232 = arith.addi %17, %231 : vector<128x1xi32>
    %c0_i32_96 = arith.constant 0 : i32
    %233 = vector.broadcast %c0_i32_96 : i32 to vector<128x1xi32>
    %234 = arith.cmpi sge, %232, %233 : vector<128x1xi32>
    %235 = arith.andi %230, %234 : vector<128x1xi1>
    %c0_i32_97 = arith.constant 0 : i32
    %236 = vector.broadcast %c0_i32_97 : i32 to vector<128x1xi32>
    %237 = arith.addi %17, %236 : vector<128x1xi32>
    %c8_i32_98 = arith.constant 8 : i32
    %238 = vector.broadcast %c8_i32_98 : i32 to vector<128x1xi32>
    %239 = arith.cmpi slt, %237, %238 : vector<128x1xi32>
    %240 = arith.andi %235, %239 : vector<128x1xi1>
    %241 = arith.extui %240 : vector<128x1xi1> to vector<128x1xi32>
    %242 = arith.sitofp %241 : vector<128x1xi32> to vector<128x1xf32>
    %243 = vector.broadcast %242 : vector<128x1xf32> to vector<128x128xf32>
    %244 = arith.mulf %221, %243 : vector<128x128xf32>
    %245 = arith.truncf %244 : vector<128x128xf32> to vector<128x128xbf16>
    %c896 = arith.constant 896 : index
    %c0_99 = arith.constant 0 : index
    %246 = vector.load %arg4[%c896, %c0_99] : memref<1152x128xbf16, #tpu.memory_space<vmem>>, vector<128x128xbf16>
    %cst_100 = arith.constant dense<0.000000e+00> : vector<128x128xf32>
    %247 = tpu.matmul %245, %246, %cst_100 {dimension_numbers = #tpu.dot_dimension_numbers<[1], [0], [0], [1], [0, 0, 1, 1], [], []>} : vector<128x128xbf16>, vector<128x128xbf16>, vector<128x128xf32> -> vector<128x128xf32>
    %248 = arith.addf %220, %247 : vector<128x128xf32>
    %c25 = arith.constant 25 : index
    %c0_101 = arith.constant 0 : index
    %249 = vector.load %arg7[%c25, %c0_101] : memref<160x128xf32, #tpu.memory_space<vmem>>, vector<128x128xf32>
    %c1_i32_102 = arith.constant 1 : i32
    %250 = vector.broadcast %c1_i32_102 : i32 to vector<128x1xi32>
    %251 = arith.addi %21, %250 : vector<128x1xi32>
    %c0_i32_103 = arith.constant 0 : i32
    %252 = vector.broadcast %c0_i32_103 : i32 to vector<128x1xi32>
    %253 = arith.cmpi sge, %251, %252 : vector<128x1xi32>
    %c1_i32_104 = arith.constant 1 : i32
    %254 = vector.broadcast %c1_i32_104 : i32 to vector<128x1xi32>
    %255 = arith.addi %21, %254 : vector<128x1xi32>
    %c8_i32_105 = arith.constant 8 : i32
    %256 = vector.broadcast %c8_i32_105 : i32 to vector<128x1xi32>
    %257 = arith.cmpi slt, %255, %256 : vector<128x1xi32>
    %258 = arith.andi %253, %257 : vector<128x1xi1>
    %c1_i32_106 = arith.constant 1 : i32
    %259 = vector.broadcast %c1_i32_106 : i32 to vector<128x1xi32>
    %260 = arith.addi %17, %259 : vector<128x1xi32>
    %c0_i32_107 = arith.constant 0 : i32
    %261 = vector.broadcast %c0_i32_107 : i32 to vector<128x1xi32>
    %262 = arith.cmpi sge, %260, %261 : vector<128x1xi32>
    %263 = arith.andi %258, %262 : vector<128x1xi1>
    %c1_i32_108 = arith.constant 1 : i32
    %264 = vector.broadcast %c1_i32_108 : i32 to vector<128x1xi32>
    %265 = arith.addi %17, %264 : vector<128x1xi32>
    %c8_i32_109 = arith.constant 8 : i32
    %266 = vector.broadcast %c8_i32_109 : i32 to vector<128x1xi32>
    %267 = arith.cmpi slt, %265, %266 : vector<128x1xi32>
    %268 = arith.andi %263, %267 : vector<128x1xi1>
    %269 = arith.extui %268 : vector<128x1xi1> to vector<128x1xi32>
    %270 = arith.sitofp %269 : vector<128x1xi32> to vector<128x1xf32>
    %271 = vector.broadcast %270 : vector<128x1xf32> to vector<128x128xf32>
    %272 = arith.mulf %249, %271 : vector<128x128xf32>
    %273 = arith.truncf %272 : vector<128x128xf32> to vector<128x128xbf16>
    %c1024 = arith.constant 1024 : index
    %c0_110 = arith.constant 0 : index
    %274 = vector.load %arg4[%c1024, %c0_110] : memref<1152x128xbf16, #tpu.memory_space<vmem>>, vector<128x128xbf16>
    %cst_111 = arith.constant dense<0.000000e+00> : vector<128x128xf32>
    %275 = tpu.matmul %273, %274, %cst_111 {dimension_numbers = #tpu.dot_dimension_numbers<[1], [0], [0], [1], [0, 0, 1, 1], [], []>} : vector<128x128xbf16>, vector<128x128xbf16>, vector<128x128xf32> -> vector<128x128xf32>
    %276 = arith.addf %248, %275 : vector<128x128xf32>
    %cst_112 = arith.constant 0.000000e+00 : f32
    %277 = vector.broadcast %cst_112 : f32 to vector<128x128xf32>
    %278 = arith.maximumf %276, %277 : vector<128x128xf32>
    %279 = arith.truncf %278 : vector<128x128xf32> to vector<128x128xbf16>
    %c0_113 = arith.constant 0 : index
    %c0_114 = arith.constant 0 : index
    %280 = vector.load %arg6[%c0_113, %c0_114] : memref<128x128xbf16, #tpu.memory_space<vmem>>, vector<128x128xbf16>
    tpu.vector_store %arg6[%c0_113, %c0_114], %279 {strides = array<i32>} : memref<128x128xbf16, #tpu.memory_space<vmem>>, vector<128x128xbf16>,
    return
  }
  func.func @transform_0(%arg0: i32) -> (i32, i32) {
    %c0_i32 = arith.constant 0 : i32
    %c0_i32_0 = arith.constant 0 : i32
    %c0_i32_1 = arith.constant 0 : i32
    return %c0_i32, %c0_i32_0 : i32, i32
  }
  func.func @transform_1(%arg0: i32) -> (i32, i32) {
    %c0_i32 = arith.constant 0 : i32
    %c0_i32_0 = arith.constant 0 : i32
    %c0_i32_1 = arith.constant 0 : i32
    return %c0_i32, %c0_i32_0 : i32, i32
  }
  func.func @transform_2(%arg0: i32) -> (i32, i32) {
    %c0_i32 = arith.constant 0 : i32
    %c0_i32_0 = arith.constant 0 : i32
    %c0_i32_1 = arith.constant 0 : i32
    return %c0_i32, %c0_i32_0 : i32, i32
  }
  func.func @transform_3(%arg0: i32) -> (i32, i32) {
    %c0_i32 = arith.constant 0 : i32
    %c0_i32_0 = arith.constant 0 : i32
    %c0_i32_1 = arith.constant 0 : i32
    return %c0_i32, %c0_i32_0 : i32, i32
  }
  func.func @transform_4(%arg0: i32) -> (i32, i32) {
    %c0_i32 = arith.constant 0 : i32
    %c0_i32_0 = arith.constant 0 : i32
    %c0_i32_1 = arith.constant 0 : i32
    return %c0_i32, %c0_i32_0 : i32, i32
  }
  func.func @transform_5(%arg0: i32) -> (i32, i32) {
    %c0_i32 = arith.constant 0 : i32
    %c0_i32_0 = arith.constant 0 : i32
    %c0_i32_1 = arith.constant 0 : i32
    return %c0_i32, %c0_i32_0 : i32, i32
  }
}

module attributes {stable_mosaic.version = 11 : i64} {
  func.func @_block_kernel(%arg0: i32, %arg1: memref<32x1152xbf16, #tpu.memory_space<vmem>>, %arg2: memref<1152x512xbf16, #tpu.memory_space<vmem>>, %arg3: memref<1x512xf32, #tpu.memory_space<vmem>>, %arg4: memref<2304x256xbf16, #tpu.memory_space<vmem>>, %arg5: memref<1x256xf32, #tpu.memory_space<vmem>>, %arg6: memref<8x32xf32, #tpu.memory_space<vmem>>, %arg7: memref<8x256xf32, #tpu.memory_space<vmem>>, %arg8: memref<48x256xf32, #tpu.memory_space<vmem>>) attributes {dimension_semantics = [#tpu.dimension_semantics<arbitrary>], iteration_bounds = array<i64: 1>, scalar_prefetch = 0 : i64, scratch_operands = 1 : i64, tpu.core_type = #tpu.core_type<tc>, window_params = [{pipeline_mode = #tpu.pipeline_mode<synchronous>, transform_indices = @transform_0, window_bounds = array<i64: 32, 1152>}, {pipeline_mode = #tpu.pipeline_mode<synchronous>, transform_indices = @transform_1, window_bounds = array<i64: 1152, 512>}, {pipeline_mode = #tpu.pipeline_mode<synchronous>, transform_indices = @transform_2, window_bounds = array<i64: 1, 512>}, {pipeline_mode = #tpu.pipeline_mode<synchronous>, transform_indices = @transform_3, window_bounds = array<i64: 2304, 256>}, {pipeline_mode = #tpu.pipeline_mode<synchronous>, transform_indices = @transform_4, window_bounds = array<i64: 1, 256>}, {pipeline_mode = #tpu.pipeline_mode<synchronous>, transform_indices = @transform_5, window_bounds = array<i64: 8, 32>}, {pipeline_mode = #tpu.pipeline_mode<synchronous>, transform_indices = @transform_6, window_bounds = array<i64: 8, 256>}]} {
    %c0 = arith.constant 0 : index
    %c0_0 = arith.constant 0 : index
    %0 = vector.load %arg1[%c0, %c0_0] : memref<32x1152xbf16, #tpu.memory_space<vmem>>, vector<32x1152xbf16>
    %c0_1 = arith.constant 0 : index
    %c0_2 = arith.constant 0 : index
    %1 = vector.load %arg2[%c0_1, %c0_2] : memref<1152x512xbf16, #tpu.memory_space<vmem>>, vector<1152x512xbf16>
    %cst = arith.constant dense<0.000000e+00> : vector<32x512xf32>
    %2 = tpu.matmul %0, %1, %cst {dimension_numbers = #tpu.dot_dimension_numbers<[1], [0], [0], [1], [0, 0, 1, 1], [], []>} : vector<32x1152xbf16>, vector<1152x512xbf16>, vector<32x512xf32> -> vector<32x512xf32>
    %c0_3 = arith.constant 0 : index
    %c0_4 = arith.constant 0 : index
    %3 = vector.load %arg3[%c0_3, %c0_4] : memref<1x512xf32, #tpu.memory_space<vmem>>, vector<1x512xf32>
    %4 = vector.broadcast %3 : vector<1x512xf32> to vector<32x512xf32>
    %5 = arith.addf %2, %4 : vector<32x512xf32>
    %6 = vector.extract_strided_slice %5 {offsets = [0, 0], sizes = [32, 256], strides = [1, 1]} : vector<32x512xf32> to vector<32x256xf32>
    %cst_5 = arith.constant 0.000000e+00 : f32
    %7 = vector.broadcast %cst_5 : f32 to vector<32x256xf32>
    %8 = arith.maximumf %6, %7 : vector<32x256xf32>
    %9 = vector.extract_strided_slice %5 {offsets = [0, 256], sizes = [32, 256], strides = [1, 1]} : vector<32x512xf32> to vector<32x256xf32>
    %cst_6 = arith.constant 0.000000e+00 : f32
    %10 = vector.broadcast %cst_6 : f32 to vector<8x256xf32>
    %c0_7 = arith.constant 0 : index
    %c0_8 = arith.constant 0 : index
    %11 = vector.load %arg8[%c0_7, %c0_8] : memref<48x256xf32, #tpu.memory_space<vmem>>, vector<8x256xf32>
    tpu.vector_store %arg8[%c0_7, %c0_8], %10 {strides = array<i32>} : memref<48x256xf32, #tpu.memory_space<vmem>>, vector<8x256xf32>,
    %c8 = arith.constant 8 : index
    %c0_9 = arith.constant 0 : index
    %12 = vector.load %arg8[%c8, %c0_9] : memref<48x256xf32, #tpu.memory_space<vmem>>, vector<32x256xf32>
    tpu.vector_store %arg8[%c8, %c0_9], %8 {strides = array<i32>} : memref<48x256xf32, #tpu.memory_space<vmem>>, vector<32x256xf32>,
    %cst_10 = arith.constant 0.000000e+00 : f32
    %13 = vector.broadcast %cst_10 : f32 to vector<8x256xf32>
    %c40 = arith.constant 40 : index
    %c0_11 = arith.constant 0 : index
    %14 = vector.load %arg8[%c40, %c0_11] : memref<48x256xf32, #tpu.memory_space<vmem>>, vector<8x256xf32>
    tpu.vector_store %arg8[%c40, %c0_11], %13 {strides = array<i32>} : memref<48x256xf32, #tpu.memory_space<vmem>>, vector<8x256xf32>,
    %15 = tpu.iota {dimensions = array<i32: 0>} : vector<32x1xi32>
    %c3_i32 = arith.constant 3 : i32
    %16 = vector.broadcast %c3_i32 : i32 to vector<32x1xi32>
    %17 = arith.andi %15, %16 : vector<32x1xi32>
    %c2_i32 = arith.constant 2 : i32
    %18 = vector.broadcast %c2_i32 : i32 to vector<32x1xi32>
    %19 = arith.shrsi %15, %18 : vector<32x1xi32>
    %c3_i32_12 = arith.constant 3 : i32
    %20 = vector.broadcast %c3_i32_12 : i32 to vector<32x1xi32>
    %21 = arith.andi %19, %20 : vector<32x1xi32>
    %c0_13 = arith.constant 0 : index
    %c0_14 = arith.constant 0 : index
    %22 = vector.load %arg5[%c0_13, %c0_14] : memref<1x256xf32, #tpu.memory_space<vmem>>, vector<1x256xf32>
    %23 = vector.broadcast %22 : vector<1x256xf32> to vector<32x256xf32>
    %24 = arith.addf %9, %23 : vector<32x256xf32>
    %c3 = arith.constant 3 : index
    %c0_15 = arith.constant 0 : index
    %25 = vector.load %arg8[%c3, %c0_15] : memref<48x256xf32, #tpu.memory_space<vmem>>, vector<32x256xf32>
    %c-1_i32 = arith.constant -1 : i32
    %26 = vector.broadcast %c-1_i32 : i32 to vector<32x1xi32>
    %27 = arith.addi %21, %26 : vector<32x1xi32>
    %c0_i32 = arith.constant 0 : i32
    %28 = vector.broadcast %c0_i32 : i32 to vector<32x1xi32>
    %29 = arith.cmpi sge, %27, %28 : vector<32x1xi32>
    %c-1_i32_16 = arith.constant -1 : i32
    %30 = vector.broadcast %c-1_i32_16 : i32 to vector<32x1xi32>
    %31 = arith.addi %21, %30 : vector<32x1xi32>
    %c4_i32 = arith.constant 4 : i32
    %32 = vector.broadcast %c4_i32 : i32 to vector<32x1xi32>
    %33 = arith.cmpi slt, %31, %32 : vector<32x1xi32>
    %34 = arith.andi %29, %33 : vector<32x1xi1>
    %c-1_i32_17 = arith.constant -1 : i32
    %35 = vector.broadcast %c-1_i32_17 : i32 to vector<32x1xi32>
    %36 = arith.addi %17, %35 : vector<32x1xi32>
    %c0_i32_18 = arith.constant 0 : i32
    %37 = vector.broadcast %c0_i32_18 : i32 to vector<32x1xi32>
    %38 = arith.cmpi sge, %36, %37 : vector<32x1xi32>
    %39 = arith.andi %34, %38 : vector<32x1xi1>
    %c-1_i32_19 = arith.constant -1 : i32
    %40 = vector.broadcast %c-1_i32_19 : i32 to vector<32x1xi32>
    %41 = arith.addi %17, %40 : vector<32x1xi32>
    %c4_i32_20 = arith.constant 4 : i32
    %42 = vector.broadcast %c4_i32_20 : i32 to vector<32x1xi32>
    %43 = arith.cmpi slt, %41, %42 : vector<32x1xi32>
    %44 = arith.andi %39, %43 : vector<32x1xi1>
    %45 = arith.extui %44 : vector<32x1xi1> to vector<32x1xi32>
    %46 = arith.sitofp %45 : vector<32x1xi32> to vector<32x1xf32>
    %47 = vector.broadcast %46 : vector<32x1xf32> to vector<32x256xf32>
    %48 = arith.mulf %25, %47 : vector<32x256xf32>
    %49 = arith.truncf %48 : vector<32x256xf32> to vector<32x256xbf16>
    %c0_21 = arith.constant 0 : index
    %c0_22 = arith.constant 0 : index
    %50 = vector.load %arg4[%c0_21, %c0_22] : memref<2304x256xbf16, #tpu.memory_space<vmem>>, vector<256x256xbf16>
    %cst_23 = arith.constant dense<0.000000e+00> : vector<32x256xf32>
    %51 = tpu.matmul %49, %50, %cst_23 {dimension_numbers = #tpu.dot_dimension_numbers<[1], [0], [0], [1], [0, 0, 1, 1], [], []>} : vector<32x256xbf16>, vector<256x256xbf16>, vector<32x256xf32> -> vector<32x256xf32>
    %52 = arith.addf %24, %51 : vector<32x256xf32>
    %c4 = arith.constant 4 : index
    %c0_24 = arith.constant 0 : index
    %53 = vector.load %arg8[%c4, %c0_24] : memref<48x256xf32, #tpu.memory_space<vmem>>, vector<32x256xf32>
    %c-1_i32_25 = arith.constant -1 : i32
    %54 = vector.broadcast %c-1_i32_25 : i32 to vector<32x1xi32>
    %55 = arith.addi %21, %54 : vector<32x1xi32>
    %c0_i32_26 = arith.constant 0 : i32
    %56 = vector.broadcast %c0_i32_26 : i32 to vector<32x1xi32>
    %57 = arith.cmpi sge, %55, %56 : vector<32x1xi32>
    %c-1_i32_27 = arith.constant -1 : i32
    %58 = vector.broadcast %c-1_i32_27 : i32 to vector<32x1xi32>
    %59 = arith.addi %21, %58 : vector<32x1xi32>
    %c4_i32_28 = arith.constant 4 : i32
    %60 = vector.broadcast %c4_i32_28 : i32 to vector<32x1xi32>
    %61 = arith.cmpi slt, %59, %60 : vector<32x1xi32>
    %62 = arith.andi %57, %61 : vector<32x1xi1>
    %c0_i32_29 = arith.constant 0 : i32
    %63 = vector.broadcast %c0_i32_29 : i32 to vector<32x1xi32>
    %64 = arith.addi %17, %63 : vector<32x1xi32>
    %c0_i32_30 = arith.constant 0 : i32
    %65 = vector.broadcast %c0_i32_30 : i32 to vector<32x1xi32>
    %66 = arith.cmpi sge, %64, %65 : vector<32x1xi32>
    %67 = arith.andi %62, %66 : vector<32x1xi1>
    %c0_i32_31 = arith.constant 0 : i32
    %68 = vector.broadcast %c0_i32_31 : i32 to vector<32x1xi32>
    %69 = arith.addi %17, %68 : vector<32x1xi32>
    %c4_i32_32 = arith.constant 4 : i32
    %70 = vector.broadcast %c4_i32_32 : i32 to vector<32x1xi32>
    %71 = arith.cmpi slt, %69, %70 : vector<32x1xi32>
    %72 = arith.andi %67, %71 : vector<32x1xi1>
    %73 = arith.extui %72 : vector<32x1xi1> to vector<32x1xi32>
    %74 = arith.sitofp %73 : vector<32x1xi32> to vector<32x1xf32>
    %75 = vector.broadcast %74 : vector<32x1xf32> to vector<32x256xf32>
    %76 = arith.mulf %53, %75 : vector<32x256xf32>
    %77 = arith.truncf %76 : vector<32x256xf32> to vector<32x256xbf16>
    %c256 = arith.constant 256 : index
    %c0_33 = arith.constant 0 : index
    %78 = vector.load %arg4[%c256, %c0_33] : memref<2304x256xbf16, #tpu.memory_space<vmem>>, vector<256x256xbf16>
    %cst_34 = arith.constant dense<0.000000e+00> : vector<32x256xf32>
    %79 = tpu.matmul %77, %78, %cst_34 {dimension_numbers = #tpu.dot_dimension_numbers<[1], [0], [0], [1], [0, 0, 1, 1], [], []>} : vector<32x256xbf16>, vector<256x256xbf16>, vector<32x256xf32> -> vector<32x256xf32>
    %80 = arith.addf %52, %79 : vector<32x256xf32>
    %c5 = arith.constant 5 : index
    %c0_35 = arith.constant 0 : index
    %81 = vector.load %arg8[%c5, %c0_35] : memref<48x256xf32, #tpu.memory_space<vmem>>, vector<32x256xf32>
    %c-1_i32_36 = arith.constant -1 : i32
    %82 = vector.broadcast %c-1_i32_36 : i32 to vector<32x1xi32>
    %83 = arith.addi %21, %82 : vector<32x1xi32>
    %c0_i32_37 = arith.constant 0 : i32
    %84 = vector.broadcast %c0_i32_37 : i32 to vector<32x1xi32>
    %85 = arith.cmpi sge, %83, %84 : vector<32x1xi32>
    %c-1_i32_38 = arith.constant -1 : i32
    %86 = vector.broadcast %c-1_i32_38 : i32 to vector<32x1xi32>
    %87 = arith.addi %21, %86 : vector<32x1xi32>
    %c4_i32_39 = arith.constant 4 : i32
    %88 = vector.broadcast %c4_i32_39 : i32 to vector<32x1xi32>
    %89 = arith.cmpi slt, %87, %88 : vector<32x1xi32>
    %90 = arith.andi %85, %89 : vector<32x1xi1>
    %c1_i32 = arith.constant 1 : i32
    %91 = vector.broadcast %c1_i32 : i32 to vector<32x1xi32>
    %92 = arith.addi %17, %91 : vector<32x1xi32>
    %c0_i32_40 = arith.constant 0 : i32
    %93 = vector.broadcast %c0_i32_40 : i32 to vector<32x1xi32>
    %94 = arith.cmpi sge, %92, %93 : vector<32x1xi32>
    %95 = arith.andi %90, %94 : vector<32x1xi1>
    %c1_i32_41 = arith.constant 1 : i32
    %96 = vector.broadcast %c1_i32_41 : i32 to vector<32x1xi32>
    %97 = arith.addi %17, %96 : vector<32x1xi32>
    %c4_i32_42 = arith.constant 4 : i32
    %98 = vector.broadcast %c4_i32_42 : i32 to vector<32x1xi32>
    %99 = arith.cmpi slt, %97, %98 : vector<32x1xi32>
    %100 = arith.andi %95, %99 : vector<32x1xi1>
    %101 = arith.extui %100 : vector<32x1xi1> to vector<32x1xi32>
    %102 = arith.sitofp %101 : vector<32x1xi32> to vector<32x1xf32>
    %103 = vector.broadcast %102 : vector<32x1xf32> to vector<32x256xf32>
    %104 = arith.mulf %81, %103 : vector<32x256xf32>
    %105 = arith.truncf %104 : vector<32x256xf32> to vector<32x256xbf16>
    %c512 = arith.constant 512 : index
    %c0_43 = arith.constant 0 : index
    %106 = vector.load %arg4[%c512, %c0_43] : memref<2304x256xbf16, #tpu.memory_space<vmem>>, vector<256x256xbf16>
    %cst_44 = arith.constant dense<0.000000e+00> : vector<32x256xf32>
    %107 = tpu.matmul %105, %106, %cst_44 {dimension_numbers = #tpu.dot_dimension_numbers<[1], [0], [0], [1], [0, 0, 1, 1], [], []>} : vector<32x256xbf16>, vector<256x256xbf16>, vector<32x256xf32> -> vector<32x256xf32>
    %108 = arith.addf %80, %107 : vector<32x256xf32>
    %c7 = arith.constant 7 : index
    %c0_45 = arith.constant 0 : index
    %109 = vector.load %arg8[%c7, %c0_45] : memref<48x256xf32, #tpu.memory_space<vmem>>, vector<32x256xf32>
    %c0_i32_46 = arith.constant 0 : i32
    %110 = vector.broadcast %c0_i32_46 : i32 to vector<32x1xi32>
    %111 = arith.addi %21, %110 : vector<32x1xi32>
    %c0_i32_47 = arith.constant 0 : i32
    %112 = vector.broadcast %c0_i32_47 : i32 to vector<32x1xi32>
    %113 = arith.cmpi sge, %111, %112 : vector<32x1xi32>
    %c0_i32_48 = arith.constant 0 : i32
    %114 = vector.broadcast %c0_i32_48 : i32 to vector<32x1xi32>
    %115 = arith.addi %21, %114 : vector<32x1xi32>
    %c4_i32_49 = arith.constant 4 : i32
    %116 = vector.broadcast %c4_i32_49 : i32 to vector<32x1xi32>
    %117 = arith.cmpi slt, %115, %116 : vector<32x1xi32>
    %118 = arith.andi %113, %117 : vector<32x1xi1>
    %c-1_i32_50 = arith.constant -1 : i32
    %119 = vector.broadcast %c-1_i32_50 : i32 to vector<32x1xi32>
    %120 = arith.addi %17, %119 : vector<32x1xi32>
    %c0_i32_51 = arith.constant 0 : i32
    %121 = vector.broadcast %c0_i32_51 : i32 to vector<32x1xi32>
    %122 = arith.cmpi sge, %120, %121 : vector<32x1xi32>
    %123 = arith.andi %118, %122 : vector<32x1xi1>
    %c-1_i32_52 = arith.constant -1 : i32
    %124 = vector.broadcast %c-1_i32_52 : i32 to vector<32x1xi32>
    %125 = arith.addi %17, %124 : vector<32x1xi32>
    %c4_i32_53 = arith.constant 4 : i32
    %126 = vector.broadcast %c4_i32_53 : i32 to vector<32x1xi32>
    %127 = arith.cmpi slt, %125, %126 : vector<32x1xi32>
    %128 = arith.andi %123, %127 : vector<32x1xi1>
    %129 = arith.extui %128 : vector<32x1xi1> to vector<32x1xi32>
    %130 = arith.sitofp %129 : vector<32x1xi32> to vector<32x1xf32>
    %131 = vector.broadcast %130 : vector<32x1xf32> to vector<32x256xf32>
    %132 = arith.mulf %109, %131 : vector<32x256xf32>
    %133 = arith.truncf %132 : vector<32x256xf32> to vector<32x256xbf16>
    %c768 = arith.constant 768 : index
    %c0_54 = arith.constant 0 : index
    %134 = vector.load %arg4[%c768, %c0_54] : memref<2304x256xbf16, #tpu.memory_space<vmem>>, vector<256x256xbf16>
    %cst_55 = arith.constant dense<0.000000e+00> : vector<32x256xf32>
    %135 = tpu.matmul %133, %134, %cst_55 {dimension_numbers = #tpu.dot_dimension_numbers<[1], [0], [0], [1], [0, 0, 1, 1], [], []>} : vector<32x256xbf16>, vector<256x256xbf16>, vector<32x256xf32> -> vector<32x256xf32>
    %136 = arith.addf %108, %135 : vector<32x256xf32>
    %c8_56 = arith.constant 8 : index
    %c0_57 = arith.constant 0 : index
    %137 = vector.load %arg8[%c8_56, %c0_57] : memref<48x256xf32, #tpu.memory_space<vmem>>, vector<32x256xf32>
    %c0_i32_58 = arith.constant 0 : i32
    %138 = vector.broadcast %c0_i32_58 : i32 to vector<32x1xi32>
    %139 = arith.addi %21, %138 : vector<32x1xi32>
    %c0_i32_59 = arith.constant 0 : i32
    %140 = vector.broadcast %c0_i32_59 : i32 to vector<32x1xi32>
    %141 = arith.cmpi sge, %139, %140 : vector<32x1xi32>
    %c0_i32_60 = arith.constant 0 : i32
    %142 = vector.broadcast %c0_i32_60 : i32 to vector<32x1xi32>
    %143 = arith.addi %21, %142 : vector<32x1xi32>
    %c4_i32_61 = arith.constant 4 : i32
    %144 = vector.broadcast %c4_i32_61 : i32 to vector<32x1xi32>
    %145 = arith.cmpi slt, %143, %144 : vector<32x1xi32>
    %146 = arith.andi %141, %145 : vector<32x1xi1>
    %c0_i32_62 = arith.constant 0 : i32
    %147 = vector.broadcast %c0_i32_62 : i32 to vector<32x1xi32>
    %148 = arith.addi %17, %147 : vector<32x1xi32>
    %c0_i32_63 = arith.constant 0 : i32
    %149 = vector.broadcast %c0_i32_63 : i32 to vector<32x1xi32>
    %150 = arith.cmpi sge, %148, %149 : vector<32x1xi32>
    %151 = arith.andi %146, %150 : vector<32x1xi1>
    %c0_i32_64 = arith.constant 0 : i32
    %152 = vector.broadcast %c0_i32_64 : i32 to vector<32x1xi32>
    %153 = arith.addi %17, %152 : vector<32x1xi32>
    %c4_i32_65 = arith.constant 4 : i32
    %154 = vector.broadcast %c4_i32_65 : i32 to vector<32x1xi32>
    %155 = arith.cmpi slt, %153, %154 : vector<32x1xi32>
    %156 = arith.andi %151, %155 : vector<32x1xi1>
    %157 = arith.extui %156 : vector<32x1xi1> to vector<32x1xi32>
    %158 = arith.sitofp %157 : vector<32x1xi32> to vector<32x1xf32>
    %159 = vector.broadcast %158 : vector<32x1xf32> to vector<32x256xf32>
    %160 = arith.mulf %137, %159 : vector<32x256xf32>
    %161 = arith.truncf %160 : vector<32x256xf32> to vector<32x256xbf16>
    %c1024 = arith.constant 1024 : index
    %c0_66 = arith.constant 0 : index
    %162 = vector.load %arg4[%c1024, %c0_66] : memref<2304x256xbf16, #tpu.memory_space<vmem>>, vector<256x256xbf16>
    %cst_67 = arith.constant dense<0.000000e+00> : vector<32x256xf32>
    %163 = tpu.matmul %161, %162, %cst_67 {dimension_numbers = #tpu.dot_dimension_numbers<[1], [0], [0], [1], [0, 0, 1, 1], [], []>} : vector<32x256xbf16>, vector<256x256xbf16>, vector<32x256xf32> -> vector<32x256xf32>
    %164 = arith.addf %136, %163 : vector<32x256xf32>
    %c9 = arith.constant 9 : index
    %c0_68 = arith.constant 0 : index
    %165 = vector.load %arg8[%c9, %c0_68] : memref<48x256xf32, #tpu.memory_space<vmem>>, vector<32x256xf32>
    %c0_i32_69 = arith.constant 0 : i32
    %166 = vector.broadcast %c0_i32_69 : i32 to vector<32x1xi32>
    %167 = arith.addi %21, %166 : vector<32x1xi32>
    %c0_i32_70 = arith.constant 0 : i32
    %168 = vector.broadcast %c0_i32_70 : i32 to vector<32x1xi32>
    %169 = arith.cmpi sge, %167, %168 : vector<32x1xi32>
    %c0_i32_71 = arith.constant 0 : i32
    %170 = vector.broadcast %c0_i32_71 : i32 to vector<32x1xi32>
    %171 = arith.addi %21, %170 : vector<32x1xi32>
    %c4_i32_72 = arith.constant 4 : i32
    %172 = vector.broadcast %c4_i32_72 : i32 to vector<32x1xi32>
    %173 = arith.cmpi slt, %171, %172 : vector<32x1xi32>
    %174 = arith.andi %169, %173 : vector<32x1xi1>
    %c1_i32_73 = arith.constant 1 : i32
    %175 = vector.broadcast %c1_i32_73 : i32 to vector<32x1xi32>
    %176 = arith.addi %17, %175 : vector<32x1xi32>
    %c0_i32_74 = arith.constant 0 : i32
    %177 = vector.broadcast %c0_i32_74 : i32 to vector<32x1xi32>
    %178 = arith.cmpi sge, %176, %177 : vector<32x1xi32>
    %179 = arith.andi %174, %178 : vector<32x1xi1>
    %c1_i32_75 = arith.constant 1 : i32
    %180 = vector.broadcast %c1_i32_75 : i32 to vector<32x1xi32>
    %181 = arith.addi %17, %180 : vector<32x1xi32>
    %c4_i32_76 = arith.constant 4 : i32
    %182 = vector.broadcast %c4_i32_76 : i32 to vector<32x1xi32>
    %183 = arith.cmpi slt, %181, %182 : vector<32x1xi32>
    %184 = arith.andi %179, %183 : vector<32x1xi1>
    %185 = arith.extui %184 : vector<32x1xi1> to vector<32x1xi32>
    %186 = arith.sitofp %185 : vector<32x1xi32> to vector<32x1xf32>
    %187 = vector.broadcast %186 : vector<32x1xf32> to vector<32x256xf32>
    %188 = arith.mulf %165, %187 : vector<32x256xf32>
    %189 = arith.truncf %188 : vector<32x256xf32> to vector<32x256xbf16>
    %c1280 = arith.constant 1280 : index
    %c0_77 = arith.constant 0 : index
    %190 = vector.load %arg4[%c1280, %c0_77] : memref<2304x256xbf16, #tpu.memory_space<vmem>>, vector<256x256xbf16>
    %cst_78 = arith.constant dense<0.000000e+00> : vector<32x256xf32>
    %191 = tpu.matmul %189, %190, %cst_78 {dimension_numbers = #tpu.dot_dimension_numbers<[1], [0], [0], [1], [0, 0, 1, 1], [], []>} : vector<32x256xbf16>, vector<256x256xbf16>, vector<32x256xf32> -> vector<32x256xf32>
    %192 = arith.addf %164, %191 : vector<32x256xf32>
    %c11 = arith.constant 11 : index
    %c0_79 = arith.constant 0 : index
    %193 = vector.load %arg8[%c11, %c0_79] : memref<48x256xf32, #tpu.memory_space<vmem>>, vector<32x256xf32>
    %c1_i32_80 = arith.constant 1 : i32
    %194 = vector.broadcast %c1_i32_80 : i32 to vector<32x1xi32>
    %195 = arith.addi %21, %194 : vector<32x1xi32>
    %c0_i32_81 = arith.constant 0 : i32
    %196 = vector.broadcast %c0_i32_81 : i32 to vector<32x1xi32>
    %197 = arith.cmpi sge, %195, %196 : vector<32x1xi32>
    %c1_i32_82 = arith.constant 1 : i32
    %198 = vector.broadcast %c1_i32_82 : i32 to vector<32x1xi32>
    %199 = arith.addi %21, %198 : vector<32x1xi32>
    %c4_i32_83 = arith.constant 4 : i32
    %200 = vector.broadcast %c4_i32_83 : i32 to vector<32x1xi32>
    %201 = arith.cmpi slt, %199, %200 : vector<32x1xi32>
    %202 = arith.andi %197, %201 : vector<32x1xi1>
    %c-1_i32_84 = arith.constant -1 : i32
    %203 = vector.broadcast %c-1_i32_84 : i32 to vector<32x1xi32>
    %204 = arith.addi %17, %203 : vector<32x1xi32>
    %c0_i32_85 = arith.constant 0 : i32
    %205 = vector.broadcast %c0_i32_85 : i32 to vector<32x1xi32>
    %206 = arith.cmpi sge, %204, %205 : vector<32x1xi32>
    %207 = arith.andi %202, %206 : vector<32x1xi1>
    %c-1_i32_86 = arith.constant -1 : i32
    %208 = vector.broadcast %c-1_i32_86 : i32 to vector<32x1xi32>
    %209 = arith.addi %17, %208 : vector<32x1xi32>
    %c4_i32_87 = arith.constant 4 : i32
    %210 = vector.broadcast %c4_i32_87 : i32 to vector<32x1xi32>
    %211 = arith.cmpi slt, %209, %210 : vector<32x1xi32>
    %212 = arith.andi %207, %211 : vector<32x1xi1>
    %213 = arith.extui %212 : vector<32x1xi1> to vector<32x1xi32>
    %214 = arith.sitofp %213 : vector<32x1xi32> to vector<32x1xf32>
    %215 = vector.broadcast %214 : vector<32x1xf32> to vector<32x256xf32>
    %216 = arith.mulf %193, %215 : vector<32x256xf32>
    %217 = arith.truncf %216 : vector<32x256xf32> to vector<32x256xbf16>
    %c1536 = arith.constant 1536 : index
    %c0_88 = arith.constant 0 : index
    %218 = vector.load %arg4[%c1536, %c0_88] : memref<2304x256xbf16, #tpu.memory_space<vmem>>, vector<256x256xbf16>
    %cst_89 = arith.constant dense<0.000000e+00> : vector<32x256xf32>
    %219 = tpu.matmul %217, %218, %cst_89 {dimension_numbers = #tpu.dot_dimension_numbers<[1], [0], [0], [1], [0, 0, 1, 1], [], []>} : vector<32x256xbf16>, vector<256x256xbf16>, vector<32x256xf32> -> vector<32x256xf32>
    %220 = arith.addf %192, %219 : vector<32x256xf32>
    %c12 = arith.constant 12 : index
    %c0_90 = arith.constant 0 : index
    %221 = vector.load %arg8[%c12, %c0_90] : memref<48x256xf32, #tpu.memory_space<vmem>>, vector<32x256xf32>
    %c1_i32_91 = arith.constant 1 : i32
    %222 = vector.broadcast %c1_i32_91 : i32 to vector<32x1xi32>
    %223 = arith.addi %21, %222 : vector<32x1xi32>
    %c0_i32_92 = arith.constant 0 : i32
    %224 = vector.broadcast %c0_i32_92 : i32 to vector<32x1xi32>
    %225 = arith.cmpi sge, %223, %224 : vector<32x1xi32>
    %c1_i32_93 = arith.constant 1 : i32
    %226 = vector.broadcast %c1_i32_93 : i32 to vector<32x1xi32>
    %227 = arith.addi %21, %226 : vector<32x1xi32>
    %c4_i32_94 = arith.constant 4 : i32
    %228 = vector.broadcast %c4_i32_94 : i32 to vector<32x1xi32>
    %229 = arith.cmpi slt, %227, %228 : vector<32x1xi32>
    %230 = arith.andi %225, %229 : vector<32x1xi1>
    %c0_i32_95 = arith.constant 0 : i32
    %231 = vector.broadcast %c0_i32_95 : i32 to vector<32x1xi32>
    %232 = arith.addi %17, %231 : vector<32x1xi32>
    %c0_i32_96 = arith.constant 0 : i32
    %233 = vector.broadcast %c0_i32_96 : i32 to vector<32x1xi32>
    %234 = arith.cmpi sge, %232, %233 : vector<32x1xi32>
    %235 = arith.andi %230, %234 : vector<32x1xi1>
    %c0_i32_97 = arith.constant 0 : i32
    %236 = vector.broadcast %c0_i32_97 : i32 to vector<32x1xi32>
    %237 = arith.addi %17, %236 : vector<32x1xi32>
    %c4_i32_98 = arith.constant 4 : i32
    %238 = vector.broadcast %c4_i32_98 : i32 to vector<32x1xi32>
    %239 = arith.cmpi slt, %237, %238 : vector<32x1xi32>
    %240 = arith.andi %235, %239 : vector<32x1xi1>
    %241 = arith.extui %240 : vector<32x1xi1> to vector<32x1xi32>
    %242 = arith.sitofp %241 : vector<32x1xi32> to vector<32x1xf32>
    %243 = vector.broadcast %242 : vector<32x1xf32> to vector<32x256xf32>
    %244 = arith.mulf %221, %243 : vector<32x256xf32>
    %245 = arith.truncf %244 : vector<32x256xf32> to vector<32x256xbf16>
    %c1792 = arith.constant 1792 : index
    %c0_99 = arith.constant 0 : index
    %246 = vector.load %arg4[%c1792, %c0_99] : memref<2304x256xbf16, #tpu.memory_space<vmem>>, vector<256x256xbf16>
    %cst_100 = arith.constant dense<0.000000e+00> : vector<32x256xf32>
    %247 = tpu.matmul %245, %246, %cst_100 {dimension_numbers = #tpu.dot_dimension_numbers<[1], [0], [0], [1], [0, 0, 1, 1], [], []>} : vector<32x256xbf16>, vector<256x256xbf16>, vector<32x256xf32> -> vector<32x256xf32>
    %248 = arith.addf %220, %247 : vector<32x256xf32>
    %c13 = arith.constant 13 : index
    %c0_101 = arith.constant 0 : index
    %249 = vector.load %arg8[%c13, %c0_101] : memref<48x256xf32, #tpu.memory_space<vmem>>, vector<32x256xf32>
    %c1_i32_102 = arith.constant 1 : i32
    %250 = vector.broadcast %c1_i32_102 : i32 to vector<32x1xi32>
    %251 = arith.addi %21, %250 : vector<32x1xi32>
    %c0_i32_103 = arith.constant 0 : i32
    %252 = vector.broadcast %c0_i32_103 : i32 to vector<32x1xi32>
    %253 = arith.cmpi sge, %251, %252 : vector<32x1xi32>
    %c1_i32_104 = arith.constant 1 : i32
    %254 = vector.broadcast %c1_i32_104 : i32 to vector<32x1xi32>
    %255 = arith.addi %21, %254 : vector<32x1xi32>
    %c4_i32_105 = arith.constant 4 : i32
    %256 = vector.broadcast %c4_i32_105 : i32 to vector<32x1xi32>
    %257 = arith.cmpi slt, %255, %256 : vector<32x1xi32>
    %258 = arith.andi %253, %257 : vector<32x1xi1>
    %c1_i32_106 = arith.constant 1 : i32
    %259 = vector.broadcast %c1_i32_106 : i32 to vector<32x1xi32>
    %260 = arith.addi %17, %259 : vector<32x1xi32>
    %c0_i32_107 = arith.constant 0 : i32
    %261 = vector.broadcast %c0_i32_107 : i32 to vector<32x1xi32>
    %262 = arith.cmpi sge, %260, %261 : vector<32x1xi32>
    %263 = arith.andi %258, %262 : vector<32x1xi1>
    %c1_i32_108 = arith.constant 1 : i32
    %264 = vector.broadcast %c1_i32_108 : i32 to vector<32x1xi32>
    %265 = arith.addi %17, %264 : vector<32x1xi32>
    %c4_i32_109 = arith.constant 4 : i32
    %266 = vector.broadcast %c4_i32_109 : i32 to vector<32x1xi32>
    %267 = arith.cmpi slt, %265, %266 : vector<32x1xi32>
    %268 = arith.andi %263, %267 : vector<32x1xi1>
    %269 = arith.extui %268 : vector<32x1xi1> to vector<32x1xi32>
    %270 = arith.sitofp %269 : vector<32x1xi32> to vector<32x1xf32>
    %271 = vector.broadcast %270 : vector<32x1xf32> to vector<32x256xf32>
    %272 = arith.mulf %249, %271 : vector<32x256xf32>
    %273 = arith.truncf %272 : vector<32x256xf32> to vector<32x256xbf16>
    %c2048 = arith.constant 2048 : index
    %c0_110 = arith.constant 0 : index
    %274 = vector.load %arg4[%c2048, %c0_110] : memref<2304x256xbf16, #tpu.memory_space<vmem>>, vector<256x256xbf16>
    %cst_111 = arith.constant dense<0.000000e+00> : vector<32x256xf32>
    %275 = tpu.matmul %273, %274, %cst_111 {dimension_numbers = #tpu.dot_dimension_numbers<[1], [0], [0], [1], [0, 0, 1, 1], [], []>} : vector<32x256xbf16>, vector<256x256xbf16>, vector<32x256xf32> -> vector<32x256xf32>
    %276 = arith.addf %248, %275 : vector<32x256xf32>
    %cst_112 = arith.constant 0.000000e+00 : f32
    %277 = vector.broadcast %cst_112 : f32 to vector<32x256xf32>
    %278 = arith.maximumf %276, %277 : vector<32x256xf32>
    %c0_113 = arith.constant 0 : index
    %c0_114 = arith.constant 0 : index
    %279 = vector.load %arg6[%c0_113, %c0_114] : memref<8x32xf32, #tpu.memory_space<vmem>>, vector<8x32xf32>
    %cst_115 = arith.constant dense<0.000000e+00> : vector<8x256xf32>
    %280 = tpu.matmul %279, %278, %cst_115 {dimension_numbers = #tpu.dot_dimension_numbers<[1], [0], [0], [1], [0, 0, 1, 1], [], []>} : vector<8x32xf32>, vector<32x256xf32>, vector<8x256xf32> -> vector<8x256xf32>
    %c0_116 = arith.constant 0 : index
    %c0_117 = arith.constant 0 : index
    %281 = vector.load %arg7[%c0_116, %c0_117] : memref<8x256xf32, #tpu.memory_space<vmem>>, vector<8x256xf32>
    tpu.vector_store %arg7[%c0_116, %c0_117], %280 {strides = array<i32>} : memref<8x256xf32, #tpu.memory_space<vmem>>, vector<8x256xf32>,
    return
  }
  func.func @transform_0(%arg0: i32) -> (i32, i32) {
    %c0_i32 = arith.constant 0 : i32
    %c0_i32_0 = arith.constant 0 : i32
    %c0_i32_1 = arith.constant 0 : i32
    return %c0_i32, %c0_i32_0 : i32, i32
  }
  func.func @transform_1(%arg0: i32) -> (i32, i32) {
    %c0_i32 = arith.constant 0 : i32
    %c0_i32_0 = arith.constant 0 : i32
    %c0_i32_1 = arith.constant 0 : i32
    return %c0_i32, %c0_i32_0 : i32, i32
  }
  func.func @transform_2(%arg0: i32) -> (i32, i32) {
    %c0_i32 = arith.constant 0 : i32
    %c0_i32_0 = arith.constant 0 : i32
    %c0_i32_1 = arith.constant 0 : i32
    return %c0_i32, %c0_i32_0 : i32, i32
  }
  func.func @transform_3(%arg0: i32) -> (i32, i32) {
    %c0_i32 = arith.constant 0 : i32
    %c0_i32_0 = arith.constant 0 : i32
    %c0_i32_1 = arith.constant 0 : i32
    return %c0_i32, %c0_i32_0 : i32, i32
  }
  func.func @transform_4(%arg0: i32) -> (i32, i32) {
    %c0_i32 = arith.constant 0 : i32
    %c0_i32_0 = arith.constant 0 : i32
    %c0_i32_1 = arith.constant 0 : i32
    return %c0_i32, %c0_i32_0 : i32, i32
  }
  func.func @transform_5(%arg0: i32) -> (i32, i32) {
    %c0_i32 = arith.constant 0 : i32
    %c0_i32_0 = arith.constant 0 : i32
    %c0_i32_1 = arith.constant 0 : i32
    return %c0_i32, %c0_i32_0 : i32, i32
  }
  func.func @transform_6(%arg0: i32) -> (i32, i32) {
    %c0_i32 = arith.constant 0 : i32
    %c0_i32_0 = arith.constant 0 : i32
    %c0_i32_1 = arith.constant 0 : i32
    return %c0_i32, %c0_i32_0 : i32, i32
  }
}

</mosaic_0001>

<llo_original>
// kernel: resnet_forward.3
$region0: #{resnet_forward.3}
  #allocation0 [shape = 'u32[]', space=smem, size = 0x4, offset = 0x4, fixed_abs, tag = 'smem constant byte address 0x4 - core index']
  #allocation1 [shape = 'u32[72,128]{1,0:T(1,128)}', space=vmem, size = 0x9000, scoped, tag = 'internal scratch']
  %s0 = inlined_call_operand.vmem [shape: bf16[512,147], index: 0, kind: input, shape index: {}]
  %s1 = inlined_call_operand.vmem [shape: bf16[147,128], index: 1, kind: input, shape index: {}]
  %s2 = inlined_call_operand.vmem [shape: f32[1,128], index: 2, kind: input, shape index: {}]
  %s3 = inlined_call_operand.vmem [shape: bf16[512,128], index: 3, kind: output, shape index: {}]
  %s4 = sld [smem:[#allocation0]]
  $region22: #{resnet_forward.3} parent=0
    _
  %s6 = ssub.s32 1, %s4
  %s7 = scalar_select 0, %s6, %s4
  // Predicated region
  $region2: #{resnet_forward.3} parent=0 // pred_check
    _
  $region3: #{resnet_forward.3} parent=0 // pred_check_branch
    %9 = sbr.rel (0) target = $region5
  $region4: #{resnet_forward.3} parent=0 // pred_region
    _
  $region5: #{resnet_forward.3} parent=0 // pred_fallthru
    _
  // Predicated region
  $region6: #{resnet_forward.3} parent=0 // pred_check
    _
  $region7: #{resnet_forward.3} parent=0 // pred_check_branch
    %11 = sbr.rel (0) target = $region9
  $region8: #{resnet_forward.3} parent=0 // pred_region
    _
  $region9: #{resnet_forward.3} parent=0 // pred_fallthru
    _
  // Predicated region
  $region10: #{resnet_forward.3} parent=0 // pred_check
    _
  $region11: #{resnet_forward.3} parent=0 // pred_check_branch
    %13 = sbr.rel (0) target = $region13
  $region12: #{resnet_forward.3} parent=0 // pred_region
    _
  $region13: #{resnet_forward.3} parent=0 // pred_fallthru
    _
  %v15 = vld [vmem:[%s0] sm:$0xff]
  %v16 = vld [vmem:[%s0 + $0x8] sm:$0xff]
  %v17 = vld [vmem:[%s0 + $0x10] sm:$0xff]
  %v18 = vld [vmem:[%s0 + $0x18] sm:$0xff]
  %v19 = vld [vmem:[%s0 + $0x20] sm:$0xff]
  %v20 = vld [vmem:[%s0 + $0x28] sm:$0xff]
  %v21 = vld [vmem:[%s0 + $0x30] sm:$0xff]
  %v22 = vld [vmem:[%s0 + $0x38] sm:$0xff]
  %v23 = vld [vmem:[%s0 + $0x40] sm:$0xff]
  %v24 = vld [vmem:[%s0 + $0x48] sm:$0xff]
  %v25 = vld [vmem:[%s0 + $0x50] sm:$0xff]
  %v26 = vld [vmem:[%s0 + $0x58] sm:$0xff]
  %v27 = vld [vmem:[%s0 + $0x60] sm:$0xff]
  %v28 = vld [vmem:[%s0 + $0x68] sm:$0xff]
  %v29 = vld [vmem:[%s0 + $0x70] sm:$0xff]
  %v30 = vld [vmem:[%s0 + $0x78] sm:$0xff]
  %v31 = vld [vmem:[%s0 + $0x80] sm:$0xff]
  %v32 = vld [vmem:[%s0 + $0x88] sm:$0xff]
  %v33 = vld [vmem:[%s0 + $0x90] sm:$0xff]
  %v34 = vld [vmem:[%s0 + $0x98] sm:$0xff]
  %v35 = vld [vmem:[%s0 + $0xa0] sm:$0xff]
  %v36 = vld [vmem:[%s0 + $0xa8] sm:$0xff]
  %v37 = vld [vmem:[%s0 + $0xb0] sm:$0xff]
  %v38 = vld [vmem:[%s0 + $0xb8] sm:$0xff]
  %v39 = vld [vmem:[%s0 + $0xc0] sm:$0xff]
  %v40 = vld [vmem:[%s0 + $0xc8] sm:$0xff]
  %v41 = vld [vmem:[%s0 + $0xd0] sm:$0xff]
  %v42 = vld [vmem:[%s0 + $0xd8] sm:$0xff]
  %v43 = vld [vmem:[%s0 + $0xe0] sm:$0xff]
  %v44 = vld [vmem:[%s0 + $0xe8] sm:$0xff]
  %v45 = vld [vmem:[%s0 + $0xf0] sm:$0xff]
  %v46 = vld [vmem:[%s0 + $0xf8] sm:$0xff]
  %v47 = vld [vmem:[%s0 + $0x100] sm:$0xff]
  %v48 = vld [vmem:[%s0 + $0x108] sm:$0xff]
  %v49 = vld [vmem:[%s0 + $0x110] sm:$0xff]
  %v50 = vld [vmem:[%s0 + $0x118] sm:$0xff]
  %v51 = vld [vmem:[%s0 + $0x120] sm:$0xff]
  %v52 = vld [vmem:[%s0 + $0x128] sm:$0xff]
  %v53 = vld [vmem:[%s0 + $0x130] sm:$0xff]
  %v54 = vld [vmem:[%s0 + $0x138] sm:$0xff]
  %v55 = vld [vmem:[%s0 + $0x140] sm:$0xff]
  %v56 = vld [vmem:[%s0 + $0x148] sm:$0xff]
  %v57 = vld [vmem:[%s0 + $0x150] sm:$0xff]
  %v58 = vld [vmem:[%s0 + $0x158] sm:$0xff]
  %v59 = vld [vmem:[%s0 + $0x160] sm:$0xff]
  %v60 = vld [vmem:[%s0 + $0x168] sm:$0xff]
  %v61 = vld [vmem:[%s0 + $0x170] sm:$0xff]
  %v62 = vld [vmem:[%s0 + $0x178] sm:$0xff]
  %v63 = vld [vmem:[%s0 + $0x180] sm:$0xff]
  %v64 = vld [vmem:[%s0 + $0x188] sm:$0xff]
  %v65 = vld [vmem:[%s0 + $0x190] sm:$0xff]
  %v66 = vld [vmem:[%s0 + $0x198] sm:$0xff]
  %v67 = vld [vmem:[%s0 + $0x1a0] sm:$0xff]
  %v68 = vld [vmem:[%s0 + $0x1a8] sm:$0xff]
  %v69 = vld [vmem:[%s0 + $0x1b0] sm:$0xff]
  %v70 = vld [vmem:[%s0 + $0x1b8] sm:$0xff]
  %v71 = vld [vmem:[%s0 + $0x1c0] sm:$0xff]
  %v72 = vld [vmem:[%s0 + $0x1c8] sm:$0xff]
  %v73 = vld [vmem:[%s0 + $0x1d0] sm:$0xff]
  %v74 = vld [vmem:[%s0 + $0x1d8] sm:$0xff]
  %v75 = vld [vmem:[%s0 + $0x1e0] sm:$0xff]
  %v76 = vld [vmem:[%s0 + $0x1e8] sm:$0xff]
  %v77 = vld [vmem:[%s0 + $0x1f0] sm:$0xff]
  %v78 = vld [vmem:[%s0 + $0x1f8] sm:$0xff]
  %v79 = vld [vmem:[%s1] sm:$0xf]
  %v80 = vld [vmem:[%s1 + $0x4] sm:$0xf]
  %v81 = vld [vmem:[%s1 + $0x8] sm:$0xf]
  %v82 = vld [vmem:[%s1 + $0xc] sm:$0xf]
  %v83 = vld [vmem:[%s1 + $0x10] sm:$0xf]
  %v84 = vld [vmem:[%s1 + $0x14] sm:$0xf]
  %v85 = vld [vmem:[%s1 + $0x18] sm:$0xf]
  %v86 = vld [vmem:[%s1 + $0x1c] sm:$0xf]
  %v87 = vld [vmem:[%s1 + $0x20] sm:$0xf]
  %v88 = vld [vmem:[%s1 + $0x24] sm:$0xf]
  %v89 = vld [vmem:[%s1 + $0x28] sm:$0xf]
  %v90 = vld [vmem:[%s1 + $0x2c] sm:$0xf]
  %v91 = vld [vmem:[%s1 + $0x30] sm:$0xf]
  %v92 = vld [vmem:[%s1 + $0x34] sm:$0xf]
  %v93 = vld [vmem:[%s1 + $0x38] sm:$0xf]
  %v94 = vld [vmem:[%s1 + $0x3c] sm:$0xf]
  %v95 = vld [vmem:[%s1 + $0x40] sm:$0xf]
  %v96 = vld [vmem:[%s1 + $0x44] sm:$0xf]
  %v97 = vld [vmem:[%s1 + $0x48] sm:$0x3]
  %v98 = vld [vmem:[%s2] sm:$0x1]
  %v100 = vperm.slane %v98, 0
  %v166 = vunpack.c.l.b16 %v15
  %v167 = vunpack.c.h.b16 %v15
  %v168 = vunpack.c.l.b16 %v16
  %v169 = vunpack.c.h.b16 %v16
  %v170 = vunpack.c.l.b16 %v17
  %v171 = vunpack.c.h.b16 %v17
  %v172 = vunpack.c.l.b16 %v18
  %v173 = vunpack.c.h.b16 %v18
  %v174 = vunpack.c.l.b16 %v19
  %v175 = vunpack.c.h.b16 %v19
  %v176 = vunpack.c.l.b16 %v20
  %v177 = vunpack.c.h.b16 %v20
  %v178 = vunpack.c.l.b16 %v21
  %v179 = vunpack.c.h.b16 %v21
  %v180 = vunpack.c.l.b16 %v22
  %v181 = vunpack.c.h.b16 %v22
  %v182 = vunpack.c.l.b16 %v23
  %v183 = vunpack.c.h.b16 %v23
  %v184 = vunpack.c.l.b16 %v24
  %v185 = vunpack.c.h.b16 %v24
  %v186 = vunpack.c.l.b16 %v25
  %v187 = vunpack.c.h.b16 %v25
  %v188 = vunpack.c.l.b16 %v26
  %v189 = vunpack.c.h.b16 %v26
  %v190 = vunpack.c.l.b16 %v27
  %v191 = vunpack.c.h.b16 %v27
  %v192 = vunpack.c.l.b16 %v28
  %v193 = vunpack.c.h.b16 %v28
  %v194 = vunpack.c.l.b16 %v29
  %v195 = vunpack.c.h.b16 %v29
  %v196 = vunpack.c.l.b16 %v30
  %v197 = vunpack.c.h.b16 %v30
  %v198 = vunpack.c.l.b16 %v31
  %v199 = vunpack.c.h.b16 %v31
  %v200 = vunpack.c.l.b16 %v32
  %v201 = vunpack.c.h.b16 %v32
  %v202 = vunpack.c.l.b16 %v33
  %v203 = vunpack.c.h.b16 %v33
  %v204 = vunpack.c.l.b16 %v34
  %v205 = vunpack.c.h.b16 %v34
  %v206 = vunpack.c.l.b16 %v35
  %v207 = vunpack.c.h.b16 %v35
  %v208 = vunpack.c.l.b16 %v36
  %v209 = vunpack.c.h.b16 %v36
  %v210 = vunpack.c.l.b16 %v37
  %v211 = vunpack.c.h.b16 %v37
  %v212 = vunpack.c.l.b16 %v38
  %v213 = vunpack.c.h.b16 %v38
  %v214 = vunpack.c.l.b16 %v39
  %v215 = vunpack.c.h.b16 %v39
  %v216 = vunpack.c.l.b16 %v40
  %v217 = vunpack.c.h.b16 %v40
  %v218 = vunpack.c.l.b16 %v41
  %v219 = vunpack.c.h.b16 %v41
  %v220 = vunpack.c.l.b16 %v42
  %v221 = vunpack.c.h.b16 %v42
  %v222 = vunpack.c.l.b16 %v43
  %v223 = vunpack.c.h.b16 %v43
  %v224 = vunpack.c.l.b16 %v44
  %v225 = vunpack.c.h.b16 %v44
  %v226 = vunpack.c.l.b16 %v45
  %v227 = vunpack.c.h.b16 %v45
  %v228 = vunpack.c.l.b16 %v46
  %v229 = vunpack.c.h.b16 %v46
  %v230 = vunpack.c.l.b16 %v47
  %v231 = vunpack.c.h.b16 %v47
  %v232 = vunpack.c.l.b16 %v48
  %v233 = vunpack.c.h.b16 %v48
  %v234 = vunpack.c.l.b16 %v49
  %v235 = vunpack.c.h.b16 %v49
  %v236 = vunpack.c.l.b16 %v50
  %v237 = vunpack.c.h.b16 %v50
  %v238 = vunpack.c.l.b16 %v51
  %v239 = vunpack.c.h.b16 %v51
  %v240 = vunpack.c.l.b16 %v52
  %v241 = vunpack.c.h.b16 %v52
  %v242 = vunpack.c.l.b16 %v53
  %v243 = vunpack.c.h.b16 %v53
  %v244 = vunpack.c.l.b16 %v54
  %v245 = vunpack.c.h.b16 %v54
  %v246 = vunpack.c.l.b16 %v55
  %v247 = vunpack.c.h.b16 %v55
  %v248 = vunpack.c.l.b16 %v56
  %v249 = vunpack.c.h.b16 %v56
  %v250 = vunpack.c.l.b16 %v57
  %v251 = vunpack.c.h.b16 %v57
  %v252 = vunpack.c.l.b16 %v58
  %v253 = vunpack.c.h.b16 %v58
  %v254 = vunpack.c.l.b16 %v59
  %v255 = vunpack.c.h.b16 %v59
  %v256 = vunpack.c.l.b16 %v60
  %v257 = vunpack.c.h.b16 %v60
  %v258 = vunpack.c.l.b16 %v61
  %v259 = vunpack.c.h.b16 %v61
  %v260 = vunpack.c.l.b16 %v62
  %v261 = vunpack.c.h.b16 %v62
  %v262 = vunpack.c.l.b16 %v63
  %v263 = vunpack.c.h.b16 %v63
  %v264 = vunpack.c.l.b16 %v64
  %v265 = vunpack.c.h.b16 %v64
  %v266 = vunpack.c.l.b16 %v65
  %v267 = vunpack.c.h.b16 %v65
  %v268 = vunpack.c.l.b16 %v66
  %v269 = vunpack.c.h.b16 %v66
  %v270 = vunpack.c.l.b16 %v67
  %v271 = vunpack.c.h.b16 %v67
  %v272 = vunpack.c.l.b16 %v68
  %v273 = vunpack.c.h.b16 %v68
  %v274 = vunpack.c.l.b16 %v69
  %v275 = vunpack.c.h.b16 %v69
  %v276 = vunpack.c.l.b16 %v70
  %v277 = vunpack.c.h.b16 %v70
  %v278 = vunpack.c.l.b16 %v71
  %v279 = vunpack.c.h.b16 %v71
  %v280 = vunpack.c.l.b16 %v72
  %v281 = vunpack.c.h.b16 %v72
  %v282 = vunpack.c.l.b16 %v73
  %v283 = vunpack.c.h.b16 %v73
  %v284 = vunpack.c.l.b16 %v74
  %v285 = vunpack.c.h.b16 %v74
  %v286 = vunpack.c.l.b16 %v75
  %v287 = vunpack.c.h.b16 %v75
  %v288 = vunpack.c.l.b16 %v76
  %v289 = vunpack.c.h.b16 %v76
  %v290 = vunpack.c.l.b16 %v77
  %v291 = vunpack.c.h.b16 %v77
  %v292 = vunpack.c.l.b16 %v78
  %v293 = vunpack.c.h.b16 %v78
  %v294 = vpack.c.b16 %v168, %v166
  %v295 = vpack.c.b16 %v169, %v167
  %v296 = vpack.c.b16 %v172, %v170
  %v297 = vpack.c.b16 %v173, %v171
  %v298 = vpack.c.b16 %v176, %v174
  %v299 = vpack.c.b16 %v177, %v175
  %v300 = vpack.c.b16 %v180, %v178
  %v301 = vpack.c.b16 %v181, %v179
  %v302 = vpack.c.b16 %v184, %v182
  %v303 = vpack.c.b16 %v185, %v183
  %v304 = vpack.c.b16 %v188, %v186
  %v305 = vpack.c.b16 %v189, %v187
  %v306 = vpack.c.b16 %v192, %v190
  %v307 = vpack.c.b16 %v193, %v191
  %v308 = vpack.c.b16 %v196, %v194
  %v309 = vpack.c.b16 %v197, %v195
  %v310 = vpack.c.b16 %v200, %v198
  %v311 = vpack.c.b16 %v201, %v199
  %v312 = vpack.c.b16 %v204, %v202
  %v313 = vpack.c.b16 %v205, %v203
  %v314 = vpack.c.b16 %v208, %v206
  %v315 = vpack.c.b16 %v209, %v207
  %v316 = vpack.c.b16 %v212, %v210
  %v317 = vpack.c.b16 %v213, %v211
  %v318 = vpack.c.b16 %v216, %v214
  %v319 = vpack.c.b16 %v217, %v215
  %v320 = vpack.c.b16 %v220, %v218
  %v321 = vpack.c.b16 %v221, %v219
  %v322 = vpack.c.b16 %v224, %v222
  %v323 = vpack.c.b16 %v225, %v223
  %v324 = vpack.c.b16 %v228, %v226
  %v325 = vpack.c.b16 %v229, %v227
  %v326 = vpack.c.b16 %v232, %v230
  %v327 = vpack.c.b16 %v233, %v231
  %v328 = vpack.c.b16 %v236, %v234
  %v329 = vpack.c.b16 %v237, %v235
  %v330 = vpack.c.b16 %v240, %v238
  %v331 = vpack.c.b16 %v241, %v239
  %v332 = vpack.c.b16 %v244, %v242
  %v333 = vpack.c.b16 %v245, %v243
  %v334 = vpack.c.b16 %v248, %v246
  %v335 = vpack.c.b16 %v249, %v247
  %v336 = vpack.c.b16 %v252, %v250
  %v337 = vpack.c.b16 %v253, %v251
  %v338 = vpack.c.b16 %v256, %v254
  %v339 = vpack.c.b16 %v257, %v255
  %v340 = vpack.c.b16 %v260, %v258
  %v341 = vpack.c.b16 %v261, %v259
  %v342 = vpack.c.b16 %v264, %v262
  %v343 = vpack.c.b16 %v265, %v263
  %v344 = vpack.c.b16 %v268, %v266
  %v345 = vpack.c.b16 %v269, %v267
  %v346 = vpack.c.b16 %v272, %v270
  %v347 = vpack.c.b16 %v273, %v271
  %v348 = vpack.c.b16 %v276, %v274
  %v349 = vpack.c.b16 %v277, %v275
  %v350 = vpack.c.b16 %v280, %v278
  %v351 = vpack.c.b16 %v281, %v279
  %v352 = vpack.c.b16 %v284, %v282
  %v353 = vpack.c.b16 %v285, %v283
  %v354 = vpack.c.b16 %v288, %v286
  %v355 = vpack.c.b16 %v289, %v287
  %v356 = vpack.c.b16 %v292, %v290
  %v357 = vpack.c.b16 %v293, %v291
  %v409 = vunpack.c.l.b16 %v79
  %v410 = vunpack.c.l.b16 %v80
  %v411 = vunpack.c.l.b16 %v81
  %v412 = vunpack.c.l.b16 %v82
  %v413 = vunpack.c.l.b16 %v83
  %v414 = vunpack.c.l.b16 %v84
  %v415 = vunpack.c.l.b16 %v85
  %v416 = vunpack.c.l.b16 %v86
  %v417 = vunpack.c.l.b16 %v87
  %v418 = vunpack.c.l.b16 %v88
  %v419 = vunpack.c.l.b16 %v89
  %v420 = vunpack.c.l.b16 %v90
  %v421 = vunpack.c.l.b16 %v91
  %v422 = vunpack.c.l.b16 %v92
  %v423 = vunpack.c.l.b16 %v93
  %v424 = vunpack.c.l.b16 %v94
  %v425 = vunpack.c.l.b16 %v95
  %v426 = vunpack.c.l.b16 %v96
  %v427 = vunpack.c.l.b16 %v97
  %v428 = vpack.c.b16 %v410, %v409
  %v429 = vpack.c.b16 %v412, %v411
  %v430 = vpack.c.b16 %v414, %v413
  %v431 = vpack.c.b16 %v416, %v415
  %v432 = vpack.c.b16 %v418, %v417
  %v433 = vpack.c.b16 %v420, %v419
  %v434 = vpack.c.b16 %v422, %v421
  %v435 = vpack.c.b16 %v424, %v423
  %v436 = vpack.c.b16 %v426, %v425
  %v437 = vpack.c.b16 %v427, %v427
  %vm447 = vcmask 154624
  %v449 = vsel %vm447, %v295, 0
  %v452 = vsel %vm447, %v297, 0
  %v455 = vsel %vm447, %v299, 0
  %v458 = vsel %vm447, %v301, 0
  %v461 = vsel %vm447, %v303, 0
  %v464 = vsel %vm447, %v305, 0
  %v467 = vsel %vm447, %v307, 0
  %v470 = vsel %vm447, %v309, 0
  %v473 = vsel %vm447, %v311, 0
  %v476 = vsel %vm447, %v313, 0
  %v479 = vsel %vm447, %v315, 0
  %v482 = vsel %vm447, %v317, 0
  %v485 = vsel %vm447, %v319, 0
  %v488 = vsel %vm447, %v321, 0
  %v491 = vsel %vm447, %v323, 0
  %v494 = vsel %vm447, %v325, 0
  %v497 = vsel %vm447, %v327, 0
  %v500 = vsel %vm447, %v329, 0
  %v503 = vsel %vm447, %v331, 0
  %v506 = vsel %vm447, %v333, 0
  %v509 = vsel %vm447, %v335, 0
  %v512 = vsel %vm447, %v337, 0
  %v515 = vsel %vm447, %v339, 0
  %v518 = vsel %vm447, %v341, 0
  %v521 = vsel %vm447, %v343, 0
  %v524 = vsel %vm447, %v345, 0
  %v527 = vsel %vm447, %v347, 0
  %v530 = vsel %vm447, %v349, 0
  %v533 = vsel %vm447, %v351, 0
  %v536 = vsel %vm447, %v353, 0
  %v539 = vsel %vm447, %v355, 0
  %v542 = vsel %vm447, %v357, 0
  %vm544 = vcmask 1040384
  %vm545 = vcmask 1041408
  %v546 = vsel %vm544, 4294967295, 65535
  %v547 = vsel %vm545, %v546, 0
  %v549 = vand.u32 %v437, %v547
  %551 = vmatpush.bf16.msra.mxu0 %v435
  %552 = vmatpush.bf16.msra.mxu0 %v434
  %553 = vmatpush.bf16.msra.mxu0 %v433
  %554 = vmatpush.bf16.msra.mxu0 %v432
  %555 = vmatpush.bf16.msra.mxu0 %v431
  %556 = vmatpush.bf16.msra.mxu0 %v430
  %557 = vmatpush.bf16.msra.mxu0 %v429
  %558 = vmatpush.bf16.msra.mxu0 %v428
  %559 = vmatmul.bf16.gmra.mxu0 %v294
  %v560 = vpop.f32.mrf.mxu0
  %v561 = vadd.f32 %v100, %v560
  %v562 = vpop.f32.mrf.mxu0
  %v563 = vadd.f32 %v100, %v562
  %564 = vmatmul.bf16.gmra.mxu0 %v296
  %v565 = vpop.f32.mrf.mxu0
  %v566 = vadd.f32 %v100, %v565
  %v567 = vpop.f32.mrf.mxu0
  %v568 = vadd.f32 %v100, %v567
  %569 = vmatmul.bf16.gmra.mxu0 %v298
  %v570 = vpop.f32.mrf.mxu0
  %v571 = vadd.f32 %v100, %v570
  %v572 = vpop.f32.mrf.mxu0
  %v573 = vadd.f32 %v100, %v572
  %574 = vmatmul.bf16.gmra.mxu0 %v300
  %v575 = vpop.f32.mrf.mxu0
  %v576 = vadd.f32 %v100, %v575
  %v577 = vpop.f32.mrf.mxu0
  %v578 = vadd.f32 %v100, %v577
  %579 = vmatmul.bf16.gmra.mxu0 %v302
  %v580 = vpop.f32.mrf.mxu0
  %v581 = vadd.f32 %v100, %v580
  %v582 = vpop.f32.mrf.mxu0
  %v583 = vadd.f32 %v100, %v582
  %584 = vmatmul.bf16.gmra.mxu0 %v304
  %v585 = vpop.f32.mrf.mxu0
  %v586 = vadd.f32 %v100, %v585
  %v587 = vpop.f32.mrf.mxu0
  %v588 = vadd.f32 %v100, %v587
  %589 = vmatmul.bf16.gmra.mxu0 %v306
  %v590 = vpop.f32.mrf.mxu0
  %v591 = vadd.f32 %v100, %v590
  %v592 = vpop.f32.mrf.mxu0
  %v593 = vadd.f32 %v100, %v592
  %594 = vmatmul.bf16.gmra.mxu0 %v308
  %v595 = vpop.f32.mrf.mxu0
  %v596 = vadd.f32 %v100, %v595
  %v597 = vpop.f32.mrf.mxu0
  %v598 = vadd.f32 %v100, %v597
  %599 = vmatmul.bf16.gmra.mxu0 %v310
  %v600 = vpop.f32.mrf.mxu0
  %v601 = vadd.f32 %v100, %v600
  %v602 = vpop.f32.mrf.mxu0
  %v603 = vadd.f32 %v100, %v602
  %604 = vmatmul.bf16.gmra.mxu0 %v312
  %v605 = vpop.f32.mrf.mxu0
  %v606 = vadd.f32 %v100, %v605
  %v607 = vpop.f32.mrf.mxu0
  %v608 = vadd.f32 %v100, %v607
  %609 = vmatmul.bf16.gmra.mxu0 %v314
  %v610 = vpop.f32.mrf.mxu0
  %v611 = vadd.f32 %v100, %v610
  %v612 = vpop.f32.mrf.mxu0
  %v613 = vadd.f32 %v100, %v612
  %614 = vmatmul.bf16.gmra.mxu0 %v316
  %v615 = vpop.f32.mrf.mxu0
  %v616 = vadd.f32 %v100, %v615
  %v617 = vpop.f32.mrf.mxu0
  %v618 = vadd.f32 %v100, %v617
  %619 = vmatmul.bf16.gmra.mxu0 %v318
  %v620 = vpop.f32.mrf.mxu0
  %v621 = vadd.f32 %v100, %v620
  %v622 = vpop.f32.mrf.mxu0
  %v623 = vadd.f32 %v100, %v622
  %624 = vmatmul.bf16.gmra.mxu0 %v320
  %v625 = vpop.f32.mrf.mxu0
  %v626 = vadd.f32 %v100, %v625
  %v627 = vpop.f32.mrf.mxu0
  %v628 = vadd.f32 %v100, %v627
  %629 = vmatmul.bf16.gmra.mxu0 %v322
  %v630 = vpop.f32.mrf.mxu0
  %v631 = vadd.f32 %v100, %v630
  %v632 = vpop.f32.mrf.mxu0
  %v633 = vadd.f32 %v100, %v632
  %634 = vmatmul.bf16.gmra.mxu0 %v324
  %v635 = vpop.f32.mrf.mxu0
  %v636 = vadd.f32 %v100, %v635
  %v637 = vpop.f32.mrf.mxu0
  %v638 = vadd.f32 %v100, %v637
  %639 = vmatmul.bf16.gmra.mxu0 %v326
  %v640 = vpop.f32.mrf.mxu0
  %v641 = vadd.f32 %v100, %v640
  %v642 = vpop.f32.mrf.mxu0
  %v643 = vadd.f32 %v100, %v642
  %644 = vmatmul.bf16.gmra.mxu0 %v328
  %v645 = vpop.f32.mrf.mxu0
  %v646 = vadd.f32 %v100, %v645
  %v647 = vpop.f32.mrf.mxu0
  %v648 = vadd.f32 %v100, %v647
  %649 = vmatmul.bf16.gmra.mxu0 %v330
  %v650 = vpop.f32.mrf.mxu0
  %v651 = vadd.f32 %v100, %v650
  %v652 = vpop.f32.mrf.mxu0
  %v653 = vadd.f32 %v100, %v652
  %654 = vmatmul.bf16.gmra.mxu0 %v332
  %v655 = vpop.f32.mrf.mxu0
  %v656 = vadd.f32 %v100, %v655
  %v657 = vpop.f32.mrf.mxu0
  %v658 = vadd.f32 %v100, %v657
  %659 = vmatmul.bf16.gmra.mxu0 %v334
  %v660 = vpop.f32.mrf.mxu0
  %v661 = vadd.f32 %v100, %v660
  %v662 = vpop.f32.mrf.mxu0
  %v663 = vadd.f32 %v100, %v662
  %664 = vmatmul.bf16.gmra.mxu0 %v336
  %v665 = vpop.f32.mrf.mxu0
  %v666 = vadd.f32 %v100, %v665
  %v667 = vpop.f32.mrf.mxu0
  %v668 = vadd.f32 %v100, %v667
  %669 = vmatmul.bf16.gmra.mxu0 %v338
  %v670 = vpop.f32.mrf.mxu0
  %v671 = vadd.f32 %v100, %v670
  %v672 = vpop.f32.mrf.mxu0
  %v673 = vadd.f32 %v100, %v672
  %674 = vmatmul.bf16.gmra.mxu0 %v340
  %v675 = vpop.f32.mrf.mxu0
  %v676 = vadd.f32 %v100, %v675
  %v677 = vpop.f32.mrf.mxu0
  %v678 = vadd.f32 %v100, %v677
  %679 = vmatmul.bf16.gmra.mxu0 %v342
  %v680 = vpop.f32.mrf.mxu0
  %v681 = vadd.f32 %v100, %v680
  %v682 = vpop.f32.mrf.mxu0
  %v683 = vadd.f32 %v100, %v682
  %684 = vmatmul.bf16.gmra.mxu0 %v344
  %v685 = vpop.f32.mrf.mxu0
  %v686 = vadd.f32 %v100, %v685
  %v687 = vpop.f32.mrf.mxu0
  %v688 = vadd.f32 %v100, %v687
  %689 = vmatmul.bf16.gmra.mxu0 %v346
  %v690 = vpop.f32.mrf.mxu0
  %v691 = vadd.f32 %v100, %v690
  %v692 = vpop.f32.mrf.mxu0
  %v693 = vadd.f32 %v100, %v692
  %694 = vmatmul.bf16.gmra.mxu0 %v348
  %v695 = vpop.f32.mrf.mxu0
  %v696 = vadd.f32 %v100, %v695
  %v697 = vpop.f32.mrf.mxu0
  %v698 = vadd.f32 %v100, %v697
  %699 = vmatmul.bf16.gmra.mxu0 %v350
  %v700 = vpop.f32.mrf.mxu0
  %v701 = vadd.f32 %v100, %v700
  %v702 = vpop.f32.mrf.mxu0
  %v703 = vadd.f32 %v100, %v702
  %704 = vmatmul.bf16.gmra.mxu0 %v352
  %v705 = vpop.f32.mrf.mxu0
  %v706 = vadd.f32 %v100, %v705
  %v707 = vpop.f32.mrf.mxu0
  %v708 = vadd.f32 %v100, %v707
  %709 = vmatmul.bf16.gmra.mxu0 %v354
  %v710 = vpop.f32.mrf.mxu0
  %v711 = vadd.f32 %v100, %v710
  %v712 = vpop.f32.mrf.mxu0
  %v713 = vadd.f32 %v100, %v712
  %714 = vmatmul.bf16.gmra.mxu0 %v356
  %v715 = vpop.f32.mrf.mxu0
  %v716 = vadd.f32 %v100, %v715
  %v717 = vpop.f32.mrf.mxu0
  %v718 = vadd.f32 %v100, %v717
  %719 = vdwg.mxu0
  %720 = vmatpush.bf16.msra.mxu0 0
  %721 = vmatpush.bf16.msra.mxu0 0
  %722 = vmatpush.bf16.msra.mxu0 0
  %723 = vmatpush.bf16.msra.mxu0 0
  %724 = vmatpush.bf16.msra.mxu0 0
  %725 = vmatpush.bf16.msra.mxu0 0
  %726 = vmatpush.bf16.msra.mxu0 %v549
  %727 = vmatpush.bf16.msra.mxu0 %v436
  %728 = vmatmul.bf16.gmra.mxu0 %v449
  %v729 = vpop.f32.mrf.mxu0
  %v730 = vadd.f32 %v561, %v729
  %v731 = vpop.f32.mrf.mxu0
  %v732 = vadd.f32 %v563, %v731
  %733 = vmatmul.bf16.gmra.mxu0 %v452
  %v734 = vpop.f32.mrf.mxu0
  %v735 = vadd.f32 %v566, %v734
  %v736 = vpop.f32.mrf.mxu0
  %v737 = vadd.f32 %v568, %v736
  %738 = vmatmul.bf16.gmra.mxu0 %v455
  %v739 = vpop.f32.mrf.mxu0
  %v740 = vadd.f32 %v571, %v739
  %v741 = vpop.f32.mrf.mxu0
  %v742 = vadd.f32 %v573, %v741
  %743 = vmatmul.bf16.gmra.mxu0 %v458
  %v744 = vpop.f32.mrf.mxu0
  %v745 = vadd.f32 %v576, %v744
  %v746 = vpop.f32.mrf.mxu0
  %v747 = vadd.f32 %v578, %v746
  %748 = vmatmul.bf16.gmra.mxu0 %v461
  %v749 = vpop.f32.mrf.mxu0
  %v750 = vadd.f32 %v581, %v749
  %v751 = vpop.f32.mrf.mxu0
  %v752 = vadd.f32 %v583, %v751
  %753 = vmatmul.bf16.gmra.mxu0 %v464
  %v754 = vpop.f32.mrf.mxu0
  %v755 = vadd.f32 %v586, %v754
  %v756 = vpop.f32.mrf.mxu0
  %v757 = vadd.f32 %v588, %v756
  %758 = vmatmul.bf16.gmra.mxu0 %v467
  %v759 = vpop.f32.mrf.mxu0
  %v760 = vadd.f32 %v591, %v759
  %v761 = vpop.f32.mrf.mxu0
  %v762 = vadd.f32 %v593, %v761
  %763 = vmatmul.bf16.gmra.mxu0 %v470
  %v764 = vpop.f32.mrf.mxu0
  %v765 = vadd.f32 %v596, %v764
  %v766 = vpop.f32.mrf.mxu0
  %v767 = vadd.f32 %v598, %v766
  %768 = vmatmul.bf16.gmra.mxu0 %v473
  %v769 = vpop.f32.mrf.mxu0
  %v770 = vadd.f32 %v601, %v769
  %v771 = vpop.f32.mrf.mxu0
  %v772 = vadd.f32 %v603, %v771
  %773 = vmatmul.bf16.gmra.mxu0 %v476
  %v774 = vpop.f32.mrf.mxu0
  %v775 = vadd.f32 %v606, %v774
  %v776 = vpop.f32.mrf.mxu0
  %v777 = vadd.f32 %v608, %v776
  %778 = vmatmul.bf16.gmra.mxu0 %v479
  %v779 = vpop.f32.mrf.mxu0
  %v780 = vadd.f32 %v611, %v779
  %v781 = vpop.f32.mrf.mxu0
  %v782 = vadd.f32 %v613, %v781
  %783 = vmatmul.bf16.gmra.mxu0 %v482
  %v784 = vpop.f32.mrf.mxu0
  %v785 = vadd.f32 %v616, %v784
  %v786 = vpop.f32.mrf.mxu0
  %v787 = vadd.f32 %v618, %v786
  %788 = vmatmul.bf16.gmra.mxu0 %v485
  %v789 = vpop.f32.mrf.mxu0
  %v790 = vadd.f32 %v621, %v789
  %v791 = vpop.f32.mrf.mxu0
  %v792 = vadd.f32 %v623, %v791
  %793 = vmatmul.bf16.gmra.mxu0 %v488
  %v794 = vpop.f32.mrf.mxu0
  %v795 = vadd.f32 %v626, %v794
  %v796 = vpop.f32.mrf.mxu0
  %v797 = vadd.f32 %v628, %v796
  %798 = vmatmul.bf16.gmra.mxu0 %v491
  %v799 = vpop.f32.mrf.mxu0
  %v800 = vadd.f32 %v631, %v799
  %v801 = vpop.f32.mrf.mxu0
  %v802 = vadd.f32 %v633, %v801
  %803 = vmatmul.bf16.gmra.mxu0 %v494
  %v804 = vpop.f32.mrf.mxu0
  %v805 = vadd.f32 %v636, %v804
  %v806 = vpop.f32.mrf.mxu0
  %v807 = vadd.f32 %v638, %v806
  %808 = vmatmul.bf16.gmra.mxu0 %v497
  %v809 = vpop.f32.mrf.mxu0
  %v810 = vadd.f32 %v641, %v809
  %v811 = vpop.f32.mrf.mxu0
  %v812 = vadd.f32 %v643, %v811
  %813 = vmatmul.bf16.gmra.mxu0 %v500
  %v814 = vpop.f32.mrf.mxu0
  %v815 = vadd.f32 %v646, %v814
  %v816 = vpop.f32.mrf.mxu0
  %v817 = vadd.f32 %v648, %v816
  %818 = vmatmul.bf16.gmra.mxu0 %v503
  %v819 = vpop.f32.mrf.mxu0
  %v820 = vadd.f32 %v651, %v819
  %v821 = vpop.f32.mrf.mxu0
  %v822 = vadd.f32 %v653, %v821
  %823 = vmatmul.bf16.gmra.mxu0 %v506
  %v824 = vpop.f32.mrf.mxu0
  %v825 = vadd.f32 %v656, %v824
  %v826 = vpop.f32.mrf.mxu0
  %v827 = vadd.f32 %v658, %v826
  %828 = vmatmul.bf16.gmra.mxu0 %v509
  %v829 = vpop.f32.mrf.mxu0
  %v830 = vadd.f32 %v661, %v829
  %v831 = vpop.f32.mrf.mxu0
  %v832 = vadd.f32 %v663, %v831
  %833 = vmatmul.bf16.gmra.mxu0 %v512
  %v834 = vpop.f32.mrf.mxu0
  %v835 = vadd.f32 %v666, %v834
  %v836 = vpop.f32.mrf.mxu0
  %v837 = vadd.f32 %v668, %v836
  %838 = vmatmul.bf16.gmra.mxu0 %v515
  %v839 = vpop.f32.mrf.mxu0
  %v840 = vadd.f32 %v671, %v839
  %v841 = vpop.f32.mrf.mxu0
  %v842 = vadd.f32 %v673, %v841
  %843 = vmatmul.bf16.gmra.mxu0 %v518
  %v844 = vpop.f32.mrf.mxu0
  %v845 = vadd.f32 %v676, %v844
  %v846 = vpop.f32.mrf.mxu0
  %v847 = vadd.f32 %v678, %v846
  %848 = vmatmul.bf16.gmra.mxu0 %v521
  %v849 = vpop.f32.mrf.mxu0
  %v850 = vadd.f32 %v681, %v849
  %v851 = vpop.f32.mrf.mxu0
  %v852 = vadd.f32 %v683, %v851
  %853 = vmatmul.bf16.gmra.mxu0 %v524
  %v854 = vpop.f32.mrf.mxu0
  %v855 = vadd.f32 %v686, %v854
  %v856 = vpop.f32.mrf.mxu0
  %v857 = vadd.f32 %v688, %v856
  %858 = vmatmul.bf16.gmra.mxu0 %v527
  %v859 = vpop.f32.mrf.mxu0
  %v860 = vadd.f32 %v691, %v859
  %v861 = vpop.f32.mrf.mxu0
  %v862 = vadd.f32 %v693, %v861
  %863 = vmatmul.bf16.gmra.mxu0 %v530
  %v864 = vpop.f32.mrf.mxu0
  %v865 = vadd.f32 %v696, %v864
  %v866 = vpop.f32.mrf.mxu0
  %v867 = vadd.f32 %v698, %v866
  %868 = vmatmul.bf16.gmra.mxu0 %v533
  %v869 = vpop.f32.mrf.mxu0
  %v870 = vadd.f32 %v701, %v869
  %v871 = vpop.f32.mrf.mxu0
  %v872 = vadd.f32 %v703, %v871
  %873 = vmatmul.bf16.gmra.mxu0 %v536
  %v874 = vpop.f32.mrf.mxu0
  %v875 = vadd.f32 %v706, %v874
  %v876 = vpop.f32.mrf.mxu0
  %v877 = vadd.f32 %v708, %v876
  %878 = vmatmul.bf16.gmra.mxu0 %v539
  %v879 = vpop.f32.mrf.mxu0
  %v880 = vadd.f32 %v711, %v879
  %v881 = vpop.f32.mrf.mxu0
  %v882 = vadd.f32 %v713, %v881
  %883 = vmatmul.bf16.gmra.mxu0 %v542
  %v884 = vpop.f32.mrf.mxu0
  %v885 = vadd.f32 %v716, %v884
  %v886 = vpop.f32.mrf.mxu0
  %v887 = vadd.f32 %v718, %v886
  %888 = vdwg.mxu0
  %v889 = vmax.f32 %v730, 0.0
  %v890 = vmax.f32 %v732, 0.0
  %v891 = vmax.f32 %v735, 0.0
  %v892 = vmax.f32 %v737, 0.0
  %v893 = vmax.f32 %v740, 0.0
  %v894 = vmax.f32 %v742, 0.0
  %v895 = vmax.f32 %v745, 0.0
  %v896 = vmax.f32 %v747, 0.0
  %v897 = vmax.f32 %v750, 0.0
  %v898 = vmax.f32 %v752, 0.0
  %v899 = vmax.f32 %v755, 0.0
  %v900 = vmax.f32 %v757, 0.0
  %v901 = vmax.f32 %v760, 0.0
  %v902 = vmax.f32 %v762, 0.0
  %v903 = vmax.f32 %v765, 0.0
  %v904 = vmax.f32 %v767, 0.0
  %v905 = vmax.f32 %v770, 0.0
  %v906 = vmax.f32 %v772, 0.0
  %v907 = vmax.f32 %v775, 0.0
  %v908 = vmax.f32 %v777, 0.0
  %v909 = vmax.f32 %v780, 0.0
  %v910 = vmax.f32 %v782, 0.0
  %v911 = vmax.f32 %v785, 0.0
  %v912 = vmax.f32 %v787, 0.0
  %v913 = vmax.f32 %v790, 0.0
  %v914 = vmax.f32 %v792, 0.0
  %v915 = vmax.f32 %v795, 0.0
  %v916 = vmax.f32 %v797, 0.0
  %v917 = vmax.f32 %v800, 0.0
  %v918 = vmax.f32 %v802, 0.0
  %v919 = vmax.f32 %v805, 0.0
  %v920 = vmax.f32 %v807, 0.0
  %v921 = vmax.f32 %v810, 0.0
  %v922 = vmax.f32 %v812, 0.0
  %v923 = vmax.f32 %v815, 0.0
  %v924 = vmax.f32 %v817, 0.0
  %v925 = vmax.f32 %v820, 0.0
  %v926 = vmax.f32 %v822, 0.0
  %v927 = vmax.f32 %v825, 0.0
  %v928 = vmax.f32 %v827, 0.0
  %v929 = vmax.f32 %v830, 0.0
  %v930 = vmax.f32 %v832, 0.0
  %v931 = vmax.f32 %v835, 0.0
  %v932 = vmax.f32 %v837, 0.0
  %v933 = vmax.f32 %v840, 0.0
  %v934 = vmax.f32 %v842, 0.0
  %v935 = vmax.f32 %v845, 0.0
  %v936 = vmax.f32 %v847, 0.0
  %v937 = vmax.f32 %v850, 0.0
  %v938 = vmax.f32 %v852, 0.0
  %v939 = vmax.f32 %v855, 0.0
  %v940 = vmax.f32 %v857, 0.0
  %v941 = vmax.f32 %v860, 0.0
  %v942 = vmax.f32 %v862, 0.0
  %v943 = vmax.f32 %v865, 0.0
  %v944 = vmax.f32 %v867, 0.0
  %v945 = vmax.f32 %v870, 0.0
  %v946 = vmax.f32 %v872, 0.0
  %v947 = vmax.f32 %v875, 0.0
  %v948 = vmax.f32 %v877, 0.0
  %v949 = vmax.f32 %v880, 0.0
  %v950 = vmax.f32 %v882, 0.0
  %v951 = vmax.f32 %v885, 0.0
  %v952 = vmax.f32 %v887, 0.0
  %v953 = vpack.c.bf16 %v889, %v889
  %v954 = vpack.c.bf16 %v890, %v890
  %v955 = vpack.c.bf16 %v891, %v891
  %v956 = vpack.c.bf16 %v892, %v892
  %v957 = vpack.c.bf16 %v893, %v893
  %v958 = vpack.c.bf16 %v894, %v894
  %v959 = vpack.c.bf16 %v895, %v895
  %v960 = vpack.c.bf16 %v896, %v896
  %v961 = vpack.c.bf16 %v897, %v897
  %v962 = vpack.c.bf16 %v898, %v898
  %v963 = vpack.c.bf16 %v899, %v899
  %v964 = vpack.c.bf16 %v900, %v900
  %v965 = vpack.c.bf16 %v901, %v901
  %v966 = vpack.c.bf16 %v902, %v902
  %v967 = vpack.c.bf16 %v903, %v903
  %v968 = vpack.c.bf16 %v904, %v904
  %v969 = vpack.c.bf16 %v905, %v905
  %v970 = vpack.c.bf16 %v906, %v906
  %v971 = vpack.c.bf16 %v907, %v907
  %v972 = vpack.c.bf16 %v908, %v908
  %v973 = vpack.c.bf16 %v909, %v909
  %v974 = vpack.c.bf16 %v910, %v910
  %v975 = vpack.c.bf16 %v911, %v911
  %v976 = vpack.c.bf16 %v912, %v912
  %v977 = vpack.c.bf16 %v913, %v913
  %v978 = vpack.c.bf16 %v914, %v914
  %v979 = vpack.c.bf16 %v915, %v915
  %v980 = vpack.c.bf16 %v916, %v916
  %v981 = vpack.c.bf16 %v917, %v917
  %v982 = vpack.c.bf16 %v918, %v918
  %v983 = vpack.c.bf16 %v919, %v919
  %v984 = vpack.c.bf16 %v920, %v920
  %v985 = vpack.c.bf16 %v921, %v921
  %v986 = vpack.c.bf16 %v922, %v922
  %v987 = vpack.c.bf16 %v923, %v923
  %v988 = vpack.c.bf16 %v924, %v924
  %v989 = vpack.c.bf16 %v925, %v925
  %v990 = vpack.c.bf16 %v926, %v926
  %v991 = vpack.c.bf16 %v927, %v927
  %v992 = vpack.c.bf16 %v928, %v928
  %v993 = vpack.c.bf16 %v929, %v929
  %v994 = vpack.c.bf16 %v930, %v930
  %v995 = vpack.c.bf16 %v931, %v931
  %v996 = vpack.c.bf16 %v932, %v932
  %v997 = vpack.c.bf16 %v933, %v933
  %v998 = vpack.c.bf16 %v934, %v934
  %v999 = vpack.c.bf16 %v935, %v935
  %v1000 = vpack.c.bf16 %v936, %v936
  %v1001 = vpack.c.bf16 %v937, %v937
  %v1002 = vpack.c.bf16 %v938, %v938
  %v1003 = vpack.c.bf16 %v939, %v939
  %v1004 = vpack.c.bf16 %v940, %v940
  %v1005 = vpack.c.bf16 %v941, %v941
  %v1006 = vpack.c.bf16 %v942, %v942
  %v1007 = vpack.c.bf16 %v943, %v943
  %v1008 = vpack.c.bf16 %v944, %v944
  %v1009 = vpack.c.bf16 %v945, %v945
  %v1010 = vpack.c.bf16 %v946, %v946
  %v1011 = vpack.c.bf16 %v947, %v947
  %v1012 = vpack.c.bf16 %v948, %v948
  %v1013 = vpack.c.bf16 %v949, %v949
  %v1014 = vpack.c.bf16 %v950, %v950
  %v1015 = vpack.c.bf16 %v951, %v951
  %v1016 = vpack.c.bf16 %v952, %v952
  %1017 = vst [vmem:[%s3] sm:$0xf] %v953
  %1018 = vst [vmem:[%s3 + $0x4] sm:$0xf] %v954
  %1019 = vst [vmem:[%s3 + $0x8] sm:$0xf] %v955
  %1020 = vst [vmem:[%s3 + $0xc] sm:$0xf] %v956
  %1021 = vst [vmem:[%s3 + $0x10] sm:$0xf] %v957
  %1022 = vst [vmem:[%s3 + $0x14] sm:$0xf] %v958
  %1023 = vst [vmem:[%s3 + $0x18] sm:$0xf] %v959
  %1024 = vst [vmem:[%s3 + $0x1c] sm:$0xf] %v960
  %1025 = vst [vmem:[%s3 + $0x20] sm:$0xf] %v961
  %1026 = vst [vmem:[%s3 + $0x24] sm:$0xf] %v962
  %1027 = vst [vmem:[%s3 + $0x28] sm:$0xf] %v963
  %1028 = vst [vmem:[%s3 + $0x2c] sm:$0xf] %v964
  %1029 = vst [vmem:[%s3 + $0x30] sm:$0xf] %v965
  %1030 = vst [vmem:[%s3 + $0x34] sm:$0xf] %v966
  %1031 = vst [vmem:[%s3 + $0x38] sm:$0xf] %v967
  %1032 = vst [vmem:[%s3 + $0x3c] sm:$0xf] %v968
  %1033 = vst [vmem:[%s3 + $0x40] sm:$0xf] %v969
  %1034 = vst [vmem:[%s3 + $0x44] sm:$0xf] %v970
  %1035 = vst [vmem:[%s3 + $0x48] sm:$0xf] %v971
  %1036 = vst [vmem:[%s3 + $0x4c] sm:$0xf] %v972
  %1037 = vst [vmem:[%s3 + $0x50] sm:$0xf] %v973
  %1038 = vst [vmem:[%s3 + $0x54] sm:$0xf] %v974
  %1039 = vst [vmem:[%s3 + $0x58] sm:$0xf] %v975
  %1040 = vst [vmem:[%s3 + $0x5c] sm:$0xf] %v976
  %1041 = vst [vmem:[%s3 + $0x60] sm:$0xf] %v977
  %1042 = vst [vmem:[%s3 + $0x64] sm:$0xf] %v978
  %1043 = vst [vmem:[%s3 + $0x68] sm:$0xf] %v979
  %1044 = vst [vmem:[%s3 + $0x6c] sm:$0xf] %v980
  %1045 = vst [vmem:[%s3 + $0x70] sm:$0xf] %v981
  %1046 = vst [vmem:[%s3 + $0x74] sm:$0xf] %v982
  %1047 = vst [vmem:[%s3 + $0x78] sm:$0xf] %v983
  %1048 = vst [vmem:[%s3 + $0x7c] sm:$0xf] %v984
  %1049 = vst [vmem:[%s3 + $0x80] sm:$0xf] %v985
  %1050 = vst [vmem:[%s3 + $0x84] sm:$0xf] %v986
  %1051 = vst [vmem:[%s3 + $0x88] sm:$0xf] %v987
  %1052 = vst [vmem:[%s3 + $0x8c] sm:$0xf] %v988
  %1053 = vst [vmem:[%s3 + $0x90] sm:$0xf] %v989
  %1054 = vst [vmem:[%s3 + $0x94] sm:$0xf] %v990
  %1055 = vst [vmem:[%s3 + $0x98] sm:$0xf] %v991
  %1056 = vst [vmem:[%s3 + $0x9c] sm:$0xf] %v992
  %1057 = vst [vmem:[%s3 + $0xa0] sm:$0xf] %v993
  %1058 = vst [vmem:[%s3 + $0xa4] sm:$0xf] %v994
  %1059 = vst [vmem:[%s3 + $0xa8] sm:$0xf] %v995
  %1060 = vst [vmem:[%s3 + $0xac] sm:$0xf] %v996
  %1061 = vst [vmem:[%s3 + $0xb0] sm:$0xf] %v997
  %1062 = vst [vmem:[%s3 + $0xb4] sm:$0xf] %v998
  %1063 = vst [vmem:[%s3 + $0xb8] sm:$0xf] %v999
  %1064 = vst [vmem:[%s3 + $0xbc] sm:$0xf] %v1000
  %1065 = vst [vmem:[%s3 + $0xc0] sm:$0xf] %v1001
  %1066 = vst [vmem:[%s3 + $0xc4] sm:$0xf] %v1002
  %1067 = vst [vmem:[%s3 + $0xc8] sm:$0xf] %v1003
  %1068 = vst [vmem:[%s3 + $0xcc] sm:$0xf] %v1004
  %1069 = vst [vmem:[%s3 + $0xd0] sm:$0xf] %v1005
  %1070 = vst [vmem:[%s3 + $0xd4] sm:$0xf] %v1006
  %1071 = vst [vmem:[%s3 + $0xd8] sm:$0xf] %v1007
  %1072 = vst [vmem:[%s3 + $0xdc] sm:$0xf] %v1008
  %1073 = vst [vmem:[%s3 + $0xe0] sm:$0xf] %v1009
  %1074 = vst [vmem:[%s3 + $0xe4] sm:$0xf] %v1010
  %1075 = vst [vmem:[%s3 + $0xe8] sm:$0xf] %v1011
  %1076 = vst [vmem:[%s3 + $0xec] sm:$0xf] %v1012
  %1077 = vst [vmem:[%s3 + $0xf0] sm:$0xf] %v1013
  %1078 = vst [vmem:[%s3 + $0xf4] sm:$0xf] %v1014
  %1079 = vst [vmem:[%s3 + $0xf8] sm:$0xf] %v1015
  %1080 = vst [vmem:[%s3 + $0xfc] sm:$0xf] %v1016
  // Predicated region
  $region14: #{resnet_forward.3} parent=0 // pred_check
    _
  $region15: #{resnet_forward.3} parent=0 // pred_check_branch
    %1082 = sbr.rel (0) target = $region17
  $region16: #{resnet_forward.3} parent=0 // pred_region
    _
  $region17: #{resnet_forward.3} parent=0 // pred_fallthru
    _
  // Predicated region
  $region18: #{resnet_forward.3} parent=0 // pred_check
    _
  $region19: #{resnet_forward.3} parent=0 // pred_check_branch
    %1084 = sbr.rel (0) target = $region21
  $region20: #{resnet_forward.3} parent=0 // pred_region
    _
  $region21: #{resnet_forward.3} parent=0 // pred_fallthru
    _

// kernel: resnet_forward.4
$region0: #{resnet_forward.4}
  #allocation0 [shape = 'u32[]', space=smem, size = 0x4, offset = 0x4, fixed_abs, tag = 'smem constant byte address 0x4 - core index']
  #allocation1 [shape = 'u32[72,128]{1,0:T(1,128)}', space=vmem, size = 0x9000, scoped, tag = 'internal scratch']
  #allocation2 [shape = 'f32[160,128]{1,0:T(8,128)}', space=vmem, size = 0x14000, scoped, tag = 'scratch operand']
  %s0 = inlined_call_operand.vmem [shape: bf16[128,1152], index: 0, kind: input, shape index: {}]
  %s1 = inlined_call_operand.vmem [shape: bf16[1152,256], index: 1, kind: input, shape index: {}]
  %s2 = inlined_call_operand.vmem [shape: f32[1,256], index: 2, kind: input, shape index: {}]
  %s3 = inlined_call_operand.vmem [shape: bf16[1152,128], index: 3, kind: input, shape index: {}]
  %s4 = inlined_call_operand.vmem [shape: f32[1,128], index: 4, kind: input, shape index: {}]
  %s5 = inlined_call_operand.vmem [shape: bf16[128,128], index: 5, kind: output, shape index: {}]
  %s6 = sld [smem:[#allocation0]]
  $region30: #{resnet_forward.4} parent=0
    _
  %s8 = ssub.s32 1, %s6
  %s9 = scalar_select 0, %s8, %s6
  // Predicated region
  $region2: #{resnet_forward.4} parent=0 // pred_check
    _
  $region3: #{resnet_forward.4} parent=0 // pred_check_branch
    %11 = sbr.rel (0) target = $region5
  $region4: #{resnet_forward.4} parent=0 // pred_region
    _
  $region5: #{resnet_forward.4} parent=0 // pred_fallthru
    _
  // Predicated region
  $region6: #{resnet_forward.4} parent=0 // pred_check
    _
  $region7: #{resnet_forward.4} parent=0 // pred_check_branch
    %13 = sbr.rel (0) target = $region9
  $region8: #{resnet_forward.4} parent=0 // pred_region
    _
  $region9: #{resnet_forward.4} parent=0 // pred_fallthru
    _
  // Predicated region
  $region10: #{resnet_forward.4} parent=0 // pred_check
    _
  $region11: #{resnet_forward.4} parent=0 // pred_check_branch
    %15 = sbr.rel (0) target = $region13
  $region12: #{resnet_forward.4} parent=0 // pred_region
    _
  $region13: #{resnet_forward.4} parent=0 // pred_fallthru
    _
  // Predicated region
  $region14: #{resnet_forward.4} parent=0 // pred_check
    _
  $region15: #{resnet_forward.4} parent=0 // pred_check_branch
    %17 = sbr.rel (0) target = $region17
  $region16: #{resnet_forward.4} parent=0 // pred_region
    _
  $region17: #{resnet_forward.4} parent=0 // pred_fallthru
    _
  // Predicated region
  $region18: #{resnet_forward.4} parent=0 // pred_check
    _
  $region19: #{resnet_forward.4} parent=0 // pred_check_branch
    %19 = sbr.rel (0) target = $region21
  $region20: #{resnet_forward.4} parent=0 // pred_region
    _
  $region21: #{resnet_forward.4} parent=0 // pred_fallthru
    _
  %v20 = vld [vmem:[%s0] sm:$0xff]
  %v21 = vld [vmem:[%s0 + $0x8] sm:$0xff]
  %v22 = vld [vmem:[%s0 + $0x10] sm:$0xff]
  %v23 = vld [vmem:[%s0 + $0x18] sm:$0xff]
  %v24 = vld [vmem:[%s0 + $0x20] sm:$0xf]
  %v25 = vld [vmem:[%s0 + $0x24] sm:$0xff]
  %v26 = vld [vmem:[%s0 + $0x2c] sm:$0xff]
  %v27 = vld [vmem:[%s0 + $0x34] sm:$0xff]
  %v28 = vld [vmem:[%s0 + $0x3c] sm:$0xff]
  %v29 = vld [vmem:[%s0 + $0x44] sm:$0xf]
  %v30 = vld [vmem:[%s0 + $0x48] sm:$0xff]
  %v31 = vld [vmem:[%s0 + $0x50] sm:$0xff]
  %v32 = vld [vmem:[%s0 + $0x58] sm:$0xff]
  %v33 = vld [vmem:[%s0 + $0x60] sm:$0xff]
  %v34 = vld [vmem:[%s0 + $0x68] sm:$0xf]
  %v35 = vld [vmem:[%s0 + $0x6c] sm:$0xff]
  %v36 = vld [vmem:[%s0 + $0x74] sm:$0xff]
  %v37 = vld [vmem:[%s0 + $0x7c] sm:$0xff]
  %v38 = vld [vmem:[%s0 + $0x84] sm:$0xff]
  %v39 = vld [vmem:[%s0 + $0x8c] sm:$0xf]
  %v40 = vld [vmem:[%s0 + $0x90] sm:$0xff]
  %v41 = vld [vmem:[%s0 + $0x98] sm:$0xff]
  %v42 = vld [vmem:[%s0 + $0xa0] sm:$0xff]
  %v43 = vld [vmem:[%s0 + $0xa8] sm:$0xff]
  %v44 = vld [vmem:[%s0 + $0xb0] sm:$0xf]
  %v45 = vld [vmem:[%s0 + $0xb4] sm:$0xff]
  %v46 = vld [vmem:[%s0 + $0xbc] sm:$0xff]
  %v47 = vld [vmem:[%s0 + $0xc4] sm:$0xff]
  %v48 = vld [vmem:[%s0 + $0xcc] sm:$0xff]
  %v49 = vld [vmem:[%s0 + $0xd4] sm:$0xf]
  %v50 = vld [vmem:[%s0 + $0xd8] sm:$0xff]
  %v51 = vld [vmem:[%s0 + $0xe0] sm:$0xff]
  %v52 = vld [vmem:[%s0 + $0xe8] sm:$0xff]
  %v53 = vld [vmem:[%s0 + $0xf0] sm:$0xff]
  %v54 = vld [vmem:[%s0 + $0xf8] sm:$0xf]
  %v55 = vld [vmem:[%s0 + $0xfc] sm:$0xff]
  %v56 = vld [vmem:[%s0 + $0x104] sm:$0xff]
  %v57 = vld [vmem:[%s0 + $0x10c] sm:$0xff]
  %v58 = vld [vmem:[%s0 + $0x114] sm:$0xff]
  %v59 = vld [vmem:[%s0 + $0x11c] sm:$0xf]
  %v60 = vld [vmem:[%s0 + $0x120] sm:$0xff]
  %v61 = vld [vmem:[%s0 + $0x128] sm:$0xff]
  %v62 = vld [vmem:[%s0 + $0x130] sm:$0xff]
  %v63 = vld [vmem:[%s0 + $0x138] sm:$0xff]
  %v64 = vld [vmem:[%s0 + $0x140] sm:$0xf]
  %v65 = vld [vmem:[%s0 + $0x144] sm:$0xff]
  %v66 = vld [vmem:[%s0 + $0x14c] sm:$0xff]
  %v67 = vld [vmem:[%s0 + $0x154] sm:$0xff]
  %v68 = vld [vmem:[%s0 + $0x15c] sm:$0xff]
  %v69 = vld [vmem:[%s0 + $0x164] sm:$0xf]
  %v70 = vld [vmem:[%s0 + $0x168] sm:$0xff]
  %v71 = vld [vmem:[%s0 + $0x170] sm:$0xff]
  %v72 = vld [vmem:[%s0 + $0x178] sm:$0xff]
  %v73 = vld [vmem:[%s0 + $0x180] sm:$0xff]
  %v74 = vld [vmem:[%s0 + $0x188] sm:$0xf]
  %v75 = vld [vmem:[%s0 + $0x18c] sm:$0xff]
  %v76 = vld [vmem:[%s0 + $0x194] sm:$0xff]
  %v77 = vld [vmem:[%s0 + $0x19c] sm:$0xff]
  %v78 = vld [vmem:[%s0 + $0x1a4] sm:$0xff]
  %v79 = vld [vmem:[%s0 + $0x1ac] sm:$0xf]
  %v80 = vld [vmem:[%s0 + $0x1b0] sm:$0xff]
  %v81 = vld [vmem:[%s0 + $0x1b8] sm:$0xff]
  %v82 = vld [vmem:[%s0 + $0x1c0] sm:$0xff]
  %v83 = vld [vmem:[%s0 + $0x1c8] sm:$0xff]
  %v84 = vld [vmem:[%s0 + $0x1d0] sm:$0xf]
  %v85 = vld [vmem:[%s0 + $0x1d4] sm:$0xff]
  %v86 = vld [vmem:[%s0 + $0x1dc] sm:$0xff]
  %v87 = vld [vmem:[%s0 + $0x1e4] sm:$0xff]
  %v88 = vld [vmem:[%s0 + $0x1ec] sm:$0xff]
  %v89 = vld [vmem:[%s0 + $0x1f4] sm:$0xf]
  %v90 = vld [vmem:[%s0 + $0x1f8] sm:$0xff]
  %v91 = vld [vmem:[%s0 + $0x200] sm:$0xff]
  %v92 = vld [vmem:[%s0 + $0x208] sm:$0xff]
  %v93 = vld [vmem:[%s0 + $0x210] sm:$0xff]
  %v94 = vld [vmem:[%s0 + $0x218] sm:$0xf]
  %v95 = vld [vmem:[%s0 + $0x21c] sm:$0xff]
  %v96 = vld [vmem:[%s0 + $0x224] sm:$0xff]
  %v97 = vld [vmem:[%s0 + $0x22c] sm:$0xff]
  %v98 = vld [vmem:[%s0 + $0x234] sm:$0xff]
  %v99 = vld [vmem:[%s0 + $0x23c] sm:$0xf]
  %v100 = vld [vmem:[%s1] sm:$0xff]
  %v101 = vld [vmem:[%s1 + $0x8] sm:$0xff]
  %v102 = vld [vmem:[%s1 + $0x10] sm:$0xff]
  %v103 = vld [vmem:[%s1 + $0x18] sm:$0xff]
  %v104 = vld [vmem:[%s1 + $0x20] sm:$0xff]
  %v105 = vld [vmem:[%s1 + $0x28] sm:$0xff]
  %v106 = vld [vmem:[%s1 + $0x30] sm:$0xff]
  %v107 = vld [vmem:[%s1 + $0x38] sm:$0xff]
  %v108 = vld [vmem:[%s1 + $0x40] sm:$0xff]
  %v109 = vld [vmem:[%s1 + $0x48] sm:$0xff]
  %v110 = vld [vmem:[%s1 + $0x50] sm:$0xff]
  %v111 = vld [vmem:[%s1 + $0x58] sm:$0xff]
  %v112 = vld [vmem:[%s1 + $0x60] sm:$0xff]
  %v113 = vld [vmem:[%s1 + $0x68] sm:$0xff]
  %v114 = vld [vmem:[%s1 + $0x70] sm:$0xff]
  %v115 = vld [vmem:[%s1 + $0x78] sm:$0xff]
  %v116 = vld [vmem:[%s1 + $0x80] sm:$0xff]
  %v117 = vld [vmem:[%s1 + $0x88] sm:$0xff]
  %v118 = vld [vmem:[%s1 + $0x90] sm:$0xff]
  %v119 = vld [vmem:[%s1 + $0x98] sm:$0xff]
  %v120 = vld [vmem:[%s1 + $0xa0] sm:$0xff]
  %v121 = vld [vmem:[%s1 + $0xa8] sm:$0xff]
  %v122 = vld [vmem:[%s1 + $0xb0] sm:$0xff]
  %v123 = vld [vmem:[%s1 + $0xb8] sm:$0xff]
  %v124 = vld [vmem:[%s1 + $0xc0] sm:$0xff]
  %v125 = vld [vmem:[%s1 + $0xc8] sm:$0xff]
  %v126 = vld [vmem:[%s1 + $0xd0] sm:$0xff]
  %v127 = vld [vmem:[%s1 + $0xd8] sm:$0xff]
  %v128 = vld [vmem:[%s1 + $0xe0] sm:$0xff]
  %v129 = vld [vmem:[%s1 + $0xe8] sm:$0xff]
  %v130 = vld [vmem:[%s1 + $0xf0] sm:$0xff]
  %v131 = vld [vmem:[%s1 + $0xf8] sm:$0xff]
  %v132 = vld [vmem:[%s1 + $0x100] sm:$0xff]
  %v133 = vld [vmem:[%s1 + $0x108] sm:$0xff]
  %v134 = vld [vmem:[%s1 + $0x110] sm:$0xff]
  %v135 = vld [vmem:[%s1 + $0x118] sm:$0xff]
  %v136 = vld [vmem:[%s1 + $0x120] sm:$0xff]
  %v137 = vld [vmem:[%s1 + $0x128] sm:$0xff]
  %v138 = vld [vmem:[%s1 + $0x130] sm:$0xff]
  %v139 = vld [vmem:[%s1 + $0x138] sm:$0xff]
  %v140 = vld [vmem:[%s1 + $0x140] sm:$0xff]
  %v141 = vld [vmem:[%s1 + $0x148] sm:$0xff]
  %v142 = vld [vmem:[%s1 + $0x150] sm:$0xff]
  %v143 = vld [vmem:[%s1 + $0x158] sm:$0xff]
  %v144 = vld [vmem:[%s1 + $0x160] sm:$0xff]
  %v145 = vld [vmem:[%s1 + $0x168] sm:$0xff]
  %v146 = vld [vmem:[%s1 + $0x170] sm:$0xff]
  %v147 = vld [vmem:[%s1 + $0x178] sm:$0xff]
  %v148 = vld [vmem:[%s1 + $0x180] sm:$0xff]
  %v149 = vld [vmem:[%s1 + $0x188] sm:$0xff]
  %v150 = vld [vmem:[%s1 + $0x190] sm:$0xff]
  %v151 = vld [vmem:[%s1 + $0x198] sm:$0xff]
  %v152 = vld [vmem:[%s1 + $0x1a0] sm:$0xff]
  %v153 = vld [vmem:[%s1 + $0x1a8] sm:$0xff]
  %v154 = vld [vmem:[%s1 + $0x1b0] sm:$0xff]
  %v155 = vld [vmem:[%s1 + $0x1b8] sm:$0xff]
  %v156 = vld [vmem:[%s1 + $0x1c0] sm:$0xff]
  %v157 = vld [vmem:[%s1 + $0x1c8] sm:$0xff]
  %v158 = vld [vmem:[%s1 + $0x1d0] sm:$0xff]
  %v159 = vld [vmem:[%s1 + $0x1d8] sm:$0xff]
  %v160 = vld [vmem:[%s1 + $0x1e0] sm:$0xff]
  %v161 = vld [vmem:[%s1 + $0x1e8] sm:$0xff]
  %v162 = vld [vmem:[%s1 + $0x1f0] sm:$0xff]
  %v163 = vld [vmem:[%s1 + $0x1f8] sm:$0xff]
  %v164 = vld [vmem:[%s1 + $0x200] sm:$0xff]
  %v165 = vld [vmem:[%s1 + $0x208] sm:$0xff]
  %v166 = vld [vmem:[%s1 + $0x210] sm:$0xff]
  %v167 = vld [vmem:[%s1 + $0x218] sm:$0xff]
  %v168 = vld [vmem:[%s1 + $0x220] sm:$0xff]
  %v169 = vld [vmem:[%s1 + $0x228] sm:$0xff]
  %v170 = vld [vmem:[%s1 + $0x230] sm:$0xff]
  %v171 = vld [vmem:[%s1 + $0x238] sm:$0xff]
  %v172 = vld [vmem:[%s1 + $0x240] sm:$0xff]
  %v173 = vld [vmem:[%s1 + $0x248] sm:$0xff]
  %v174 = vld [vmem:[%s1 + $0x250] sm:$0xff]
  %v175 = vld [vmem:[%s1 + $0x258] sm:$0xff]
  %v176 = vld [vmem:[%s1 + $0x260] sm:$0xff]
  %v177 = vld [vmem:[%s1 + $0x268] sm:$0xff]
  %v178 = vld [vmem:[%s1 + $0x270] sm:$0xff]
  %v179 = vld [vmem:[%s1 + $0x278] sm:$0xff]
  %v180 = vld [vmem:[%s1 + $0x280] sm:$0xff]
  %v181 = vld [vmem:[%s1 + $0x288] sm:$0xff]
  %v182 = vld [vmem:[%s1 + $0x290] sm:$0xff]
  %v183 = vld [vmem:[%s1 + $0x298] sm:$0xff]
  %v184 = vld [vmem:[%s1 + $0x2a0] sm:$0xff]
  %v185 = vld [vmem:[%s1 + $0x2a8] sm:$0xff]
  %v186 = vld [vmem:[%s1 + $0x2b0] sm:$0xff]
  %v187 = vld [vmem:[%s1 + $0x2b8] sm:$0xff]
  %v188 = vld [vmem:[%s1 + $0x2c0] sm:$0xff]
  %v189 = vld [vmem:[%s1 + $0x2c8] sm:$0xff]
  %v190 = vld [vmem:[%s1 + $0x2d0] sm:$0xff]
  %v191 = vld [vmem:[%s1 + $0x2d8] sm:$0xff]
  %v192 = vld [vmem:[%s1 + $0x2e0] sm:$0xff]
  %v193 = vld [vmem:[%s1 + $0x2e8] sm:$0xff]
  %v194 = vld [vmem:[%s1 + $0x2f0] sm:$0xff]
  %v195 = vld [vmem:[%s1 + $0x2f8] sm:$0xff]
  %v196 = vld [vmem:[%s1 + $0x300] sm:$0xff]
  %v197 = vld [vmem:[%s1 + $0x308] sm:$0xff]
  %v198 = vld [vmem:[%s1 + $0x310] sm:$0xff]
  %v199 = vld [vmem:[%s1 + $0x318] sm:$0xff]
  %v200 = vld [vmem:[%s1 + $0x320] sm:$0xff]
  %v201 = vld [vmem:[%s1 + $0x328] sm:$0xff]
  %v202 = vld [vmem:[%s1 + $0x330] sm:$0xff]
  %v203 = vld [vmem:[%s1 + $0x338] sm:$0xff]
  %v204 = vld [vmem:[%s1 + $0x340] sm:$0xff]
  %v205 = vld [vmem:[%s1 + $0x348] sm:$0xff]
  %v206 = vld [vmem:[%s1 + $0x350] sm:$0xff]
  %v207 = vld [vmem:[%s1 + $0x358] sm:$0xff]
  %v208 = vld [vmem:[%s1 + $0x360] sm:$0xff]
  %v209 = vld [vmem:[%s1 + $0x368] sm:$0xff]
  %v210 = vld [vmem:[%s1 + $0x370] sm:$0xff]
  %v211 = vld [vmem:[%s1 + $0x378] sm:$0xff]
  %v212 = vld [vmem:[%s1 + $0x380] sm:$0xff]
  %v213 = vld [vmem:[%s1 + $0x388] sm:$0xff]
  %v214 = vld [vmem:[%s1 + $0x390] sm:$0xff]
  %v215 = vld [vmem:[%s1 + $0x398] sm:$0xff]
  %v216 = vld [vmem:[%s1 + $0x3a0] sm:$0xff]
  %v217 = vld [vmem:[%s1 + $0x3a8] sm:$0xff]
  %v218 = vld [vmem:[%s1 + $0x3b0] sm:$0xff]
  %v219 = vld [vmem:[%s1 + $0x3b8] sm:$0xff]
  %v220 = vld [vmem:[%s1 + $0x3c0] sm:$0xff]
  %v221 = vld [vmem:[%s1 + $0x3c8] sm:$0xff]
  %v222 = vld [vmem:[%s1 + $0x3d0] sm:$0xff]
  %v223 = vld [vmem:[%s1 + $0x3d8] sm:$0xff]
  %v224 = vld [vmem:[%s1 + $0x3e0] sm:$0xff]
  %v225 = vld [vmem:[%s1 + $0x3e8] sm:$0xff]
  %v226 = vld [vmem:[%s1 + $0x3f0] sm:$0xff]
  %v227 = vld [vmem:[%s1 + $0x3f8] sm:$0xff]
  %v228 = vld [vmem:[%s1 + $0x400] sm:$0xff]
  %v229 = vld [vmem:[%s1 + $0x408] sm:$0xff]
  %v230 = vld [vmem:[%s1 + $0x410] sm:$0xff]
  %v231 = vld [vmem:[%s1 + $0x418] sm:$0xff]
  %v232 = vld [vmem:[%s1 + $0x420] sm:$0xff]
  %v233 = vld [vmem:[%s1 + $0x428] sm:$0xff]
  %v234 = vld [vmem:[%s1 + $0x430] sm:$0xff]
  %v235 = vld [vmem:[%s1 + $0x438] sm:$0xff]
  %v236 = vld [vmem:[%s1 + $0x440] sm:$0xff]
  %v237 = vld [vmem:[%s1 + $0x448] sm:$0xff]
  %v238 = vld [vmem:[%s1 + $0x450] sm:$0xff]
  %v239 = vld [vmem:[%s1 + $0x458] sm:$0xff]
  %v240 = vld [vmem:[%s1 + $0x460] sm:$0xff]
  %v241 = vld [vmem:[%s1 + $0x468] sm:$0xff]
  %v242 = vld [vmem:[%s1 + $0x470] sm:$0xff]
  %v243 = vld [vmem:[%s1 + $0x478] sm:$0xff]
  %v244 = vld [vmem:[%s2] sm:$0x3]
  %v246 = vperm.slane %v244, 0
  %v247 = vperm.slane %v244, 1
  %v330 = vunpack.c.l.b16 %v20
  %v331 = vunpack.c.h.b16 %v20
  %v332 = vunpack.c.l.b16 %v21
  %v333 = vunpack.c.h.b16 %v21
  %v334 = vunpack.c.l.b16 %v22
  %v335 = vunpack.c.h.b16 %v22
  %v336 = vunpack.c.l.b16 %v23
  %v337 = vunpack.c.h.b16 %v23
  %v338 = vunpack.c.l.b16 %v24
  %v339 = vunpack.c.l.b16 %v25
  %v340 = vunpack.c.h.b16 %v25
  %v341 = vunpack.c.l.b16 %v26
  %v342 = vunpack.c.h.b16 %v26
  %v343 = vunpack.c.l.b16 %v27
  %v344 = vunpack.c.h.b16 %v27
  %v345 = vunpack.c.l.b16 %v28
  %v346 = vunpack.c.h.b16 %v28
  %v347 = vunpack.c.l.b16 %v29
  %v348 = vunpack.c.l.b16 %v30
  %v349 = vunpack.c.h.b16 %v30
  %v350 = vunpack.c.l.b16 %v31
  %v351 = vunpack.c.h.b16 %v31
  %v352 = vunpack.c.l.b16 %v32
  %v353 = vunpack.c.h.b16 %v32
  %v354 = vunpack.c.l.b16 %v33
  %v355 = vunpack.c.h.b16 %v33
  %v356 = vunpack.c.l.b16 %v34
  %v357 = vunpack.c.l.b16 %v35
  %v358 = vunpack.c.h.b16 %v35
  %v359 = vunpack.c.l.b16 %v36
  %v360 = vunpack.c.h.b16 %v36
  %v361 = vunpack.c.l.b16 %v37
  %v362 = vunpack.c.h.b16 %v37
  %v363 = vunpack.c.l.b16 %v38
  %v364 = vunpack.c.h.b16 %v38
  %v365 = vunpack.c.l.b16 %v39
  %v366 = vunpack.c.l.b16 %v40
  %v367 = vunpack.c.h.b16 %v40
  %v368 = vunpack.c.l.b16 %v41
  %v369 = vunpack.c.h.b16 %v41
  %v370 = vunpack.c.l.b16 %v42
  %v371 = vunpack.c.h.b16 %v42
  %v372 = vunpack.c.l.b16 %v43
  %v373 = vunpack.c.h.b16 %v43
  %v374 = vunpack.c.l.b16 %v44
  %v375 = vunpack.c.l.b16 %v45
  %v376 = vunpack.c.h.b16 %v45
  %v377 = vunpack.c.l.b16 %v46
  %v378 = vunpack.c.h.b16 %v46
  %v379 = vunpack.c.l.b16 %v47
  %v380 = vunpack.c.h.b16 %v47
  %v381 = vunpack.c.l.b16 %v48
  %v382 = vunpack.c.h.b16 %v48
  %v383 = vunpack.c.l.b16 %v49
  %v384 = vunpack.c.l.b16 %v50
  %v385 = vunpack.c.h.b16 %v50
  %v386 = vunpack.c.l.b16 %v51
  %v387 = vunpack.c.h.b16 %v51
  %v388 = vunpack.c.l.b16 %v52
  %v389 = vunpack.c.h.b16 %v52
  %v390 = vunpack.c.l.b16 %v53
  %v391 = vunpack.c.h.b16 %v53
  %v392 = vunpack.c.l.b16 %v54
  %v393 = vunpack.c.l.b16 %v55
  %v394 = vunpack.c.h.b16 %v55
  %v395 = vunpack.c.l.b16 %v56
  %v396 = vunpack.c.h.b16 %v56
  %v397 = vunpack.c.l.b16 %v57
  %v398 = vunpack.c.h.b16 %v57
  %v399 = vunpack.c.l.b16 %v58
  %v400 = vunpack.c.h.b16 %v58
  %v401 = vunpack.c.l.b16 %v59
  %v402 = vunpack.c.l.b16 %v60
  %v403 = vunpack.c.h.b16 %v60
  %v404 = vunpack.c.l.b16 %v61
  %v405 = vunpack.c.h.b16 %v61
  %v406 = vunpack.c.l.b16 %v62
  %v407 = vunpack.c.h.b16 %v62
  %v408 = vunpack.c.l.b16 %v63
  %v409 = vunpack.c.h.b16 %v63
  %v410 = vunpack.c.l.b16 %v64
  %v411 = vunpack.c.l.b16 %v65
  %v412 = vunpack.c.h.b16 %v65
  %v413 = vunpack.c.l.b16 %v66
  %v414 = vunpack.c.h.b16 %v66
  %v415 = vunpack.c.l.b16 %v67
  %v416 = vunpack.c.h.b16 %v67
  %v417 = vunpack.c.l.b16 %v68
  %v418 = vunpack.c.h.b16 %v68
  %v419 = vunpack.c.l.b16 %v69
  %v420 = vunpack.c.l.b16 %v70
  %v421 = vunpack.c.h.b16 %v70
  %v422 = vunpack.c.l.b16 %v71
  %v423 = vunpack.c.h.b16 %v71
  %v424 = vunpack.c.l.b16 %v72
  %v425 = vunpack.c.h.b16 %v72
  %v426 = vunpack.c.l.b16 %v73
  %v427 = vunpack.c.h.b16 %v73
  %v428 = vunpack.c.l.b16 %v74
  %v429 = vunpack.c.l.b16 %v75
  %v430 = vunpack.c.h.b16 %v75
  %v431 = vunpack.c.l.b16 %v76
  %v432 = vunpack.c.h.b16 %v76
  %v433 = vunpack.c.l.b16 %v77
  %v434 = vunpack.c.h.b16 %v77
  %v435 = vunpack.c.l.b16 %v78
  %v436 = vunpack.c.h.b16 %v78
  %v437 = vunpack.c.l.b16 %v79
  %v438 = vunpack.c.l.b16 %v80
  %v439 = vunpack.c.h.b16 %v80
  %v440 = vunpack.c.l.b16 %v81
  %v441 = vunpack.c.h.b16 %v81
  %v442 = vunpack.c.l.b16 %v82
  %v443 = vunpack.c.h.b16 %v82
  %v444 = vunpack.c.l.b16 %v83
  %v445 = vunpack.c.h.b16 %v83
  %v446 = vunpack.c.l.b16 %v84
  %v447 = vunpack.c.l.b16 %v85
  %v448 = vunpack.c.h.b16 %v85
  %v449 = vunpack.c.l.b16 %v86
  %v450 = vunpack.c.h.b16 %v86
  %v451 = vunpack.c.l.b16 %v87
  %v452 = vunpack.c.h.b16 %v87
  %v453 = vunpack.c.l.b16 %v88
  %v454 = vunpack.c.h.b16 %v88
  %v455 = vunpack.c.l.b16 %v89
  %v456 = vunpack.c.l.b16 %v90
  %v457 = vunpack.c.h.b16 %v90
  %v458 = vunpack.c.l.b16 %v91
  %v459 = vunpack.c.h.b16 %v91
  %v460 = vunpack.c.l.b16 %v92
  %v461 = vunpack.c.h.b16 %v92
  %v462 = vunpack.c.l.b16 %v93
  %v463 = vunpack.c.h.b16 %v93
  %v464 = vunpack.c.l.b16 %v94
  %v465 = vunpack.c.l.b16 %v95
  %v466 = vunpack.c.h.b16 %v95
  %v467 = vunpack.c.l.b16 %v96
  %v468 = vunpack.c.h.b16 %v96
  %v469 = vunpack.c.l.b16 %v97
  %v470 = vunpack.c.h.b16 %v97
  %v471 = vunpack.c.l.b16 %v98
  %v472 = vunpack.c.h.b16 %v98
  %v473 = vunpack.c.l.b16 %v99
  %v474 = vpack.c.b16 %v339, %v330
  %v475 = vpack.c.b16 %v340, %v331
  %v476 = vpack.c.b16 %v341, %v332
  %v477 = vpack.c.b16 %v342, %v333
  %v478 = vpack.c.b16 %v343, %v334
  %v479 = vpack.c.b16 %v344, %v335
  %v480 = vpack.c.b16 %v345, %v336
  %v481 = vpack.c.b16 %v346, %v337
  %v482 = vpack.c.b16 %v347, %v338
  %v483 = vpack.c.b16 %v357, %v348
  %v484 = vpack.c.b16 %v358, %v349
  %v485 = vpack.c.b16 %v359, %v350
  %v486 = vpack.c.b16 %v360, %v351
  %v487 = vpack.c.b16 %v361, %v352
  %v488 = vpack.c.b16 %v362, %v353
  %v489 = vpack.c.b16 %v363, %v354
  %v490 = vpack.c.b16 %v364, %v355
  %v491 = vpack.c.b16 %v365, %v356
  %v492 = vpack.c.b16 %v375, %v366
  %v493 = vpack.c.b16 %v376, %v367
  %v494 = vpack.c.b16 %v377, %v368
  %v495 = vpack.c.b16 %v378, %v369
  %v496 = vpack.c.b16 %v379, %v370
  %v497 = vpack.c.b16 %v380, %v371
  %v498 = vpack.c.b16 %v381, %v372
  %v499 = vpack.c.b16 %v382, %v373
  %v500 = vpack.c.b16 %v383, %v374
  %v501 = vpack.c.b16 %v393, %v384
  %v502 = vpack.c.b16 %v394, %v385
  %v503 = vpack.c.b16 %v395, %v386
  %v504 = vpack.c.b16 %v396, %v387
  %v505 = vpack.c.b16 %v397, %v388
  %v506 = vpack.c.b16 %v398, %v389
  %v507 = vpack.c.b16 %v399, %v390
  %v508 = vpack.c.b16 %v400, %v391
  %v509 = vpack.c.b16 %v401, %v392
  %v510 = vpack.c.b16 %v411, %v402
  %v511 = vpack.c.b16 %v412, %v403
  %v512 = vpack.c.b16 %v413, %v404
  %v513 = vpack.c.b16 %v414, %v405
  %v514 = vpack.c.b16 %v415, %v406
  %v515 = vpack.c.b16 %v416, %v407
  %v516 = vpack.c.b16 %v417, %v408
  %v517 = vpack.c.b16 %v418, %v409
  %v518 = vpack.c.b16 %v419, %v410
  %v519 = vpack.c.b16 %v429, %v420
  %v520 = vpack.c.b16 %v430, %v421
  %v521 = vpack.c.b16 %v431, %v422
  %v522 = vpack.c.b16 %v432, %v423
  %v523 = vpack.c.b16 %v433, %v424
  %v524 = vpack.c.b16 %v434, %v425
  %v525 = vpack.c.b16 %v435, %v426
  %v526 = vpack.c.b16 %v436, %v427
  %v527 = vpack.c.b16 %v437, %v428
  %v528 = vpack.c.b16 %v447, %v438
  %v529 = vpack.c.b16 %v448, %v439
  %v530 = vpack.c.b16 %v449, %v440
  %v531 = vpack.c.b16 %v450, %v441
  %v532 = vpack.c.b16 %v451, %v442
  %v533 = vpack.c.b16 %v452, %v443
  %v534 = vpack.c.b16 %v453, %v444
  %v535 = vpack.c.b16 %v454, %v445
  %v536 = vpack.c.b16 %v455, %v446
  %v537 = vpack.c.b16 %v465, %v456
  %v538 = vpack.c.b16 %v466, %v457
  %v539 = vpack.c.b16 %v467, %v458
  %v540 = vpack.c.b16 %v468, %v459
  %v541 = vpack.c.b16 %v469, %v460
  %v542 = vpack.c.b16 %v470, %v461
  %v543 = vpack.c.b16 %v471, %v462
  %v544 = vpack.c.b16 %v472, %v463
  %v545 = vpack.c.b16 %v473, %v464
  %v762 = vunpack.c.l.b16 %v100
  %v763 = vunpack.c.h.b16 %v100
  %v764 = vunpack.c.l.b16 %v101
  %v765 = vunpack.c.h.b16 %v101
  %v766 = vunpack.c.l.b16 %v102
  %v767 = vunpack.c.h.b16 %v102
  %v768 = vunpack.c.l.b16 %v103
  %v769 = vunpack.c.h.b16 %v103
  %v770 = vunpack.c.l.b16 %v104
  %v771 = vunpack.c.h.b16 %v104
  %v772 = vunpack.c.l.b16 %v105
  %v773 = vunpack.c.h.b16 %v105
  %v774 = vunpack.c.l.b16 %v106
  %v775 = vunpack.c.h.b16 %v106
  %v776 = vunpack.c.l.b16 %v107
  %v777 = vunpack.c.h.b16 %v107
  %v778 = vunpack.c.l.b16 %v108
  %v779 = vunpack.c.h.b16 %v108
  %v780 = vunpack.c.l.b16 %v109
  %v781 = vunpack.c.h.b16 %v109
  %v782 = vunpack.c.l.b16 %v110
  %v783 = vunpack.c.h.b16 %v110
  %v784 = vunpack.c.l.b16 %v111
  %v785 = vunpack.c.h.b16 %v111
  %v786 = vunpack.c.l.b16 %v112
  %v787 = vunpack.c.h.b16 %v112
  %v788 = vunpack.c.l.b16 %v113
  %v789 = vunpack.c.h.b16 %v113
  %v790 = vunpack.c.l.b16 %v114
  %v791 = vunpack.c.h.b16 %v114
  %v792 = vunpack.c.l.b16 %v115
  %v793 = vunpack.c.h.b16 %v115
  %v794 = vunpack.c.l.b16 %v116
  %v795 = vunpack.c.h.b16 %v116
  %v796 = vunpack.c.l.b16 %v117
  %v797 = vunpack.c.h.b16 %v117
  %v798 = vunpack.c.l.b16 %v118
  %v799 = vunpack.c.h.b16 %v118
  %v800 = vunpack.c.l.b16 %v119
  %v801 = vunpack.c.h.b16 %v119
  %v802 = vunpack.c.l.b16 %v120
  %v803 = vunpack.c.h.b16 %v120
  %v804 = vunpack.c.l.b16 %v121
  %v805 = vunpack.c.h.b16 %v121
  %v806 = vunpack.c.l.b16 %v122
  %v807 = vunpack.c.h.b16 %v122
  %v808 = vunpack.c.l.b16 %v123
  %v809 = vunpack.c.h.b16 %v123
  %v810 = vunpack.c.l.b16 %v124
  %v811 = vunpack.c.h.b16 %v124
  %v812 = vunpack.c.l.b16 %v125
  %v813 = vunpack.c.h.b16 %v125
  %v814 = vunpack.c.l.b16 %v126
  %v815 = vunpack.c.h.b16 %v126
  %v816 = vunpack.c.l.b16 %v127
  %v817 = vunpack.c.h.b16 %v127
  %v818 = vunpack.c.l.b16 %v128
  %v819 = vunpack.c.h.b16 %v128
  %v820 = vunpack.c.l.b16 %v129
  %v821 = vunpack.c.h.b16 %v129
  %v822 = vunpack.c.l.b16 %v130
  %v823 = vunpack.c.h.b16 %v130
  %v824 = vunpack.c.l.b16 %v131
  %v825 = vunpack.c.h.b16 %v131
  %v826 = vunpack.c.l.b16 %v132
  %v827 = vunpack.c.h.b16 %v132
  %v828 = vunpack.c.l.b16 %v133
  %v829 = vunpack.c.h.b16 %v133
  %v830 = vunpack.c.l.b16 %v134
  %v831 = vunpack.c.h.b16 %v134
  %v832 = vunpack.c.l.b16 %v135
  %v833 = vunpack.c.h.b16 %v135
  %v834 = vunpack.c.l.b16 %v136
  %v835 = vunpack.c.h.b16 %v136
  %v836 = vunpack.c.l.b16 %v137
  %v837 = vunpack.c.h.b16 %v137
  %v838 = vunpack.c.l.b16 %v138
  %v839 = vunpack.c.h.b16 %v138
  %v840 = vunpack.c.l.b16 %v139
  %v841 = vunpack.c.h.b16 %v139
  %v842 = vunpack.c.l.b16 %v140
  %v843 = vunpack.c.h.b16 %v140
  %v844 = vunpack.c.l.b16 %v141
  %v845 = vunpack.c.h.b16 %v141
  %v846 = vunpack.c.l.b16 %v142
  %v847 = vunpack.c.h.b16 %v142
  %v848 = vunpack.c.l.b16 %v143
  %v849 = vunpack.c.h.b16 %v143
  %v850 = vunpack.c.l.b16 %v144
  %v851 = vunpack.c.h.b16 %v144
  %v852 = vunpack.c.l.b16 %v145
  %v853 = vunpack.c.h.b16 %v145
  %v854 = vunpack.c.l.b16 %v146
  %v855 = vunpack.c.h.b16 %v146
  %v856 = vunpack.c.l.b16 %v147
  %v857 = vunpack.c.h.b16 %v147
  %v858 = vunpack.c.l.b16 %v148
  %v859 = vunpack.c.h.b16 %v148
  %v860 = vunpack.c.l.b16 %v149
  %v861 = vunpack.c.h.b16 %v149
  %v862 = vunpack.c.l.b16 %v150
  %v863 = vunpack.c.h.b16 %v150
  %v864 = vunpack.c.l.b16 %v151
  %v865 = vunpack.c.h.b16 %v151
  %v866 = vunpack.c.l.b16 %v152
  %v867 = vunpack.c.h.b16 %v152
  %v868 = vunpack.c.l.b16 %v153
  %v869 = vunpack.c.h.b16 %v153
  %v870 = vunpack.c.l.b16 %v154
  %v871 = vunpack.c.h.b16 %v154
  %v872 = vunpack.c.l.b16 %v155
  %v873 = vunpack.c.h.b16 %v155
  %v874 = vunpack.c.l.b16 %v156
  %v875 = vunpack.c.h.b16 %v156
  %v876 = vunpack.c.l.b16 %v157
  %v877 = vunpack.c.h.b16 %v157
  %v878 = vunpack.c.l.b16 %v158
  %v879 = vunpack.c.h.b16 %v158
  %v880 = vunpack.c.l.b16 %v159
  %v881 = vunpack.c.h.b16 %v159
  %v882 = vunpack.c.l.b16 %v160
  %v883 = vunpack.c.h.b16 %v160
  %v884 = vunpack.c.l.b16 %v161
  %v885 = vunpack.c.h.b16 %v161
  %v886 = vunpack.c.l.b16 %v162
  %v887 = vunpack.c.h.b16 %v162
  %v888 = vunpack.c.l.b16 %v163
  %v889 = vunpack.c.h.b16 %v163
  %v890 = vunpack.c.l.b16 %v164
  %v891 = vunpack.c.h.b16 %v164
  %v892 = vunpack.c.l.b16 %v165
  %v893 = vunpack.c.h.b16 %v165
  %v894 = vunpack.c.l.b16 %v166
  %v895 = vunpack.c.h.b16 %v166
  %v896 = vunpack.c.l.b16 %v167
  %v897 = vunpack.c.h.b16 %v167
  %v898 = vunpack.c.l.b16 %v168
  %v899 = vunpack.c.h.b16 %v168
  %v900 = vunpack.c.l.b16 %v169
  %v901 = vunpack.c.h.b16 %v169
  %v902 = vunpack.c.l.b16 %v170
  %v903 = vunpack.c.h.b16 %v170
  %v904 = vunpack.c.l.b16 %v171
  %v905 = vunpack.c.h.b16 %v171
  %v906 = vunpack.c.l.b16 %v172
  %v907 = vunpack.c.h.b16 %v172
  %v908 = vunpack.c.l.b16 %v173
  %v909 = vunpack.c.h.b16 %v173
  %v910 = vunpack.c.l.b16 %v174
  %v911 = vunpack.c.h.b16 %v174
  %v912 = vunpack.c.l.b16 %v175
  %v913 = vunpack.c.h.b16 %v175
  %v914 = vunpack.c.l.b16 %v176
  %v915 = vunpack.c.h.b16 %v176
  %v916 = vunpack.c.l.b16 %v177
  %v917 = vunpack.c.h.b16 %v177
  %v918 = vunpack.c.l.b16 %v178
  %v919 = vunpack.c.h.b16 %v178
  %v920 = vunpack.c.l.b16 %v179
  %v921 = vunpack.c.h.b16 %v179
  %v922 = vunpack.c.l.b16 %v180
  %v923 = vunpack.c.h.b16 %v180
  %v924 = vunpack.c.l.b16 %v181
  %v925 = vunpack.c.h.b16 %v181
  %v926 = vunpack.c.l.b16 %v182
  %v927 = vunpack.c.h.b16 %v182
  %v928 = vunpack.c.l.b16 %v183
  %v929 = vunpack.c.h.b16 %v183
  %v930 = vunpack.c.l.b16 %v184
  %v931 = vunpack.c.h.b16 %v184
  %v932 = vunpack.c.l.b16 %v185
  %v933 = vunpack.c.h.b16 %v185
  %v934 = vunpack.c.l.b16 %v186
  %v935 = vunpack.c.h.b16 %v186
  %v936 = vunpack.c.l.b16 %v187
  %v937 = vunpack.c.h.b16 %v187
  %v938 = vunpack.c.l.b16 %v188
  %v939 = vunpack.c.h.b16 %v188
  %v940 = vunpack.c.l.b16 %v189
  %v941 = vunpack.c.h.b16 %v189
  %v942 = vunpack.c.l.b16 %v190
  %v943 = vunpack.c.h.b16 %v190
  %v944 = vunpack.c.l.b16 %v191
  %v945 = vunpack.c.h.b16 %v191
  %v946 = vunpack.c.l.b16 %v192
  %v947 = vunpack.c.h.b16 %v192
  %v948 = vunpack.c.l.b16 %v193
  %v949 = vunpack.c.h.b16 %v193
  %v950 = vunpack.c.l.b16 %v194
  %v951 = vunpack.c.h.b16 %v194
  %v952 = vunpack.c.l.b16 %v195
  %v953 = vunpack.c.h.b16 %v195
  %v954 = vunpack.c.l.b16 %v196
  %v955 = vunpack.c.h.b16 %v196
  %v956 = vunpack.c.l.b16 %v197
  %v957 = vunpack.c.h.b16 %v197
  %v958 = vunpack.c.l.b16 %v198
  %v959 = vunpack.c.h.b16 %v198
  %v960 = vunpack.c.l.b16 %v199
  %v961 = vunpack.c.h.b16 %v199
  %v962 = vunpack.c.l.b16 %v200
  %v963 = vunpack.c.h.b16 %v200
  %v964 = vunpack.c.l.b16 %v201
  %v965 = vunpack.c.h.b16 %v201
  %v966 = vunpack.c.l.b16 %v202
  %v967 = vunpack.c.h.b16 %v202
  %v968 = vunpack.c.l.b16 %v203
  %v969 = vunpack.c.h.b16 %v203
  %v970 = vunpack.c.l.b16 %v204
  %v971 = vunpack.c.h.b16 %v204
  %v972 = vunpack.c.l.b16 %v205
  %v973 = vunpack.c.h.b16 %v205
  %v974 = vunpack.c.l.b16 %v206
  %v975 = vunpack.c.h.b16 %v206
  %v976 = vunpack.c.l.b16 %v207
  %v977 = vunpack.c.h.b16 %v207
  %v978 = vunpack.c.l.b16 %v208
  %v979 = vunpack.c.h.b16 %v208
  %v980 = vunpack.c.l.b16 %v209
  %v981 = vunpack.c.h.b16 %v209
  %v982 = vunpack.c.l.b16 %v210
  %v983 = vunpack.c.h.b16 %v210
  %v984 = vunpack.c.l.b16 %v211
  %v985 = vunpack.c.h.b16 %v211
  %v986 = vunpack.c.l.b16 %v212
  %v987 = vunpack.c.h.b16 %v212
  %v988 = vunpack.c.l.b16 %v213
  %v989 = vunpack.c.h.b16 %v213
  %v990 = vunpack.c.l.b16 %v214
  %v991 = vunpack.c.h.b16 %v214
  %v992 = vunpack.c.l.b16 %v215
  %v993 = vunpack.c.h.b16 %v215
  %v994 = vunpack.c.l.b16 %v216
  %v995 = vunpack.c.h.b16 %v216
  %v996 = vunpack.c.l.b16 %v217
  %v997 = vunpack.c.h.b16 %v217
  %v998 = vunpack.c.l.b16 %v218
  %v999 = vunpack.c.h.b16 %v218
  %v1000 = vunpack.c.l.b16 %v219
  %v1001 = vunpack.c.h.b16 %v219
  %v1002 = vunpack.c.l.b16 %v220
  %v1003 = vunpack.c.h.b16 %v220
  %v1004 = vunpack.c.l.b16 %v221
  %v1005 = vunpack.c.h.b16 %v221
  %v1006 = vunpack.c.l.b16 %v222
  %v1007 = vunpack.c.h.b16 %v222
  %v1008 = vunpack.c.l.b16 %v223
  %v1009 = vunpack.c.h.b16 %v223
  %v1010 = vunpack.c.l.b16 %v224
  %v1011 = vunpack.c.h.b16 %v224
  %v1012 = vunpack.c.l.b16 %v225
  %v1013 = vunpack.c.h.b16 %v225
  %v1014 = vunpack.c.l.b16 %v226
  %v1015 = vunpack.c.h.b16 %v226
  %v1016 = vunpack.c.l.b16 %v227
  %v1017 = vunpack.c.h.b16 %v227
  %v1018 = vunpack.c.l.b16 %v228
  %v1019 = vunpack.c.h.b16 %v228
  %v1020 = vunpack.c.l.b16 %v229
  %v1021 = vunpack.c.h.b16 %v229
  %v1022 = vunpack.c.l.b16 %v230
  %v1023 = vunpack.c.h.b16 %v230
  %v1024 = vunpack.c.l.b16 %v231
  %v1025 = vunpack.c.h.b16 %v231
  %v1026 = vunpack.c.l.b16 %v232
  %v1027 = vunpack.c.h.b16 %v232
  %v1028 = vunpack.c.l.b16 %v233
  %v1029 = vunpack.c.h.b16 %v233
  %v1030 = vunpack.c.l.b16 %v234
  %v1031 = vunpack.c.h.b16 %v234
  %v1032 = vunpack.c.l.b16 %v235
  %v1033 = vunpack.c.h.b16 %v235
  %v1034 = vunpack.c.l.b16 %v236
  %v1035 = vunpack.c.h.b16 %v236
  %v1036 = vunpack.c.l.b16 %v237
  %v1037 = vunpack.c.h.b16 %v237
  %v1038 = vunpack.c.l.b16 %v238
  %v1039 = vunpack.c.h.b16 %v238
  %v1040 = vunpack.c.l.b16 %v239
  %v1041 = vunpack.c.h.b16 %v239
  %v1042 = vunpack.c.l.b16 %v240
  %v1043 = vunpack.c.h.b16 %v240
  %v1044 = vunpack.c.l.b16 %v241
  %v1045 = vunpack.c.h.b16 %v241
  %v1046 = vunpack.c.l.b16 %v242
  %v1047 = vunpack.c.h.b16 %v242
  %v1048 = vunpack.c.l.b16 %v243
  %v1049 = vunpack.c.h.b16 %v243
  %v1050 = vpack.c.b16 %v764, %v762
  %v1051 = vpack.c.b16 %v765, %v763
  %v1052 = vpack.c.b16 %v768, %v766
  %v1053 = vpack.c.b16 %v769, %v767
  %v1054 = vpack.c.b16 %v772, %v770
  %v1055 = vpack.c.b16 %v773, %v771
  %v1056 = vpack.c.b16 %v776, %v774
  %v1057 = vpack.c.b16 %v777, %v775
  %v1058 = vpack.c.b16 %v780, %v778
  %v1059 = vpack.c.b16 %v781, %v779
  %v1060 = vpack.c.b16 %v784, %v782
  %v1061 = vpack.c.b16 %v785, %v783
  %v1062 = vpack.c.b16 %v788, %v786
  %v1063 = vpack.c.b16 %v789, %v787
  %v1064 = vpack.c.b16 %v792, %v790
  %v1065 = vpack.c.b16 %v793, %v791
  %v1066 = vpack.c.b16 %v796, %v794
  %v1067 = vpack.c.b16 %v797, %v795
  %v1068 = vpack.c.b16 %v800, %v798
  %v1069 = vpack.c.b16 %v801, %v799
  %v1070 = vpack.c.b16 %v804, %v802
  %v1071 = vpack.c.b16 %v805, %v803
  %v1072 = vpack.c.b16 %v808, %v806
  %v1073 = vpack.c.b16 %v809, %v807
  %v1074 = vpack.c.b16 %v812, %v810
  %v1075 = vpack.c.b16 %v813, %v811
  %v1076 = vpack.c.b16 %v816, %v814
  %v1077 = vpack.c.b16 %v817, %v815
  %v1078 = vpack.c.b16 %v820, %v818
  %v1079 = vpack.c.b16 %v821, %v819
  %v1080 = vpack.c.b16 %v824, %v822
  %v1081 = vpack.c.b16 %v825, %v823
  %v1082 = vpack.c.b16 %v828, %v826
  %v1083 = vpack.c.b16 %v829, %v827
  %v1084 = vpack.c.b16 %v832, %v830
  %v1085 = vpack.c.b16 %v833, %v831
  %v1086 = vpack.c.b16 %v836, %v834
  %v1087 = vpack.c.b16 %v837, %v835
  %v1088 = vpack.c.b16 %v840, %v838
  %v1089 = vpack.c.b16 %v841, %v839
  %v1090 = vpack.c.b16 %v844, %v842
  %v1091 = vpack.c.b16 %v845, %v843
  %v1092 = vpack.c.b16 %v848, %v846
  %v1093 = vpack.c.b16 %v849, %v847
  %v1094 = vpack.c.b16 %v852, %v850
  %v1095 = vpack.c.b16 %v853, %v851
  %v1096 = vpack.c.b16 %v856, %v854
  %v1097 = vpack.c.b16 %v857, %v855
  %v1098 = vpack.c.b16 %v860, %v858
  %v1099 = vpack.c.b16 %v861, %v859
  %v1100 = vpack.c.b16 %v864, %v862
  %v1101 = vpack.c.b16 %v865, %v863
  %v1102 = vpack.c.b16 %v868, %v866
  %v1103 = vpack.c.b16 %v869, %v867
  %v1104 = vpack.c.b16 %v872, %v870
  %v1105 = vpack.c.b16 %v873, %v871
  %v1106 = vpack.c.b16 %v876, %v874
  %v1107 = vpack.c.b16 %v877, %v875
  %v1108 = vpack.c.b16 %v880, %v878
  %v1109 = vpack.c.b16 %v881, %v879
  %v1110 = vpack.c.b16 %v884, %v882
  %v1111 = vpack.c.b16 %v885, %v883
  %v1112 = vpack.c.b16 %v888, %v886
  %v1113 = vpack.c.b16 %v889, %v887
  %v1114 = vpack.c.b16 %v892, %v890
  %v1115 = vpack.c.b16 %v893, %v891
  %v1116 = vpack.c.b16 %v896, %v894
  %v1117 = vpack.c.b16 %v897, %v895
  %v1118 = vpack.c.b16 %v900, %v898
  %v1119 = vpack.c.b16 %v901, %v899
  %v1120 = vpack.c.b16 %v904, %v902
  %v1121 = vpack.c.b16 %v905, %v903
  %v1122 = vpack.c.b16 %v908, %v906
  %v1123 = vpack.c.b16 %v909, %v907
  %v1124 = vpack.c.b16 %v912, %v910
  %v1125 = vpack.c.b16 %v913, %v911
  %v1126 = vpack.c.b16 %v916, %v914
  %v1127 = vpack.c.b16 %v917, %v915
  %v1128 = vpack.c.b16 %v920, %v918
  %v1129 = vpack.c.b16 %v921, %v919
  %v1130 = vpack.c.b16 %v924, %v922
  %v1131 = vpack.c.b16 %v925, %v923
  %v1132 = vpack.c.b16 %v928, %v926
  %v1133 = vpack.c.b16 %v929, %v927
  %v1134 = vpack.c.b16 %v932, %v930
  %v1135 = vpack.c.b16 %v933, %v931
  %v1136 = vpack.c.b16 %v936, %v934
  %v1137 = vpack.c.b16 %v937, %v935
  %v1138 = vpack.c.b16 %v940, %v938
  %v1139 = vpack.c.b16 %v941, %v939
  %v1140 = vpack.c.b16 %v944, %v942
  %v1141 = vpack.c.b16 %v945, %v943
  %v1142 = vpack.c.b16 %v948, %v946
  %v1143 = vpack.c.b16 %v949, %v947
  %v1144 = vpack.c.b16 %v952, %v950
  %v1145 = vpack.c.b16 %v953, %v951
  %v1146 = vpack.c.b16 %v956, %v954
  %v1147 = vpack.c.b16 %v957, %v955
  %v1148 = vpack.c.b16 %v960, %v958
  %v1149 = vpack.c.b16 %v961, %v959
  %v1150 = vpack.c.b16 %v964, %v962
  %v1151 = vpack.c.b16 %v965, %v963
  %v1152 = vpack.c.b16 %v968, %v966
  %v1153 = vpack.c.b16 %v969, %v967
  %v1154 = vpack.c.b16 %v972, %v970
  %v1155 = vpack.c.b16 %v973, %v971
  %v1156 = vpack.c.b16 %v976, %v974
  %v1157 = vpack.c.b16 %v977, %v975
  %v1158 = vpack.c.b16 %v980, %v978
  %v1159 = vpack.c.b16 %v981, %v979
  %v1160 = vpack.c.b16 %v984, %v982
  %v1161 = vpack.c.b16 %v985, %v983
  %v1162 = vpack.c.b16 %v988, %v986
  %v1163 = vpack.c.b16 %v989, %v987
  %v1164 = vpack.c.b16 %v992, %v990
  %v1165 = vpack.c.b16 %v993, %v991
  %v1166 = vpack.c.b16 %v996, %v994
  %v1167 = vpack.c.b16 %v997, %v995
  %v1168 = vpack.c.b16 %v1000, %v998
  %v1169 = vpack.c.b16 %v1001, %v999
  %v1170 = vpack.c.b16 %v1004, %v1002
  %v1171 = vpack.c.b16 %v1005, %v1003
  %v1172 = vpack.c.b16 %v1008, %v1006
  %v1173 = vpack.c.b16 %v1009, %v1007
  %v1174 = vpack.c.b16 %v1012, %v1010
  %v1175 = vpack.c.b16 %v1013, %v1011
  %v1176 = vpack.c.b16 %v1016, %v1014
  %v1177 = vpack.c.b16 %v1017, %v1015
  %v1178 = vpack.c.b16 %v1020, %v1018
  %v1179 = vpack.c.b16 %v1021, %v1019
  %v1180 = vpack.c.b16 %v1024, %v1022
  %v1181 = vpack.c.b16 %v1025, %v1023
  %v1182 = vpack.c.b16 %v1028, %v1026
  %v1183 = vpack.c.b16 %v1029, %v1027
  %v1184 = vpack.c.b16 %v1032, %v1030
  %v1185 = vpack.c.b16 %v1033, %v1031
  %v1186 = vpack.c.b16 %v1036, %v1034
  %v1187 = vpack.c.b16 %v1037, %v1035
  %v1188 = vpack.c.b16 %v1040, %v1038
  %v1189 = vpack.c.b16 %v1041, %v1039
  %v1190 = vpack.c.b16 %v1044, %v1042
  %v1191 = vpack.c.b16 %v1045, %v1043
  %v1192 = vpack.c.b16 %v1048, %v1046
  %v1193 = vpack.c.b16 %v1049, %v1047
  %1338 = vmatpush.bf16.msra.mxu0 %v1064
  %1339 = vmatpush.bf16.msra.mxu0 %v1062
  %1340 = vmatpush.bf16.msra.mxu0 %v1060
  %1341 = vmatpush.bf16.msra.mxu0 %v1058
  %1342 = vmatpush.bf16.msra.mxu0 %v1056
  %1343 = vmatpush.bf16.msra.mxu0 %v1054
  %1344 = vmatpush.bf16.msra.mxu0 %v1052
  %1345 = vmatpush.bf16.msra.mxu0 %v1050
  %1346 = vmatmul.bf16.gmra.mxu0 %v474
  %v1347 = vpop.f32.mrf.mxu0
  %v1348 = vadd.f32 %v246, %v1347
  %v1349 = vpop.f32.mrf.mxu0
  %v1350 = vadd.f32 %v246, %v1349
  %1351 = vmatmul.bf16.gmra.mxu0 %v483
  %v1352 = vpop.f32.mrf.mxu0
  %v1353 = vadd.f32 %v246, %v1352
  %v1354 = vpop.f32.mrf.mxu0
  %v1355 = vadd.f32 %v246, %v1354
  %1356 = vmatmul.bf16.gmra.mxu0 %v492
  %v1357 = vpop.f32.mrf.mxu0
  %v1358 = vadd.f32 %v246, %v1357
  %v1359 = vpop.f32.mrf.mxu0
  %v1360 = vadd.f32 %v246, %v1359
  %1361 = vmatmul.bf16.gmra.mxu0 %v501
  %v1362 = vpop.f32.mrf.mxu0
  %v1363 = vadd.f32 %v246, %v1362
  %v1364 = vpop.f32.mrf.mxu0
  %v1365 = vadd.f32 %v246, %v1364
  %1366 = vmatmul.bf16.gmra.mxu0 %v510
  %v1367 = vpop.f32.mrf.mxu0
  %v1368 = vadd.f32 %v246, %v1367
  %v1369 = vpop.f32.mrf.mxu0
  %v1370 = vadd.f32 %v246, %v1369
  %1371 = vmatmul.bf16.gmra.mxu0 %v519
  %v1372 = vpop.f32.mrf.mxu0
  %v1373 = vadd.f32 %v246, %v1372
  %v1374 = vpop.f32.mrf.mxu0
  %v1375 = vadd.f32 %v246, %v1374
  %1376 = vmatmul.bf16.gmra.mxu0 %v528
  %v1377 = vpop.f32.mrf.mxu0
  %v1378 = vadd.f32 %v246, %v1377
  %v1379 = vpop.f32.mrf.mxu0
  %v1380 = vadd.f32 %v246, %v1379
  %1381 = vmatmul.bf16.gmra.mxu0 %v537
  %v1382 = vpop.f32.mrf.mxu0
  %v1383 = vadd.f32 %v246, %v1382
  %v1384 = vpop.f32.mrf.mxu0
  %v1385 = vadd.f32 %v246, %v1384
  %1386 = vdwg.mxu0
  %1387 = vmatpush.bf16.msra.mxu0 %v1080
  %1388 = vmatpush.bf16.msra.mxu0 %v1078
  %1389 = vmatpush.bf16.msra.mxu0 %v1076
  %1390 = vmatpush.bf16.msra.mxu0 %v1074
  %1391 = vmatpush.bf16.msra.mxu0 %v1072
  %1392 = vmatpush.bf16.msra.mxu0 %v1070
  %1393 = vmatpush.bf16.msra.mxu0 %v1068
  %1394 = vmatpush.bf16.msra.mxu0 %v1066
  %1395 = vmatmul.bf16.gmra.mxu0 %v475
  %v1396 = vpop.f32.mrf.mxu0
  %v1397 = vadd.f32 %v1348, %v1396
  %v1398 = vpop.f32.mrf.mxu0
  %v1399 = vadd.f32 %v1350, %v1398
  %1400 = vmatmul.bf16.gmra.mxu0 %v484
  %v1401 = vpop.f32.mrf.mxu0
  %v1402 = vadd.f32 %v1353, %v1401
  %v1403 = vpop.f32.mrf.mxu0
  %v1404 = vadd.f32 %v1355, %v1403
  %1405 = vmatmul.bf16.gmra.mxu0 %v493
  %v1406 = vpop.f32.mrf.mxu0
  %v1407 = vadd.f32 %v1358, %v1406
  %v1408 = vpop.f32.mrf.mxu0
  %v1409 = vadd.f32 %v1360, %v1408
  %1410 = vmatmul.bf16.gmra.mxu0 %v502
  %v1411 = vpop.f32.mrf.mxu0
  %v1412 = vadd.f32 %v1363, %v1411
  %v1413 = vpop.f32.mrf.mxu0
  %v1414 = vadd.f32 %v1365, %v1413
  %1415 = vmatmul.bf16.gmra.mxu0 %v511
  %v1416 = vpop.f32.mrf.mxu0
  %v1417 = vadd.f32 %v1368, %v1416
  %v1418 = vpop.f32.mrf.mxu0
  %v1419 = vadd.f32 %v1370, %v1418
  %1420 = vmatmul.bf16.gmra.mxu0 %v520
  %v1421 = vpop.f32.mrf.mxu0
  %v1422 = vadd.f32 %v1373, %v1421
  %v1423 = vpop.f32.mrf.mxu0
  %v1424 = vadd.f32 %v1375, %v1423
  %1425 = vmatmul.bf16.gmra.mxu0 %v529
  %v1426 = vpop.f32.mrf.mxu0
  %v1427 = vadd.f32 %v1378, %v1426
  %v1428 = vpop.f32.mrf.mxu0
  %v1429 = vadd.f32 %v1380, %v1428
  %1430 = vmatmul.bf16.gmra.mxu0 %v538
  %v1431 = vpop.f32.mrf.mxu0
  %v1432 = vadd.f32 %v1383, %v1431
  %v1433 = vpop.f32.mrf.mxu0
  %v1434 = vadd.f32 %v1385, %v1433
  %1435 = vdwg.mxu0
  %1436 = vmatpush.bf16.msra.mxu0 %v1096
  %1437 = vmatpush.bf16.msra.mxu0 %v1094
  %1438 = vmatpush.bf16.msra.mxu0 %v1092
  %1439 = vmatpush.bf16.msra.mxu0 %v1090
  %1440 = vmatpush.bf16.msra.mxu0 %v1088
  %1441 = vmatpush.bf16.msra.mxu0 %v1086
  %1442 = vmatpush.bf16.msra.mxu0 %v1084
  %1443 = vmatpush.bf16.msra.mxu0 %v1082
  %1444 = vmatmul.bf16.gmra.mxu0 %v476
  %v1445 = vpop.f32.mrf.mxu0
  %v1446 = vadd.f32 %v1397, %v1445
  %v1447 = vpop.f32.mrf.mxu0
  %v1448 = vadd.f32 %v1399, %v1447
  %1449 = vmatmul.bf16.gmra.mxu0 %v485
  %v1450 = vpop.f32.mrf.mxu0
  %v1451 = vadd.f32 %v1402, %v1450
  %v1452 = vpop.f32.mrf.mxu0
  %v1453 = vadd.f32 %v1404, %v1452
  %1454 = vmatmul.bf16.gmra.mxu0 %v494
  %v1455 = vpop.f32.mrf.mxu0
  %v1456 = vadd.f32 %v1407, %v1455
  %v1457 = vpop.f32.mrf.mxu0
  %v1458 = vadd.f32 %v1409, %v1457
  %1459 = vmatmul.bf16.gmra.mxu0 %v503
  %v1460 = vpop.f32.mrf.mxu0
  %v1461 = vadd.f32 %v1412, %v1460
  %v1462 = vpop.f32.mrf.mxu0
  %v1463 = vadd.f32 %v1414, %v1462
  %1464 = vmatmul.bf16.gmra.mxu0 %v512
  %v1465 = vpop.f32.mrf.mxu0
  %v1466 = vadd.f32 %v1417, %v1465
  %v1467 = vpop.f32.mrf.mxu0
  %v1468 = vadd.f32 %v1419, %v1467
  %1469 = vmatmul.bf16.gmra.mxu0 %v521
  %v1470 = vpop.f32.mrf.mxu0
  %v1471 = vadd.f32 %v1422, %v1470
  %v1472 = vpop.f32.mrf.mxu0
  %v1473 = vadd.f32 %v1424, %v1472
  %1474 = vmatmul.bf16.gmra.mxu0 %v530
  %v1475 = vpop.f32.mrf.mxu0
  %v1476 = vadd.f32 %v1427, %v1475
  %v1477 = vpop.f32.mrf.mxu0
  %v1478 = vadd.f32 %v1429, %v1477
  %1479 = vmatmul.bf16.gmra.mxu0 %v539
  %v1480 = vpop.f32.mrf.mxu0
  %v1481 = vadd.f32 %v1432, %v1480
  %v1482 = vpop.f32.mrf.mxu0
  %v1483 = vadd.f32 %v1434, %v1482
  %1484 = vdwg.mxu0
  %1485 = vmatpush.bf16.msra.mxu0 %v1112
  %1486 = vmatpush.bf16.msra.mxu0 %v1110
  %1487 = vmatpush.bf16.msra.mxu0 %v1108
  %1488 = vmatpush.bf16.msra.mxu0 %v1106
  %1489 = vmatpush.bf16.msra.mxu0 %v1104
  %1490 = vmatpush.bf16.msra.mxu0 %v1102
  %1491 = vmatpush.bf16.msra.mxu0 %v1100
  %1492 = vmatpush.bf16.msra.mxu0 %v1098
  %1493 = vmatmul.bf16.gmra.mxu0 %v477
  %v1494 = vpop.f32.mrf.mxu0
  %v1495 = vadd.f32 %v1446, %v1494
  %v1496 = vpop.f32.mrf.mxu0
  %v1497 = vadd.f32 %v1448, %v1496
  %1498 = vmatmul.bf16.gmra.mxu0 %v486
  %v1499 = vpop.f32.mrf.mxu0
  %v1500 = vadd.f32 %v1451, %v1499
  %v1501 = vpop.f32.mrf.mxu0
  %v1502 = vadd.f32 %v1453, %v1501
  %1503 = vmatmul.bf16.gmra.mxu0 %v495
  %v1504 = vpop.f32.mrf.mxu0
  %v1505 = vadd.f32 %v1456, %v1504
  %v1506 = vpop.f32.mrf.mxu0
  %v1507 = vadd.f32 %v1458, %v1506
  %1508 = vmatmul.bf16.gmra.mxu0 %v504
  %v1509 = vpop.f32.mrf.mxu0
  %v1510 = vadd.f32 %v1461, %v1509
  %v1511 = vpop.f32.mrf.mxu0
  %v1512 = vadd.f32 %v1463, %v1511
  %1513 = vmatmul.bf16.gmra.mxu0 %v513
  %v1514 = vpop.f32.mrf.mxu0
  %v1515 = vadd.f32 %v1466, %v1514
  %v1516 = vpop.f32.mrf.mxu0
  %v1517 = vadd.f32 %v1468, %v1516
  %1518 = vmatmul.bf16.gmra.mxu0 %v522
  %v1519 = vpop.f32.mrf.mxu0
  %v1520 = vadd.f32 %v1471, %v1519
  %v1521 = vpop.f32.mrf.mxu0
  %v1522 = vadd.f32 %v1473, %v1521
  %1523 = vmatmul.bf16.gmra.mxu0 %v531
  %v1524 = vpop.f32.mrf.mxu0
  %v1525 = vadd.f32 %v1476, %v1524
  %v1526 = vpop.f32.mrf.mxu0
  %v1527 = vadd.f32 %v1478, %v1526
  %1528 = vmatmul.bf16.gmra.mxu0 %v540
  %v1529 = vpop.f32.mrf.mxu0
  %v1530 = vadd.f32 %v1481, %v1529
  %v1531 = vpop.f32.mrf.mxu0
  %v1532 = vadd.f32 %v1483, %v1531
  %1533 = vdwg.mxu0
  %1534 = vmatpush.bf16.msra.mxu0 %v1128
  %1535 = vmatpush.bf16.msra.mxu0 %v1126
  %1536 = vmatpush.bf16.msra.mxu0 %v1124
  %1537 = vmatpush.bf16.msra.mxu0 %v1122
  %1538 = vmatpush.bf16.msra.mxu0 %v1120
  %1539 = vmatpush.bf16.msra.mxu0 %v1118
  %1540 = vmatpush.bf16.msra.mxu0 %v1116
  %1541 = vmatpush.bf16.msra.mxu0 %v1114
  %1542 = vmatmul.bf16.gmra.mxu0 %v478
  %v1543 = vpop.f32.mrf.mxu0
  %v1544 = vadd.f32 %v1495, %v1543
  %v1545 = vpop.f32.mrf.mxu0
  %v1546 = vadd.f32 %v1497, %v1545
  %1547 = vmatmul.bf16.gmra.mxu0 %v487
  %v1548 = vpop.f32.mrf.mxu0
  %v1549 = vadd.f32 %v1500, %v1548
  %v1550 = vpop.f32.mrf.mxu0
  %v1551 = vadd.f32 %v1502, %v1550
  %1552 = vmatmul.bf16.gmra.mxu0 %v496
  %v1553 = vpop.f32.mrf.mxu0
  %v1554 = vadd.f32 %v1505, %v1553
  %v1555 = vpop.f32.mrf.mxu0
  %v1556 = vadd.f32 %v1507, %v1555
  %1557 = vmatmul.bf16.gmra.mxu0 %v505
  %v1558 = vpop.f32.mrf.mxu0
  %v1559 = vadd.f32 %v1510, %v1558
  %v1560 = vpop.f32.mrf.mxu0
  %v1561 = vadd.f32 %v1512, %v1560
  %1562 = vmatmul.bf16.gmra.mxu0 %v514
  %v1563 = vpop.f32.mrf.mxu0
  %v1564 = vadd.f32 %v1515, %v1563
  %v1565 = vpop.f32.mrf.mxu0
  %v1566 = vadd.f32 %v1517, %v1565
  %1567 = vmatmul.bf16.gmra.mxu0 %v523
  %v1568 = vpop.f32.mrf.mxu0
  %v1569 = vadd.f32 %v1520, %v1568
  %v1570 = vpop.f32.mrf.mxu0
  %v1571 = vadd.f32 %v1522, %v1570
  %1572 = vmatmul.bf16.gmra.mxu0 %v532
  %v1573 = vpop.f32.mrf.mxu0
  %v1574 = vadd.f32 %v1525, %v1573
  %v1575 = vpop.f32.mrf.mxu0
  %v1576 = vadd.f32 %v1527, %v1575
  %1577 = vmatmul.bf16.gmra.mxu0 %v541
  %v1578 = vpop.f32.mrf.mxu0
  %v1579 = vadd.f32 %v1530, %v1578
  %v1580 = vpop.f32.mrf.mxu0
  %v1581 = vadd.f32 %v1532, %v1580
  %1582 = vdwg.mxu0
  %1583 = vmatpush.bf16.msra.mxu0 %v1144
  %1584 = vmatpush.bf16.msra.mxu0 %v1142
  %1585 = vmatpush.bf16.msra.mxu0 %v1140
  %1586 = vmatpush.bf16.msra.mxu0 %v1138
  %1587 = vmatpush.bf16.msra.mxu0 %v1136
  %1588 = vmatpush.bf16.msra.mxu0 %v1134
  %1589 = vmatpush.bf16.msra.mxu0 %v1132
  %1590 = vmatpush.bf16.msra.mxu0 %v1130
  %1591 = vmatmul.bf16.gmra.mxu0 %v479
  %v1592 = vpop.f32.mrf.mxu0
  %v1593 = vadd.f32 %v1544, %v1592
  %v1594 = vpop.f32.mrf.mxu0
  %v1595 = vadd.f32 %v1546, %v1594
  %1596 = vmatmul.bf16.gmra.mxu0 %v488
  %v1597 = vpop.f32.mrf.mxu0
  %v1598 = vadd.f32 %v1549, %v1597
  %v1599 = vpop.f32.mrf.mxu0
  %v1600 = vadd.f32 %v1551, %v1599
  %1601 = vmatmul.bf16.gmra.mxu0 %v497
  %v1602 = vpop.f32.mrf.mxu0
  %v1603 = vadd.f32 %v1554, %v1602
  %v1604 = vpop.f32.mrf.mxu0
  %v1605 = vadd.f32 %v1556, %v1604
  %1606 = vmatmul.bf16.gmra.mxu0 %v506
  %v1607 = vpop.f32.mrf.mxu0
  %v1608 = vadd.f32 %v1559, %v1607
  %v1609 = vpop.f32.mrf.mxu0
  %v1610 = vadd.f32 %v1561, %v1609
  %1611 = vmatmul.bf16.gmra.mxu0 %v515
  %v1612 = vpop.f32.mrf.mxu0
  %v1613 = vadd.f32 %v1564, %v1612
  %v1614 = vpop.f32.mrf.mxu0
  %v1615 = vadd.f32 %v1566, %v1614
  %1616 = vmatmul.bf16.gmra.mxu0 %v524
  %v1617 = vpop.f32.mrf.mxu0
  %v1618 = vadd.f32 %v1569, %v1617
  %v1619 = vpop.f32.mrf.mxu0
  %v1620 = vadd.f32 %v1571, %v1619
  %1621 = vmatmul.bf16.gmra.mxu0 %v533
  %v1622 = vpop.f32.mrf.mxu0
  %v1623 = vadd.f32 %v1574, %v1622
  %v1624 = vpop.f32.mrf.mxu0
  %v1625 = vadd.f32 %v1576, %v1624
  %1626 = vmatmul.bf16.gmra.mxu0 %v542
  %v1627 = vpop.f32.mrf.mxu0
  %v1628 = vadd.f32 %v1579, %v1627
  %v1629 = vpop.f32.mrf.mxu0
  %v1630 = vadd.f32 %v1581, %v1629
  %1631 = vdwg.mxu0
  %1632 = vmatpush.bf16.msra.mxu0 %v1160
  %1633 = vmatpush.bf16.msra.mxu0 %v1158
  %1634 = vmatpush.bf16.msra.mxu0 %v1156
  %1635 = vmatpush.bf16.msra.mxu0 %v1154
  %1636 = vmatpush.bf16.msra.mxu0 %v1152
  %1637 = vmatpush.bf16.msra.mxu0 %v1150
  %1638 = vmatpush.bf16.msra.mxu0 %v1148
  %1639 = vmatpush.bf16.msra.mxu0 %v1146
  %1640 = vmatmul.bf16.gmra.mxu0 %v480
  %v1641 = vpop.f32.mrf.mxu0
  %v1642 = vadd.f32 %v1593, %v1641
  %v1643 = vpop.f32.mrf.mxu0
  %v1644 = vadd.f32 %v1595, %v1643
  %1645 = vmatmul.bf16.gmra.mxu0 %v489
  %v1646 = vpop.f32.mrf.mxu0
  %v1647 = vadd.f32 %v1598, %v1646
  %v1648 = vpop.f32.mrf.mxu0
  %v1649 = vadd.f32 %v1600, %v1648
  %1650 = vmatmul.bf16.gmra.mxu0 %v498
  %v1651 = vpop.f32.mrf.mxu0
  %v1652 = vadd.f32 %v1603, %v1651
  %v1653 = vpop.f32.mrf.mxu0
  %v1654 = vadd.f32 %v1605, %v1653
  %1655 = vmatmul.bf16.gmra.mxu0 %v507
  %v1656 = vpop.f32.mrf.mxu0
  %v1657 = vadd.f32 %v1608, %v1656
  %v1658 = vpop.f32.mrf.mxu0
  %v1659 = vadd.f32 %v1610, %v1658
  %1660 = vmatmul.bf16.gmra.mxu0 %v516
  %v1661 = vpop.f32.mrf.mxu0
  %v1662 = vadd.f32 %v1613, %v1661
  %v1663 = vpop.f32.mrf.mxu0
  %v1664 = vadd.f32 %v1615, %v1663
  %1665 = vmatmul.bf16.gmra.mxu0 %v525
  %v1666 = vpop.f32.mrf.mxu0
  %v1667 = vadd.f32 %v1618, %v1666
  %v1668 = vpop.f32.mrf.mxu0
  %v1669 = vadd.f32 %v1620, %v1668
  %1670 = vmatmul.bf16.gmra.mxu0 %v534
  %v1671 = vpop.f32.mrf.mxu0
  %v1672 = vadd.f32 %v1623, %v1671
  %v1673 = vpop.f32.mrf.mxu0
  %v1674 = vadd.f32 %v1625, %v1673
  %1675 = vmatmul.bf16.gmra.mxu0 %v543
  %v1676 = vpop.f32.mrf.mxu0
  %v1677 = vadd.f32 %v1628, %v1676
  %v1678 = vpop.f32.mrf.mxu0
  %v1679 = vadd.f32 %v1630, %v1678
  %1680 = vdwg.mxu0
  %1681 = vmatpush.bf16.msra.mxu0 %v1176
  %1682 = vmatpush.bf16.msra.mxu0 %v1174
  %1683 = vmatpush.bf16.msra.mxu0 %v1172
  %1684 = vmatpush.bf16.msra.mxu0 %v1170
  %1685 = vmatpush.bf16.msra.mxu0 %v1168
  %1686 = vmatpush.bf16.msra.mxu0 %v1166
  %1687 = vmatpush.bf16.msra.mxu0 %v1164
  %1688 = vmatpush.bf16.msra.mxu0 %v1162
  %1689 = vmatmul.bf16.gmra.mxu0 %v481
  %v1690 = vpop.f32.mrf.mxu0
  %v1691 = vadd.f32 %v1642, %v1690
  %v1692 = vpop.f32.mrf.mxu0
  %v1693 = vadd.f32 %v1644, %v1692
  %1694 = vmatmul.bf16.gmra.mxu0 %v490
  %v1695 = vpop.f32.mrf.mxu0
  %v1696 = vadd.f32 %v1647, %v1695
  %v1697 = vpop.f32.mrf.mxu0
  %v1698 = vadd.f32 %v1649, %v1697
  %1699 = vmatmul.bf16.gmra.mxu0 %v499
  %v1700 = vpop.f32.mrf.mxu0
  %v1701 = vadd.f32 %v1652, %v1700
  %v1702 = vpop.f32.mrf.mxu0
  %v1703 = vadd.f32 %v1654, %v1702
  %1704 = vmatmul.bf16.gmra.mxu0 %v508
  %v1705 = vpop.f32.mrf.mxu0
  %v1706 = vadd.f32 %v1657, %v1705
  %v1707 = vpop.f32.mrf.mxu0
  %v1708 = vadd.f32 %v1659, %v1707
  %1709 = vmatmul.bf16.gmra.mxu0 %v517
  %v1710 = vpop.f32.mrf.mxu0
  %v1711 = vadd.f32 %v1662, %v1710
  %v1712 = vpop.f32.mrf.mxu0
  %v1713 = vadd.f32 %v1664, %v1712
  %1714 = vmatmul.bf16.gmra.mxu0 %v526
  %v1715 = vpop.f32.mrf.mxu0
  %v1716 = vadd.f32 %v1667, %v1715
  %v1717 = vpop.f32.mrf.mxu0
  %v1718 = vadd.f32 %v1669, %v1717
  %1719 = vmatmul.bf16.gmra.mxu0 %v535
  %v1720 = vpop.f32.mrf.mxu0
  %v1721 = vadd.f32 %v1672, %v1720
  %v1722 = vpop.f32.mrf.mxu0
  %v1723 = vadd.f32 %v1674, %v1722
  %1724 = vmatmul.bf16.gmra.mxu0 %v544
  %v1725 = vpop.f32.mrf.mxu0
  %v1726 = vadd.f32 %v1677, %v1725
  %v1727 = vpop.f32.mrf.mxu0
  %v1728 = vadd.f32 %v1679, %v1727
  %1729 = vdwg.mxu0
  %1730 = vmatpush.bf16.msra.mxu0 %v1192
  %1731 = vmatpush.bf16.msra.mxu0 %v1190
  %1732 = vmatpush.bf16.msra.mxu0 %v1188
  %1733 = vmatpush.bf16.msra.mxu0 %v1186
  %1734 = vmatpush.bf16.msra.mxu0 %v1184
  %1735 = vmatpush.bf16.msra.mxu0 %v1182
  %1736 = vmatpush.bf16.msra.mxu0 %v1180
  %1737 = vmatpush.bf16.msra.mxu0 %v1178
  %1738 = vmatmul.bf16.gmra.mxu0 %v482
  %v1739 = vpop.f32.mrf.mxu0
  %v1740 = vadd.f32 %v1691, %v1739
  %v1741 = vpop.f32.mrf.mxu0
  %v1742 = vadd.f32 %v1693, %v1741
  %1743 = vmatmul.bf16.gmra.mxu0 %v491
  %v1744 = vpop.f32.mrf.mxu0
  %v1745 = vadd.f32 %v1696, %v1744
  %v1746 = vpop.f32.mrf.mxu0
  %v1747 = vadd.f32 %v1698, %v1746
  %1748 = vmatmul.bf16.gmra.mxu0 %v500
  %v1749 = vpop.f32.mrf.mxu0
  %v1750 = vadd.f32 %v1701, %v1749
  %v1751 = vpop.f32.mrf.mxu0
  %v1752 = vadd.f32 %v1703, %v1751
  %1753 = vmatmul.bf16.gmra.mxu0 %v509
  %v1754 = vpop.f32.mrf.mxu0
  %v1755 = vadd.f32 %v1706, %v1754
  %v1756 = vpop.f32.mrf.mxu0
  %v1757 = vadd.f32 %v1708, %v1756
  %1758 = vmatmul.bf16.gmra.mxu0 %v518
  %v1759 = vpop.f32.mrf.mxu0
  %v1760 = vadd.f32 %v1711, %v1759
  %v1761 = vpop.f32.mrf.mxu0
  %v1762 = vadd.f32 %v1713, %v1761
  %1763 = vmatmul.bf16.gmra.mxu0 %v527
  %v1764 = vpop.f32.mrf.mxu0
  %v1765 = vadd.f32 %v1716, %v1764
  %v1766 = vpop.f32.mrf.mxu0
  %v1767 = vadd.f32 %v1718, %v1766
  %1768 = vmatmul.bf16.gmra.mxu0 %v536
  %v1769 = vpop.f32.mrf.mxu0
  %v1770 = vadd.f32 %v1721, %v1769
  %v1771 = vpop.f32.mrf.mxu0
  %v1772 = vadd.f32 %v1723, %v1771
  %1773 = vmatmul.bf16.gmra.mxu0 %v545
  %v1774 = vpop.f32.mrf.mxu0
  %v1775 = vadd.f32 %v1726, %v1774
  %v1776 = vpop.f32.mrf.mxu0
  %v1777 = vadd.f32 %v1728, %v1776
  %1778 = vdwg.mxu0
  %1779 = vmatpush.bf16.msra.mxu0 %v1065
  %1780 = vmatpush.bf16.msra.mxu0 %v1063
  %1781 = vmatpush.bf16.msra.mxu0 %v1061
  %1782 = vmatpush.bf16.msra.mxu0 %v1059
  %1783 = vmatpush.bf16.msra.mxu0 %v1057
  %1784 = vmatpush.bf16.msra.mxu0 %v1055
  %1785 = vmatpush.bf16.msra.mxu0 %v1053
  %1786 = vmatpush.bf16.msra.mxu0 %v1051
  %1787 = vmatmul.bf16.gmra.mxu0 %v474
  %v1788 = vpop.f32.mrf.mxu0
  %v1789 = vadd.f32 %v247, %v1788
  %v1790 = vpop.f32.mrf.mxu0
  %v1791 = vadd.f32 %v247, %v1790
  %1792 = vmatmul.bf16.gmra.mxu0 %v483
  %v1793 = vpop.f32.mrf.mxu0
  %v1794 = vadd.f32 %v247, %v1793
  %v1795 = vpop.f32.mrf.mxu0
  %v1796 = vadd.f32 %v247, %v1795
  %1797 = vmatmul.bf16.gmra.mxu0 %v492
  %v1798 = vpop.f32.mrf.mxu0
  %v1799 = vadd.f32 %v247, %v1798
  %v1800 = vpop.f32.mrf.mxu0
  %v1801 = vadd.f32 %v247, %v1800
  %1802 = vmatmul.bf16.gmra.mxu0 %v501
  %v1803 = vpop.f32.mrf.mxu0
  %v1804 = vadd.f32 %v247, %v1803
  %v1805 = vpop.f32.mrf.mxu0
  %v1806 = vadd.f32 %v247, %v1805
  %1807 = vmatmul.bf16.gmra.mxu0 %v510
  %v1808 = vpop.f32.mrf.mxu0
  %v1809 = vadd.f32 %v247, %v1808
  %v1810 = vpop.f32.mrf.mxu0
  %v1811 = vadd.f32 %v247, %v1810
  %1812 = vmatmul.bf16.gmra.mxu0 %v519
  %v1813 = vpop.f32.mrf.mxu0
  %v1814 = vadd.f32 %v247, %v1813
  %v1815 = vpop.f32.mrf.mxu0
  %v1816 = vadd.f32 %v247, %v1815
  %1817 = vmatmul.bf16.gmra.mxu0 %v528
  %v1818 = vpop.f32.mrf.mxu0
  %v1819 = vadd.f32 %v247, %v1818
  %v1820 = vpop.f32.mrf.mxu0
  %v1821 = vadd.f32 %v247, %v1820
  %1822 = vmatmul.bf16.gmra.mxu0 %v537
  %v1823 = vpop.f32.mrf.mxu0
  %v1824 = vadd.f32 %v247, %v1823
  %v1825 = vpop.f32.mrf.mxu0
  %v1826 = vadd.f32 %v247, %v1825
  %1827 = vdwg.mxu0
  %1828 = vmatpush.bf16.msra.mxu0 %v1081
  %1829 = vmatpush.bf16.msra.mxu0 %v1079
  %1830 = vmatpush.bf16.msra.mxu0 %v1077
  %1831 = vmatpush.bf16.msra.mxu0 %v1075
  %1832 = vmatpush.bf16.msra.mxu0 %v1073
  %1833 = vmatpush.bf16.msra.mxu0 %v1071
  %1834 = vmatpush.bf16.msra.mxu0 %v1069
  %1835 = vmatpush.bf16.msra.mxu0 %v1067
  %1836 = vmatmul.bf16.gmra.mxu0 %v475
  %v1837 = vpop.f32.mrf.mxu0
  %v1838 = vadd.f32 %v1789, %v1837
  %v1839 = vpop.f32.mrf.mxu0
  %v1840 = vadd.f32 %v1791, %v1839
  %1841 = vmatmul.bf16.gmra.mxu0 %v484
  %v1842 = vpop.f32.mrf.mxu0
  %v1843 = vadd.f32 %v1794, %v1842
  %v1844 = vpop.f32.mrf.mxu0
  %v1845 = vadd.f32 %v1796, %v1844
  %1846 = vmatmul.bf16.gmra.mxu0 %v493
  %v1847 = vpop.f32.mrf.mxu0
  %v1848 = vadd.f32 %v1799, %v1847
  %v1849 = vpop.f32.mrf.mxu0
  %v1850 = vadd.f32 %v1801, %v1849
  %1851 = vmatmul.bf16.gmra.mxu0 %v502
  %v1852 = vpop.f32.mrf.mxu0
  %v1853 = vadd.f32 %v1804, %v1852
  %v1854 = vpop.f32.mrf.mxu0
  %v1855 = vadd.f32 %v1806, %v1854
  %1856 = vmatmul.bf16.gmra.mxu0 %v511
  %v1857 = vpop.f32.mrf.mxu0
  %v1858 = vadd.f32 %v1809, %v1857
  %v1859 = vpop.f32.mrf.mxu0
  %v1860 = vadd.f32 %v1811, %v1859
  %1861 = vmatmul.bf16.gmra.mxu0 %v520
  %v1862 = vpop.f32.mrf.mxu0
  %v1863 = vadd.f32 %v1814, %v1862
  %v1864 = vpop.f32.mrf.mxu0
  %v1865 = vadd.f32 %v1816, %v1864
  %1866 = vmatmul.bf16.gmra.mxu0 %v529
  %v1867 = vpop.f32.mrf.mxu0
  %v1868 = vadd.f32 %v1819, %v1867
  %v1869 = vpop.f32.mrf.mxu0
  %v1870 = vadd.f32 %v1821, %v1869
  %1871 = vmatmul.bf16.gmra.mxu0 %v538
  %v1872 = vpop.f32.mrf.mxu0
  %v1873 = vadd.f32 %v1824, %v1872
  %v1874 = vpop.f32.mrf.mxu0
  %v1875 = vadd.f32 %v1826, %v1874
  %1876 = vdwg.mxu0
  %1877 = vmatpush.bf16.msra.mxu0 %v1097
  %1878 = vmatpush.bf16.msra.mxu0 %v1095
  %1879 = vmatpush.bf16.msra.mxu0 %v1093
  %1880 = vmatpush.bf16.msra.mxu0 %v1091
  %1881 = vmatpush.bf16.msra.mxu0 %v1089
  %1882 = vmatpush.bf16.msra.mxu0 %v1087
  %1883 = vmatpush.bf16.msra.mxu0 %v1085
  %1884 = vmatpush.bf16.msra.mxu0 %v1083
  %1885 = vmatmul.bf16.gmra.mxu0 %v476
  %v1886 = vpop.f32.mrf.mxu0
  %v1887 = vadd.f32 %v1838, %v1886
  %v1888 = vpop.f32.mrf.mxu0
  %v1889 = vadd.f32 %v1840, %v1888
  %1890 = vmatmul.bf16.gmra.mxu0 %v485
  %v1891 = vpop.f32.mrf.mxu0
  %v1892 = vadd.f32 %v1843, %v1891
  %v1893 = vpop.f32.mrf.mxu0
  %v1894 = vadd.f32 %v1845, %v1893
  %1895 = vmatmul.bf16.gmra.mxu0 %v494
  %v1896 = vpop.f32.mrf.mxu0
  %v1897 = vadd.f32 %v1848, %v1896
  %v1898 = vpop.f32.mrf.mxu0
  %v1899 = vadd.f32 %v1850, %v1898
  %1900 = vmatmul.bf16.gmra.mxu0 %v503
  %v1901 = vpop.f32.mrf.mxu0
  %v1902 = vadd.f32 %v1853, %v1901
  %v1903 = vpop.f32.mrf.mxu0
  %v1904 = vadd.f32 %v1855, %v1903
  %1905 = vmatmul.bf16.gmra.mxu0 %v512
  %v1906 = vpop.f32.mrf.mxu0
  %v1907 = vadd.f32 %v1858, %v1906
  %v1908 = vpop.f32.mrf.mxu0
  %v1909 = vadd.f32 %v1860, %v1908
  %1910 = vmatmul.bf16.gmra.mxu0 %v521
  %v1911 = vpop.f32.mrf.mxu0
  %v1912 = vadd.f32 %v1863, %v1911
  %v1913 = vpop.f32.mrf.mxu0
  %v1914 = vadd.f32 %v1865, %v1913
  %1915 = vmatmul.bf16.gmra.mxu0 %v530
  %v1916 = vpop.f32.mrf.mxu0
  %v1917 = vadd.f32 %v1868, %v1916
  %v1918 = vpop.f32.mrf.mxu0
  %v1919 = vadd.f32 %v1870, %v1918
  %1920 = vmatmul.bf16.gmra.mxu0 %v539
  %v1921 = vpop.f32.mrf.mxu0
  %v1922 = vadd.f32 %v1873, %v1921
  %v1923 = vpop.f32.mrf.mxu0
  %v1924 = vadd.f32 %v1875, %v1923
  %1925 = vdwg.mxu0
  %1926 = vmatpush.bf16.msra.mxu0 %v1113
  %1927 = vmatpush.bf16.msra.mxu0 %v1111
  %1928 = vmatpush.bf16.msra.mxu0 %v1109
  %1929 = vmatpush.bf16.msra.mxu0 %v1107
  %1930 = vmatpush.bf16.msra.mxu0 %v1105
  %1931 = vmatpush.bf16.msra.mxu0 %v1103
  %1932 = vmatpush.bf16.msra.mxu0 %v1101
  %1933 = vmatpush.bf16.msra.mxu0 %v1099
  %1934 = vmatmul.bf16.gmra.mxu0 %v477
  %v1935 = vpop.f32.mrf.mxu0
  %v1936 = vadd.f32 %v1887, %v1935
  %v1937 = vpop.f32.mrf.mxu0
  %v1938 = vadd.f32 %v1889, %v1937
  %1939 = vmatmul.bf16.gmra.mxu0 %v486
  %v1940 = vpop.f32.mrf.mxu0
  %v1941 = vadd.f32 %v1892, %v1940
  %v1942 = vpop.f32.mrf.mxu0
  %v1943 = vadd.f32 %v1894, %v1942
  %1944 = vmatmul.bf16.gmra.mxu0 %v495
  %v1945 = vpop.f32.mrf.mxu0
  %v1946 = vadd.f32 %v1897, %v1945
  %v1947 = vpop.f32.mrf.mxu0
  %v1948 = vadd.f32 %v1899, %v1947
  %1949 = vmatmul.bf16.gmra.mxu0 %v504
  %v1950 = vpop.f32.mrf.mxu0
  %v1951 = vadd.f32 %v1902, %v1950
  %v1952 = vpop.f32.mrf.mxu0
  %v1953 = vadd.f32 %v1904, %v1952
  %1954 = vmatmul.bf16.gmra.mxu0 %v513
  %v1955 = vpop.f32.mrf.mxu0
  %v1956 = vadd.f32 %v1907, %v1955
  %v1957 = vpop.f32.mrf.mxu0
  %v1958 = vadd.f32 %v1909, %v1957
  %1959 = vmatmul.bf16.gmra.mxu0 %v522
  %v1960 = vpop.f32.mrf.mxu0
  %v1961 = vadd.f32 %v1912, %v1960
  %v1962 = vpop.f32.mrf.mxu0
  %v1963 = vadd.f32 %v1914, %v1962
  %1964 = vmatmul.bf16.gmra.mxu0 %v531
  %v1965 = vpop.f32.mrf.mxu0
  %v1966 = vadd.f32 %v1917, %v1965
  %v1967 = vpop.f32.mrf.mxu0
  %v1968 = vadd.f32 %v1919, %v1967
  %1969 = vmatmul.bf16.gmra.mxu0 %v540
  %v1970 = vpop.f32.mrf.mxu0
  %v1971 = vadd.f32 %v1922, %v1970
  %v1972 = vpop.f32.mrf.mxu0
  %v1973 = vadd.f32 %v1924, %v1972
  %1974 = vdwg.mxu0
  %1975 = vmatpush.bf16.msra.mxu0 %v1129
  %1976 = vmatpush.bf16.msra.mxu0 %v1127
  %1977 = vmatpush.bf16.msra.mxu0 %v1125
  %1978 = vmatpush.bf16.msra.mxu0 %v1123
  %1979 = vmatpush.bf16.msra.mxu0 %v1121
  %1980 = vmatpush.bf16.msra.mxu0 %v1119
  %1981 = vmatpush.bf16.msra.mxu0 %v1117
  %1982 = vmatpush.bf16.msra.mxu0 %v1115
  %1983 = vmatmul.bf16.gmra.mxu0 %v478
  %v1984 = vpop.f32.mrf.mxu0
  %v1985 = vadd.f32 %v1936, %v1984
  %v1986 = vpop.f32.mrf.mxu0
  %v1987 = vadd.f32 %v1938, %v1986
  %1988 = vmatmul.bf16.gmra.mxu0 %v487
  %v1989 = vpop.f32.mrf.mxu0
  %v1990 = vadd.f32 %v1941, %v1989
  %v1991 = vpop.f32.mrf.mxu0
  %v1992 = vadd.f32 %v1943, %v1991
  %1993 = vmatmul.bf16.gmra.mxu0 %v496
  %v1994 = vpop.f32.mrf.mxu0
  %v1995 = vadd.f32 %v1946, %v1994
  %v1996 = vpop.f32.mrf.mxu0
  %v1997 = vadd.f32 %v1948, %v1996
  %1998 = vmatmul.bf16.gmra.mxu0 %v505
  %v1999 = vpop.f32.mrf.mxu0
  %v2000 = vadd.f32 %v1951, %v1999
  %v2001 = vpop.f32.mrf.mxu0
  %v2002 = vadd.f32 %v1953, %v2001
  %2003 = vmatmul.bf16.gmra.mxu0 %v514
  %v2004 = vpop.f32.mrf.mxu0
  %v2005 = vadd.f32 %v1956, %v2004
  %v2006 = vpop.f32.mrf.mxu0
  %v2007 = vadd.f32 %v1958, %v2006
  %2008 = vmatmul.bf16.gmra.mxu0 %v523
  %v2009 = vpop.f32.mrf.mxu0
  %v2010 = vadd.f32 %v1961, %v2009
  %v2011 = vpop.f32.mrf.mxu0
  %v2012 = vadd.f32 %v1963, %v2011
  %2013 = vmatmul.bf16.gmra.mxu0 %v532
  %v2014 = vpop.f32.mrf.mxu0
  %v2015 = vadd.f32 %v1966, %v2014
  %v2016 = vpop.f32.mrf.mxu0
  %v2017 = vadd.f32 %v1968, %v2016
  %2018 = vmatmul.bf16.gmra.mxu0 %v541
  %v2019 = vpop.f32.mrf.mxu0
  %v2020 = vadd.f32 %v1971, %v2019
  %v2021 = vpop.f32.mrf.mxu0
  %v2022 = vadd.f32 %v1973, %v2021
  %2023 = vdwg.mxu0
  %2024 = vmatpush.bf16.msra.mxu0 %v1145
  %2025 = vmatpush.bf16.msra.mxu0 %v1143
  %2026 = vmatpush.bf16.msra.mxu0 %v1141
  %2027 = vmatpush.bf16.msra.mxu0 %v1139
  %2028 = vmatpush.bf16.msra.mxu0 %v1137
  %2029 = vmatpush.bf16.msra.mxu0 %v1135
  %2030 = vmatpush.bf16.msra.mxu0 %v1133
  %2031 = vmatpush.bf16.msra.mxu0 %v1131
  %2032 = vmatmul.bf16.gmra.mxu0 %v479
  %v2033 = vpop.f32.mrf.mxu0
  %v2034 = vadd.f32 %v1985, %v2033
  %v2035 = vpop.f32.mrf.mxu0
  %v2036 = vadd.f32 %v1987, %v2035
  %2037 = vmatmul.bf16.gmra.mxu0 %v488
  %v2038 = vpop.f32.mrf.mxu0
  %v2039 = vadd.f32 %v1990, %v2038
  %v2040 = vpop.f32.mrf.mxu0
  %v2041 = vadd.f32 %v1992, %v2040
  %2042 = vmatmul.bf16.gmra.mxu0 %v497
  %v2043 = vpop.f32.mrf.mxu0
  %v2044 = vadd.f32 %v1995, %v2043
  %v2045 = vpop.f32.mrf.mxu0
  %v2046 = vadd.f32 %v1997, %v2045
  %2047 = vmatmul.bf16.gmra.mxu0 %v506
  %v2048 = vpop.f32.mrf.mxu0
  %v2049 = vadd.f32 %v2000, %v2048
  %v2050 = vpop.f32.mrf.mxu0
  %v2051 = vadd.f32 %v2002, %v2050
  %2052 = vmatmul.bf16.gmra.mxu0 %v515
  %v2053 = vpop.f32.mrf.mxu0
  %v2054 = vadd.f32 %v2005, %v2053
  %v2055 = vpop.f32.mrf.mxu0
  %v2056 = vadd.f32 %v2007, %v2055
  %2057 = vmatmul.bf16.gmra.mxu0 %v524
  %v2058 = vpop.f32.mrf.mxu0
  %v2059 = vadd.f32 %v2010, %v2058
  %v2060 = vpop.f32.mrf.mxu0
  %v2061 = vadd.f32 %v2012, %v2060
  %2062 = vmatmul.bf16.gmra.mxu0 %v533
  %v2063 = vpop.f32.mrf.mxu0
  %v2064 = vadd.f32 %v2015, %v2063
  %v2065 = vpop.f32.mrf.mxu0
  %v2066 = vadd.f32 %v2017, %v2065
  %2067 = vmatmul.bf16.gmra.mxu0 %v542
  %v2068 = vpop.f32.mrf.mxu0
  %v2069 = vadd.f32 %v2020, %v2068
  %v2070 = vpop.f32.mrf.mxu0
  %v2071 = vadd.f32 %v2022, %v2070
  %2072 = vdwg.mxu0
  %2073 = vmatpush.bf16.msra.mxu0 %v1161
  %2074 = vmatpush.bf16.msra.mxu0 %v1159
  %2075 = vmatpush.bf16.msra.mxu0 %v1157
  %2076 = vmatpush.bf16.msra.mxu0 %v1155
  %2077 = vmatpush.bf16.msra.mxu0 %v1153
  %2078 = vmatpush.bf16.msra.mxu0 %v1151
  %2079 = vmatpush.bf16.msra.mxu0 %v1149
  %2080 = vmatpush.bf16.msra.mxu0 %v1147
  %2081 = vmatmul.bf16.gmra.mxu0 %v480
  %v2082 = vpop.f32.mrf.mxu0
  %v2083 = vadd.f32 %v2034, %v2082
  %v2084 = vpop.f32.mrf.mxu0
  %v2085 = vadd.f32 %v2036, %v2084
  %2086 = vmatmul.bf16.gmra.mxu0 %v489
  %v2087 = vpop.f32.mrf.mxu0
  %v2088 = vadd.f32 %v2039, %v2087
  %v2089 = vpop.f32.mrf.mxu0
  %v2090 = vadd.f32 %v2041, %v2089
  %2091 = vmatmul.bf16.gmra.mxu0 %v498
  %v2092 = vpop.f32.mrf.mxu0
  %v2093 = vadd.f32 %v2044, %v2092
  %v2094 = vpop.f32.mrf.mxu0
  %v2095 = vadd.f32 %v2046, %v2094
  %2096 = vmatmul.bf16.gmra.mxu0 %v507
  %v2097 = vpop.f32.mrf.mxu0
  %v2098 = vadd.f32 %v2049, %v2097
  %v2099 = vpop.f32.mrf.mxu0
  %v2100 = vadd.f32 %v2051, %v2099
  %2101 = vmatmul.bf16.gmra.mxu0 %v516
  %v2102 = vpop.f32.mrf.mxu0
  %v2103 = vadd.f32 %v2054, %v2102
  %v2104 = vpop.f32.mrf.mxu0
  %v2105 = vadd.f32 %v2056, %v2104
  %2106 = vmatmul.bf16.gmra.mxu0 %v525
  %v2107 = vpop.f32.mrf.mxu0
  %v2108 = vadd.f32 %v2059, %v2107
  %v2109 = vpop.f32.mrf.mxu0
  %v2110 = vadd.f32 %v2061, %v2109
  %2111 = vmatmul.bf16.gmra.mxu0 %v534
  %v2112 = vpop.f32.mrf.mxu0
  %v2113 = vadd.f32 %v2064, %v2112
  %v2114 = vpop.f32.mrf.mxu0
  %v2115 = vadd.f32 %v2066, %v2114
  %2116 = vmatmul.bf16.gmra.mxu0 %v543
  %v2117 = vpop.f32.mrf.mxu0
  %v2118 = vadd.f32 %v2069, %v2117
  %v2119 = vpop.f32.mrf.mxu0
  %v2120 = vadd.f32 %v2071, %v2119
  %2121 = vdwg.mxu0
  %2122 = vmatpush.bf16.msra.mxu0 %v1177
  %2123 = vmatpush.bf16.msra.mxu0 %v1175
  %2124 = vmatpush.bf16.msra.mxu0 %v1173
  %2125 = vmatpush.bf16.msra.mxu0 %v1171
  %2126 = vmatpush.bf16.msra.mxu0 %v1169
  %2127 = vmatpush.bf16.msra.mxu0 %v1167
  %2128 = vmatpush.bf16.msra.mxu0 %v1165
  %2129 = vmatpush.bf16.msra.mxu0 %v1163
  %2130 = vmatmul.bf16.gmra.mxu0 %v481
  %v2131 = vpop.f32.mrf.mxu0
  %v2132 = vadd.f32 %v2083, %v2131
  %v2133 = vpop.f32.mrf.mxu0
  %v2134 = vadd.f32 %v2085, %v2133
  %2135 = vmatmul.bf16.gmra.mxu0 %v490
  %v2136 = vpop.f32.mrf.mxu0
  %v2137 = vadd.f32 %v2088, %v2136
  %v2138 = vpop.f32.mrf.mxu0
  %v2139 = vadd.f32 %v2090, %v2138
  %2140 = vmatmul.bf16.gmra.mxu0 %v499
  %v2141 = vpop.f32.mrf.mxu0
  %v2142 = vadd.f32 %v2093, %v2141
  %v2143 = vpop.f32.mrf.mxu0
  %v2144 = vadd.f32 %v2095, %v2143
  %2145 = vmatmul.bf16.gmra.mxu0 %v508
  %v2146 = vpop.f32.mrf.mxu0
  %v2147 = vadd.f32 %v2098, %v2146
  %v2148 = vpop.f32.mrf.mxu0
  %v2149 = vadd.f32 %v2100, %v2148
  %2150 = vmatmul.bf16.gmra.mxu0 %v517
  %v2151 = vpop.f32.mrf.mxu0
  %v2152 = vadd.f32 %v2103, %v2151
  %v2153 = vpop.f32.mrf.mxu0
  %v2154 = vadd.f32 %v2105, %v2153
  %2155 = vmatmul.bf16.gmra.mxu0 %v526
  %v2156 = vpop.f32.mrf.mxu0
  %v2157 = vadd.f32 %v2108, %v2156
  %v2158 = vpop.f32.mrf.mxu0
  %v2159 = vadd.f32 %v2110, %v2158
  %2160 = vmatmul.bf16.gmra.mxu0 %v535
  %v2161 = vpop.f32.mrf.mxu0
  %v2162 = vadd.f32 %v2113, %v2161
  %v2163 = vpop.f32.mrf.mxu0
  %v2164 = vadd.f32 %v2115, %v2163
  %2165 = vmatmul.bf16.gmra.mxu0 %v544
  %v2166 = vpop.f32.mrf.mxu0
  %v2167 = vadd.f32 %v2118, %v2166
  %v2168 = vpop.f32.mrf.mxu0
  %v2169 = vadd.f32 %v2120, %v2168
  %2170 = vdwg.mxu0
  %2171 = vmatpush.bf16.msra.mxu0 %v1193
  %2172 = vmatpush.bf16.msra.mxu0 %v1191
  %2173 = vmatpush.bf16.msra.mxu0 %v1189
  %2174 = vmatpush.bf16.msra.mxu0 %v1187
  %2175 = vmatpush.bf16.msra.mxu0 %v1185
  %2176 = vmatpush.bf16.msra.mxu0 %v1183
  %2177 = vmatpush.bf16.msra.mxu0 %v1181
  %2178 = vmatpush.bf16.msra.mxu0 %v1179
  %2179 = vmatmul.bf16.gmra.mxu0 %v482
  %v2180 = vpop.f32.mrf.mxu0
  %v2181 = vadd.f32 %v2132, %v2180
  %v2182 = vpop.f32.mrf.mxu0
  %v2183 = vadd.f32 %v2134, %v2182
  %2184 = vmatmul.bf16.gmra.mxu0 %v491
  %v2185 = vpop.f32.mrf.mxu0
  %v2186 = vadd.f32 %v2137, %v2185
  %v2187 = vpop.f32.mrf.mxu0
  %v2188 = vadd.f32 %v2139, %v2187
  %2189 = vmatmul.bf16.gmra.mxu0 %v500
  %v2190 = vpop.f32.mrf.mxu0
  %v2191 = vadd.f32 %v2142, %v2190
  %v2192 = vpop.f32.mrf.mxu0
  %v2193 = vadd.f32 %v2144, %v2192
  %2194 = vmatmul.bf16.gmra.mxu0 %v509
  %v2195 = vpop.f32.mrf.mxu0
  %v2196 = vadd.f32 %v2147, %v2195
  %v2197 = vpop.f32.mrf.mxu0
  %v2198 = vadd.f32 %v2149, %v2197
  %2199 = vmatmul.bf16.gmra.mxu0 %v518
  %v2200 = vpop.f32.mrf.mxu0
  %v2201 = vadd.f32 %v2152, %v2200
  %v2202 = vpop.f32.mrf.mxu0
  %v2203 = vadd.f32 %v2154, %v2202
  %2204 = vmatmul.bf16.gmra.mxu0 %v527
  %v2205 = vpop.f32.mrf.mxu0
  %v2206 = vadd.f32 %v2157, %v2205
  %v2207 = vpop.f32.mrf.mxu0
  %v2208 = vadd.f32 %v2159, %v2207
  %2209 = vmatmul.bf16.gmra.mxu0 %v536
  %v2210 = vpop.f32.mrf.mxu0
  %v2211 = vadd.f32 %v2162, %v2210
  %v2212 = vpop.f32.mrf.mxu0
  %v2213 = vadd.f32 %v2164, %v2212
  %2214 = vmatmul.bf16.gmra.mxu0 %v545
  %v2215 = vpop.f32.mrf.mxu0
  %v2216 = vadd.f32 %v2167, %v2215
  %v2217 = vpop.f32.mrf.mxu0
  %v2218 = vadd.f32 %v2169, %v2217
  %2219 = vdwg.mxu0
  %v2220 = vmax.f32 %v1740, 0.0
  %v2221 = vmax.f32 %v1742, 0.0
  %v2222 = vmax.f32 %v1745, 0.0
  %v2223 = vmax.f32 %v1747, 0.0
  %v2224 = vmax.f32 %v1750, 0.0
  %v2225 = vmax.f32 %v1752, 0.0
  %v2226 = vmax.f32 %v1755, 0.0
  %v2227 = vmax.f32 %v1757, 0.0
  %v2228 = vmax.f32 %v1760, 0.0
  %v2229 = vmax.f32 %v1762, 0.0
  %v2230 = vmax.f32 %v1765, 0.0
  %v2231 = vmax.f32 %v1767, 0.0
  %v2232 = vmax.f32 %v1770, 0.0
  %v2233 = vmax.f32 %v1772, 0.0
  %v2234 = vmax.f32 %v1775, 0.0
  %v2235 = vmax.f32 %v1777, 0.0
  %2236 = vst [vmem:[#allocation2] sm:$0xff] 0.0
  %2237 = vst [vmem:[#allocation2 + $0x8] sm:$0xff] 0.0
  %2238 = vst [vmem:[#allocation2 + $0x10] sm:$0xff] %v2220
  %2239 = vst [vmem:[#allocation2 + $0x18] sm:$0xff] %v2221
  %2240 = vst [vmem:[#allocation2 + $0x20] sm:$0xff] %v2222
  %2241 = vst [vmem:[#allocation2 + $0x28] sm:$0xff] %v2223
  %2242 = vst [vmem:[#allocation2 + $0x30] sm:$0xff] %v2224
  %2243 = vst [vmem:[#allocation2 + $0x38] sm:$0xff] %v2225
  %2244 = vst [vmem:[#allocation2 + $0x40] sm:$0xff] %v2226
  %2245 = vst [vmem:[#allocation2 + $0x48] sm:$0xff] %v2227
  %2246 = vst [vmem:[#allocation2 + $0x50] sm:$0xff] %v2228
  %2247 = vst [vmem:[#allocation2 + $0x58] sm:$0xff] %v2229
  %2248 = vst [vmem:[#allocation2 + $0x60] sm:$0xff] %v2230
  %2249 = vst [vmem:[#allocation2 + $0x68] sm:$0xff] %v2231
  %2250 = vst [vmem:[#allocation2 + $0x70] sm:$0xff] %v2232
  %2251 = vst [vmem:[#allocation2 + $0x78] sm:$0xff] %v2233
  %2252 = vst [vmem:[#allocation2 + $0x80] sm:$0xff] %v2234
  %2253 = vst [vmem:[#allocation2 + $0x88] sm:$0xff] %v2235
  %2254 = vst [vmem:[#allocation2 + $0x90] sm:$0xff] 0.0
  %2255 = vst [vmem:[#allocation2 + $0x98] sm:$0xff] 0.0
  %v2256 = vlaneseq
  %v2257 = vshrl.u32 %v2256, 7
  %v2258 = vadd.s32 %v2257, 8
  %v2259 = vadd.s32 %v2257, 16
  %v2260 = vadd.s32 %v2257, 24
  %v2261 = vadd.s32 %v2257, 32
  %v2262 = vadd.s32 %v2257, 40
  %v2263 = vadd.s32 %v2257, 48
  %v2264 = vadd.s32 %v2257, 56
  %v2265 = vadd.s32 %v2257, 64
  %v2266 = vadd.s32 %v2257, 72
  %v2267 = vadd.s32 %v2257, 80
  %v2268 = vadd.s32 %v2257, 88
  %v2269 = vadd.s32 %v2257, 96
  %v2270 = vadd.s32 %v2257, 104
  %v2271 = vadd.s32 %v2257, 112
  %v2272 = vadd.s32 %v2257, 120
  %v2273 = vand.u32 %v2257, 7
  %v2274 = vand.u32 %v2258, 7
  %v2275 = vand.u32 %v2259, 7
  %v2276 = vand.u32 %v2260, 7
  %v2277 = vand.u32 %v2261, 7
  %v2278 = vand.u32 %v2262, 7
  %v2279 = vand.u32 %v2263, 7
  %v2280 = vand.u32 %v2264, 7
  %v2281 = vand.u32 %v2265, 7
  %v2282 = vand.u32 %v2266, 7
  %v2283 = vand.u32 %v2267, 7
  %v2284 = vand.u32 %v2268, 7
  %v2285 = vand.u32 %v2269, 7
  %v2286 = vand.u32 %v2270, 7
  %v2287 = vand.u32 %v2271, 7
  %v2288 = vand.u32 %v2272, 7
  %v2289 = vshra.s32 %v2257, 3
  %v2290 = vshra.s32 %v2258, 3
  %v2291 = vshra.s32 %v2259, 3
  %v2292 = vshra.s32 %v2260, 3
  %v2293 = vshra.s32 %v2261, 3
  %v2294 = vshra.s32 %v2262, 3
  %v2295 = vshra.s32 %v2263, 3
  %v2296 = vshra.s32 %v2264, 3
  %v2297 = vshra.s32 %v2265, 3
  %v2298 = vshra.s32 %v2266, 3
  %v2299 = vshra.s32 %v2267, 3
  %v2300 = vshra.s32 %v2268, 3
  %v2301 = vshra.s32 %v2269, 3
  %v2302 = vshra.s32 %v2270, 3
  %v2303 = vshra.s32 %v2271, 3
  %v2304 = vshra.s32 %v2272, 3
  %v2305 = vand.u32 %v2289, 7
  %v2306 = vand.u32 %v2290, 7
  %v2307 = vand.u32 %v2291, 7
  %v2308 = vand.u32 %v2292, 7
  %v2309 = vand.u32 %v2293, 7
  %v2310 = vand.u32 %v2294, 7
  %v2311 = vand.u32 %v2295, 7
  %v2312 = vand.u32 %v2296, 7
  %v2313 = vand.u32 %v2297, 7
  %v2314 = vand.u32 %v2298, 7
  %v2315 = vand.u32 %v2299, 7
  %v2316 = vand.u32 %v2300, 7
  %v2317 = vand.u32 %v2301, 7
  %v2318 = vand.u32 %v2302, 7
  %v2319 = vand.u32 %v2303, 7
  %v2320 = vand.u32 %v2304, 7
  %v2321 = vld [vmem:[%s4] sm:$0x1]
  %v2323 = vperm.slane %v2321, 0
  %v2325 = vadd.f32 %v2181, %v2323
  %v2326 = vadd.f32 %v2183, %v2323
  %v2327 = vadd.f32 %v2186, %v2323
  %v2328 = vadd.f32 %v2188, %v2323
  %v2329 = vadd.f32 %v2191, %v2323
  %v2330 = vadd.f32 %v2193, %v2323
  %v2331 = vadd.f32 %v2196, %v2323
  %v2332 = vadd.f32 %v2198, %v2323
  %v2333 = vadd.f32 %v2201, %v2323
  %v2334 = vadd.f32 %v2203, %v2323
  %v2335 = vadd.f32 %v2206, %v2323
  %v2336 = vadd.f32 %v2208, %v2323
  %v2337 = vadd.f32 %v2211, %v2323
  %v2338 = vadd.f32 %v2213, %v2323
  %v2339 = vadd.f32 %v2216, %v2323
  %v2340 = vadd.f32 %v2218, %v2323
  %v2341 = vld [vmem:[#allocation2 + $0x7] sm:$0xff]
  %v2342 = vld [vmem:[#allocation2 + $0xf] sm:$0xff]
  %v2343 = vld [vmem:[#allocation2 + $0x17] sm:$0xff]
  %v2344 = vld [vmem:[#allocation2 + $0x1f] sm:$0xff]
  %v2345 = vld [vmem:[#allocation2 + $0x27] sm:$0xff]
  %v2346 = vld [vmem:[#allocation2 + $0x2f] sm:$0xff]
  %v2347 = vld [vmem:[#allocation2 + $0x37] sm:$0xff]
  %v2348 = vld [vmem:[#allocation2 + $0x3f] sm:$0xff]
  %v2349 = vld [vmem:[#allocation2 + $0x47] sm:$0xff]
  %v2350 = vld [vmem:[#allocation2 + $0x4f] sm:$0xff]
  %v2351 = vld [vmem:[#allocation2 + $0x57] sm:$0xff]
  %v2352 = vld [vmem:[#allocation2 + $0x5f] sm:$0xff]
  %v2353 = vld [vmem:[#allocation2 + $0x67] sm:$0xff]
  %v2354 = vld [vmem:[#allocation2 + $0x6f] sm:$0xff]
  %v2355 = vld [vmem:[#allocation2 + $0x77] sm:$0xff]
  %v2356 = vld [vmem:[#allocation2 + $0x7f] sm:$0xff]
  %v2357 = vadd.s32 %v2305, 4294967295
  %v2358 = vadd.s32 %v2306, 4294967295
  %v2359 = vadd.s32 %v2307, 4294967295
  %v2360 = vadd.s32 %v2308, 4294967295
  %v2361 = vadd.s32 %v2309, 4294967295
  %v2362 = vadd.s32 %v2310, 4294967295
  %v2363 = vadd.s32 %v2311, 4294967295
  %v2364 = vadd.s32 %v2312, 4294967295
  %v2365 = vadd.s32 %v2313, 4294967295
  %v2366 = vadd.s32 %v2314, 4294967295
  %v2367 = vadd.s32 %v2315, 4294967295
  %v2368 = vadd.s32 %v2316, 4294967295
  %v2369 = vadd.s32 %v2317, 4294967295
  %v2370 = vadd.s32 %v2318, 4294967295
  %v2371 = vadd.s32 %v2319, 4294967295
  %v2372 = vadd.s32 %v2320, 4294967295
  %vm2373 = vcmp.ge.s32.totalorder %v2357, 0
  %vm2374 = vcmp.ge.s32.totalorder %v2358, 0
  %vm2375 = vcmp.ge.s32.totalorder %v2359, 0
  %vm2376 = vcmp.ge.s32.totalorder %v2360, 0
  %vm2377 = vcmp.ge.s32.totalorder %v2361, 0
  %vm2378 = vcmp.ge.s32.totalorder %v2362, 0
  %vm2379 = vcmp.ge.s32.totalorder %v2363, 0
  %vm2380 = vcmp.ge.s32.totalorder %v2364, 0
  %vm2381 = vcmp.ge.s32.totalorder %v2365, 0
  %vm2382 = vcmp.ge.s32.totalorder %v2366, 0
  %vm2383 = vcmp.ge.s32.totalorder %v2367, 0
  %vm2384 = vcmp.ge.s32.totalorder %v2368, 0
  %vm2385 = vcmp.ge.s32.totalorder %v2369, 0
  %vm2386 = vcmp.ge.s32.totalorder %v2370, 0
  %vm2387 = vcmp.ge.s32.totalorder %v2371, 0
  %vm2388 = vcmp.ge.s32.totalorder %v2372, 0
  %vm2389 = vcmp.lt.s32.totalorder %v2357, 8
  %vm2390 = vcmp.lt.s32.totalorder %v2358, 8
  %vm2391 = vcmp.lt.s32.totalorder %v2359, 8
  %vm2392 = vcmp.lt.s32.totalorder %v2360, 8
  %vm2393 = vcmp.lt.s32.totalorder %v2361, 8
  %vm2394 = vcmp.lt.s32.totalorder %v2362, 8
  %vm2395 = vcmp.lt.s32.totalorder %v2363, 8
  %vm2396 = vcmp.lt.s32.totalorder %v2364, 8
  %vm2397 = vcmp.lt.s32.totalorder %v2365, 8
  %vm2398 = vcmp.lt.s32.totalorder %v2366, 8
  %vm2399 = vcmp.lt.s32.totalorder %v2367, 8
  %vm2400 = vcmp.lt.s32.totalorder %v2368, 8
  %vm2401 = vcmp.lt.s32.totalorder %v2369, 8
  %vm2402 = vcmp.lt.s32.totalorder %v2370, 8
  %vm2403 = vcmp.lt.s32.totalorder %v2371, 8
  %vm2404 = vcmp.lt.s32.totalorder %v2372, 8
  %vm2405 = vmand %vm2373, %vm2389
  %vm2406 = vmand %vm2374, %vm2390
  %vm2407 = vmand %vm2375, %vm2391
  %vm2408 = vmand %vm2376, %vm2392
  %vm2409 = vmand %vm2377, %vm2393
  %vm2410 = vmand %vm2378, %vm2394
  %vm2411 = vmand %vm2379, %vm2395
  %vm2412 = vmand %vm2380, %vm2396
  %vm2413 = vmand %vm2381, %vm2397
  %vm2414 = vmand %vm2382, %vm2398
  %vm2415 = vmand %vm2383, %vm2399
  %vm2416 = vmand %vm2384, %vm2400
  %vm2417 = vmand %vm2385, %vm2401
  %vm2418 = vmand %vm2386, %vm2402
  %vm2419 = vmand %vm2387, %vm2403
  %vm2420 = vmand %vm2388, %vm2404
  %v2421 = vadd.s32 %v2273, 4294967295
  %v2422 = vadd.s32 %v2274, 4294967295
  %v2423 = vadd.s32 %v2275, 4294967295
  %v2424 = vadd.s32 %v2276, 4294967295
  %v2425 = vadd.s32 %v2277, 4294967295
  %v2426 = vadd.s32 %v2278, 4294967295
  %v2427 = vadd.s32 %v2279, 4294967295
  %v2428 = vadd.s32 %v2280, 4294967295
  %v2429 = vadd.s32 %v2281, 4294967295
  %v2430 = vadd.s32 %v2282, 4294967295
  %v2431 = vadd.s32 %v2283, 4294967295
  %v2432 = vadd.s32 %v2284, 4294967295
  %v2433 = vadd.s32 %v2285, 4294967295
  %v2434 = vadd.s32 %v2286, 4294967295
  %v2435 = vadd.s32 %v2287, 4294967295
  %v2436 = vadd.s32 %v2288, 4294967295
  %vm2437 = vcmp.ge.s32.totalorder %v2421, 0
  %vm2438 = vcmp.ge.s32.totalorder %v2422, 0
  %vm2439 = vcmp.ge.s32.totalorder %v2423, 0
  %vm2440 = vcmp.ge.s32.totalorder %v2424, 0
  %vm2441 = vcmp.ge.s32.totalorder %v2425, 0
  %vm2442 = vcmp.ge.s32.totalorder %v2426, 0
  %vm2443 = vcmp.ge.s32.totalorder %v2427, 0
  %vm2444 = vcmp.ge.s32.totalorder %v2428, 0
  %vm2445 = vcmp.ge.s32.totalorder %v2429, 0
  %vm2446 = vcmp.ge.s32.totalorder %v2430, 0
  %vm2447 = vcmp.ge.s32.totalorder %v2431, 0
  %vm2448 = vcmp.ge.s32.totalorder %v2432, 0
  %vm2449 = vcmp.ge.s32.totalorder %v2433, 0
  %vm2450 = vcmp.ge.s32.totalorder %v2434, 0
  %vm2451 = vcmp.ge.s32.totalorder %v2435, 0
  %vm2452 = vcmp.ge.s32.totalorder %v2436, 0
  %vm2453 = vmand %vm2405, %vm2437
  %vm2454 = vmand %vm2406, %vm2438
  %vm2455 = vmand %vm2407, %vm2439
  %vm2456 = vmand %vm2408, %vm2440
  %vm2457 = vmand %vm2409, %vm2441
  %vm2458 = vmand %vm2410, %vm2442
  %vm2459 = vmand %vm2411, %vm2443
  %vm2460 = vmand %vm2412, %vm2444
  %vm2461 = vmand %vm2413, %vm2445
  %vm2462 = vmand %vm2414, %vm2446
  %vm2463 = vmand %vm2415, %vm2447
  %vm2464 = vmand %vm2416, %vm2448
  %vm2465 = vmand %vm2417, %vm2449
  %vm2466 = vmand %vm2418, %vm2450
  %vm2467 = vmand %vm2419, %vm2451
  %vm2468 = vmand %vm2420, %vm2452
  %vm2469 = vcmp.lt.s32.totalorder %v2421, 8
  %vm2470 = vcmp.lt.s32.totalorder %v2422, 8
  %vm2471 = vcmp.lt.s32.totalorder %v2423, 8
  %vm2472 = vcmp.lt.s32.totalorder %v2424, 8
  %vm2473 = vcmp.lt.s32.totalorder %v2425, 8
  %vm2474 = vcmp.lt.s32.totalorder %v2426, 8
  %vm2475 = vcmp.lt.s32.totalorder %v2427, 8
  %vm2476 = vcmp.lt.s32.totalorder %v2428, 8
  %vm2477 = vcmp.lt.s32.totalorder %v2429, 8
  %vm2478 = vcmp.lt.s32.totalorder %v2430, 8
  %vm2479 = vcmp.lt.s32.totalorder %v2431, 8
  %vm2480 = vcmp.lt.s32.totalorder %v2432, 8
  %vm2481 = vcmp.lt.s32.totalorder %v2433, 8
  %vm2482 = vcmp.lt.s32.totalorder %v2434, 8
  %vm2483 = vcmp.lt.s32.totalorder %v2435, 8
  %vm2484 = vcmp.lt.s32.totalorder %v2436, 8
  %vm2485 = vmand %vm2453, %vm2469
  %vm2486 = vmand %vm2454, %vm2470
  %vm2487 = vmand %vm2455, %vm2471
  %vm2488 = vmand %vm2456, %vm2472
  %vm2489 = vmand %vm2457, %vm2473
  %vm2490 = vmand %vm2458, %vm2474
  %vm2491 = vmand %vm2459, %vm2475
  %vm2492 = vmand %vm2460, %vm2476
  %vm2493 = vmand %vm2461, %vm2477
  %vm2494 = vmand %vm2462, %vm2478
  %vm2495 = vmand %vm2463, %vm2479
  %vm2496 = vmand %vm2464, %vm2480
  %vm2497 = vmand %vm2465, %vm2481
  %vm2498 = vmand %vm2466, %vm2482
  %vm2499 = vmand %vm2467, %vm2483
  %vm2500 = vmand %vm2468, %vm2484
  %v2501 = vsel %vm2485, 1, 0
  %v2502 = vsel %vm2486, 1, 0
  %v2503 = vsel %vm2487, 1, 0
  %v2504 = vsel %vm2488, 1, 0
  %v2505 = vsel %vm2489, 1, 0
  %v2506 = vsel %vm2490, 1, 0
  %v2507 = vsel %vm2491, 1, 0
  %v2508 = vsel %vm2492, 1, 0
  %v2509 = vsel %vm2493, 1, 0
  %v2510 = vsel %vm2494, 1, 0
  %v2511 = vsel %vm2495, 1, 0
  %v2512 = vsel %vm2496, 1, 0
  %v2513 = vsel %vm2497, 1, 0
  %v2514 = vsel %vm2498, 1, 0
  %v2515 = vsel %vm2499, 1, 0
  %v2516 = vsel %vm2500, 1, 0
  %v2517 = vcvt.s32.f32 %v2501
  %v2518 = vcvt.s32.f32 %v2502
  %v2519 = vcvt.s32.f32 %v2503
  %v2520 = vcvt.s32.f32 %v2504
  %v2521 = vcvt.s32.f32 %v2505
  %v2522 = vcvt.s32.f32 %v2506
  %v2523 = vcvt.s32.f32 %v2507
  %v2524 = vcvt.s32.f32 %v2508
  %v2525 = vcvt.s32.f32 %v2509
  %v2526 = vcvt.s32.f32 %v2510
  %v2527 = vcvt.s32.f32 %v2511
  %v2528 = vcvt.s32.f32 %v2512
  %v2529 = vcvt.s32.f32 %v2513
  %v2530 = vcvt.s32.f32 %v2514
  %v2531 = vcvt.s32.f32 %v2515
  %v2532 = vcvt.s32.f32 %v2516
  %v2533 = vmul.f32 %v2341, %v2517
  %v2534 = vmul.f32 %v2342, %v2518
  %v2535 = vmul.f32 %v2343, %v2519
  %v2536 = vmul.f32 %v2344, %v2520
  %v2537 = vmul.f32 %v2345, %v2521
  %v2538 = vmul.f32 %v2346, %v2522
  %v2539 = vmul.f32 %v2347, %v2523
  %v2540 = vmul.f32 %v2348, %v2524
  %v2541 = vmul.f32 %v2349, %v2525
  %v2542 = vmul.f32 %v2350, %v2526
  %v2543 = vmul.f32 %v2351, %v2527
  %v2544 = vmul.f32 %v2352, %v2528
  %v2545 = vmul.f32 %v2353, %v2529
  %v2546 = vmul.f32 %v2354, %v2530
  %v2547 = vmul.f32 %v2355, %v2531
  %v2548 = vmul.f32 %v2356, %v2532
  %v2549 = vpack.c.bf16 %v2534, %v2533
  %v2550 = vpack.c.bf16 %v2536, %v2535
  %v2551 = vpack.c.bf16 %v2538, %v2537
  %v2552 = vpack.c.bf16 %v2540, %v2539
  %v2553 = vpack.c.bf16 %v2542, %v2541
  %v2554 = vpack.c.bf16 %v2544, %v2543
  %v2555 = vpack.c.bf16 %v2546, %v2545
  %v2556 = vpack.c.bf16 %v2548, %v2547
  %v2557 = vld [vmem:[%s3] sm:$0xf]
  %v2558 = vld [vmem:[%s3 + $0x4] sm:$0xf]
  %v2559 = vld [vmem:[%s3 + $0x8] sm:$0xf]
  %v2560 = vld [vmem:[%s3 + $0xc] sm:$0xf]
  %v2561 = vld [vmem:[%s3 + $0x10] sm:$0xf]
  %v2562 = vld [vmem:[%s3 + $0x14] sm:$0xf]
  %v2563 = vld [vmem:[%s3 + $0x18] sm:$0xf]
  %v2564 = vld [vmem:[%s3 + $0x1c] sm:$0xf]
  %v2565 = vld [vmem:[%s3 + $0x20] sm:$0xf]
  %v2566 = vld [vmem:[%s3 + $0x24] sm:$0xf]
  %v2567 = vld [vmem:[%s3 + $0x28] sm:$0xf]
  %v2568 = vld [vmem:[%s3 + $0x2c] sm:$0xf]
  %v2569 = vld [vmem:[%s3 + $0x30] sm:$0xf]
  %v2570 = vld [vmem:[%s3 + $0x34] sm:$0xf]
  %v2571 = vld [vmem:[%s3 + $0x38] sm:$0xf]
  %v2572 = vld [vmem:[%s3 + $0x3c] sm:$0xf]
  %v2589 = vunpack.c.l.b16 %v2557
  %v2590 = vunpack.c.l.b16 %v2558
  %v2591 = vunpack.c.l.b16 %v2559
  %v2592 = vunpack.c.l.b16 %v2560
  %v2593 = vunpack.c.l.b16 %v2561
  %v2594 = vunpack.c.l.b16 %v2562
  %v2595 = vunpack.c.l.b16 %v2563
  %v2596 = vunpack.c.l.b16 %v2564
  %v2597 = vunpack.c.l.b16 %v2565
  %v2598 = vunpack.c.l.b16 %v2566
  %v2599 = vunpack.c.l.b16 %v2567
  %v2600 = vunpack.c.l.b16 %v2568
  %v2601 = vunpack.c.l.b16 %v2569
  %v2602 = vunpack.c.l.b16 %v2570
  %v2603 = vunpack.c.l.b16 %v2571
  %v2604 = vunpack.c.l.b16 %v2572
  %v2605 = vpack.c.b16 %v2590, %v2589
  %v2606 = vpack.c.b16 %v2592, %v2591
  %v2607 = vpack.c.b16 %v2594, %v2593
  %v2608 = vpack.c.b16 %v2596, %v2595
  %v2609 = vpack.c.b16 %v2598, %v2597
  %v2610 = vpack.c.b16 %v2600, %v2599
  %v2611 = vpack.c.b16 %v2602, %v2601
  %v2612 = vpack.c.b16 %v2604, %v2603
  %2621 = vmatpush.bf16.msra.mxu0 %v2612
  %2622 = vmatpush.bf16.msra.mxu0 %v2611
  %2623 = vmatpush.bf16.msra.mxu0 %v2610
  %2624 = vmatpush.bf16.msra.mxu0 %v2609
  %2625 = vmatpush.bf16.msra.mxu0 %v2608
  %2626 = vmatpush.bf16.msra.mxu0 %v2607
  %2627 = vmatpush.bf16.msra.mxu0 %v2606
  %2628 = vmatpush.bf16.msra.mxu0 %v2605
  %2629 = vmatmul.bf16.gmra.mxu0 %v2549
  %v2630 = vpop.f32.mrf.mxu0
  %v2631 = vadd.f32 0.0, %v2630
  %v2632 = vpop.f32.mrf.mxu0
  %v2633 = vadd.f32 0.0, %v2632
  %2634 = vmatmul.bf16.gmra.mxu0 %v2550
  %v2635 = vpop.f32.mrf.mxu0
  %v2636 = vadd.f32 0.0, %v2635
  %v2637 = vpop.f32.mrf.mxu0
  %v2638 = vadd.f32 0.0, %v2637
  %2639 = vmatmul.bf16.gmra.mxu0 %v2551
  %v2640 = vpop.f32.mrf.mxu0
  %v2641 = vadd.f32 0.0, %v2640
  %v2642 = vpop.f32.mrf.mxu0
  %v2643 = vadd.f32 0.0, %v2642
  %2644 = vmatmul.bf16.gmra.mxu0 %v2552
  %v2645 = vpop.f32.mrf.mxu0
  %v2646 = vadd.f32 0.0, %v2645
  %v2647 = vpop.f32.mrf.mxu0
  %v2648 = vadd.f32 0.0, %v2647
  %2649 = vmatmul.bf16.gmra.mxu0 %v2553
  %v2650 = vpop.f32.mrf.mxu0
  %v2651 = vadd.f32 0.0, %v2650
  %v2652 = vpop.f32.mrf.mxu0
  %v2653 = vadd.f32 0.0, %v2652
  %2654 = vmatmul.bf16.gmra.mxu0 %v2554
  %v2655 = vpop.f32.mrf.mxu0
  %v2656 = vadd.f32 0.0, %v2655
  %v2657 = vpop.f32.mrf.mxu0
  %v2658 = vadd.f32 0.0, %v2657
  %2659 = vmatmul.bf16.gmra.mxu0 %v2555
  %v2660 = vpop.f32.mrf.mxu0
  %v2661 = vadd.f32 0.0, %v2660
  %v2662 = vpop.f32.mrf.mxu0
  %v2663 = vadd.f32 0.0, %v2662
  %2664 = vmatmul.bf16.gmra.mxu0 %v2556
  %v2665 = vpop.f32.mrf.mxu0
  %v2666 = vadd.f32 0.0, %v2665
  %v2667 = vpop.f32.mrf.mxu0
  %v2668 = vadd.f32 0.0, %v2667
  %2669 = vdwg.mxu0
  %v2670 = vadd.f32 %v2325, %v2631
  %v2671 = vadd.f32 %v2326, %v2633
  %v2672 = vadd.f32 %v2327, %v2636
  %v2673 = vadd.f32 %v2328, %v2638
  %v2674 = vadd.f32 %v2329, %v2641
  %v2675 = vadd.f32 %v2330, %v2643
  %v2676 = vadd.f32 %v2331, %v2646
  %v2677 = vadd.f32 %v2332, %v2648
  %v2678 = vadd.f32 %v2333, %v2651
  %v2679 = vadd.f32 %v2334, %v2653
  %v2680 = vadd.f32 %v2335, %v2656
  %v2681 = vadd.f32 %v2336, %v2658
  %v2682 = vadd.f32 %v2337, %v2661
  %v2683 = vadd.f32 %v2338, %v2663
  %v2684 = vadd.f32 %v2339, %v2666
  %v2685 = vadd.f32 %v2340, %v2668
  %v2686 = vld [vmem:[#allocation2 + $0x8] sm:$0xff]
  %v2687 = vld [vmem:[#allocation2 + $0x10] sm:$0xff]
  %v2688 = vld [vmem:[#allocation2 + $0x18] sm:$0xff]
  %v2689 = vld [vmem:[#allocation2 + $0x20] sm:$0xff]
  %v2690 = vld [vmem:[#allocation2 + $0x28] sm:$0xff]
  %v2691 = vld [vmem:[#allocation2 + $0x30] sm:$0xff]
  %v2692 = vld [vmem:[#allocation2 + $0x38] sm:$0xff]
  %v2693 = vld [vmem:[#allocation2 + $0x40] sm:$0xff]
  %v2694 = vld [vmem:[#allocation2 + $0x48] sm:$0xff]
  %v2695 = vld [vmem:[#allocation2 + $0x50] sm:$0xff]
  %v2696 = vld [vmem:[#allocation2 + $0x58] sm:$0xff]
  %v2697 = vld [vmem:[#allocation2 + $0x60] sm:$0xff]
  %v2698 = vld [vmem:[#allocation2 + $0x68] sm:$0xff]
  %v2699 = vld [vmem:[#allocation2 + $0x70] sm:$0xff]
  %v2700 = vld [vmem:[#allocation2 + $0x78] sm:$0xff]
  %v2701 = vld [vmem:[#allocation2 + $0x80] sm:$0xff]
  %vm2702 = vcmp.ge.s32.totalorder %v2273, 0
  %vm2703 = vcmp.ge.s32.totalorder %v2274, 0
  %vm2704 = vcmp.ge.s32.totalorder %v2275, 0
  %vm2705 = vcmp.ge.s32.totalorder %v2276, 0
  %vm2706 = vcmp.ge.s32.totalorder %v2277, 0
  %vm2707 = vcmp.ge.s32.totalorder %v2278, 0
  %vm2708 = vcmp.ge.s32.totalorder %v2279, 0
  %vm2709 = vcmp.ge.s32.totalorder %v2280, 0
  %vm2710 = vcmp.ge.s32.totalorder %v2281, 0
  %vm2711 = vcmp.ge.s32.totalorder %v2282, 0
  %vm2712 = vcmp.ge.s32.totalorder %v2283, 0
  %vm2713 = vcmp.ge.s32.totalorder %v2284, 0
  %vm2714 = vcmp.ge.s32.totalorder %v2285, 0
  %vm2715 = vcmp.ge.s32.totalorder %v2286, 0
  %vm2716 = vcmp.ge.s32.totalorder %v2287, 0
  %vm2717 = vcmp.ge.s32.totalorder %v2288, 0
  %vm2718 = vmand %vm2405, %vm2702
  %vm2719 = vmand %vm2406, %vm2703
  %vm2720 = vmand %vm2407, %vm2704
  %vm2721 = vmand %vm2408, %vm2705
  %vm2722 = vmand %vm2409, %vm2706
  %vm2723 = vmand %vm2410, %vm2707
  %vm2724 = vmand %vm2411, %vm2708
  %vm2725 = vmand %vm2412, %vm2709
  %vm2726 = vmand %vm2413, %vm2710
  %vm2727 = vmand %vm2414, %vm2711
  %vm2728 = vmand %vm2415, %vm2712
  %vm2729 = vmand %vm2416, %vm2713
  %vm2730 = vmand %vm2417, %vm2714
  %vm2731 = vmand %vm2418, %vm2715
  %vm2732 = vmand %vm2419, %vm2716
  %vm2733 = vmand %vm2420, %vm2717
  %vm2734 = vcmp.lt.s32.totalorder %v2273, 8
  %vm2735 = vcmp.lt.s32.totalorder %v2274, 8
  %vm2736 = vcmp.lt.s32.totalorder %v2275, 8
  %vm2737 = vcmp.lt.s32.totalorder %v2276, 8
  %vm2738 = vcmp.lt.s32.totalorder %v2277, 8
  %vm2739 = vcmp.lt.s32.totalorder %v2278, 8
  %vm2740 = vcmp.lt.s32.totalorder %v2279, 8
  %vm2741 = vcmp.lt.s32.totalorder %v2280, 8
  %vm2742 = vcmp.lt.s32.totalorder %v2281, 8
  %vm2743 = vcmp.lt.s32.totalorder %v2282, 8
  %vm2744 = vcmp.lt.s32.totalorder %v2283, 8
  %vm2745 = vcmp.lt.s32.totalorder %v2284, 8
  %vm2746 = vcmp.lt.s32.totalorder %v2285, 8
  %vm2747 = vcmp.lt.s32.totalorder %v2286, 8
  %vm2748 = vcmp.lt.s32.totalorder %v2287, 8
  %vm2749 = vcmp.lt.s32.totalorder %v2288, 8
  %vm2750 = vmand %vm2718, %vm2734
  %vm2751 = vmand %vm2719, %vm2735
  %vm2752 = vmand %vm2720, %vm2736
  %vm2753 = vmand %vm2721, %vm2737
  %vm2754 = vmand %vm2722, %vm2738
  %vm2755 = vmand %vm2723, %vm2739
  %vm2756 = vmand %vm2724, %vm2740
  %vm2757 = vmand %vm2725, %vm2741
  %vm2758 = vmand %vm2726, %vm2742
  %vm2759 = vmand %vm2727, %vm2743
  %vm2760 = vmand %vm2728, %vm2744
  %vm2761 = vmand %vm2729, %vm2745
  %vm2762 = vmand %vm2730, %vm2746
  %vm2763 = vmand %vm2731, %vm2747
  %vm2764 = vmand %vm2732, %vm2748
  %vm2765 = vmand %vm2733, %vm2749
  %v2766 = vsel %vm2750, 1, 0
  %v2767 = vsel %vm2751, 1, 0
  %v2768 = vsel %vm2752, 1, 0
  %v2769 = vsel %vm2753, 1, 0
  %v2770 = vsel %vm2754, 1, 0
  %v2771 = vsel %vm2755, 1, 0
  %v2772 = vsel %vm2756, 1, 0
  %v2773 = vsel %vm2757, 1, 0
  %v2774 = vsel %vm2758, 1, 0
  %v2775 = vsel %vm2759, 1, 0
  %v2776 = vsel %vm2760, 1, 0
  %v2777 = vsel %vm2761, 1, 0
  %v2778 = vsel %vm2762, 1, 0
  %v2779 = vsel %vm2763, 1, 0
  %v2780 = vsel %vm2764, 1, 0
  %v2781 = vsel %vm2765, 1, 0
  %v2782 = vcvt.s32.f32 %v2766
  %v2783 = vcvt.s32.f32 %v2767
  %v2784 = vcvt.s32.f32 %v2768
  %v2785 = vcvt.s32.f32 %v2769
  %v2786 = vcvt.s32.f32 %v2770
  %v2787 = vcvt.s32.f32 %v2771
  %v2788 = vcvt.s32.f32 %v2772
  %v2789 = vcvt.s32.f32 %v2773
  %v2790 = vcvt.s32.f32 %v2774
  %v2791 = vcvt.s32.f32 %v2775
  %v2792 = vcvt.s32.f32 %v2776
  %v2793 = vcvt.s32.f32 %v2777
  %v2794 = vcvt.s32.f32 %v2778
  %v2795 = vcvt.s32.f32 %v2779
  %v2796 = vcvt.s32.f32 %v2780
  %v2797 = vcvt.s32.f32 %v2781
  %v2798 = vmul.f32 %v2686, %v2782
  %v2799 = vmul.f32 %v2687, %v2783
  %v2800 = vmul.f32 %v2688, %v2784
  %v2801 = vmul.f32 %v2689, %v2785
  %v2802 = vmul.f32 %v2690, %v2786
  %v2803 = vmul.f32 %v2691, %v2787
  %v2804 = vmul.f32 %v2692, %v2788
  %v2805 = vmul.f32 %v2693, %v2789
  %v2806 = vmul.f32 %v2694, %v2790
  %v2807 = vmul.f32 %v2695, %v2791
  %v2808 = vmul.f32 %v2696, %v2792
  %v2809 = vmul.f32 %v2697, %v2793
  %v2810 = vmul.f32 %v2698, %v2794
  %v2811 = vmul.f32 %v2699, %v2795
  %v2812 = vmul.f32 %v2700, %v2796
  %v2813 = vmul.f32 %v2701, %v2797
  %v2814 = vpack.c.bf16 %v2799, %v2798
  %v2815 = vpack.c.bf16 %v2801, %v2800
  %v2816 = vpack.c.bf16 %v2803, %v2802
  %v2817 = vpack.c.bf16 %v2805, %v2804
  %v2818 = vpack.c.bf16 %v2807, %v2806
  %v2819 = vpack.c.bf16 %v2809, %v2808
  %v2820 = vpack.c.bf16 %v2811, %v2810
  %v2821 = vpack.c.bf16 %v2813, %v2812
  %v2822 = vld [vmem:[%s3 + $0x40] sm:$0xf]
  %v2823 = vld [vmem:[%s3 + $0x44] sm:$0xf]
  %v2824 = vld [vmem:[%s3 + $0x48] sm:$0xf]
  %v2825 = vld [vmem:[%s3 + $0x4c] sm:$0xf]
  %v2826 = vld [vmem:[%s3 + $0x50] sm:$0xf]
  %v2827 = vld [vmem:[%s3 + $0x54] sm:$0xf]
  %v2828 = vld [vmem:[%s3 + $0x58] sm:$0xf]
  %v2829 = vld [vmem:[%s3 + $0x5c] sm:$0xf]
  %v2830 = vld [vmem:[%s3 + $0x60] sm:$0xf]
  %v2831 = vld [vmem:[%s3 + $0x64] sm:$0xf]
  %v2832 = vld [vmem:[%s3 + $0x68] sm:$0xf]
  %v2833 = vld [vmem:[%s3 + $0x6c] sm:$0xf]
  %v2834 = vld [vmem:[%s3 + $0x70] sm:$0xf]
  %v2835 = vld [vmem:[%s3 + $0x74] sm:$0xf]
  %v2836 = vld [vmem:[%s3 + $0x78] sm:$0xf]
  %v2837 = vld [vmem:[%s3 + $0x7c] sm:$0xf]
  %v2854 = vunpack.c.l.b16 %v2822
  %v2855 = vunpack.c.l.b16 %v2823
  %v2856 = vunpack.c.l.b16 %v2824
  %v2857 = vunpack.c.l.b16 %v2825
  %v2858 = vunpack.c.l.b16 %v2826
  %v2859 = vunpack.c.l.b16 %v2827
  %v2860 = vunpack.c.l.b16 %v2828
  %v2861 = vunpack.c.l.b16 %v2829
  %v2862 = vunpack.c.l.b16 %v2830
  %v2863 = vunpack.c.l.b16 %v2831
  %v2864 = vunpack.c.l.b16 %v2832
  %v2865 = vunpack.c.l.b16 %v2833
  %v2866 = vunpack.c.l.b16 %v2834
  %v2867 = vunpack.c.l.b16 %v2835
  %v2868 = vunpack.c.l.b16 %v2836
  %v2869 = vunpack.c.l.b16 %v2837
  %v2870 = vpack.c.b16 %v2855, %v2854
  %v2871 = vpack.c.b16 %v2857, %v2856
  %v2872 = vpack.c.b16 %v2859, %v2858
  %v2873 = vpack.c.b16 %v2861, %v2860
  %v2874 = vpack.c.b16 %v2863, %v2862
  %v2875 = vpack.c.b16 %v2865, %v2864
  %v2876 = vpack.c.b16 %v2867, %v2866
  %v2877 = vpack.c.b16 %v2869, %v2868
  %2886 = vmatpush.bf16.msra.mxu0 %v2877
  %2887 = vmatpush.bf16.msra.mxu0 %v2876
  %2888 = vmatpush.bf16.msra.mxu0 %v2875
  %2889 = vmatpush.bf16.msra.mxu0 %v2874
  %2890 = vmatpush.bf16.msra.mxu0 %v2873
  %2891 = vmatpush.bf16.msra.mxu0 %v2872
  %2892 = vmatpush.bf16.msra.mxu0 %v2871
  %2893 = vmatpush.bf16.msra.mxu0 %v2870
  %2894 = vmatmul.bf16.gmra.mxu0 %v2814
  %v2895 = vpop.f32.mrf.mxu0
  %v2896 = vadd.f32 0.0, %v2895
  %v2897 = vpop.f32.mrf.mxu0
  %v2898 = vadd.f32 0.0, %v2897
  %2899 = vmatmul.bf16.gmra.mxu0 %v2815
  %v2900 = vpop.f32.mrf.mxu0
  %v2901 = vadd.f32 0.0, %v2900
  %v2902 = vpop.f32.mrf.mxu0
  %v2903 = vadd.f32 0.0, %v2902
  %2904 = vmatmul.bf16.gmra.mxu0 %v2816
  %v2905 = vpop.f32.mrf.mxu0
  %v2906 = vadd.f32 0.0, %v2905
  %v2907 = vpop.f32.mrf.mxu0
  %v2908 = vadd.f32 0.0, %v2907
  %2909 = vmatmul.bf16.gmra.mxu0 %v2817
  %v2910 = vpop.f32.mrf.mxu0
  %v2911 = vadd.f32 0.0, %v2910
  %v2912 = vpop.f32.mrf.mxu0
  %v2913 = vadd.f32 0.0, %v2912
  %2914 = vmatmul.bf16.gmra.mxu0 %v2818
  %v2915 = vpop.f32.mrf.mxu0
  %v2916 = vadd.f32 0.0, %v2915
  %v2917 = vpop.f32.mrf.mxu0
  %v2918 = vadd.f32 0.0, %v2917
  %2919 = vmatmul.bf16.gmra.mxu0 %v2819
  %v2920 = vpop.f32.mrf.mxu0
  %v2921 = vadd.f32 0.0, %v2920
  %v2922 = vpop.f32.mrf.mxu0
  %v2923 = vadd.f32 0.0, %v2922
  %2924 = vmatmul.bf16.gmra.mxu0 %v2820
  %v2925 = vpop.f32.mrf.mxu0
  %v2926 = vadd.f32 0.0, %v2925
  %v2927 = vpop.f32.mrf.mxu0
  %v2928 = vadd.f32 0.0, %v2927
  %2929 = vmatmul.bf16.gmra.mxu0 %v2821
  %v2930 = vpop.f32.mrf.mxu0
  %v2931 = vadd.f32 0.0, %v2930
  %v2932 = vpop.f32.mrf.mxu0
  %v2933 = vadd.f32 0.0, %v2932
  %2934 = vdwg.mxu0
  %v2935 = vadd.f32 %v2670, %v2896
  %v2936 = vadd.f32 %v2671, %v2898
  %v2937 = vadd.f32 %v2672, %v2901
  %v2938 = vadd.f32 %v2673, %v2903
  %v2939 = vadd.f32 %v2674, %v2906
  %v2940 = vadd.f32 %v2675, %v2908
  %v2941 = vadd.f32 %v2676, %v2911
  %v2942 = vadd.f32 %v2677, %v2913
  %v2943 = vadd.f32 %v2678, %v2916
  %v2944 = vadd.f32 %v2679, %v2918
  %v2945 = vadd.f32 %v2680, %v2921
  %v2946 = vadd.f32 %v2681, %v2923
  %v2947 = vadd.f32 %v2682, %v2926
  %v2948 = vadd.f32 %v2683, %v2928
  %v2949 = vadd.f32 %v2684, %v2931
  %v2950 = vadd.f32 %v2685, %v2933
  %v2951 = vld [vmem:[#allocation2 + $0x9] sm:$0xff]
  %v2952 = vld [vmem:[#allocation2 + $0x11] sm:$0xff]
  %v2953 = vld [vmem:[#allocation2 + $0x19] sm:$0xff]
  %v2954 = vld [vmem:[#allocation2 + $0x21] sm:$0xff]
  %v2955 = vld [vmem:[#allocation2 + $0x29] sm:$0xff]
  %v2956 = vld [vmem:[#allocation2 + $0x31] sm:$0xff]
  %v2957 = vld [vmem:[#allocation2 + $0x39] sm:$0xff]
  %v2958 = vld [vmem:[#allocation2 + $0x41] sm:$0xff]
  %v2959 = vld [vmem:[#allocation2 + $0x49] sm:$0xff]
  %v2960 = vld [vmem:[#allocation2 + $0x51] sm:$0xff]
  %v2961 = vld [vmem:[#allocation2 + $0x59] sm:$0xff]
  %v2962 = vld [vmem:[#allocation2 + $0x61] sm:$0xff]
  %v2963 = vld [vmem:[#allocation2 + $0x69] sm:$0xff]
  %v2964 = vld [vmem:[#allocation2 + $0x71] sm:$0xff]
  %v2965 = vld [vmem:[#allocation2 + $0x79] sm:$0xff]
  %v2966 = vld [vmem:[#allocation2 + $0x81] sm:$0xff]
  %v2967 = vadd.s32 %v2273, 1
  %v2968 = vadd.s32 %v2274, 1
  %v2969 = vadd.s32 %v2275, 1
  %v2970 = vadd.s32 %v2276, 1
  %v2971 = vadd.s32 %v2277, 1
  %v2972 = vadd.s32 %v2278, 1
  %v2973 = vadd.s32 %v2279, 1
  %v2974 = vadd.s32 %v2280, 1
  %v2975 = vadd.s32 %v2281, 1
  %v2976 = vadd.s32 %v2282, 1
  %v2977 = vadd.s32 %v2283, 1
  %v2978 = vadd.s32 %v2284, 1
  %v2979 = vadd.s32 %v2285, 1
  %v2980 = vadd.s32 %v2286, 1
  %v2981 = vadd.s32 %v2287, 1
  %v2982 = vadd.s32 %v2288, 1
  %vm2983 = vcmp.ge.s32.totalorder %v2967, 0
  %vm2984 = vcmp.ge.s32.totalorder %v2968, 0
  %vm2985 = vcmp.ge.s32.totalorder %v2969, 0
  %vm2986 = vcmp.ge.s32.totalorder %v2970, 0
  %vm2987 = vcmp.ge.s32.totalorder %v2971, 0
  %vm2988 = vcmp.ge.s32.totalorder %v2972, 0
  %vm2989 = vcmp.ge.s32.totalorder %v2973, 0
  %vm2990 = vcmp.ge.s32.totalorder %v2974, 0
  %vm2991 = vcmp.ge.s32.totalorder %v2975, 0
  %vm2992 = vcmp.ge.s32.totalorder %v2976, 0
  %vm2993 = vcmp.ge.s32.totalorder %v2977, 0
  %vm2994 = vcmp.ge.s32.totalorder %v2978, 0
  %vm2995 = vcmp.ge.s32.totalorder %v2979, 0
  %vm2996 = vcmp.ge.s32.totalorder %v2980, 0
  %vm2997 = vcmp.ge.s32.totalorder %v2981, 0
  %vm2998 = vcmp.ge.s32.totalorder %v2982, 0
  %vm2999 = vmand %vm2405, %vm2983
  %vm3000 = vmand %vm2406, %vm2984
  %vm3001 = vmand %vm2407, %vm2985
  %vm3002 = vmand %vm2408, %vm2986
  %vm3003 = vmand %vm2409, %vm2987
  %vm3004 = vmand %vm2410, %vm2988
  %vm3005 = vmand %vm2411, %vm2989
  %vm3006 = vmand %vm2412, %vm2990
  %vm3007 = vmand %vm2413, %vm2991
  %vm3008 = vmand %vm2414, %vm2992
  %vm3009 = vmand %vm2415, %vm2993
  %vm3010 = vmand %vm2416, %vm2994
  %vm3011 = vmand %vm2417, %vm2995
  %vm3012 = vmand %vm2418, %vm2996
  %vm3013 = vmand %vm2419, %vm2997
  %vm3014 = vmand %vm2420, %vm2998
  %vm3015 = vcmp.lt.s32.totalorder %v2967, 8
  %vm3016 = vcmp.lt.s32.totalorder %v2968, 8
  %vm3017 = vcmp.lt.s32.totalorder %v2969, 8
  %vm3018 = vcmp.lt.s32.totalorder %v2970, 8
  %vm3019 = vcmp.lt.s32.totalorder %v2971, 8
  %vm3020 = vcmp.lt.s32.totalorder %v2972, 8
  %vm3021 = vcmp.lt.s32.totalorder %v2973, 8
  %vm3022 = vcmp.lt.s32.totalorder %v2974, 8
  %vm3023 = vcmp.lt.s32.totalorder %v2975, 8
  %vm3024 = vcmp.lt.s32.totalorder %v2976, 8
  %vm3025 = vcmp.lt.s32.totalorder %v2977, 8
  %vm3026 = vcmp.lt.s32.totalorder %v2978, 8
  %vm3027 = vcmp.lt.s32.totalorder %v2979, 8
  %vm3028 = vcmp.lt.s32.totalorder %v2980, 8
  %vm3029 = vcmp.lt.s32.totalorder %v2981, 8
  %vm3030 = vcmp.lt.s32.totalorder %v2982, 8
  %vm3031 = vmand %vm2999, %vm3015
  %vm3032 = vmand %vm3000, %vm3016
  %vm3033 = vmand %vm3001, %vm3017
  %vm3034 = vmand %vm3002, %vm3018
  %vm3035 = vmand %vm3003, %vm3019
  %vm3036 = vmand %vm3004, %vm3020
  %vm3037 = vmand %vm3005, %vm3021
  %vm3038 = vmand %vm3006, %vm3022
  %vm3039 = vmand %vm3007, %vm3023
  %vm3040 = vmand %vm3008, %vm3024
  %vm3041 = vmand %vm3009, %vm3025
  %vm3042 = vmand %vm3010, %vm3026
  %vm3043 = vmand %vm3011, %vm3027
  %vm3044 = vmand %vm3012, %vm3028
  %vm3045 = vmand %vm3013, %vm3029
  %vm3046 = vmand %vm3014, %vm3030
  %v3047 = vsel %vm3031, 1, 0
  %v3048 = vsel %vm3032, 1, 0
  %v3049 = vsel %vm3033, 1, 0
  %v3050 = vsel %vm3034, 1, 0
  %v3051 = vsel %vm3035, 1, 0
  %v3052 = vsel %vm3036, 1, 0
  %v3053 = vsel %vm3037, 1, 0
  %v3054 = vsel %vm3038, 1, 0
  %v3055 = vsel %vm3039, 1, 0
  %v3056 = vsel %vm3040, 1, 0
  %v3057 = vsel %vm3041, 1, 0
  %v3058 = vsel %vm3042, 1, 0
  %v3059 = vsel %vm3043, 1, 0
  %v3060 = vsel %vm3044, 1, 0
  %v3061 = vsel %vm3045, 1, 0
  %v3062 = vsel %vm3046, 1, 0
  %v3063 = vcvt.s32.f32 %v3047
  %v3064 = vcvt.s32.f32 %v3048
  %v3065 = vcvt.s32.f32 %v3049
  %v3066 = vcvt.s32.f32 %v3050
  %v3067 = vcvt.s32.f32 %v3051
  %v3068 = vcvt.s32.f32 %v3052
  %v3069 = vcvt.s32.f32 %v3053
  %v3070 = vcvt.s32.f32 %v3054
  %v3071 = vcvt.s32.f32 %v3055
  %v3072 = vcvt.s32.f32 %v3056
  %v3073 = vcvt.s32.f32 %v3057
  %v3074 = vcvt.s32.f32 %v3058
  %v3075 = vcvt.s32.f32 %v3059
  %v3076 = vcvt.s32.f32 %v3060
  %v3077 = vcvt.s32.f32 %v3061
  %v3078 = vcvt.s32.f32 %v3062
  %v3079 = vmul.f32 %v2951, %v3063
  %v3080 = vmul.f32 %v2952, %v3064
  %v3081 = vmul.f32 %v2953, %v3065
  %v3082 = vmul.f32 %v2954, %v3066
  %v3083 = vmul.f32 %v2955, %v3067
  %v3084 = vmul.f32 %v2956, %v3068
  %v3085 = vmul.f32 %v2957, %v3069
  %v3086 = vmul.f32 %v2958, %v3070
  %v3087 = vmul.f32 %v2959, %v3071
  %v3088 = vmul.f32 %v2960, %v3072
  %v3089 = vmul.f32 %v2961, %v3073
  %v3090 = vmul.f32 %v2962, %v3074
  %v3091 = vmul.f32 %v2963, %v3075
  %v3092 = vmul.f32 %v2964, %v3076
  %v3093 = vmul.f32 %v2965, %v3077
  %v3094 = vmul.f32 %v2966, %v3078
  %v3095 = vpack.c.bf16 %v3080, %v3079
  %v3096 = vpack.c.bf16 %v3082, %v3081
  %v3097 = vpack.c.bf16 %v3084, %v3083
  %v3098 = vpack.c.bf16 %v3086, %v3085
  %v3099 = vpack.c.bf16 %v3088, %v3087
  %v3100 = vpack.c.bf16 %v3090, %v3089
  %v3101 = vpack.c.bf16 %v3092, %v3091
  %v3102 = vpack.c.bf16 %v3094, %v3093
  %v3103 = vld [vmem:[%s3 + $0x80] sm:$0xf]
  %v3104 = vld [vmem:[%s3 + $0x84] sm:$0xf]
  %v3105 = vld [vmem:[%s3 + $0x88] sm:$0xf]
  %v3106 = vld [vmem:[%s3 + $0x8c] sm:$0xf]
  %v3107 = vld [vmem:[%s3 + $0x90] sm:$0xf]
  %v3108 = vld [vmem:[%s3 + $0x94] sm:$0xf]
  %v3109 = vld [vmem:[%s3 + $0x98] sm:$0xf]
  %v3110 = vld [vmem:[%s3 + $0x9c] sm:$0xf]
  %v3111 = vld [vmem:[%s3 + $0xa0] sm:$0xf]
  %v3112 = vld [vmem:[%s3 + $0xa4] sm:$0xf]
  %v3113 = vld [vmem:[%s3 + $0xa8] sm:$0xf]
  %v3114 = vld [vmem:[%s3 + $0xac] sm:$0xf]
  %v3115 = vld [vmem:[%s3 + $0xb0] sm:$0xf]
  %v3116 = vld [vmem:[%s3 + $0xb4] sm:$0xf]
  %v3117 = vld [vmem:[%s3 + $0xb8] sm:$0xf]
  %v3118 = vld [vmem:[%s3 + $0xbc] sm:$0xf]
  %v3135 = vunpack.c.l.b16 %v3103
  %v3136 = vunpack.c.l.b16 %v3104
  %v3137 = vunpack.c.l.b16 %v3105
  %v3138 = vunpack.c.l.b16 %v3106
  %v3139 = vunpack.c.l.b16 %v3107
  %v3140 = vunpack.c.l.b16 %v3108
  %v3141 = vunpack.c.l.b16 %v3109
  %v3142 = vunpack.c.l.b16 %v3110
  %v3143 = vunpack.c.l.b16 %v3111
  %v3144 = vunpack.c.l.b16 %v3112
  %v3145 = vunpack.c.l.b16 %v3113
  %v3146 = vunpack.c.l.b16 %v3114
  %v3147 = vunpack.c.l.b16 %v3115
  %v3148 = vunpack.c.l.b16 %v3116
  %v3149 = vunpack.c.l.b16 %v3117
  %v3150 = vunpack.c.l.b16 %v3118
  %v3151 = vpack.c.b16 %v3136, %v3135
  %v3152 = vpack.c.b16 %v3138, %v3137
  %v3153 = vpack.c.b16 %v3140, %v3139
  %v3154 = vpack.c.b16 %v3142, %v3141
  %v3155 = vpack.c.b16 %v3144, %v3143
  %v3156 = vpack.c.b16 %v3146, %v3145
  %v3157 = vpack.c.b16 %v3148, %v3147
  %v3158 = vpack.c.b16 %v3150, %v3149
  %3167 = vmatpush.bf16.msra.mxu0 %v3158
  %3168 = vmatpush.bf16.msra.mxu0 %v3157
  %3169 = vmatpush.bf16.msra.mxu0 %v3156
  %3170 = vmatpush.bf16.msra.mxu0 %v3155
  %3171 = vmatpush.bf16.msra.mxu0 %v3154
  %3172 = vmatpush.bf16.msra.mxu0 %v3153
  %3173 = vmatpush.bf16.msra.mxu0 %v3152
  %3174 = vmatpush.bf16.msra.mxu0 %v3151
  %3175 = vmatmul.bf16.gmra.mxu0 %v3095
  %v3176 = vpop.f32.mrf.mxu0
  %v3177 = vadd.f32 0.0, %v3176
  %v3178 = vpop.f32.mrf.mxu0
  %v3179 = vadd.f32 0.0, %v3178
  %3180 = vmatmul.bf16.gmra.mxu0 %v3096
  %v3181 = vpop.f32.mrf.mxu0
  %v3182 = vadd.f32 0.0, %v3181
  %v3183 = vpop.f32.mrf.mxu0
  %v3184 = vadd.f32 0.0, %v3183
  %3185 = vmatmul.bf16.gmra.mxu0 %v3097
  %v3186 = vpop.f32.mrf.mxu0
  %v3187 = vadd.f32 0.0, %v3186
  %v3188 = vpop.f32.mrf.mxu0
  %v3189 = vadd.f32 0.0, %v3188
  %3190 = vmatmul.bf16.gmra.mxu0 %v3098
  %v3191 = vpop.f32.mrf.mxu0
  %v3192 = vadd.f32 0.0, %v3191
  %v3193 = vpop.f32.mrf.mxu0
  %v3194 = vadd.f32 0.0, %v3193
  %3195 = vmatmul.bf16.gmra.mxu0 %v3099
  %v3196 = vpop.f32.mrf.mxu0
  %v3197 = vadd.f32 0.0, %v3196
  %v3198 = vpop.f32.mrf.mxu0
  %v3199 = vadd.f32 0.0, %v3198
  %3200 = vmatmul.bf16.gmra.mxu0 %v3100
  %v3201 = vpop.f32.mrf.mxu0
  %v3202 = vadd.f32 0.0, %v3201
  %v3203 = vpop.f32.mrf.mxu0
  %v3204 = vadd.f32 0.0, %v3203
  %3205 = vmatmul.bf16.gmra.mxu0 %v3101
  %v3206 = vpop.f32.mrf.mxu0
  %v3207 = vadd.f32 0.0, %v3206
  %v3208 = vpop.f32.mrf.mxu0
  %v3209 = vadd.f32 0.0, %v3208
  %3210 = vmatmul.bf16.gmra.mxu0 %v3102
  %v3211 = vpop.f32.mrf.mxu0
  %v3212 = vadd.f32 0.0, %v3211
  %v3213 = vpop.f32.mrf.mxu0
  %v3214 = vadd.f32 0.0, %v3213
  %3215 = vdwg.mxu0
  %v3216 = vadd.f32 %v2935, %v3177
  %v3217 = vadd.f32 %v2936, %v3179
  %v3218 = vadd.f32 %v2937, %v3182
  %v3219 = vadd.f32 %v2938, %v3184
  %v3220 = vadd.f32 %v2939, %v3187
  %v3221 = vadd.f32 %v2940, %v3189
  %v3222 = vadd.f32 %v2941, %v3192
  %v3223 = vadd.f32 %v2942, %v3194
  %v3224 = vadd.f32 %v2943, %v3197
  %v3225 = vadd.f32 %v2944, %v3199
  %v3226 = vadd.f32 %v2945, %v3202
  %v3227 = vadd.f32 %v2946, %v3204
  %v3228 = vadd.f32 %v2947, %v3207
  %v3229 = vadd.f32 %v2948, %v3209
  %v3230 = vadd.f32 %v2949, %v3212
  %v3231 = vadd.f32 %v2950, %v3214
  %v3232 = vld [vmem:[#allocation2 + $0xf] sm:$0xff]
  %v3233 = vld [vmem:[#allocation2 + $0x17] sm:$0xff]
  %v3234 = vld [vmem:[#allocation2 + $0x1f] sm:$0xff]
  %v3235 = vld [vmem:[#allocation2 + $0x27] sm:$0xff]
  %v3236 = vld [vmem:[#allocation2 + $0x2f] sm:$0xff]
  %v3237 = vld [vmem:[#allocation2 + $0x37] sm:$0xff]
  %v3238 = vld [vmem:[#allocation2 + $0x3f] sm:$0xff]
  %v3239 = vld [vmem:[#allocation2 + $0x47] sm:$0xff]
  %v3240 = vld [vmem:[#allocation2 + $0x4f] sm:$0xff]
  %v3241 = vld [vmem:[#allocation2 + $0x57] sm:$0xff]
  %v3242 = vld [vmem:[#allocation2 + $0x5f] sm:$0xff]
  %v3243 = vld [vmem:[#allocation2 + $0x67] sm:$0xff]
  %v3244 = vld [vmem:[#allocation2 + $0x6f] sm:$0xff]
  %v3245 = vld [vmem:[#allocation2 + $0x77] sm:$0xff]
  %v3246 = vld [vmem:[#allocation2 + $0x7f] sm:$0xff]
  %v3247 = vld [vmem:[#allocation2 + $0x87] sm:$0xff]
  %vm3248 = vcmp.ge.s32.totalorder %v2305, 0
  %vm3249 = vcmp.ge.s32.totalorder %v2306, 0
  %vm3250 = vcmp.ge.s32.totalorder %v2307, 0
  %vm3251 = vcmp.ge.s32.totalorder %v2308, 0
  %vm3252 = vcmp.ge.s32.totalorder %v2309, 0
  %vm3253 = vcmp.ge.s32.totalorder %v2310, 0
  %vm3254 = vcmp.ge.s32.totalorder %v2311, 0
  %vm3255 = vcmp.ge.s32.totalorder %v2312, 0
  %vm3256 = vcmp.ge.s32.totalorder %v2313, 0
  %vm3257 = vcmp.ge.s32.totalorder %v2314, 0
  %vm3258 = vcmp.ge.s32.totalorder %v2315, 0
  %vm3259 = vcmp.ge.s32.totalorder %v2316, 0
  %vm3260 = vcmp.ge.s32.totalorder %v2317, 0
  %vm3261 = vcmp.ge.s32.totalorder %v2318, 0
  %vm3262 = vcmp.ge.s32.totalorder %v2319, 0
  %vm3263 = vcmp.ge.s32.totalorder %v2320, 0
  %vm3264 = vcmp.lt.s32.totalorder %v2305, 8
  %vm3265 = vcmp.lt.s32.totalorder %v2306, 8
  %vm3266 = vcmp.lt.s32.totalorder %v2307, 8
  %vm3267 = vcmp.lt.s32.totalorder %v2308, 8
  %vm3268 = vcmp.lt.s32.totalorder %v2309, 8
  %vm3269 = vcmp.lt.s32.totalorder %v2310, 8
  %vm3270 = vcmp.lt.s32.totalorder %v2311, 8
  %vm3271 = vcmp.lt.s32.totalorder %v2312, 8
  %vm3272 = vcmp.lt.s32.totalorder %v2313, 8
  %vm3273 = vcmp.lt.s32.totalorder %v2314, 8
  %vm3274 = vcmp.lt.s32.totalorder %v2315, 8
  %vm3275 = vcmp.lt.s32.totalorder %v2316, 8
  %vm3276 = vcmp.lt.s32.totalorder %v2317, 8
  %vm3277 = vcmp.lt.s32.totalorder %v2318, 8
  %vm3278 = vcmp.lt.s32.totalorder %v2319, 8
  %vm3279 = vcmp.lt.s32.totalorder %v2320, 8
  %vm3280 = vmand %vm3248, %vm3264
  %vm3281 = vmand %vm3249, %vm3265
  %vm3282 = vmand %vm3250, %vm3266
  %vm3283 = vmand %vm3251, %vm3267
  %vm3284 = vmand %vm3252, %vm3268
  %vm3285 = vmand %vm3253, %vm3269
  %vm3286 = vmand %vm3254, %vm3270
  %vm3287 = vmand %vm3255, %vm3271
  %vm3288 = vmand %vm3256, %vm3272
  %vm3289 = vmand %vm3257, %vm3273
  %vm3290 = vmand %vm3258, %vm3274
  %vm3291 = vmand %vm3259, %vm3275
  %vm3292 = vmand %vm3260, %vm3276
  %vm3293 = vmand %vm3261, %vm3277
  %vm3294 = vmand %vm3262, %vm3278
  %vm3295 = vmand %vm3263, %vm3279
  %vm3296 = vmand %vm3280, %vm2437
  %vm3297 = vmand %vm3281, %vm2438
  %vm3298 = vmand %vm3282, %vm2439
  %vm3299 = vmand %vm3283, %vm2440
  %vm3300 = vmand %vm3284, %vm2441
  %vm3301 = vmand %vm3285, %vm2442
  %vm3302 = vmand %vm3286, %vm2443
  %vm3303 = vmand %vm3287, %vm2444
  %vm3304 = vmand %vm3288, %vm2445
  %vm3305 = vmand %vm3289, %vm2446
  %vm3306 = vmand %vm3290, %vm2447
  %vm3307 = vmand %vm3291, %vm2448
  %vm3308 = vmand %vm3292, %vm2449
  %vm3309 = vmand %vm3293, %vm2450
  %vm3310 = vmand %vm3294, %vm2451
  %vm3311 = vmand %vm3295, %vm2452
  %vm3312 = vmand %vm3296, %vm2469
  %vm3313 = vmand %vm3297, %vm2470
  %vm3314 = vmand %vm3298, %vm2471
  %vm3315 = vmand %vm3299, %vm2472
  %vm3316 = vmand %vm3300, %vm2473
  %vm3317 = vmand %vm3301, %vm2474
  %vm3318 = vmand %vm3302, %vm2475
  %vm3319 = vmand %vm3303, %vm2476
  %vm3320 = vmand %vm3304, %vm2477
  %vm3321 = vmand %vm3305, %vm2478
  %vm3322 = vmand %vm3306, %vm2479
  %vm3323 = vmand %vm3307, %vm2480
  %vm3324 = vmand %vm3308, %vm2481
  %vm3325 = vmand %vm3309, %vm2482
  %vm3326 = vmand %vm3310, %vm2483
  %vm3327 = vmand %vm3311, %vm2484
  %v3328 = vsel %vm3312, 1, 0
  %v3329 = vsel %vm3313, 1, 0
  %v3330 = vsel %vm3314, 1, 0
  %v3331 = vsel %vm3315, 1, 0
  %v3332 = vsel %vm3316, 1, 0
  %v3333 = vsel %vm3317, 1, 0
  %v3334 = vsel %vm3318, 1, 0
  %v3335 = vsel %vm3319, 1, 0
  %v3336 = vsel %vm3320, 1, 0
  %v3337 = vsel %vm3321, 1, 0
  %v3338 = vsel %vm3322, 1, 0
  %v3339 = vsel %vm3323, 1, 0
  %v3340 = vsel %vm3324, 1, 0
  %v3341 = vsel %vm3325, 1, 0
  %v3342 = vsel %vm3326, 1, 0
  %v3343 = vsel %vm3327, 1, 0
  %v3344 = vcvt.s32.f32 %v3328
  %v3345 = vcvt.s32.f32 %v3329
  %v3346 = vcvt.s32.f32 %v3330
  %v3347 = vcvt.s32.f32 %v3331
  %v3348 = vcvt.s32.f32 %v3332
  %v3349 = vcvt.s32.f32 %v3333
  %v3350 = vcvt.s32.f32 %v3334
  %v3351 = vcvt.s32.f32 %v3335
  %v3352 = vcvt.s32.f32 %v3336
  %v3353 = vcvt.s32.f32 %v3337
  %v3354 = vcvt.s32.f32 %v3338
  %v3355 = vcvt.s32.f32 %v3339
  %v3356 = vcvt.s32.f32 %v3340
  %v3357 = vcvt.s32.f32 %v3341
  %v3358 = vcvt.s32.f32 %v3342
  %v3359 = vcvt.s32.f32 %v3343
  %v3360 = vmul.f32 %v3232, %v3344
  %v3361 = vmul.f32 %v3233, %v3345
  %v3362 = vmul.f32 %v3234, %v3346
  %v3363 = vmul.f32 %v3235, %v3347
  %v3364 = vmul.f32 %v3236, %v3348
  %v3365 = vmul.f32 %v3237, %v3349
  %v3366 = vmul.f32 %v3238, %v3350
  %v3367 = vmul.f32 %v3239, %v3351
  %v3368 = vmul.f32 %v3240, %v3352
  %v3369 = vmul.f32 %v3241, %v3353
  %v3370 = vmul.f32 %v3242, %v3354
  %v3371 = vmul.f32 %v3243, %v3355
  %v3372 = vmul.f32 %v3244, %v3356
  %v3373 = vmul.f32 %v3245, %v3357
  %v3374 = vmul.f32 %v3246, %v3358
  %v3375 = vmul.f32 %v3247, %v3359
  %v3376 = vpack.c.bf16 %v3361, %v3360
  %v3377 = vpack.c.bf16 %v3363, %v3362
  %v3378 = vpack.c.bf16 %v3365, %v3364
  %v3379 = vpack.c.bf16 %v3367, %v3366
  %v3380 = vpack.c.bf16 %v3369, %v3368
  %v3381 = vpack.c.bf16 %v3371, %v3370
  %v3382 = vpack.c.bf16 %v3373, %v3372
  %v3383 = vpack.c.bf16 %v3375, %v3374
  %v3384 = vld [vmem:[%s3 + $0xc0] sm:$0xf]
  %v3385 = vld [vmem:[%s3 + $0xc4] sm:$0xf]
  %v3386 = vld [vmem:[%s3 + $0xc8] sm:$0xf]
  %v3387 = vld [vmem:[%s3 + $0xcc] sm:$0xf]
  %v3388 = vld [vmem:[%s3 + $0xd0] sm:$0xf]
  %v3389 = vld [vmem:[%s3 + $0xd4] sm:$0xf]
  %v3390 = vld [vmem:[%s3 + $0xd8] sm:$0xf]
  %v3391 = vld [vmem:[%s3 + $0xdc] sm:$0xf]
  %v3392 = vld [vmem:[%s3 + $0xe0] sm:$0xf]
  %v3393 = vld [vmem:[%s3 + $0xe4] sm:$0xf]
  %v3394 = vld [vmem:[%s3 + $0xe8] sm:$0xf]
  %v3395 = vld [vmem:[%s3 + $0xec] sm:$0xf]
  %v3396 = vld [vmem:[%s3 + $0xf0] sm:$0xf]
  %v3397 = vld [vmem:[%s3 + $0xf4] sm:$0xf]
  %v3398 = vld [vmem:[%s3 + $0xf8] sm:$0xf]
  %v3399 = vld [vmem:[%s3 + $0xfc] sm:$0xf]
  %v3416 = vunpack.c.l.b16 %v3384
  %v3417 = vunpack.c.l.b16 %v3385
  %v3418 = vunpack.c.l.b16 %v3386
  %v3419 = vunpack.c.l.b16 %v3387
  %v3420 = vunpack.c.l.b16 %v3388
  %v3421 = vunpack.c.l.b16 %v3389
  %v3422 = vunpack.c.l.b16 %v3390
  %v3423 = vunpack.c.l.b16 %v3391
  %v3424 = vunpack.c.l.b16 %v3392
  %v3425 = vunpack.c.l.b16 %v3393
  %v3426 = vunpack.c.l.b16 %v3394
  %v3427 = vunpack.c.l.b16 %v3395
  %v3428 = vunpack.c.l.b16 %v3396
  %v3429 = vunpack.c.l.b16 %v3397
  %v3430 = vunpack.c.l.b16 %v3398
  %v3431 = vunpack.c.l.b16 %v3399
  %v3432 = vpack.c.b16 %v3417, %v3416
  %v3433 = vpack.c.b16 %v3419, %v3418
  %v3434 = vpack.c.b16 %v3421, %v3420
  %v3435 = vpack.c.b16 %v3423, %v3422
  %v3436 = vpack.c.b16 %v3425, %v3424
  %v3437 = vpack.c.b16 %v3427, %v3426
  %v3438 = vpack.c.b16 %v3429, %v3428
  %v3439 = vpack.c.b16 %v3431, %v3430
  %3448 = vmatpush.bf16.msra.mxu0 %v3439
  %3449 = vmatpush.bf16.msra.mxu0 %v3438
  %3450 = vmatpush.bf16.msra.mxu0 %v3437
  %3451 = vmatpush.bf16.msra.mxu0 %v3436
  %3452 = vmatpush.bf16.msra.mxu0 %v3435
  %3453 = vmatpush.bf16.msra.mxu0 %v3434
  %3454 = vmatpush.bf16.msra.mxu0 %v3433
  %3455 = vmatpush.bf16.msra.mxu0 %v3432
  %3456 = vmatmul.bf16.gmra.mxu0 %v3376
  %v3457 = vpop.f32.mrf.mxu0
  %v3458 = vadd.f32 0.0, %v3457
  %v3459 = vpop.f32.mrf.mxu0
  %v3460 = vadd.f32 0.0, %v3459
  %3461 = vmatmul.bf16.gmra.mxu0 %v3377
  %v3462 = vpop.f32.mrf.mxu0
  %v3463 = vadd.f32 0.0, %v3462
  %v3464 = vpop.f32.mrf.mxu0
  %v3465 = vadd.f32 0.0, %v3464
  %3466 = vmatmul.bf16.gmra.mxu0 %v3378
  %v3467 = vpop.f32.mrf.mxu0
  %v3468 = vadd.f32 0.0, %v3467
  %v3469 = vpop.f32.mrf.mxu0
  %v3470 = vadd.f32 0.0, %v3469
  %3471 = vmatmul.bf16.gmra.mxu0 %v3379
  %v3472 = vpop.f32.mrf.mxu0
  %v3473 = vadd.f32 0.0, %v3472
  %v3474 = vpop.f32.mrf.mxu0
  %v3475 = vadd.f32 0.0, %v3474
  %3476 = vmatmul.bf16.gmra.mxu0 %v3380
  %v3477 = vpop.f32.mrf.mxu0
  %v3478 = vadd.f32 0.0, %v3477
  %v3479 = vpop.f32.mrf.mxu0
  %v3480 = vadd.f32 0.0, %v3479
  %3481 = vmatmul.bf16.gmra.mxu0 %v3381
  %v3482 = vpop.f32.mrf.mxu0
  %v3483 = vadd.f32 0.0, %v3482
  %v3484 = vpop.f32.mrf.mxu0
  %v3485 = vadd.f32 0.0, %v3484
  %3486 = vmatmul.bf16.gmra.mxu0 %v3382
  %v3487 = vpop.f32.mrf.mxu0
  %v3488 = vadd.f32 0.0, %v3487
  %v3489 = vpop.f32.mrf.mxu0
  %v3490 = vadd.f32 0.0, %v3489
  %3491 = vmatmul.bf16.gmra.mxu0 %v3383
  %v3492 = vpop.f32.mrf.mxu0
  %v3493 = vadd.f32 0.0, %v3492
  %v3494 = vpop.f32.mrf.mxu0
  %v3495 = vadd.f32 0.0, %v3494
  %3496 = vdwg.mxu0
  %v3497 = vadd.f32 %v3216, %v3458
  %v3498 = vadd.f32 %v3217, %v3460
  %v3499 = vadd.f32 %v3218, %v3463
  %v3500 = vadd.f32 %v3219, %v3465
  %v3501 = vadd.f32 %v3220, %v3468
  %v3502 = vadd.f32 %v3221, %v3470
  %v3503 = vadd.f32 %v3222, %v3473
  %v3504 = vadd.f32 %v3223, %v3475
  %v3505 = vadd.f32 %v3224, %v3478
  %v3506 = vadd.f32 %v3225, %v3480
  %v3507 = vadd.f32 %v3226, %v3483
  %v3508 = vadd.f32 %v3227, %v3485
  %v3509 = vadd.f32 %v3228, %v3488
  %v3510 = vadd.f32 %v3229, %v3490
  %v3511 = vadd.f32 %v3230, %v3493
  %v3512 = vadd.f32 %v3231, %v3495
  %v3513 = vld [vmem:[#allocation2 + $0x10] sm:$0xff]
  %v3514 = vld [vmem:[#allocation2 + $0x18] sm:$0xff]
  %v3515 = vld [vmem:[#allocation2 + $0x20] sm:$0xff]
  %v3516 = vld [vmem:[#allocation2 + $0x28] sm:$0xff]
  %v3517 = vld [vmem:[#allocation2 + $0x30] sm:$0xff]
  %v3518 = vld [vmem:[#allocation2 + $0x38] sm:$0xff]
  %v3519 = vld [vmem:[#allocation2 + $0x40] sm:$0xff]
  %v3520 = vld [vmem:[#allocation2 + $0x48] sm:$0xff]
  %v3521 = vld [vmem:[#allocation2 + $0x50] sm:$0xff]
  %v3522 = vld [vmem:[#allocation2 + $0x58] sm:$0xff]
  %v3523 = vld [vmem:[#allocation2 + $0x60] sm:$0xff]
  %v3524 = vld [vmem:[#allocation2 + $0x68] sm:$0xff]
  %v3525 = vld [vmem:[#allocation2 + $0x70] sm:$0xff]
  %v3526 = vld [vmem:[#allocation2 + $0x78] sm:$0xff]
  %v3527 = vld [vmem:[#allocation2 + $0x80] sm:$0xff]
  %v3528 = vld [vmem:[#allocation2 + $0x88] sm:$0xff]
  %vm3529 = vmand %vm3280, %vm2702
  %vm3530 = vmand %vm3281, %vm2703
  %vm3531 = vmand %vm3282, %vm2704
  %vm3532 = vmand %vm3283, %vm2705
  %vm3533 = vmand %vm3284, %vm2706
  %vm3534 = vmand %vm3285, %vm2707
  %vm3535 = vmand %vm3286, %vm2708
  %vm3536 = vmand %vm3287, %vm2709
  %vm3537 = vmand %vm3288, %vm2710
  %vm3538 = vmand %vm3289, %vm2711
  %vm3539 = vmand %vm3290, %vm2712
  %vm3540 = vmand %vm3291, %vm2713
  %vm3541 = vmand %vm3292, %vm2714
  %vm3542 = vmand %vm3293, %vm2715
  %vm3543 = vmand %vm3294, %vm2716
  %vm3544 = vmand %vm3295, %vm2717
  %vm3545 = vmand %vm3529, %vm2734
  %vm3546 = vmand %vm3530, %vm2735
  %vm3547 = vmand %vm3531, %vm2736
  %vm3548 = vmand %vm3532, %vm2737
  %vm3549 = vmand %vm3533, %vm2738
  %vm3550 = vmand %vm3534, %vm2739
  %vm3551 = vmand %vm3535, %vm2740
  %vm3552 = vmand %vm3536, %vm2741
  %vm3553 = vmand %vm3537, %vm2742
  %vm3554 = vmand %vm3538, %vm2743
  %vm3555 = vmand %vm3539, %vm2744
  %vm3556 = vmand %vm3540, %vm2745
  %vm3557 = vmand %vm3541, %vm2746
  %vm3558 = vmand %vm3542, %vm2747
  %vm3559 = vmand %vm3543, %vm2748
  %vm3560 = vmand %vm3544, %vm2749
  %v3561 = vsel %vm3545, 1, 0
  %v3562 = vsel %vm3546, 1, 0
  %v3563 = vsel %vm3547, 1, 0
  %v3564 = vsel %vm3548, 1, 0
  %v3565 = vsel %vm3549, 1, 0
  %v3566 = vsel %vm3550, 1, 0
  %v3567 = vsel %vm3551, 1, 0
  %v3568 = vsel %vm3552, 1, 0
  %v3569 = vsel %vm3553, 1, 0
  %v3570 = vsel %vm3554, 1, 0
  %v3571 = vsel %vm3555, 1, 0
  %v3572 = vsel %vm3556, 1, 0
  %v3573 = vsel %vm3557, 1, 0
  %v3574 = vsel %vm3558, 1, 0
  %v3575 = vsel %vm3559, 1, 0
  %v3576 = vsel %vm3560, 1, 0
  %v3577 = vcvt.s32.f32 %v3561
  %v3578 = vcvt.s32.f32 %v3562
  %v3579 = vcvt.s32.f32 %v3563
  %v3580 = vcvt.s32.f32 %v3564
  %v3581 = vcvt.s32.f32 %v3565
  %v3582 = vcvt.s32.f32 %v3566
  %v3583 = vcvt.s32.f32 %v3567
  %v3584 = vcvt.s32.f32 %v3568
  %v3585 = vcvt.s32.f32 %v3569
  %v3586 = vcvt.s32.f32 %v3570
  %v3587 = vcvt.s32.f32 %v3571
  %v3588 = vcvt.s32.f32 %v3572
  %v3589 = vcvt.s32.f32 %v3573
  %v3590 = vcvt.s32.f32 %v3574
  %v3591 = vcvt.s32.f32 %v3575
  %v3592 = vcvt.s32.f32 %v3576
  %v3593 = vmul.f32 %v3513, %v3577
  %v3594 = vmul.f32 %v3514, %v3578
  %v3595 = vmul.f32 %v3515, %v3579
  %v3596 = vmul.f32 %v3516, %v3580
  %v3597 = vmul.f32 %v3517, %v3581
  %v3598 = vmul.f32 %v3518, %v3582
  %v3599 = vmul.f32 %v3519, %v3583
  %v3600 = vmul.f32 %v3520, %v3584
  %v3601 = vmul.f32 %v3521, %v3585
  %v3602 = vmul.f32 %v3522, %v3586
  %v3603 = vmul.f32 %v3523, %v3587
  %v3604 = vmul.f32 %v3524, %v3588
  %v3605 = vmul.f32 %v3525, %v3589
  %v3606 = vmul.f32 %v3526, %v3590
  %v3607 = vmul.f32 %v3527, %v3591
  %v3608 = vmul.f32 %v3528, %v3592
  %v3609 = vpack.c.bf16 %v3594, %v3593
  %v3610 = vpack.c.bf16 %v3596, %v3595
  %v3611 = vpack.c.bf16 %v3598, %v3597
  %v3612 = vpack.c.bf16 %v3600, %v3599
  %v3613 = vpack.c.bf16 %v3602, %v3601
  %v3614 = vpack.c.bf16 %v3604, %v3603
  %v3615 = vpack.c.bf16 %v3606, %v3605
  %v3616 = vpack.c.bf16 %v3608, %v3607
  %v3617 = vld [vmem:[%s3 + $0x100] sm:$0xf]
  %v3618 = vld [vmem:[%s3 + $0x104] sm:$0xf]
  %v3619 = vld [vmem:[%s3 + $0x108] sm:$0xf]
  %v3620 = vld [vmem:[%s3 + $0x10c] sm:$0xf]
  %v3621 = vld [vmem:[%s3 + $0x110] sm:$0xf]
  %v3622 = vld [vmem:[%s3 + $0x114] sm:$0xf]
  %v3623 = vld [vmem:[%s3 + $0x118] sm:$0xf]
  %v3624 = vld [vmem:[%s3 + $0x11c] sm:$0xf]
  %v3625 = vld [vmem:[%s3 + $0x120] sm:$0xf]
  %v3626 = vld [vmem:[%s3 + $0x124] sm:$0xf]
  %v3627 = vld [vmem:[%s3 + $0x128] sm:$0xf]
  %v3628 = vld [vmem:[%s3 + $0x12c] sm:$0xf]
  %v3629 = vld [vmem:[%s3 + $0x130] sm:$0xf]
  %v3630 = vld [vmem:[%s3 + $0x134] sm:$0xf]
  %v3631 = vld [vmem:[%s3 + $0x138] sm:$0xf]
  %v3632 = vld [vmem:[%s3 + $0x13c] sm:$0xf]
  %v3649 = vunpack.c.l.b16 %v3617
  %v3650 = vunpack.c.l.b16 %v3618
  %v3651 = vunpack.c.l.b16 %v3619
  %v3652 = vunpack.c.l.b16 %v3620
  %v3653 = vunpack.c.l.b16 %v3621
  %v3654 = vunpack.c.l.b16 %v3622
  %v3655 = vunpack.c.l.b16 %v3623
  %v3656 = vunpack.c.l.b16 %v3624
  %v3657 = vunpack.c.l.b16 %v3625
  %v3658 = vunpack.c.l.b16 %v3626
  %v3659 = vunpack.c.l.b16 %v3627
  %v3660 = vunpack.c.l.b16 %v3628
  %v3661 = vunpack.c.l.b16 %v3629
  %v3662 = vunpack.c.l.b16 %v3630
  %v3663 = vunpack.c.l.b16 %v3631
  %v3664 = vunpack.c.l.b16 %v3632
  %v3665 = vpack.c.b16 %v3650, %v3649
  %v3666 = vpack.c.b16 %v3652, %v3651
  %v3667 = vpack.c.b16 %v3654, %v3653
  %v3668 = vpack.c.b16 %v3656, %v3655
  %v3669 = vpack.c.b16 %v3658, %v3657
  %v3670 = vpack.c.b16 %v3660, %v3659
  %v3671 = vpack.c.b16 %v3662, %v3661
  %v3672 = vpack.c.b16 %v3664, %v3663
  %3681 = vmatpush.bf16.msra.mxu0 %v3672
  %3682 = vmatpush.bf16.msra.mxu0 %v3671
  %3683 = vmatpush.bf16.msra.mxu0 %v3670
  %3684 = vmatpush.bf16.msra.mxu0 %v3669
  %3685 = vmatpush.bf16.msra.mxu0 %v3668
  %3686 = vmatpush.bf16.msra.mxu0 %v3667
  %3687 = vmatpush.bf16.msra.mxu0 %v3666
  %3688 = vmatpush.bf16.msra.mxu0 %v3665
  %3689 = vmatmul.bf16.gmra.mxu0 %v3609
  %v3690 = vpop.f32.mrf.mxu0
  %v3691 = vadd.f32 0.0, %v3690
  %v3692 = vpop.f32.mrf.mxu0
  %v3693 = vadd.f32 0.0, %v3692
  %3694 = vmatmul.bf16.gmra.mxu0 %v3610
  %v3695 = vpop.f32.mrf.mxu0
  %v3696 = vadd.f32 0.0, %v3695
  %v3697 = vpop.f32.mrf.mxu0
  %v3698 = vadd.f32 0.0, %v3697
  %3699 = vmatmul.bf16.gmra.mxu0 %v3611
  %v3700 = vpop.f32.mrf.mxu0
  %v3701 = vadd.f32 0.0, %v3700
  %v3702 = vpop.f32.mrf.mxu0
  %v3703 = vadd.f32 0.0, %v3702
  %3704 = vmatmul.bf16.gmra.mxu0 %v3612
  %v3705 = vpop.f32.mrf.mxu0
  %v3706 = vadd.f32 0.0, %v3705
  %v3707 = vpop.f32.mrf.mxu0
  %v3708 = vadd.f32 0.0, %v3707
  %3709 = vmatmul.bf16.gmra.mxu0 %v3613
  %v3710 = vpop.f32.mrf.mxu0
  %v3711 = vadd.f32 0.0, %v3710
  %v3712 = vpop.f32.mrf.mxu0
  %v3713 = vadd.f32 0.0, %v3712
  %3714 = vmatmul.bf16.gmra.mxu0 %v3614
  %v3715 = vpop.f32.mrf.mxu0
  %v3716 = vadd.f32 0.0, %v3715
  %v3717 = vpop.f32.mrf.mxu0
  %v3718 = vadd.f32 0.0, %v3717
  %3719 = vmatmul.bf16.gmra.mxu0 %v3615
  %v3720 = vpop.f32.mrf.mxu0
  %v3721 = vadd.f32 0.0, %v3720
  %v3722 = vpop.f32.mrf.mxu0
  %v3723 = vadd.f32 0.0, %v3722
  %3724 = vmatmul.bf16.gmra.mxu0 %v3616
  %v3725 = vpop.f32.mrf.mxu0
  %v3726 = vadd.f32 0.0, %v3725
  %v3727 = vpop.f32.mrf.mxu0
  %v3728 = vadd.f32 0.0, %v3727
  %3729 = vdwg.mxu0
  %v3730 = vadd.f32 %v3497, %v3691
  %v3731 = vadd.f32 %v3498, %v3693
  %v3732 = vadd.f32 %v3499, %v3696
  %v3733 = vadd.f32 %v3500, %v3698
  %v3734 = vadd.f32 %v3501, %v3701
  %v3735 = vadd.f32 %v3502, %v3703
  %v3736 = vadd.f32 %v3503, %v3706
  %v3737 = vadd.f32 %v3504, %v3708
  %v3738 = vadd.f32 %v3505, %v3711
  %v3739 = vadd.f32 %v3506, %v3713
  %v3740 = vadd.f32 %v3507, %v3716
  %v3741 = vadd.f32 %v3508, %v3718
  %v3742 = vadd.f32 %v3509, %v3721
  %v3743 = vadd.f32 %v3510, %v3723
  %v3744 = vadd.f32 %v3511, %v3726
  %v3745 = vadd.f32 %v3512, %v3728
  %v3746 = vld [vmem:[#allocation2 + $0x11] sm:$0xff]
  %v3747 = vld [vmem:[#allocation2 + $0x19] sm:$0xff]
  %v3748 = vld [vmem:[#allocation2 + $0x21] sm:$0xff]
  %v3749 = vld [vmem:[#allocation2 + $0x29] sm:$0xff]
  %v3750 = vld [vmem:[#allocation2 + $0x31] sm:$0xff]
  %v3751 = vld [vmem:[#allocation2 + $0x39] sm:$0xff]
  %v3752 = vld [vmem:[#allocation2 + $0x41] sm:$0xff]
  %v3753 = vld [vmem:[#allocation2 + $0x49] sm:$0xff]
  %v3754 = vld [vmem:[#allocation2 + $0x51] sm:$0xff]
  %v3755 = vld [vmem:[#allocation2 + $0x59] sm:$0xff]
  %v3756 = vld [vmem:[#allocation2 + $0x61] sm:$0xff]
  %v3757 = vld [vmem:[#allocation2 + $0x69] sm:$0xff]
  %v3758 = vld [vmem:[#allocation2 + $0x71] sm:$0xff]
  %v3759 = vld [vmem:[#allocation2 + $0x79] sm:$0xff]
  %v3760 = vld [vmem:[#allocation2 + $0x81] sm:$0xff]
  %v3761 = vld [vmem:[#allocation2 + $0x89] sm:$0xff]
  %vm3762 = vmand %vm3280, %vm2983
  %vm3763 = vmand %vm3281, %vm2984
  %vm3764 = vmand %vm3282, %vm2985
  %vm3765 = vmand %vm3283, %vm2986
  %vm3766 = vmand %vm3284, %vm2987
  %vm3767 = vmand %vm3285, %vm2988
  %vm3768 = vmand %vm3286, %vm2989
  %vm3769 = vmand %vm3287, %vm2990
  %vm3770 = vmand %vm3288, %vm2991
  %vm3771 = vmand %vm3289, %vm2992
  %vm3772 = vmand %vm3290, %vm2993
  %vm3773 = vmand %vm3291, %vm2994
  %vm3774 = vmand %vm3292, %vm2995
  %vm3775 = vmand %vm3293, %vm2996
  %vm3776 = vmand %vm3294, %vm2997
  %vm3777 = vmand %vm3295, %vm2998
  %vm3778 = vmand %vm3762, %vm3015
  %vm3779 = vmand %vm3763, %vm3016
  %vm3780 = vmand %vm3764, %vm3017
  %vm3781 = vmand %vm3765, %vm3018
  %vm3782 = vmand %vm3766, %vm3019
  %vm3783 = vmand %vm3767, %vm3020
  %vm3784 = vmand %vm3768, %vm3021
  %vm3785 = vmand %vm3769, %vm3022
  %vm3786 = vmand %vm3770, %vm3023
  %vm3787 = vmand %vm3771, %vm3024
  %vm3788 = vmand %vm3772, %vm3025
  %vm3789 = vmand %vm3773, %vm3026
  %vm3790 = vmand %vm3774, %vm3027
  %vm3791 = vmand %vm3775, %vm3028
  %vm3792 = vmand %vm3776, %vm3029
  %vm3793 = vmand %vm3777, %vm3030
  %v3794 = vsel %vm3778, 1, 0
  %v3795 = vsel %vm3779, 1, 0
  %v3796 = vsel %vm3780, 1, 0
  %v3797 = vsel %vm3781, 1, 0
  %v3798 = vsel %vm3782, 1, 0
  %v3799 = vsel %vm3783, 1, 0
  %v3800 = vsel %vm3784, 1, 0
  %v3801 = vsel %vm3785, 1, 0
  %v3802 = vsel %vm3786, 1, 0
  %v3803 = vsel %vm3787, 1, 0
  %v3804 = vsel %vm3788, 1, 0
  %v3805 = vsel %vm3789, 1, 0
  %v3806 = vsel %vm3790, 1, 0
  %v3807 = vsel %vm3791, 1, 0
  %v3808 = vsel %vm3792, 1, 0
  %v3809 = vsel %vm3793, 1, 0
  %v3810 = vcvt.s32.f32 %v3794
  %v3811 = vcvt.s32.f32 %v3795
  %v3812 = vcvt.s32.f32 %v3796
  %v3813 = vcvt.s32.f32 %v3797
  %v3814 = vcvt.s32.f32 %v3798
  %v3815 = vcvt.s32.f32 %v3799
  %v3816 = vcvt.s32.f32 %v3800
  %v3817 = vcvt.s32.f32 %v3801
  %v3818 = vcvt.s32.f32 %v3802
  %v3819 = vcvt.s32.f32 %v3803
  %v3820 = vcvt.s32.f32 %v3804
  %v3821 = vcvt.s32.f32 %v3805
  %v3822 = vcvt.s32.f32 %v3806
  %v3823 = vcvt.s32.f32 %v3807
  %v3824 = vcvt.s32.f32 %v3808
  %v3825 = vcvt.s32.f32 %v3809
  %v3826 = vmul.f32 %v3746, %v3810
  %v3827 = vmul.f32 %v3747, %v3811
  %v3828 = vmul.f32 %v3748, %v3812
  %v3829 = vmul.f32 %v3749, %v3813
  %v3830 = vmul.f32 %v3750, %v3814
  %v3831 = vmul.f32 %v3751, %v3815
  %v3832 = vmul.f32 %v3752, %v3816
  %v3833 = vmul.f32 %v3753, %v3817
  %v3834 = vmul.f32 %v3754, %v3818
  %v3835 = vmul.f32 %v3755, %v3819
  %v3836 = vmul.f32 %v3756, %v3820
  %v3837 = vmul.f32 %v3757, %v3821
  %v3838 = vmul.f32 %v3758, %v3822
  %v3839 = vmul.f32 %v3759, %v3823
  %v3840 = vmul.f32 %v3760, %v3824
  %v3841 = vmul.f32 %v3761, %v3825
  %v3842 = vpack.c.bf16 %v3827, %v3826
  %v3843 = vpack.c.bf16 %v3829, %v3828
  %v3844 = vpack.c.bf16 %v3831, %v3830
  %v3845 = vpack.c.bf16 %v3833, %v3832
  %v3846 = vpack.c.bf16 %v3835, %v3834
  %v3847 = vpack.c.bf16 %v3837, %v3836
  %v3848 = vpack.c.bf16 %v3839, %v3838
  %v3849 = vpack.c.bf16 %v3841, %v3840
  %v3850 = vld [vmem:[%s3 + $0x140] sm:$0xf]
  %v3851 = vld [vmem:[%s3 + $0x144] sm:$0xf]
  %v3852 = vld [vmem:[%s3 + $0x148] sm:$0xf]
  %v3853 = vld [vmem:[%s3 + $0x14c] sm:$0xf]
  %v3854 = vld [vmem:[%s3 + $0x150] sm:$0xf]
  %v3855 = vld [vmem:[%s3 + $0x154] sm:$0xf]
  %v3856 = vld [vmem:[%s3 + $0x158] sm:$0xf]
  %v3857 = vld [vmem:[%s3 + $0x15c] sm:$0xf]
  %v3858 = vld [vmem:[%s3 + $0x160] sm:$0xf]
  %v3859 = vld [vmem:[%s3 + $0x164] sm:$0xf]
  %v3860 = vld [vmem:[%s3 + $0x168] sm:$0xf]
  %v3861 = vld [vmem:[%s3 + $0x16c] sm:$0xf]
  %v3862 = vld [vmem:[%s3 + $0x170] sm:$0xf]
  %v3863 = vld [vmem:[%s3 + $0x174] sm:$0xf]
  %v3864 = vld [vmem:[%s3 + $0x178] sm:$0xf]
  %v3865 = vld [vmem:[%s3 + $0x17c] sm:$0xf]
  %v3882 = vunpack.c.l.b16 %v3850
  %v3883 = vunpack.c.l.b16 %v3851
  %v3884 = vunpack.c.l.b16 %v3852
  %v3885 = vunpack.c.l.b16 %v3853
  %v3886 = vunpack.c.l.b16 %v3854
  %v3887 = vunpack.c.l.b16 %v3855
  %v3888 = vunpack.c.l.b16 %v3856
  %v3889 = vunpack.c.l.b16 %v3857
  %v3890 = vunpack.c.l.b16 %v3858
  %v3891 = vunpack.c.l.b16 %v3859
  %v3892 = vunpack.c.l.b16 %v3860
  %v3893 = vunpack.c.l.b16 %v3861
  %v3894 = vunpack.c.l.b16 %v3862
  %v3895 = vunpack.c.l.b16 %v3863
  %v3896 = vunpack.c.l.b16 %v3864
  %v3897 = vunpack.c.l.b16 %v3865
  %v3898 = vpack.c.b16 %v3883, %v3882
  %v3899 = vpack.c.b16 %v3885, %v3884
  %v3900 = vpack.c.b16 %v3887, %v3886
  %v3901 = vpack.c.b16 %v3889, %v3888
  %v3902 = vpack.c.b16 %v3891, %v3890
  %v3903 = vpack.c.b16 %v3893, %v3892
  %v3904 = vpack.c.b16 %v3895, %v3894
  %v3905 = vpack.c.b16 %v3897, %v3896
  %3914 = vmatpush.bf16.msra.mxu0 %v3905
  %3915 = vmatpush.bf16.msra.mxu0 %v3904
  %3916 = vmatpush.bf16.msra.mxu0 %v3903
  %3917 = vmatpush.bf16.msra.mxu0 %v3902
  %3918 = vmatpush.bf16.msra.mxu0 %v3901
  %3919 = vmatpush.bf16.msra.mxu0 %v3900
  %3920 = vmatpush.bf16.msra.mxu0 %v3899
  %3921 = vmatpush.bf16.msra.mxu0 %v3898
  %3922 = vmatmul.bf16.gmra.mxu0 %v3842
  %v3923 = vpop.f32.mrf.mxu0
  %v3924 = vadd.f32 0.0, %v3923
  %v3925 = vpop.f32.mrf.mxu0
  %v3926 = vadd.f32 0.0, %v3925
  %3927 = vmatmul.bf16.gmra.mxu0 %v3843
  %v3928 = vpop.f32.mrf.mxu0
  %v3929 = vadd.f32 0.0, %v3928
  %v3930 = vpop.f32.mrf.mxu0
  %v3931 = vadd.f32 0.0, %v3930
  %3932 = vmatmul.bf16.gmra.mxu0 %v3844
  %v3933 = vpop.f32.mrf.mxu0
  %v3934 = vadd.f32 0.0, %v3933
  %v3935 = vpop.f32.mrf.mxu0
  %v3936 = vadd.f32 0.0, %v3935
  %3937 = vmatmul.bf16.gmra.mxu0 %v3845
  %v3938 = vpop.f32.mrf.mxu0
  %v3939 = vadd.f32 0.0, %v3938
  %v3940 = vpop.f32.mrf.mxu0
  %v3941 = vadd.f32 0.0, %v3940
  %3942 = vmatmul.bf16.gmra.mxu0 %v3846
  %v3943 = vpop.f32.mrf.mxu0
  %v3944 = vadd.f32 0.0, %v3943
  %v3945 = vpop.f32.mrf.mxu0
  %v3946 = vadd.f32 0.0, %v3945
  %3947 = vmatmul.bf16.gmra.mxu0 %v3847
  %v3948 = vpop.f32.mrf.mxu0
  %v3949 = vadd.f32 0.0, %v3948
  %v3950 = vpop.f32.mrf.mxu0
  %v3951 = vadd.f32 0.0, %v3950
  %3952 = vmatmul.bf16.gmra.mxu0 %v3848
  %v3953 = vpop.f32.mrf.mxu0
  %v3954 = vadd.f32 0.0, %v3953
  %v3955 = vpop.f32.mrf.mxu0
  %v3956 = vadd.f32 0.0, %v3955
  %3957 = vmatmul.bf16.gmra.mxu0 %v3849
  %v3958 = vpop.f32.mrf.mxu0
  %v3959 = vadd.f32 0.0, %v3958
  %v3960 = vpop.f32.mrf.mxu0
  %v3961 = vadd.f32 0.0, %v3960
  %3962 = vdwg.mxu0
  %v3963 = vadd.f32 %v3730, %v3924
  %v3964 = vadd.f32 %v3731, %v3926
  %v3965 = vadd.f32 %v3732, %v3929
  %v3966 = vadd.f32 %v3733, %v3931
  %v3967 = vadd.f32 %v3734, %v3934
  %v3968 = vadd.f32 %v3735, %v3936
  %v3969 = vadd.f32 %v3736, %v3939
  %v3970 = vadd.f32 %v3737, %v3941
  %v3971 = vadd.f32 %v3738, %v3944
  %v3972 = vadd.f32 %v3739, %v3946
  %v3973 = vadd.f32 %v3740, %v3949
  %v3974 = vadd.f32 %v3741, %v3951
  %v3975 = vadd.f32 %v3742, %v3954
  %v3976 = vadd.f32 %v3743, %v3956
  %v3977 = vadd.f32 %v3744, %v3959
  %v3978 = vadd.f32 %v3745, %v3961
  %v3979 = vld [vmem:[#allocation2 + $0x17] sm:$0xff]
  %v3980 = vld [vmem:[#allocation2 + $0x1f] sm:$0xff]
  %v3981 = vld [vmem:[#allocation2 + $0x27] sm:$0xff]
  %v3982 = vld [vmem:[#allocation2 + $0x2f] sm:$0xff]
  %v3983 = vld [vmem:[#allocation2 + $0x37] sm:$0xff]
  %v3984 = vld [vmem:[#allocation2 + $0x3f] sm:$0xff]
  %v3985 = vld [vmem:[#allocation2 + $0x47] sm:$0xff]
  %v3986 = vld [vmem:[#allocation2 + $0x4f] sm:$0xff]
  %v3987 = vld [vmem:[#allocation2 + $0x57] sm:$0xff]
  %v3988 = vld [vmem:[#allocation2 + $0x5f] sm:$0xff]
  %v3989 = vld [vmem:[#allocation2 + $0x67] sm:$0xff]
  %v3990 = vld [vmem:[#allocation2 + $0x6f] sm:$0xff]
  %v3991 = vld [vmem:[#allocation2 + $0x77] sm:$0xff]
  %v3992 = vld [vmem:[#allocation2 + $0x7f] sm:$0xff]
  %v3993 = vld [vmem:[#allocation2 + $0x87] sm:$0xff]
  %v3994 = vld [vmem:[#allocation2 + $0x8f] sm:$0xff]
  %v3995 = vadd.s32 %v2305, 1
  %v3996 = vadd.s32 %v2306, 1
  %v3997 = vadd.s32 %v2307, 1
  %v3998 = vadd.s32 %v2308, 1
  %v3999 = vadd.s32 %v2309, 1
  %v4000 = vadd.s32 %v2310, 1
  %v4001 = vadd.s32 %v2311, 1
  %v4002 = vadd.s32 %v2312, 1
  %v4003 = vadd.s32 %v2313, 1
  %v4004 = vadd.s32 %v2314, 1
  %v4005 = vadd.s32 %v2315, 1
  %v4006 = vadd.s32 %v2316, 1
  %v4007 = vadd.s32 %v2317, 1
  %v4008 = vadd.s32 %v2318, 1
  %v4009 = vadd.s32 %v2319, 1
  %v4010 = vadd.s32 %v2320, 1
  %vm4011 = vcmp.ge.s32.totalorder %v3995, 0
  %vm4012 = vcmp.ge.s32.totalorder %v3996, 0
  %vm4013 = vcmp.ge.s32.totalorder %v3997, 0
  %vm4014 = vcmp.ge.s32.totalorder %v3998, 0
  %vm4015 = vcmp.ge.s32.totalorder %v3999, 0
  %vm4016 = vcmp.ge.s32.totalorder %v4000, 0
  %vm4017 = vcmp.ge.s32.totalorder %v4001, 0
  %vm4018 = vcmp.ge.s32.totalorder %v4002, 0
  %vm4019 = vcmp.ge.s32.totalorder %v4003, 0
  %vm4020 = vcmp.ge.s32.totalorder %v4004, 0
  %vm4021 = vcmp.ge.s32.totalorder %v4005, 0
  %vm4022 = vcmp.ge.s32.totalorder %v4006, 0
  %vm4023 = vcmp.ge.s32.totalorder %v4007, 0
  %vm4024 = vcmp.ge.s32.totalorder %v4008, 0
  %vm4025 = vcmp.ge.s32.totalorder %v4009, 0
  %vm4026 = vcmp.ge.s32.totalorder %v4010, 0
  %vm4027 = vcmp.lt.s32.totalorder %v3995, 8
  %vm4028 = vcmp.lt.s32.totalorder %v3996, 8
  %vm4029 = vcmp.lt.s32.totalorder %v3997, 8
  %vm4030 = vcmp.lt.s32.totalorder %v3998, 8
  %vm4031 = vcmp.lt.s32.totalorder %v3999, 8
  %vm4032 = vcmp.lt.s32.totalorder %v4000, 8
  %vm4033 = vcmp.lt.s32.totalorder %v4001, 8
  %vm4034 = vcmp.lt.s32.totalorder %v4002, 8
  %vm4035 = vcmp.lt.s32.totalorder %v4003, 8
  %vm4036 = vcmp.lt.s32.totalorder %v4004, 8
  %vm4037 = vcmp.lt.s32.totalorder %v4005, 8
  %vm4038 = vcmp.lt.s32.totalorder %v4006, 8
  %vm4039 = vcmp.lt.s32.totalorder %v4007, 8
  %vm4040 = vcmp.lt.s32.totalorder %v4008, 8
  %vm4041 = vcmp.lt.s32.totalorder %v4009, 8
  %vm4042 = vcmp.lt.s32.totalorder %v4010, 8
  %vm4043 = vmand %vm4011, %vm4027
  %vm4044 = vmand %vm4012, %vm4028
  %vm4045 = vmand %vm4013, %vm4029
  %vm4046 = vmand %vm4014, %vm4030
  %vm4047 = vmand %vm4015, %vm4031
  %vm4048 = vmand %vm4016, %vm4032
  %vm4049 = vmand %vm4017, %vm4033
  %vm4050 = vmand %vm4018, %vm4034
  %vm4051 = vmand %vm4019, %vm4035
  %vm4052 = vmand %vm4020, %vm4036
  %vm4053 = vmand %vm4021, %vm4037
  %vm4054 = vmand %vm4022, %vm4038
  %vm4055 = vmand %vm4023, %vm4039
  %vm4056 = vmand %vm4024, %vm4040
  %vm4057 = vmand %vm4025, %vm4041
  %vm4058 = vmand %vm4026, %vm4042
  %vm4059 = vmand %vm4043, %vm2437
  %vm4060 = vmand %vm4044, %vm2438
  %vm4061 = vmand %vm4045, %vm2439
  %vm4062 = vmand %vm4046, %vm2440
  %vm4063 = vmand %vm4047, %vm2441
  %vm4064 = vmand %vm4048, %vm2442
  %vm4065 = vmand %vm4049, %vm2443
  %vm4066 = vmand %vm4050, %vm2444
  %vm4067 = vmand %vm4051, %vm2445
  %vm4068 = vmand %vm4052, %vm2446
  %vm4069 = vmand %vm4053, %vm2447
  %vm4070 = vmand %vm4054, %vm2448
  %vm4071 = vmand %vm4055, %vm2449
  %vm4072 = vmand %vm4056, %vm2450
  %vm4073 = vmand %vm4057, %vm2451
  %vm4074 = vmand %vm4058, %vm2452
  %vm4075 = vmand %vm4059, %vm2469
  %vm4076 = vmand %vm4060, %vm2470
  %vm4077 = vmand %vm4061, %vm2471
  %vm4078 = vmand %vm4062, %vm2472
  %vm4079 = vmand %vm4063, %vm2473
  %vm4080 = vmand %vm4064, %vm2474
  %vm4081 = vmand %vm4065, %vm2475
  %vm4082 = vmand %vm4066, %vm2476
  %vm4083 = vmand %vm4067, %vm2477
  %vm4084 = vmand %vm4068, %vm2478
  %vm4085 = vmand %vm4069, %vm2479
  %vm4086 = vmand %vm4070, %vm2480
  %vm4087 = vmand %vm4071, %vm2481
  %vm4088 = vmand %vm4072, %vm2482
  %vm4089 = vmand %vm4073, %vm2483
  %vm4090 = vmand %vm4074, %vm2484
  %v4091 = vsel %vm4075, 1, 0
  %v4092 = vsel %vm4076, 1, 0
  %v4093 = vsel %vm4077, 1, 0
  %v4094 = vsel %vm4078, 1, 0
  %v4095 = vsel %vm4079, 1, 0
  %v4096 = vsel %vm4080, 1, 0
  %v4097 = vsel %vm4081, 1, 0
  %v4098 = vsel %vm4082, 1, 0
  %v4099 = vsel %vm4083, 1, 0
  %v4100 = vsel %vm4084, 1, 0
  %v4101 = vsel %vm4085, 1, 0
  %v4102 = vsel %vm4086, 1, 0
  %v4103 = vsel %vm4087, 1, 0
  %v4104 = vsel %vm4088, 1, 0
  %v4105 = vsel %vm4089, 1, 0
  %v4106 = vsel %vm4090, 1, 0
  %v4107 = vcvt.s32.f32 %v4091
  %v4108 = vcvt.s32.f32 %v4092
  %v4109 = vcvt.s32.f32 %v4093
  %v4110 = vcvt.s32.f32 %v4094
  %v4111 = vcvt.s32.f32 %v4095
  %v4112 = vcvt.s32.f32 %v4096
  %v4113 = vcvt.s32.f32 %v4097
  %v4114 = vcvt.s32.f32 %v4098
  %v4115 = vcvt.s32.f32 %v4099
  %v4116 = vcvt.s32.f32 %v4100
  %v4117 = vcvt.s32.f32 %v4101
  %v4118 = vcvt.s32.f32 %v4102
  %v4119 = vcvt.s32.f32 %v4103
  %v4120 = vcvt.s32.f32 %v4104
  %v4121 = vcvt.s32.f32 %v4105
  %v4122 = vcvt.s32.f32 %v4106
  %v4123 = vmul.f32 %v3979, %v4107
  %v4124 = vmul.f32 %v3980, %v4108
  %v4125 = vmul.f32 %v3981, %v4109
  %v4126 = vmul.f32 %v3982, %v4110
  %v4127 = vmul.f32 %v3983, %v4111
  %v4128 = vmul.f32 %v3984, %v4112
  %v4129 = vmul.f32 %v3985, %v4113
  %v4130 = vmul.f32 %v3986, %v4114
  %v4131 = vmul.f32 %v3987, %v4115
  %v4132 = vmul.f32 %v3988, %v4116
  %v4133 = vmul.f32 %v3989, %v4117
  %v4134 = vmul.f32 %v3990, %v4118
  %v4135 = vmul.f32 %v3991, %v4119
  %v4136 = vmul.f32 %v3992, %v4120
  %v4137 = vmul.f32 %v3993, %v4121
  %v4138 = vmul.f32 %v3994, %v4122
  %v4139 = vpack.c.bf16 %v4124, %v4123
  %v4140 = vpack.c.bf16 %v4126, %v4125
  %v4141 = vpack.c.bf16 %v4128, %v4127
  %v4142 = vpack.c.bf16 %v4130, %v4129
  %v4143 = vpack.c.bf16 %v4132, %v4131
  %v4144 = vpack.c.bf16 %v4134, %v4133
  %v4145 = vpack.c.bf16 %v4136, %v4135
  %v4146 = vpack.c.bf16 %v4138, %v4137
  %v4147 = vld [vmem:[%s3 + $0x180] sm:$0xf]
  %v4148 = vld [vmem:[%s3 + $0x184] sm:$0xf]
  %v4149 = vld [vmem:[%s3 + $0x188] sm:$0xf]
  %v4150 = vld [vmem:[%s3 + $0x18c] sm:$0xf]
  %v4151 = vld [vmem:[%s3 + $0x190] sm:$0xf]
  %v4152 = vld [vmem:[%s3 + $0x194] sm:$0xf]
  %v4153 = vld [vmem:[%s3 + $0x198] sm:$0xf]
  %v4154 = vld [vmem:[%s3 + $0x19c] sm:$0xf]
  %v4155 = vld [vmem:[%s3 + $0x1a0] sm:$0xf]
  %v4156 = vld [vmem:[%s3 + $0x1a4] sm:$0xf]
  %v4157 = vld [vmem:[%s3 + $0x1a8] sm:$0xf]
  %v4158 = vld [vmem:[%s3 + $0x1ac] sm:$0xf]
  %v4159 = vld [vmem:[%s3 + $0x1b0] sm:$0xf]
  %v4160 = vld [vmem:[%s3 + $0x1b4] sm:$0xf]
  %v4161 = vld [vmem:[%s3 + $0x1b8] sm:$0xf]
  %v4162 = vld [vmem:[%s3 + $0x1bc] sm:$0xf]
  %v4179 = vunpack.c.l.b16 %v4147
  %v4180 = vunpack.c.l.b16 %v4148
  %v4181 = vunpack.c.l.b16 %v4149
  %v4182 = vunpack.c.l.b16 %v4150
  %v4183 = vunpack.c.l.b16 %v4151
  %v4184 = vunpack.c.l.b16 %v4152
  %v4185 = vunpack.c.l.b16 %v4153
  %v4186 = vunpack.c.l.b16 %v4154
  %v4187 = vunpack.c.l.b16 %v4155
  %v4188 = vunpack.c.l.b16 %v4156
  %v4189 = vunpack.c.l.b16 %v4157
  %v4190 = vunpack.c.l.b16 %v4158
  %v4191 = vunpack.c.l.b16 %v4159
  %v4192 = vunpack.c.l.b16 %v4160
  %v4193 = vunpack.c.l.b16 %v4161
  %v4194 = vunpack.c.l.b16 %v4162
  %v4195 = vpack.c.b16 %v4180, %v4179
  %v4196 = vpack.c.b16 %v4182, %v4181
  %v4197 = vpack.c.b16 %v4184, %v4183
  %v4198 = vpack.c.b16 %v4186, %v4185
  %v4199 = vpack.c.b16 %v4188, %v4187
  %v4200 = vpack.c.b16 %v4190, %v4189
  %v4201 = vpack.c.b16 %v4192, %v4191
  %v4202 = vpack.c.b16 %v4194, %v4193
  %4211 = vmatpush.bf16.msra.mxu0 %v4202
  %4212 = vmatpush.bf16.msra.mxu0 %v4201
  %4213 = vmatpush.bf16.msra.mxu0 %v4200
  %4214 = vmatpush.bf16.msra.mxu0 %v4199
  %4215 = vmatpush.bf16.msra.mxu0 %v4198
  %4216 = vmatpush.bf16.msra.mxu0 %v4197
  %4217 = vmatpush.bf16.msra.mxu0 %v4196
  %4218 = vmatpush.bf16.msra.mxu0 %v4195
  %4219 = vmatmul.bf16.gmra.mxu0 %v4139
  %v4220 = vpop.f32.mrf.mxu0
  %v4221 = vadd.f32 0.0, %v4220
  %v4222 = vpop.f32.mrf.mxu0
  %v4223 = vadd.f32 0.0, %v4222
  %4224 = vmatmul.bf16.gmra.mxu0 %v4140
  %v4225 = vpop.f32.mrf.mxu0
  %v4226 = vadd.f32 0.0, %v4225
  %v4227 = vpop.f32.mrf.mxu0
  %v4228 = vadd.f32 0.0, %v4227
  %4229 = vmatmul.bf16.gmra.mxu0 %v4141
  %v4230 = vpop.f32.mrf.mxu0
  %v4231 = vadd.f32 0.0, %v4230
  %v4232 = vpop.f32.mrf.mxu0
  %v4233 = vadd.f32 0.0, %v4232
  %4234 = vmatmul.bf16.gmra.mxu0 %v4142
  %v4235 = vpop.f32.mrf.mxu0
  %v4236 = vadd.f32 0.0, %v4235
  %v4237 = vpop.f32.mrf.mxu0
  %v4238 = vadd.f32 0.0, %v4237
  %4239 = vmatmul.bf16.gmra.mxu0 %v4143
  %v4240 = vpop.f32.mrf.mxu0
  %v4241 = vadd.f32 0.0, %v4240
  %v4242 = vpop.f32.mrf.mxu0
  %v4243 = vadd.f32 0.0, %v4242
  %4244 = vmatmul.bf16.gmra.mxu0 %v4144
  %v4245 = vpop.f32.mrf.mxu0
  %v4246 = vadd.f32 0.0, %v4245
  %v4247 = vpop.f32.mrf.mxu0
  %v4248 = vadd.f32 0.0, %v4247
  %4249 = vmatmul.bf16.gmra.mxu0 %v4145
  %v4250 = vpop.f32.mrf.mxu0
  %v4251 = vadd.f32 0.0, %v4250
  %v4252 = vpop.f32.mrf.mxu0
  %v4253 = vadd.f32 0.0, %v4252
  %4254 = vmatmul.bf16.gmra.mxu0 %v4146
  %v4255 = vpop.f32.mrf.mxu0
  %v4256 = vadd.f32 0.0, %v4255
  %v4257 = vpop.f32.mrf.mxu0
  %v4258 = vadd.f32 0.0, %v4257
  %4259 = vdwg.mxu0
  %v4260 = vadd.f32 %v3963, %v4221
  %v4261 = vadd.f32 %v3964, %v4223
  %v4262 = vadd.f32 %v3965, %v4226
  %v4263 = vadd.f32 %v3966, %v4228
  %v4264 = vadd.f32 %v3967, %v4231
  %v4265 = vadd.f32 %v3968, %v4233
  %v4266 = vadd.f32 %v3969, %v4236
  %v4267 = vadd.f32 %v3970, %v4238
  %v4268 = vadd.f32 %v3971, %v4241
  %v4269 = vadd.f32 %v3972, %v4243
  %v4270 = vadd.f32 %v3973, %v4246
  %v4271 = vadd.f32 %v3974, %v4248
  %v4272 = vadd.f32 %v3975, %v4251
  %v4273 = vadd.f32 %v3976, %v4253
  %v4274 = vadd.f32 %v3977, %v4256
  %v4275 = vadd.f32 %v3978, %v4258
  %v4276 = vld [vmem:[#allocation2 + $0x18] sm:$0xff]
  %v4277 = vld [vmem:[#allocation2 + $0x20] sm:$0xff]
  %v4278 = vld [vmem:[#allocation2 + $0x28] sm:$0xff]
  %v4279 = vld [vmem:[#allocation2 + $0x30] sm:$0xff]
  %v4280 = vld [vmem:[#allocation2 + $0x38] sm:$0xff]
  %v4281 = vld [vmem:[#allocation2 + $0x40] sm:$0xff]
  %v4282 = vld [vmem:[#allocation2 + $0x48] sm:$0xff]
  %v4283 = vld [vmem:[#allocation2 + $0x50] sm:$0xff]
  %v4284 = vld [vmem:[#allocation2 + $0x58] sm:$0xff]
  %v4285 = vld [vmem:[#allocation2 + $0x60] sm:$0xff]
  %v4286 = vld [vmem:[#allocation2 + $0x68] sm:$0xff]
  %v4287 = vld [vmem:[#allocation2 + $0x70] sm:$0xff]
  %v4288 = vld [vmem:[#allocation2 + $0x78] sm:$0xff]
  %v4289 = vld [vmem:[#allocation2 + $0x80] sm:$0xff]
  %v4290 = vld [vmem:[#allocation2 + $0x88] sm:$0xff]
  %v4291 = vld [vmem:[#allocation2 + $0x90] sm:$0xff]
  %vm4292 = vmand %vm4043, %vm2702
  %vm4293 = vmand %vm4044, %vm2703
  %vm4294 = vmand %vm4045, %vm2704
  %vm4295 = vmand %vm4046, %vm2705
  %vm4296 = vmand %vm4047, %vm2706
  %vm4297 = vmand %vm4048, %vm2707
  %vm4298 = vmand %vm4049, %vm2708
  %vm4299 = vmand %vm4050, %vm2709
  %vm4300 = vmand %vm4051, %vm2710
  %vm4301 = vmand %vm4052, %vm2711
  %vm4302 = vmand %vm4053, %vm2712
  %vm4303 = vmand %vm4054, %vm2713
  %vm4304 = vmand %vm4055, %vm2714
  %vm4305 = vmand %vm4056, %vm2715
  %vm4306 = vmand %vm4057, %vm2716
  %vm4307 = vmand %vm4058, %vm2717
  %vm4308 = vmand %vm4292, %vm2734
  %vm4309 = vmand %vm4293, %vm2735
  %vm4310 = vmand %vm4294, %vm2736
  %vm4311 = vmand %vm4295, %vm2737
  %vm4312 = vmand %vm4296, %vm2738
  %vm4313 = vmand %vm4297, %vm2739
  %vm4314 = vmand %vm4298, %vm2740
  %vm4315 = vmand %vm4299, %vm2741
  %vm4316 = vmand %vm4300, %vm2742
  %vm4317 = vmand %vm4301, %vm2743
  %vm4318 = vmand %vm4302, %vm2744
  %vm4319 = vmand %vm4303, %vm2745
  %vm4320 = vmand %vm4304, %vm2746
  %vm4321 = vmand %vm4305, %vm2747
  %vm4322 = vmand %vm4306, %vm2748
  %vm4323 = vmand %vm4307, %vm2749
  %v4324 = vsel %vm4308, 1, 0
  %v4325 = vsel %vm4309, 1, 0
  %v4326 = vsel %vm4310, 1, 0
  %v4327 = vsel %vm4311, 1, 0
  %v4328 = vsel %vm4312, 1, 0
  %v4329 = vsel %vm4313, 1, 0
  %v4330 = vsel %vm4314, 1, 0
  %v4331 = vsel %vm4315, 1, 0
  %v4332 = vsel %vm4316, 1, 0
  %v4333 = vsel %vm4317, 1, 0
  %v4334 = vsel %vm4318, 1, 0
  %v4335 = vsel %vm4319, 1, 0
  %v4336 = vsel %vm4320, 1, 0
  %v4337 = vsel %vm4321, 1, 0
  %v4338 = vsel %vm4322, 1, 0
  %v4339 = vsel %vm4323, 1, 0
  %v4340 = vcvt.s32.f32 %v4324
  %v4341 = vcvt.s32.f32 %v4325
  %v4342 = vcvt.s32.f32 %v4326
  %v4343 = vcvt.s32.f32 %v4327
  %v4344 = vcvt.s32.f32 %v4328
  %v4345 = vcvt.s32.f32 %v4329
  %v4346 = vcvt.s32.f32 %v4330
  %v4347 = vcvt.s32.f32 %v4331
  %v4348 = vcvt.s32.f32 %v4332
  %v4349 = vcvt.s32.f32 %v4333
  %v4350 = vcvt.s32.f32 %v4334
  %v4351 = vcvt.s32.f32 %v4335
  %v4352 = vcvt.s32.f32 %v4336
  %v4353 = vcvt.s32.f32 %v4337
  %v4354 = vcvt.s32.f32 %v4338
  %v4355 = vcvt.s32.f32 %v4339
  %v4356 = vmul.f32 %v4276, %v4340
  %v4357 = vmul.f32 %v4277, %v4341
  %v4358 = vmul.f32 %v4278, %v4342
  %v4359 = vmul.f32 %v4279, %v4343
  %v4360 = vmul.f32 %v4280, %v4344
  %v4361 = vmul.f32 %v4281, %v4345
  %v4362 = vmul.f32 %v4282, %v4346
  %v4363 = vmul.f32 %v4283, %v4347
  %v4364 = vmul.f32 %v4284, %v4348
  %v4365 = vmul.f32 %v4285, %v4349
  %v4366 = vmul.f32 %v4286, %v4350
  %v4367 = vmul.f32 %v4287, %v4351
  %v4368 = vmul.f32 %v4288, %v4352
  %v4369 = vmul.f32 %v4289, %v4353
  %v4370 = vmul.f32 %v4290, %v4354
  %v4371 = vmul.f32 %v4291, %v4355
  %v4372 = vpack.c.bf16 %v4357, %v4356
  %v4373 = vpack.c.bf16 %v4359, %v4358
  %v4374 = vpack.c.bf16 %v4361, %v4360
  %v4375 = vpack.c.bf16 %v4363, %v4362
  %v4376 = vpack.c.bf16 %v4365, %v4364
  %v4377 = vpack.c.bf16 %v4367, %v4366
  %v4378 = vpack.c.bf16 %v4369, %v4368
  %v4379 = vpack.c.bf16 %v4371, %v4370
  %v4380 = vld [vmem:[%s3 + $0x1c0] sm:$0xf]
  %v4381 = vld [vmem:[%s3 + $0x1c4] sm:$0xf]
  %v4382 = vld [vmem:[%s3 + $0x1c8] sm:$0xf]
  %v4383 = vld [vmem:[%s3 + $0x1cc] sm:$0xf]
  %v4384 = vld [vmem:[%s3 + $0x1d0] sm:$0xf]
  %v4385 = vld [vmem:[%s3 + $0x1d4] sm:$0xf]
  %v4386 = vld [vmem:[%s3 + $0x1d8] sm:$0xf]
  %v4387 = vld [vmem:[%s3 + $0x1dc] sm:$0xf]
  %v4388 = vld [vmem:[%s3 + $0x1e0] sm:$0xf]
  %v4389 = vld [vmem:[%s3 + $0x1e4] sm:$0xf]
  %v4390 = vld [vmem:[%s3 + $0x1e8] sm:$0xf]
  %v4391 = vld [vmem:[%s3 + $0x1ec] sm:$0xf]
  %v4392 = vld [vmem:[%s3 + $0x1f0] sm:$0xf]
  %v4393 = vld [vmem:[%s3 + $0x1f4] sm:$0xf]
  %v4394 = vld [vmem:[%s3 + $0x1f8] sm:$0xf]
  %v4395 = vld [vmem:[%s3 + $0x1fc] sm:$0xf]
  %v4412 = vunpack.c.l.b16 %v4380
  %v4413 = vunpack.c.l.b16 %v4381
  %v4414 = vunpack.c.l.b16 %v4382
  %v4415 = vunpack.c.l.b16 %v4383
  %v4416 = vunpack.c.l.b16 %v4384
  %v4417 = vunpack.c.l.b16 %v4385
  %v4418 = vunpack.c.l.b16 %v4386
  %v4419 = vunpack.c.l.b16 %v4387
  %v4420 = vunpack.c.l.b16 %v4388
  %v4421 = vunpack.c.l.b16 %v4389
  %v4422 = vunpack.c.l.b16 %v4390
  %v4423 = vunpack.c.l.b16 %v4391
  %v4424 = vunpack.c.l.b16 %v4392
  %v4425 = vunpack.c.l.b16 %v4393
  %v4426 = vunpack.c.l.b16 %v4394
  %v4427 = vunpack.c.l.b16 %v4395
  %v4428 = vpack.c.b16 %v4413, %v4412
  %v4429 = vpack.c.b16 %v4415, %v4414
  %v4430 = vpack.c.b16 %v4417, %v4416
  %v4431 = vpack.c.b16 %v4419, %v4418
  %v4432 = vpack.c.b16 %v4421, %v4420
  %v4433 = vpack.c.b16 %v4423, %v4422
  %v4434 = vpack.c.b16 %v4425, %v4424
  %v4435 = vpack.c.b16 %v4427, %v4426
  %4444 = vmatpush.bf16.msra.mxu0 %v4435
  %4445 = vmatpush.bf16.msra.mxu0 %v4434
  %4446 = vmatpush.bf16.msra.mxu0 %v4433
  %4447 = vmatpush.bf16.msra.mxu0 %v4432
  %4448 = vmatpush.bf16.msra.mxu0 %v4431
  %4449 = vmatpush.bf16.msra.mxu0 %v4430
  %4450 = vmatpush.bf16.msra.mxu0 %v4429
  %4451 = vmatpush.bf16.msra.mxu0 %v4428
  %4452 = vmatmul.bf16.gmra.mxu0 %v4372
  %v4453 = vpop.f32.mrf.mxu0
  %v4454 = vadd.f32 0.0, %v4453
  %v4455 = vpop.f32.mrf.mxu0
  %v4456 = vadd.f32 0.0, %v4455
  %4457 = vmatmul.bf16.gmra.mxu0 %v4373
  %v4458 = vpop.f32.mrf.mxu0
  %v4459 = vadd.f32 0.0, %v4458
  %v4460 = vpop.f32.mrf.mxu0
  %v4461 = vadd.f32 0.0, %v4460
  %4462 = vmatmul.bf16.gmra.mxu0 %v4374
  %v4463 = vpop.f32.mrf.mxu0
  %v4464 = vadd.f32 0.0, %v4463
  %v4465 = vpop.f32.mrf.mxu0
  %v4466 = vadd.f32 0.0, %v4465
  %4467 = vmatmul.bf16.gmra.mxu0 %v4375
  %v4468 = vpop.f32.mrf.mxu0
  %v4469 = vadd.f32 0.0, %v4468
  %v4470 = vpop.f32.mrf.mxu0
  %v4471 = vadd.f32 0.0, %v4470
  %4472 = vmatmul.bf16.gmra.mxu0 %v4376
  %v4473 = vpop.f32.mrf.mxu0
  %v4474 = vadd.f32 0.0, %v4473
  %v4475 = vpop.f32.mrf.mxu0
  %v4476 = vadd.f32 0.0, %v4475
  %4477 = vmatmul.bf16.gmra.mxu0 %v4377
  %v4478 = vpop.f32.mrf.mxu0
  %v4479 = vadd.f32 0.0, %v4478
  %v4480 = vpop.f32.mrf.mxu0
  %v4481 = vadd.f32 0.0, %v4480
  %4482 = vmatmul.bf16.gmra.mxu0 %v4378
  %v4483 = vpop.f32.mrf.mxu0
  %v4484 = vadd.f32 0.0, %v4483
  %v4485 = vpop.f32.mrf.mxu0
  %v4486 = vadd.f32 0.0, %v4485
  %4487 = vmatmul.bf16.gmra.mxu0 %v4379
  %v4488 = vpop.f32.mrf.mxu0
  %v4489 = vadd.f32 0.0, %v4488
  %v4490 = vpop.f32.mrf.mxu0
  %v4491 = vadd.f32 0.0, %v4490
  %4492 = vdwg.mxu0
  %v4493 = vadd.f32 %v4260, %v4454
  %v4494 = vadd.f32 %v4261, %v4456
  %v4495 = vadd.f32 %v4262, %v4459
  %v4496 = vadd.f32 %v4263, %v4461
  %v4497 = vadd.f32 %v4264, %v4464
  %v4498 = vadd.f32 %v4265, %v4466
  %v4499 = vadd.f32 %v4266, %v4469
  %v4500 = vadd.f32 %v4267, %v4471
  %v4501 = vadd.f32 %v4268, %v4474
  %v4502 = vadd.f32 %v4269, %v4476
  %v4503 = vadd.f32 %v4270, %v4479
  %v4504 = vadd.f32 %v4271, %v4481
  %v4505 = vadd.f32 %v4272, %v4484
  %v4506 = vadd.f32 %v4273, %v4486
  %v4507 = vadd.f32 %v4274, %v4489
  %v4508 = vadd.f32 %v4275, %v4491
  %v4509 = vld [vmem:[#allocation2 + $0x19] sm:$0xff]
  %v4510 = vld [vmem:[#allocation2 + $0x21] sm:$0xff]
  %v4511 = vld [vmem:[#allocation2 + $0x29] sm:$0xff]
  %v4512 = vld [vmem:[#allocation2 + $0x31] sm:$0xff]
  %v4513 = vld [vmem:[#allocation2 + $0x39] sm:$0xff]
  %v4514 = vld [vmem:[#allocation2 + $0x41] sm:$0xff]
  %v4515 = vld [vmem:[#allocation2 + $0x49] sm:$0xff]
  %v4516 = vld [vmem:[#allocation2 + $0x51] sm:$0xff]
  %v4517 = vld [vmem:[#allocation2 + $0x59] sm:$0xff]
  %v4518 = vld [vmem:[#allocation2 + $0x61] sm:$0xff]
  %v4519 = vld [vmem:[#allocation2 + $0x69] sm:$0xff]
  %v4520 = vld [vmem:[#allocation2 + $0x71] sm:$0xff]
  %v4521 = vld [vmem:[#allocation2 + $0x79] sm:$0xff]
  %v4522 = vld [vmem:[#allocation2 + $0x81] sm:$0xff]
  %v4523 = vld [vmem:[#allocation2 + $0x89] sm:$0xff]
  %v4524 = vld [vmem:[#allocation2 + $0x91] sm:$0xff]
  %vm4525 = vmand %vm4043, %vm2983
  %vm4526 = vmand %vm4044, %vm2984
  %vm4527 = vmand %vm4045, %vm2985
  %vm4528 = vmand %vm4046, %vm2986
  %vm4529 = vmand %vm4047, %vm2987
  %vm4530 = vmand %vm4048, %vm2988
  %vm4531 = vmand %vm4049, %vm2989
  %vm4532 = vmand %vm4050, %vm2990
  %vm4533 = vmand %vm4051, %vm2991
  %vm4534 = vmand %vm4052, %vm2992
  %vm4535 = vmand %vm4053, %vm2993
  %vm4536 = vmand %vm4054, %vm2994
  %vm4537 = vmand %vm4055, %vm2995
  %vm4538 = vmand %vm4056, %vm2996
  %vm4539 = vmand %vm4057, %vm2997
  %vm4540 = vmand %vm4058, %vm2998
  %vm4541 = vmand %vm4525, %vm3015
  %vm4542 = vmand %vm4526, %vm3016
  %vm4543 = vmand %vm4527, %vm3017
  %vm4544 = vmand %vm4528, %vm3018
  %vm4545 = vmand %vm4529, %vm3019
  %vm4546 = vmand %vm4530, %vm3020
  %vm4547 = vmand %vm4531, %vm3021
  %vm4548 = vmand %vm4532, %vm3022
  %vm4549 = vmand %vm4533, %vm3023
  %vm4550 = vmand %vm4534, %vm3024
  %vm4551 = vmand %vm4535, %vm3025
  %vm4552 = vmand %vm4536, %vm3026
  %vm4553 = vmand %vm4537, %vm3027
  %vm4554 = vmand %vm4538, %vm3028
  %vm4555 = vmand %vm4539, %vm3029
  %vm4556 = vmand %vm4540, %vm3030
  %v4557 = vsel %vm4541, 1, 0
  %v4558 = vsel %vm4542, 1, 0
  %v4559 = vsel %vm4543, 1, 0
  %v4560 = vsel %vm4544, 1, 0
  %v4561 = vsel %vm4545, 1, 0
  %v4562 = vsel %vm4546, 1, 0
  %v4563 = vsel %vm4547, 1, 0
  %v4564 = vsel %vm4548, 1, 0
  %v4565 = vsel %vm4549, 1, 0
  %v4566 = vsel %vm4550, 1, 0
  %v4567 = vsel %vm4551, 1, 0
  %v4568 = vsel %vm4552, 1, 0
  %v4569 = vsel %vm4553, 1, 0
  %v4570 = vsel %vm4554, 1, 0
  %v4571 = vsel %vm4555, 1, 0
  %v4572 = vsel %vm4556, 1, 0
  %v4573 = vcvt.s32.f32 %v4557
  %v4574 = vcvt.s32.f32 %v4558
  %v4575 = vcvt.s32.f32 %v4559
  %v4576 = vcvt.s32.f32 %v4560
  %v4577 = vcvt.s32.f32 %v4561
  %v4578 = vcvt.s32.f32 %v4562
  %v4579 = vcvt.s32.f32 %v4563
  %v4580 = vcvt.s32.f32 %v4564
  %v4581 = vcvt.s32.f32 %v4565
  %v4582 = vcvt.s32.f32 %v4566
  %v4583 = vcvt.s32.f32 %v4567
  %v4584 = vcvt.s32.f32 %v4568
  %v4585 = vcvt.s32.f32 %v4569
  %v4586 = vcvt.s32.f32 %v4570
  %v4587 = vcvt.s32.f32 %v4571
  %v4588 = vcvt.s32.f32 %v4572
  %v4589 = vmul.f32 %v4509, %v4573
  %v4590 = vmul.f32 %v4510, %v4574
  %v4591 = vmul.f32 %v4511, %v4575
  %v4592 = vmul.f32 %v4512, %v4576
  %v4593 = vmul.f32 %v4513, %v4577
  %v4594 = vmul.f32 %v4514, %v4578
  %v4595 = vmul.f32 %v4515, %v4579
  %v4596 = vmul.f32 %v4516, %v4580
  %v4597 = vmul.f32 %v4517, %v4581
  %v4598 = vmul.f32 %v4518, %v4582
  %v4599 = vmul.f32 %v4519, %v4583
  %v4600 = vmul.f32 %v4520, %v4584
  %v4601 = vmul.f32 %v4521, %v4585
  %v4602 = vmul.f32 %v4522, %v4586
  %v4603 = vmul.f32 %v4523, %v4587
  %v4604 = vmul.f32 %v4524, %v4588
  %v4605 = vpack.c.bf16 %v4590, %v4589
  %v4606 = vpack.c.bf16 %v4592, %v4591
  %v4607 = vpack.c.bf16 %v4594, %v4593
  %v4608 = vpack.c.bf16 %v4596, %v4595
  %v4609 = vpack.c.bf16 %v4598, %v4597
  %v4610 = vpack.c.bf16 %v4600, %v4599
  %v4611 = vpack.c.bf16 %v4602, %v4601
  %v4612 = vpack.c.bf16 %v4604, %v4603
  %v4613 = vld [vmem:[%s3 + $0x200] sm:$0xf]
  %v4614 = vld [vmem:[%s3 + $0x204] sm:$0xf]
  %v4615 = vld [vmem:[%s3 + $0x208] sm:$0xf]
  %v4616 = vld [vmem:[%s3 + $0x20c] sm:$0xf]
  %v4617 = vld [vmem:[%s3 + $0x210] sm:$0xf]
  %v4618 = vld [vmem:[%s3 + $0x214] sm:$0xf]
  %v4619 = vld [vmem:[%s3 + $0x218] sm:$0xf]
  %v4620 = vld [vmem:[%s3 + $0x21c] sm:$0xf]
  %v4621 = vld [vmem:[%s3 + $0x220] sm:$0xf]
  %v4622 = vld [vmem:[%s3 + $0x224] sm:$0xf]
  %v4623 = vld [vmem:[%s3 + $0x228] sm:$0xf]
  %v4624 = vld [vmem:[%s3 + $0x22c] sm:$0xf]
  %v4625 = vld [vmem:[%s3 + $0x230] sm:$0xf]
  %v4626 = vld [vmem:[%s3 + $0x234] sm:$0xf]
  %v4627 = vld [vmem:[%s3 + $0x238] sm:$0xf]
  %v4628 = vld [vmem:[%s3 + $0x23c] sm:$0xf]
  %v4645 = vunpack.c.l.b16 %v4613
  %v4646 = vunpack.c.l.b16 %v4614
  %v4647 = vunpack.c.l.b16 %v4615
  %v4648 = vunpack.c.l.b16 %v4616
  %v4649 = vunpack.c.l.b16 %v4617
  %v4650 = vunpack.c.l.b16 %v4618
  %v4651 = vunpack.c.l.b16 %v4619
  %v4652 = vunpack.c.l.b16 %v4620
  %v4653 = vunpack.c.l.b16 %v4621
  %v4654 = vunpack.c.l.b16 %v4622
  %v4655 = vunpack.c.l.b16 %v4623
  %v4656 = vunpack.c.l.b16 %v4624
  %v4657 = vunpack.c.l.b16 %v4625
  %v4658 = vunpack.c.l.b16 %v4626
  %v4659 = vunpack.c.l.b16 %v4627
  %v4660 = vunpack.c.l.b16 %v4628
  %v4661 = vpack.c.b16 %v4646, %v4645
  %v4662 = vpack.c.b16 %v4648, %v4647
  %v4663 = vpack.c.b16 %v4650, %v4649
  %v4664 = vpack.c.b16 %v4652, %v4651
  %v4665 = vpack.c.b16 %v4654, %v4653
  %v4666 = vpack.c.b16 %v4656, %v4655
  %v4667 = vpack.c.b16 %v4658, %v4657
  %v4668 = vpack.c.b16 %v4660, %v4659
  %4677 = vmatpush.bf16.msra.mxu0 %v4668
  %4678 = vmatpush.bf16.msra.mxu0 %v4667
  %4679 = vmatpush.bf16.msra.mxu0 %v4666
  %4680 = vmatpush.bf16.msra.mxu0 %v4665
  %4681 = vmatpush.bf16.msra.mxu0 %v4664
  %4682 = vmatpush.bf16.msra.mxu0 %v4663
  %4683 = vmatpush.bf16.msra.mxu0 %v4662
  %4684 = vmatpush.bf16.msra.mxu0 %v4661
  %4685 = vmatmul.bf16.gmra.mxu0 %v4605
  %v4686 = vpop.f32.mrf.mxu0
  %v4687 = vadd.f32 0.0, %v4686
  %v4688 = vpop.f32.mrf.mxu0
  %v4689 = vadd.f32 0.0, %v4688
  %4690 = vmatmul.bf16.gmra.mxu0 %v4606
  %v4691 = vpop.f32.mrf.mxu0
  %v4692 = vadd.f32 0.0, %v4691
  %v4693 = vpop.f32.mrf.mxu0
  %v4694 = vadd.f32 0.0, %v4693
  %4695 = vmatmul.bf16.gmra.mxu0 %v4607
  %v4696 = vpop.f32.mrf.mxu0
  %v4697 = vadd.f32 0.0, %v4696
  %v4698 = vpop.f32.mrf.mxu0
  %v4699 = vadd.f32 0.0, %v4698
  %4700 = vmatmul.bf16.gmra.mxu0 %v4608
  %v4701 = vpop.f32.mrf.mxu0
  %v4702 = vadd.f32 0.0, %v4701
  %v4703 = vpop.f32.mrf.mxu0
  %v4704 = vadd.f32 0.0, %v4703
  %4705 = vmatmul.bf16.gmra.mxu0 %v4609
  %v4706 = vpop.f32.mrf.mxu0
  %v4707 = vadd.f32 0.0, %v4706
  %v4708 = vpop.f32.mrf.mxu0
  %v4709 = vadd.f32 0.0, %v4708
  %4710 = vmatmul.bf16.gmra.mxu0 %v4610
  %v4711 = vpop.f32.mrf.mxu0
  %v4712 = vadd.f32 0.0, %v4711
  %v4713 = vpop.f32.mrf.mxu0
  %v4714 = vadd.f32 0.0, %v4713
  %4715 = vmatmul.bf16.gmra.mxu0 %v4611
  %v4716 = vpop.f32.mrf.mxu0
  %v4717 = vadd.f32 0.0, %v4716
  %v4718 = vpop.f32.mrf.mxu0
  %v4719 = vadd.f32 0.0, %v4718
  %4720 = vmatmul.bf16.gmra.mxu0 %v4612
  %v4721 = vpop.f32.mrf.mxu0
  %v4722 = vadd.f32 0.0, %v4721
  %v4723 = vpop.f32.mrf.mxu0
  %v4724 = vadd.f32 0.0, %v4723
  %4725 = vdwg.mxu0
  %v4726 = vadd.f32 %v4493, %v4687
  %v4727 = vadd.f32 %v4494, %v4689
  %v4728 = vadd.f32 %v4495, %v4692
  %v4729 = vadd.f32 %v4496, %v4694
  %v4730 = vadd.f32 %v4497, %v4697
  %v4731 = vadd.f32 %v4498, %v4699
  %v4732 = vadd.f32 %v4499, %v4702
  %v4733 = vadd.f32 %v4500, %v4704
  %v4734 = vadd.f32 %v4501, %v4707
  %v4735 = vadd.f32 %v4502, %v4709
  %v4736 = vadd.f32 %v4503, %v4712
  %v4737 = vadd.f32 %v4504, %v4714
  %v4738 = vadd.f32 %v4505, %v4717
  %v4739 = vadd.f32 %v4506, %v4719
  %v4740 = vadd.f32 %v4507, %v4722
  %v4741 = vadd.f32 %v4508, %v4724
  %v4742 = vmax.f32 %v4726, 0.0
  %v4743 = vmax.f32 %v4727, 0.0
  %v4744 = vmax.f32 %v4728, 0.0
  %v4745 = vmax.f32 %v4729, 0.0
  %v4746 = vmax.f32 %v4730, 0.0
  %v4747 = vmax.f32 %v4731, 0.0
  %v4748 = vmax.f32 %v4732, 0.0
  %v4749 = vmax.f32 %v4733, 0.0
  %v4750 = vmax.f32 %v4734, 0.0
  %v4751 = vmax.f32 %v4735, 0.0
  %v4752 = vmax.f32 %v4736, 0.0
  %v4753 = vmax.f32 %v4737, 0.0
  %v4754 = vmax.f32 %v4738, 0.0
  %v4755 = vmax.f32 %v4739, 0.0
  %v4756 = vmax.f32 %v4740, 0.0
  %v4757 = vmax.f32 %v4741, 0.0
  %v4758 = vpack.c.bf16 %v4742, %v4742
  %v4759 = vpack.c.bf16 %v4743, %v4743
  %v4760 = vpack.c.bf16 %v4744, %v4744
  %v4761 = vpack.c.bf16 %v4745, %v4745
  %v4762 = vpack.c.bf16 %v4746, %v4746
  %v4763 = vpack.c.bf16 %v4747, %v4747
  %v4764 = vpack.c.bf16 %v4748, %v4748
  %v4765 = vpack.c.bf16 %v4749, %v4749
  %v4766 = vpack.c.bf16 %v4750, %v4750
  %v4767 = vpack.c.bf16 %v4751, %v4751
  %v4768 = vpack.c.bf16 %v4752, %v4752
  %v4769 = vpack.c.bf16 %v4753, %v4753
  %v4770 = vpack.c.bf16 %v4754, %v4754
  %v4771 = vpack.c.bf16 %v4755, %v4755
  %v4772 = vpack.c.bf16 %v4756, %v4756
  %v4773 = vpack.c.bf16 %v4757, %v4757
  %4774 = vst [vmem:[%s5] sm:$0xf] %v4758
  %4775 = vst [vmem:[%s5 + $0x4] sm:$0xf] %v4759
  %4776 = vst [vmem:[%s5 + $0x8] sm:$0xf] %v4760
  %4777 = vst [vmem:[%s5 + $0xc] sm:$0xf] %v4761
  %4778 = vst [vmem:[%s5 + $0x10] sm:$0xf] %v4762
  %4779 = vst [vmem:[%s5 + $0x14] sm:$0xf] %v4763
  %4780 = vst [vmem:[%s5 + $0x18] sm:$0xf] %v4764
  %4781 = vst [vmem:[%s5 + $0x1c] sm:$0xf] %v4765
  %4782 = vst [vmem:[%s5 + $0x20] sm:$0xf] %v4766
  %4783 = vst [vmem:[%s5 + $0x24] sm:$0xf] %v4767
  %4784 = vst [vmem:[%s5 + $0x28] sm:$0xf] %v4768
  %4785 = vst [vmem:[%s5 + $0x2c] sm:$0xf] %v4769
  %4786 = vst [vmem:[%s5 + $0x30] sm:$0xf] %v4770
  %4787 = vst [vmem:[%s5 + $0x34] sm:$0xf] %v4771
  %4788 = vst [vmem:[%s5 + $0x38] sm:$0xf] %v4772
  %4789 = vst [vmem:[%s5 + $0x3c] sm:$0xf] %v4773
  // Predicated region
  $region22: #{resnet_forward.4} parent=0 // pred_check
    _
  $region23: #{resnet_forward.4} parent=0 // pred_check_branch
    %4791 = sbr.rel (0) target = $region25
  $region24: #{resnet_forward.4} parent=0 // pred_region
    _
  $region25: #{resnet_forward.4} parent=0 // pred_fallthru
    _
  // Predicated region
  $region26: #{resnet_forward.4} parent=0 // pred_check
    _
  $region27: #{resnet_forward.4} parent=0 // pred_check_branch
    %4793 = sbr.rel (0) target = $region29
  $region28: #{resnet_forward.4} parent=0 // pred_region
    _
  $region29: #{resnet_forward.4} parent=0 // pred_fallthru
    _

// kernel: resnet_forward.5
$region0: #{resnet_forward.5}
  #allocation0 [shape = 'u32[]', space=smem, size = 0x4, offset = 0x4, fixed_abs, tag = 'smem constant byte address 0x4 - core index']
  #allocation1 [shape = 'u32[72,128]{1,0:T(1,128)}', space=vmem, size = 0x9000, scoped, tag = 'internal scratch']
  #allocation2 [shape = 'f32[48,256]{1,0:T(8,128)}', space=vmem, size = 0xc000, scoped, tag = 'scratch operand']
  %s0 = inlined_call_operand.vmem [shape: bf16[32,1152], index: 0, kind: input, shape index: {}]
  %s1 = inlined_call_operand.vmem [shape: bf16[1152,512], index: 1, kind: input, shape index: {}]
  %s2 = inlined_call_operand.vmem [shape: f32[1,512], index: 2, kind: input, shape index: {}]
  %s3 = inlined_call_operand.vmem [shape: bf16[2304,256], index: 3, kind: input, shape index: {}]
  %s4 = inlined_call_operand.vmem [shape: f32[1,256], index: 4, kind: input, shape index: {}]
  %s5 = inlined_call_operand.vmem [shape: f32[8,32], index: 5, kind: input, shape index: {}]
  %s6 = inlined_call_operand.vmem [shape: f32[8,256], index: 6, kind: output, shape index: {}]
  %s7 = sld [smem:[#allocation0]]
  $region34: #{resnet_forward.5} parent=0
    _
  %s9 = ssub.s32 1, %s7
  %s10 = scalar_select 0, %s9, %s7
  // Predicated region
  $region2: #{resnet_forward.5} parent=0 // pred_check
    _
  $region3: #{resnet_forward.5} parent=0 // pred_check_branch
    %12 = sbr.rel (0) target = $region5
  $region4: #{resnet_forward.5} parent=0 // pred_region
    _
  $region5: #{resnet_forward.5} parent=0 // pred_fallthru
    _
  // Predicated region
  $region6: #{resnet_forward.5} parent=0 // pred_check
    _
  $region7: #{resnet_forward.5} parent=0 // pred_check_branch
    %14 = sbr.rel (0) target = $region9
  $region8: #{resnet_forward.5} parent=0 // pred_region
    _
  $region9: #{resnet_forward.5} parent=0 // pred_fallthru
    _
  // Predicated region
  $region10: #{resnet_forward.5} parent=0 // pred_check
    _
  $region11: #{resnet_forward.5} parent=0 // pred_check_branch
    %16 = sbr.rel (0) target = $region13
  $region12: #{resnet_forward.5} parent=0 // pred_region
    _
  $region13: #{resnet_forward.5} parent=0 // pred_fallthru
    _
  // Predicated region
  $region14: #{resnet_forward.5} parent=0 // pred_check
    _
  $region15: #{resnet_forward.5} parent=0 // pred_check_branch
    %18 = sbr.rel (0) target = $region17
  $region16: #{resnet_forward.5} parent=0 // pred_region
    _
  $region17: #{resnet_forward.5} parent=0 // pred_fallthru
    _
  // Predicated region
  $region18: #{resnet_forward.5} parent=0 // pred_check
    _
  $region19: #{resnet_forward.5} parent=0 // pred_check_branch
    %20 = sbr.rel (0) target = $region21
  $region20: #{resnet_forward.5} parent=0 // pred_region
    _
  $region21: #{resnet_forward.5} parent=0 // pred_fallthru
    _
  // Predicated region
  $region22: #{resnet_forward.5} parent=0 // pred_check
    _
  $region23: #{resnet_forward.5} parent=0 // pred_check_branch
    %22 = sbr.rel (0) target = $region25
  $region24: #{resnet_forward.5} parent=0 // pred_region
    _
  $region25: #{resnet_forward.5} parent=0 // pred_fallthru
    _
  %v23 = vld [vmem:[%s0] sm:$0xff]
  %v24 = vld [vmem:[%s0 + $0x8] sm:$0xff]
  %v25 = vld [vmem:[%s0 + $0x10] sm:$0xff]
  %v26 = vld [vmem:[%s0 + $0x18] sm:$0xff]
  %v27 = vld [vmem:[%s0 + $0x20] sm:$0xf]
  %v28 = vld [vmem:[%s0 + $0x24] sm:$0xff]
  %v29 = vld [vmem:[%s0 + $0x2c] sm:$0xff]
  %v30 = vld [vmem:[%s0 + $0x34] sm:$0xff]
  %v31 = vld [vmem:[%s0 + $0x3c] sm:$0xff]
  %v32 = vld [vmem:[%s0 + $0x44] sm:$0xf]
  %v33 = vld [vmem:[%s0 + $0x48] sm:$0xff]
  %v34 = vld [vmem:[%s0 + $0x50] sm:$0xff]
  %v35 = vld [vmem:[%s0 + $0x58] sm:$0xff]
  %v36 = vld [vmem:[%s0 + $0x60] sm:$0xff]
  %v37 = vld [vmem:[%s0 + $0x68] sm:$0xf]
  %v38 = vld [vmem:[%s0 + $0x6c] sm:$0xff]
  %v39 = vld [vmem:[%s0 + $0x74] sm:$0xff]
  %v40 = vld [vmem:[%s0 + $0x7c] sm:$0xff]
  %v41 = vld [vmem:[%s0 + $0x84] sm:$0xff]
  %v42 = vld [vmem:[%s0 + $0x8c] sm:$0xf]
  %v43 = vld [vmem:[%s1] sm:$0xff]
  %v44 = vld [vmem:[%s1 + $0x8] sm:$0xff]
  %v45 = vld [vmem:[%s1 + $0x10] sm:$0xff]
  %v46 = vld [vmem:[%s1 + $0x18] sm:$0xff]
  %v47 = vld [vmem:[%s1 + $0x20] sm:$0xff]
  %v48 = vld [vmem:[%s1 + $0x28] sm:$0xff]
  %v49 = vld [vmem:[%s1 + $0x30] sm:$0xff]
  %v50 = vld [vmem:[%s1 + $0x38] sm:$0xff]
  %v51 = vld [vmem:[%s1 + $0x40] sm:$0xff]
  %v52 = vld [vmem:[%s1 + $0x48] sm:$0xff]
  %v53 = vld [vmem:[%s1 + $0x50] sm:$0xff]
  %v54 = vld [vmem:[%s1 + $0x58] sm:$0xff]
  %v55 = vld [vmem:[%s1 + $0x60] sm:$0xff]
  %v56 = vld [vmem:[%s1 + $0x68] sm:$0xff]
  %v57 = vld [vmem:[%s1 + $0x70] sm:$0xff]
  %v58 = vld [vmem:[%s1 + $0x78] sm:$0xff]
  %v59 = vld [vmem:[%s1 + $0x80] sm:$0xff]
  %v60 = vld [vmem:[%s1 + $0x88] sm:$0xff]
  %v61 = vld [vmem:[%s1 + $0x90] sm:$0xff]
  %v62 = vld [vmem:[%s1 + $0x98] sm:$0xff]
  %v63 = vld [vmem:[%s1 + $0xa0] sm:$0xff]
  %v64 = vld [vmem:[%s1 + $0xa8] sm:$0xff]
  %v65 = vld [vmem:[%s1 + $0xb0] sm:$0xff]
  %v66 = vld [vmem:[%s1 + $0xb8] sm:$0xff]
  %v67 = vld [vmem:[%s1 + $0xc0] sm:$0xff]
  %v68 = vld [vmem:[%s1 + $0xc8] sm:$0xff]
  %v69 = vld [vmem:[%s1 + $0xd0] sm:$0xff]
  %v70 = vld [vmem:[%s1 + $0xd8] sm:$0xff]
  %v71 = vld [vmem:[%s1 + $0xe0] sm:$0xff]
  %v72 = vld [vmem:[%s1 + $0xe8] sm:$0xff]
  %v73 = vld [vmem:[%s1 + $0xf0] sm:$0xff]
  %v74 = vld [vmem:[%s1 + $0xf8] sm:$0xff]
  %v75 = vld [vmem:[%s1 + $0x100] sm:$0xff]
  %v76 = vld [vmem:[%s1 + $0x108] sm:$0xff]
  %v77 = vld [vmem:[%s1 + $0x110] sm:$0xff]
  %v78 = vld [vmem:[%s1 + $0x118] sm:$0xff]
  %v79 = vld [vmem:[%s1 + $0x120] sm:$0xff]
  %v80 = vld [vmem:[%s1 + $0x128] sm:$0xff]
  %v81 = vld [vmem:[%s1 + $0x130] sm:$0xff]
  %v82 = vld [vmem:[%s1 + $0x138] sm:$0xff]
  %v83 = vld [vmem:[%s1 + $0x140] sm:$0xff]
  %v84 = vld [vmem:[%s1 + $0x148] sm:$0xff]
  %v85 = vld [vmem:[%s1 + $0x150] sm:$0xff]
  %v86 = vld [vmem:[%s1 + $0x158] sm:$0xff]
  %v87 = vld [vmem:[%s1 + $0x160] sm:$0xff]
  %v88 = vld [vmem:[%s1 + $0x168] sm:$0xff]
  %v89 = vld [vmem:[%s1 + $0x170] sm:$0xff]
  %v90 = vld [vmem:[%s1 + $0x178] sm:$0xff]
  %v91 = vld [vmem:[%s1 + $0x180] sm:$0xff]
  %v92 = vld [vmem:[%s1 + $0x188] sm:$0xff]
  %v93 = vld [vmem:[%s1 + $0x190] sm:$0xff]
  %v94 = vld [vmem:[%s1 + $0x198] sm:$0xff]
  %v95 = vld [vmem:[%s1 + $0x1a0] sm:$0xff]
  %v96 = vld [vmem:[%s1 + $0x1a8] sm:$0xff]
  %v97 = vld [vmem:[%s1 + $0x1b0] sm:$0xff]
  %v98 = vld [vmem:[%s1 + $0x1b8] sm:$0xff]
  %v99 = vld [vmem:[%s1 + $0x1c0] sm:$0xff]
  %v100 = vld [vmem:[%s1 + $0x1c8] sm:$0xff]
  %v101 = vld [vmem:[%s1 + $0x1d0] sm:$0xff]
  %v102 = vld [vmem:[%s1 + $0x1d8] sm:$0xff]
  %v103 = vld [vmem:[%s1 + $0x1e0] sm:$0xff]
  %v104 = vld [vmem:[%s1 + $0x1e8] sm:$0xff]
  %v105 = vld [vmem:[%s1 + $0x1f0] sm:$0xff]
  %v106 = vld [vmem:[%s1 + $0x1f8] sm:$0xff]
  %v107 = vld [vmem:[%s1 + $0x200] sm:$0xff]
  %v108 = vld [vmem:[%s1 + $0x208] sm:$0xff]
  %v109 = vld [vmem:[%s1 + $0x210] sm:$0xff]
  %v110 = vld [vmem:[%s1 + $0x218] sm:$0xff]
  %v111 = vld [vmem:[%s1 + $0x220] sm:$0xff]
  %v112 = vld [vmem:[%s1 + $0x228] sm:$0xff]
  %v113 = vld [vmem:[%s1 + $0x230] sm:$0xff]
  %v114 = vld [vmem:[%s1 + $0x238] sm:$0xff]
  %v115 = vld [vmem:[%s1 + $0x240] sm:$0xff]
  %v116 = vld [vmem:[%s1 + $0x248] sm:$0xff]
  %v117 = vld [vmem:[%s1 + $0x250] sm:$0xff]
  %v118 = vld [vmem:[%s1 + $0x258] sm:$0xff]
  %v119 = vld [vmem:[%s1 + $0x260] sm:$0xff]
  %v120 = vld [vmem:[%s1 + $0x268] sm:$0xff]
  %v121 = vld [vmem:[%s1 + $0x270] sm:$0xff]
  %v122 = vld [vmem:[%s1 + $0x278] sm:$0xff]
  %v123 = vld [vmem:[%s1 + $0x280] sm:$0xff]
  %v124 = vld [vmem:[%s1 + $0x288] sm:$0xff]
  %v125 = vld [vmem:[%s1 + $0x290] sm:$0xff]
  %v126 = vld [vmem:[%s1 + $0x298] sm:$0xff]
  %v127 = vld [vmem:[%s1 + $0x2a0] sm:$0xff]
  %v128 = vld [vmem:[%s1 + $0x2a8] sm:$0xff]
  %v129 = vld [vmem:[%s1 + $0x2b0] sm:$0xff]
  %v130 = vld [vmem:[%s1 + $0x2b8] sm:$0xff]
  %v131 = vld [vmem:[%s1 + $0x2c0] sm:$0xff]
  %v132 = vld [vmem:[%s1 + $0x2c8] sm:$0xff]
  %v133 = vld [vmem:[%s1 + $0x2d0] sm:$0xff]
  %v134 = vld [vmem:[%s1 + $0x2d8] sm:$0xff]
  %v135 = vld [vmem:[%s1 + $0x2e0] sm:$0xff]
  %v136 = vld [vmem:[%s1 + $0x2e8] sm:$0xff]
  %v137 = vld [vmem:[%s1 + $0x2f0] sm:$0xff]
  %v138 = vld [vmem:[%s1 + $0x2f8] sm:$0xff]
  %v139 = vld [vmem:[%s1 + $0x300] sm:$0xff]
  %v140 = vld [vmem:[%s1 + $0x308] sm:$0xff]
  %v141 = vld [vmem:[%s1 + $0x310] sm:$0xff]
  %v142 = vld [vmem:[%s1 + $0x318] sm:$0xff]
  %v143 = vld [vmem:[%s1 + $0x320] sm:$0xff]
  %v144 = vld [vmem:[%s1 + $0x328] sm:$0xff]
  %v145 = vld [vmem:[%s1 + $0x330] sm:$0xff]
  %v146 = vld [vmem:[%s1 + $0x338] sm:$0xff]
  %v147 = vld [vmem:[%s1 + $0x340] sm:$0xff]
  %v148 = vld [vmem:[%s1 + $0x348] sm:$0xff]
  %v149 = vld [vmem:[%s1 + $0x350] sm:$0xff]
  %v150 = vld [vmem:[%s1 + $0x358] sm:$0xff]
  %v151 = vld [vmem:[%s1 + $0x360] sm:$0xff]
  %v152 = vld [vmem:[%s1 + $0x368] sm:$0xff]
  %v153 = vld [vmem:[%s1 + $0x370] sm:$0xff]
  %v154 = vld [vmem:[%s1 + $0x378] sm:$0xff]
  %v155 = vld [vmem:[%s1 + $0x380] sm:$0xff]
  %v156 = vld [vmem:[%s1 + $0x388] sm:$0xff]
  %v157 = vld [vmem:[%s1 + $0x390] sm:$0xff]
  %v158 = vld [vmem:[%s1 + $0x398] sm:$0xff]
  %v159 = vld [vmem:[%s1 + $0x3a0] sm:$0xff]
  %v160 = vld [vmem:[%s1 + $0x3a8] sm:$0xff]
  %v161 = vld [vmem:[%s1 + $0x3b0] sm:$0xff]
  %v162 = vld [vmem:[%s1 + $0x3b8] sm:$0xff]
  %v163 = vld [vmem:[%s1 + $0x3c0] sm:$0xff]
  %v164 = vld [vmem:[%s1 + $0x3c8] sm:$0xff]
  %v165 = vld [vmem:[%s1 + $0x3d0] sm:$0xff]
  %v166 = vld [vmem:[%s1 + $0x3d8] sm:$0xff]
  %v167 = vld [vmem:[%s1 + $0x3e0] sm:$0xff]
  %v168 = vld [vmem:[%s1 + $0x3e8] sm:$0xff]
  %v169 = vld [vmem:[%s1 + $0x3f0] sm:$0xff]
  %v170 = vld [vmem:[%s1 + $0x3f8] sm:$0xff]
  %v171 = vld [vmem:[%s1 + $0x400] sm:$0xff]
  %v172 = vld [vmem:[%s1 + $0x408] sm:$0xff]
  %v173 = vld [vmem:[%s1 + $0x410] sm:$0xff]
  %v174 = vld [vmem:[%s1 + $0x418] sm:$0xff]
  %v175 = vld [vmem:[%s1 + $0x420] sm:$0xff]
  %v176 = vld [vmem:[%s1 + $0x428] sm:$0xff]
  %v177 = vld [vmem:[%s1 + $0x430] sm:$0xff]
  %v178 = vld [vmem:[%s1 + $0x438] sm:$0xff]
  %v179 = vld [vmem:[%s1 + $0x440] sm:$0xff]
  %v180 = vld [vmem:[%s1 + $0x448] sm:$0xff]
  %v181 = vld [vmem:[%s1 + $0x450] sm:$0xff]
  %v182 = vld [vmem:[%s1 + $0x458] sm:$0xff]
  %v183 = vld [vmem:[%s1 + $0x460] sm:$0xff]
  %v184 = vld [vmem:[%s1 + $0x468] sm:$0xff]
  %v185 = vld [vmem:[%s1 + $0x470] sm:$0xff]
  %v186 = vld [vmem:[%s1 + $0x478] sm:$0xff]
  %v187 = vld [vmem:[%s1 + $0x480] sm:$0xff]
  %v188 = vld [vmem:[%s1 + $0x488] sm:$0xff]
  %v189 = vld [vmem:[%s1 + $0x490] sm:$0xff]
  %v190 = vld [vmem:[%s1 + $0x498] sm:$0xff]
  %v191 = vld [vmem:[%s1 + $0x4a0] sm:$0xff]
  %v192 = vld [vmem:[%s1 + $0x4a8] sm:$0xff]
  %v193 = vld [vmem:[%s1 + $0x4b0] sm:$0xff]
  %v194 = vld [vmem:[%s1 + $0x4b8] sm:$0xff]
  %v195 = vld [vmem:[%s1 + $0x4c0] sm:$0xff]
  %v196 = vld [vmem:[%s1 + $0x4c8] sm:$0xff]
  %v197 = vld [vmem:[%s1 + $0x4d0] sm:$0xff]
  %v198 = vld [vmem:[%s1 + $0x4d8] sm:$0xff]
  %v199 = vld [vmem:[%s1 + $0x4e0] sm:$0xff]
  %v200 = vld [vmem:[%s1 + $0x4e8] sm:$0xff]
  %v201 = vld [vmem:[%s1 + $0x4f0] sm:$0xff]
  %v202 = vld [vmem:[%s1 + $0x4f8] sm:$0xff]
  %v203 = vld [vmem:[%s1 + $0x500] sm:$0xff]
  %v204 = vld [vmem:[%s1 + $0x508] sm:$0xff]
  %v205 = vld [vmem:[%s1 + $0x510] sm:$0xff]
  %v206 = vld [vmem:[%s1 + $0x518] sm:$0xff]
  %v207 = vld [vmem:[%s1 + $0x520] sm:$0xff]
  %v208 = vld [vmem:[%s1 + $0x528] sm:$0xff]
  %v209 = vld [vmem:[%s1 + $0x530] sm:$0xff]
  %v210 = vld [vmem:[%s1 + $0x538] sm:$0xff]
  %v211 = vld [vmem:[%s1 + $0x540] sm:$0xff]
  %v212 = vld [vmem:[%s1 + $0x548] sm:$0xff]
  %v213 = vld [vmem:[%s1 + $0x550] sm:$0xff]
  %v214 = vld [vmem:[%s1 + $0x558] sm:$0xff]
  %v215 = vld [vmem:[%s1 + $0x560] sm:$0xff]
  %v216 = vld [vmem:[%s1 + $0x568] sm:$0xff]
  %v217 = vld [vmem:[%s1 + $0x570] sm:$0xff]
  %v218 = vld [vmem:[%s1 + $0x578] sm:$0xff]
  %v219 = vld [vmem:[%s1 + $0x580] sm:$0xff]
  %v220 = vld [vmem:[%s1 + $0x588] sm:$0xff]
  %v221 = vld [vmem:[%s1 + $0x590] sm:$0xff]
  %v222 = vld [vmem:[%s1 + $0x598] sm:$0xff]
  %v223 = vld [vmem:[%s1 + $0x5a0] sm:$0xff]
  %v224 = vld [vmem:[%s1 + $0x5a8] sm:$0xff]
  %v225 = vld [vmem:[%s1 + $0x5b0] sm:$0xff]
  %v226 = vld [vmem:[%s1 + $0x5b8] sm:$0xff]
  %v227 = vld [vmem:[%s1 + $0x5c0] sm:$0xff]
  %v228 = vld [vmem:[%s1 + $0x5c8] sm:$0xff]
  %v229 = vld [vmem:[%s1 + $0x5d0] sm:$0xff]
  %v230 = vld [vmem:[%s1 + $0x5d8] sm:$0xff]
  %v231 = vld [vmem:[%s1 + $0x5e0] sm:$0xff]
  %v232 = vld [vmem:[%s1 + $0x5e8] sm:$0xff]
  %v233 = vld [vmem:[%s1 + $0x5f0] sm:$0xff]
  %v234 = vld [vmem:[%s1 + $0x5f8] sm:$0xff]
  %v235 = vld [vmem:[%s1 + $0x600] sm:$0xff]
  %v236 = vld [vmem:[%s1 + $0x608] sm:$0xff]
  %v237 = vld [vmem:[%s1 + $0x610] sm:$0xff]
  %v238 = vld [vmem:[%s1 + $0x618] sm:$0xff]
  %v239 = vld [vmem:[%s1 + $0x620] sm:$0xff]
  %v240 = vld [vmem:[%s1 + $0x628] sm:$0xff]
  %v241 = vld [vmem:[%s1 + $0x630] sm:$0xff]
  %v242 = vld [vmem:[%s1 + $0x638] sm:$0xff]
  %v243 = vld [vmem:[%s1 + $0x640] sm:$0xff]
  %v244 = vld [vmem:[%s1 + $0x648] sm:$0xff]
  %v245 = vld [vmem:[%s1 + $0x650] sm:$0xff]
  %v246 = vld [vmem:[%s1 + $0x658] sm:$0xff]
  %v247 = vld [vmem:[%s1 + $0x660] sm:$0xff]
  %v248 = vld [vmem:[%s1 + $0x668] sm:$0xff]
  %v249 = vld [vmem:[%s1 + $0x670] sm:$0xff]
  %v250 = vld [vmem:[%s1 + $0x678] sm:$0xff]
  %v251 = vld [vmem:[%s1 + $0x680] sm:$0xff]
  %v252 = vld [vmem:[%s1 + $0x688] sm:$0xff]
  %v253 = vld [vmem:[%s1 + $0x690] sm:$0xff]
  %v254 = vld [vmem:[%s1 + $0x698] sm:$0xff]
  %v255 = vld [vmem:[%s1 + $0x6a0] sm:$0xff]
  %v256 = vld [vmem:[%s1 + $0x6a8] sm:$0xff]
  %v257 = vld [vmem:[%s1 + $0x6b0] sm:$0xff]
  %v258 = vld [vmem:[%s1 + $0x6b8] sm:$0xff]
  %v259 = vld [vmem:[%s1 + $0x6c0] sm:$0xff]
  %v260 = vld [vmem:[%s1 + $0x6c8] sm:$0xff]
  %v261 = vld [vmem:[%s1 + $0x6d0] sm:$0xff]
  %v262 = vld [vmem:[%s1 + $0x6d8] sm:$0xff]
  %v263 = vld [vmem:[%s1 + $0x6e0] sm:$0xff]
  %v264 = vld [vmem:[%s1 + $0x6e8] sm:$0xff]
  %v265 = vld [vmem:[%s1 + $0x6f0] sm:$0xff]
  %v266 = vld [vmem:[%s1 + $0x6f8] sm:$0xff]
  %v267 = vld [vmem:[%s1 + $0x700] sm:$0xff]
  %v268 = vld [vmem:[%s1 + $0x708] sm:$0xff]
  %v269 = vld [vmem:[%s1 + $0x710] sm:$0xff]
  %v270 = vld [vmem:[%s1 + $0x718] sm:$0xff]
  %v271 = vld [vmem:[%s1 + $0x720] sm:$0xff]
  %v272 = vld [vmem:[%s1 + $0x728] sm:$0xff]
  %v273 = vld [vmem:[%s1 + $0x730] sm:$0xff]
  %v274 = vld [vmem:[%s1 + $0x738] sm:$0xff]
  %v275 = vld [vmem:[%s1 + $0x740] sm:$0xff]
  %v276 = vld [vmem:[%s1 + $0x748] sm:$0xff]
  %v277 = vld [vmem:[%s1 + $0x750] sm:$0xff]
  %v278 = vld [vmem:[%s1 + $0x758] sm:$0xff]
  %v279 = vld [vmem:[%s1 + $0x760] sm:$0xff]
  %v280 = vld [vmem:[%s1 + $0x768] sm:$0xff]
  %v281 = vld [vmem:[%s1 + $0x770] sm:$0xff]
  %v282 = vld [vmem:[%s1 + $0x778] sm:$0xff]
  %v283 = vld [vmem:[%s1 + $0x780] sm:$0xff]
  %v284 = vld [vmem:[%s1 + $0x788] sm:$0xff]
  %v285 = vld [vmem:[%s1 + $0x790] sm:$0xff]
  %v286 = vld [vmem:[%s1 + $0x798] sm:$0xff]
  %v287 = vld [vmem:[%s1 + $0x7a0] sm:$0xff]
  %v288 = vld [vmem:[%s1 + $0x7a8] sm:$0xff]
  %v289 = vld [vmem:[%s1 + $0x7b0] sm:$0xff]
  %v290 = vld [vmem:[%s1 + $0x7b8] sm:$0xff]
  %v291 = vld [vmem:[%s1 + $0x7c0] sm:$0xff]
  %v292 = vld [vmem:[%s1 + $0x7c8] sm:$0xff]
  %v293 = vld [vmem:[%s1 + $0x7d0] sm:$0xff]
  %v294 = vld [vmem:[%s1 + $0x7d8] sm:$0xff]
  %v295 = vld [vmem:[%s1 + $0x7e0] sm:$0xff]
  %v296 = vld [vmem:[%s1 + $0x7e8] sm:$0xff]
  %v297 = vld [vmem:[%s1 + $0x7f0] sm:$0xff]
  %v298 = vld [vmem:[%s1 + $0x7f8] sm:$0xff]
  %v299 = vld [vmem:[%s1 + $0x800] sm:$0xff]
  %v300 = vld [vmem:[%s1 + $0x808] sm:$0xff]
  %v301 = vld [vmem:[%s1 + $0x810] sm:$0xff]
  %v302 = vld [vmem:[%s1 + $0x818] sm:$0xff]
  %v303 = vld [vmem:[%s1 + $0x820] sm:$0xff]
  %v304 = vld [vmem:[%s1 + $0x828] sm:$0xff]
  %v305 = vld [vmem:[%s1 + $0x830] sm:$0xff]
  %v306 = vld [vmem:[%s1 + $0x838] sm:$0xff]
  %v307 = vld [vmem:[%s1 + $0x840] sm:$0xff]
  %v308 = vld [vmem:[%s1 + $0x848] sm:$0xff]
  %v309 = vld [vmem:[%s1 + $0x850] sm:$0xff]
  %v310 = vld [vmem:[%s1 + $0x858] sm:$0xff]
  %v311 = vld [vmem:[%s1 + $0x860] sm:$0xff]
  %v312 = vld [vmem:[%s1 + $0x868] sm:$0xff]
  %v313 = vld [vmem:[%s1 + $0x870] sm:$0xff]
  %v314 = vld [vmem:[%s1 + $0x878] sm:$0xff]
  %v315 = vld [vmem:[%s1 + $0x880] sm:$0xff]
  %v316 = vld [vmem:[%s1 + $0x888] sm:$0xff]
  %v317 = vld [vmem:[%s1 + $0x890] sm:$0xff]
  %v318 = vld [vmem:[%s1 + $0x898] sm:$0xff]
  %v319 = vld [vmem:[%s1 + $0x8a0] sm:$0xff]
  %v320 = vld [vmem:[%s1 + $0x8a8] sm:$0xff]
  %v321 = vld [vmem:[%s1 + $0x8b0] sm:$0xff]
  %v322 = vld [vmem:[%s1 + $0x8b8] sm:$0xff]
  %v323 = vld [vmem:[%s1 + $0x8c0] sm:$0xff]
  %v324 = vld [vmem:[%s1 + $0x8c8] sm:$0xff]
  %v325 = vld [vmem:[%s1 + $0x8d0] sm:$0xff]
  %v326 = vld [vmem:[%s1 + $0x8d8] sm:$0xff]
  %v327 = vld [vmem:[%s1 + $0x8e0] sm:$0xff]
  %v328 = vld [vmem:[%s1 + $0x8e8] sm:$0xff]
  %v329 = vld [vmem:[%s1 + $0x8f0] sm:$0xff]
  %v330 = vld [vmem:[%s1 + $0x8f8] sm:$0xff]
  %v331 = vld [vmem:[%s2] sm:$0xf]
  %v333 = vperm.slane %v331, 0
  %v334 = vperm.slane %v331, 1
  %v335 = vperm.slane %v331, 2
  %v336 = vperm.slane %v331, 3
  %v361 = vunpack.c.l.b16 %v23
  %v362 = vunpack.c.h.b16 %v23
  %v363 = vunpack.c.l.b16 %v24
  %v364 = vunpack.c.h.b16 %v24
  %v365 = vunpack.c.l.b16 %v25
  %v366 = vunpack.c.h.b16 %v25
  %v367 = vunpack.c.l.b16 %v26
  %v368 = vunpack.c.h.b16 %v26
  %v369 = vunpack.c.l.b16 %v27
  %v370 = vunpack.c.l.b16 %v28
  %v371 = vunpack.c.h.b16 %v28
  %v372 = vunpack.c.l.b16 %v29
  %v373 = vunpack.c.h.b16 %v29
  %v374 = vunpack.c.l.b16 %v30
  %v375 = vunpack.c.h.b16 %v30
  %v376 = vunpack.c.l.b16 %v31
  %v377 = vunpack.c.h.b16 %v31
  %v378 = vunpack.c.l.b16 %v32
  %v379 = vunpack.c.l.b16 %v33
  %v380 = vunpack.c.h.b16 %v33
  %v381 = vunpack.c.l.b16 %v34
  %v382 = vunpack.c.h.b16 %v34
  %v383 = vunpack.c.l.b16 %v35
  %v384 = vunpack.c.h.b16 %v35
  %v385 = vunpack.c.l.b16 %v36
  %v386 = vunpack.c.h.b16 %v36
  %v387 = vunpack.c.l.b16 %v37
  %v388 = vunpack.c.l.b16 %v38
  %v389 = vunpack.c.h.b16 %v38
  %v390 = vunpack.c.l.b16 %v39
  %v391 = vunpack.c.h.b16 %v39
  %v392 = vunpack.c.l.b16 %v40
  %v393 = vunpack.c.h.b16 %v40
  %v394 = vunpack.c.l.b16 %v41
  %v395 = vunpack.c.h.b16 %v41
  %v396 = vunpack.c.l.b16 %v42
  %v397 = vpack.c.b16 %v370, %v361
  %v398 = vpack.c.b16 %v371, %v362
  %v399 = vpack.c.b16 %v372, %v363
  %v400 = vpack.c.b16 %v373, %v364
  %v401 = vpack.c.b16 %v374, %v365
  %v402 = vpack.c.b16 %v375, %v366
  %v403 = vpack.c.b16 %v376, %v367
  %v404 = vpack.c.b16 %v377, %v368
  %v405 = vpack.c.b16 %v378, %v369
  %v406 = vpack.c.b16 %v388, %v379
  %v407 = vpack.c.b16 %v389, %v380
  %v408 = vpack.c.b16 %v390, %v381
  %v409 = vpack.c.b16 %v391, %v382
  %v410 = vpack.c.b16 %v392, %v383
  %v411 = vpack.c.b16 %v393, %v384
  %v412 = vpack.c.b16 %v394, %v385
  %v413 = vpack.c.b16 %v395, %v386
  %v414 = vpack.c.b16 %v396, %v387
  %v721 = vunpack.c.l.b16 %v43
  %v722 = vunpack.c.h.b16 %v43
  %v723 = vunpack.c.l.b16 %v44
  %v724 = vunpack.c.h.b16 %v44
  %v725 = vunpack.c.l.b16 %v45
  %v726 = vunpack.c.h.b16 %v45
  %v727 = vunpack.c.l.b16 %v46
  %v728 = vunpack.c.h.b16 %v46
  %v729 = vunpack.c.l.b16 %v47
  %v730 = vunpack.c.h.b16 %v47
  %v731 = vunpack.c.l.b16 %v48
  %v732 = vunpack.c.h.b16 %v48
  %v733 = vunpack.c.l.b16 %v49
  %v734 = vunpack.c.h.b16 %v49
  %v735 = vunpack.c.l.b16 %v50
  %v736 = vunpack.c.h.b16 %v50
  %v737 = vunpack.c.l.b16 %v51
  %v738 = vunpack.c.h.b16 %v51
  %v739 = vunpack.c.l.b16 %v52
  %v740 = vunpack.c.h.b16 %v52
  %v741 = vunpack.c.l.b16 %v53
  %v742 = vunpack.c.h.b16 %v53
  %v743 = vunpack.c.l.b16 %v54
  %v744 = vunpack.c.h.b16 %v54
  %v745 = vunpack.c.l.b16 %v55
  %v746 = vunpack.c.h.b16 %v55
  %v747 = vunpack.c.l.b16 %v56
  %v748 = vunpack.c.h.b16 %v56
  %v749 = vunpack.c.l.b16 %v57
  %v750 = vunpack.c.h.b16 %v57
  %v751 = vunpack.c.l.b16 %v58
  %v752 = vunpack.c.h.b16 %v58
  %v753 = vunpack.c.l.b16 %v59
  %v754 = vunpack.c.h.b16 %v59
  %v755 = vunpack.c.l.b16 %v60
  %v756 = vunpack.c.h.b16 %v60
  %v757 = vunpack.c.l.b16 %v61
  %v758 = vunpack.c.h.b16 %v61
  %v759 = vunpack.c.l.b16 %v62
  %v760 = vunpack.c.h.b16 %v62
  %v761 = vunpack.c.l.b16 %v63
  %v762 = vunpack.c.h.b16 %v63
  %v763 = vunpack.c.l.b16 %v64
  %v764 = vunpack.c.h.b16 %v64
  %v765 = vunpack.c.l.b16 %v65
  %v766 = vunpack.c.h.b16 %v65
  %v767 = vunpack.c.l.b16 %v66
  %v768 = vunpack.c.h.b16 %v66
  %v769 = vunpack.c.l.b16 %v67
  %v770 = vunpack.c.h.b16 %v67
  %v771 = vunpack.c.l.b16 %v68
  %v772 = vunpack.c.h.b16 %v68
  %v773 = vunpack.c.l.b16 %v69
  %v774 = vunpack.c.h.b16 %v69
  %v775 = vunpack.c.l.b16 %v70
  %v776 = vunpack.c.h.b16 %v70
  %v777 = vunpack.c.l.b16 %v71
  %v778 = vunpack.c.h.b16 %v71
  %v779 = vunpack.c.l.b16 %v72
  %v780 = vunpack.c.h.b16 %v72
  %v781 = vunpack.c.l.b16 %v73
  %v782 = vunpack.c.h.b16 %v73
  %v783 = vunpack.c.l.b16 %v74
  %v784 = vunpack.c.h.b16 %v74
  %v785 = vunpack.c.l.b16 %v75
  %v786 = vunpack.c.h.b16 %v75
  %v787 = vunpack.c.l.b16 %v76
  %v788 = vunpack.c.h.b16 %v76
  %v789 = vunpack.c.l.b16 %v77
  %v790 = vunpack.c.h.b16 %v77
  %v791 = vunpack.c.l.b16 %v78
  %v792 = vunpack.c.h.b16 %v78
  %v793 = vunpack.c.l.b16 %v79
  %v794 = vunpack.c.h.b16 %v79
  %v795 = vunpack.c.l.b16 %v80
  %v796 = vunpack.c.h.b16 %v80
  %v797 = vunpack.c.l.b16 %v81
  %v798 = vunpack.c.h.b16 %v81
  %v799 = vunpack.c.l.b16 %v82
  %v800 = vunpack.c.h.b16 %v82
  %v801 = vunpack.c.l.b16 %v83
  %v802 = vunpack.c.h.b16 %v83
  %v803 = vunpack.c.l.b16 %v84
  %v804 = vunpack.c.h.b16 %v84
  %v805 = vunpack.c.l.b16 %v85
  %v806 = vunpack.c.h.b16 %v85
  %v807 = vunpack.c.l.b16 %v86
  %v808 = vunpack.c.h.b16 %v86
  %v809 = vunpack.c.l.b16 %v87
  %v810 = vunpack.c.h.b16 %v87
  %v811 = vunpack.c.l.b16 %v88
  %v812 = vunpack.c.h.b16 %v88
  %v813 = vunpack.c.l.b16 %v89
  %v814 = vunpack.c.h.b16 %v89
  %v815 = vunpack.c.l.b16 %v90
  %v816 = vunpack.c.h.b16 %v90
  %v817 = vunpack.c.l.b16 %v91
  %v818 = vunpack.c.h.b16 %v91
  %v819 = vunpack.c.l.b16 %v92
  %v820 = vunpack.c.h.b16 %v92
  %v821 = vunpack.c.l.b16 %v93
  %v822 = vunpack.c.h.b16 %v93
  %v823 = vunpack.c.l.b16 %v94
  %v824 = vunpack.c.h.b16 %v94
  %v825 = vunpack.c.l.b16 %v95
  %v826 = vunpack.c.h.b16 %v95
  %v827 = vunpack.c.l.b16 %v96
  %v828 = vunpack.c.h.b16 %v96
  %v829 = vunpack.c.l.b16 %v97
  %v830 = vunpack.c.h.b16 %v97
  %v831 = vunpack.c.l.b16 %v98
  %v832 = vunpack.c.h.b16 %v98
  %v833 = vunpack.c.l.b16 %v99
  %v834 = vunpack.c.h.b16 %v99
  %v835 = vunpack.c.l.b16 %v100
  %v836 = vunpack.c.h.b16 %v100
  %v837 = vunpack.c.l.b16 %v101
  %v838 = vunpack.c.h.b16 %v101
  %v839 = vunpack.c.l.b16 %v102
  %v840 = vunpack.c.h.b16 %v102
  %v841 = vunpack.c.l.b16 %v103
  %v842 = vunpack.c.h.b16 %v103
  %v843 = vunpack.c.l.b16 %v104
  %v844 = vunpack.c.h.b16 %v104
  %v845 = vunpack.c.l.b16 %v105
  %v846 = vunpack.c.h.b16 %v105
  %v847 = vunpack.c.l.b16 %v106
  %v848 = vunpack.c.h.b16 %v106
  %v849 = vunpack.c.l.b16 %v107
  %v850 = vunpack.c.h.b16 %v107
  %v851 = vunpack.c.l.b16 %v108
  %v852 = vunpack.c.h.b16 %v108
  %v853 = vunpack.c.l.b16 %v109
  %v854 = vunpack.c.h.b16 %v109
  %v855 = vunpack.c.l.b16 %v110
  %v856 = vunpack.c.h.b16 %v110
  %v857 = vunpack.c.l.b16 %v111
  %v858 = vunpack.c.h.b16 %v111
  %v859 = vunpack.c.l.b16 %v112
  %v860 = vunpack.c.h.b16 %v112
  %v861 = vunpack.c.l.b16 %v113
  %v862 = vunpack.c.h.b16 %v113
  %v863 = vunpack.c.l.b16 %v114
  %v864 = vunpack.c.h.b16 %v114
  %v865 = vunpack.c.l.b16 %v115
  %v866 = vunpack.c.h.b16 %v115
  %v867 = vunpack.c.l.b16 %v116
  %v868 = vunpack.c.h.b16 %v116
  %v869 = vunpack.c.l.b16 %v117
  %v870 = vunpack.c.h.b16 %v117
  %v871 = vunpack.c.l.b16 %v118
  %v872 = vunpack.c.h.b16 %v118
  %v873 = vunpack.c.l.b16 %v119
  %v874 = vunpack.c.h.b16 %v119
  %v875 = vunpack.c.l.b16 %v120
  %v876 = vunpack.c.h.b16 %v120
  %v877 = vunpack.c.l.b16 %v121
  %v878 = vunpack.c.h.b16 %v121
  %v879 = vunpack.c.l.b16 %v122
  %v880 = vunpack.c.h.b16 %v122
  %v881 = vunpack.c.l.b16 %v123
  %v882 = vunpack.c.h.b16 %v123
  %v883 = vunpack.c.l.b16 %v124
  %v884 = vunpack.c.h.b16 %v124
  %v885 = vunpack.c.l.b16 %v125
  %v886 = vunpack.c.h.b16 %v125
  %v887 = vunpack.c.l.b16 %v126
  %v888 = vunpack.c.h.b16 %v126
  %v889 = vunpack.c.l.b16 %v127
  %v890 = vunpack.c.h.b16 %v127
  %v891 = vunpack.c.l.b16 %v128
  %v892 = vunpack.c.h.b16 %v128
  %v893 = vunpack.c.l.b16 %v129
  %v894 = vunpack.c.h.b16 %v129
  %v895 = vunpack.c.l.b16 %v130
  %v896 = vunpack.c.h.b16 %v130
  %v897 = vunpack.c.l.b16 %v131
  %v898 = vunpack.c.h.b16 %v131
  %v899 = vunpack.c.l.b16 %v132
  %v900 = vunpack.c.h.b16 %v132
  %v901 = vunpack.c.l.b16 %v133
  %v902 = vunpack.c.h.b16 %v133
  %v903 = vunpack.c.l.b16 %v134
  %v904 = vunpack.c.h.b16 %v134
  %v905 = vunpack.c.l.b16 %v135
  %v906 = vunpack.c.h.b16 %v135
  %v907 = vunpack.c.l.b16 %v136
  %v908 = vunpack.c.h.b16 %v136
  %v909 = vunpack.c.l.b16 %v137
  %v910 = vunpack.c.h.b16 %v137
  %v911 = vunpack.c.l.b16 %v138
  %v912 = vunpack.c.h.b16 %v138
  %v913 = vunpack.c.l.b16 %v139
  %v914 = vunpack.c.h.b16 %v139
  %v915 = vunpack.c.l.b16 %v140
  %v916 = vunpack.c.h.b16 %v140
  %v917 = vunpack.c.l.b16 %v141
  %v918 = vunpack.c.h.b16 %v141
  %v919 = vunpack.c.l.b16 %v142
  %v920 = vunpack.c.h.b16 %v142
  %v921 = vunpack.c.l.b16 %v143
  %v922 = vunpack.c.h.b16 %v143
  %v923 = vunpack.c.l.b16 %v144
  %v924 = vunpack.c.h.b16 %v144
  %v925 = vunpack.c.l.b16 %v145
  %v926 = vunpack.c.h.b16 %v145
  %v927 = vunpack.c.l.b16 %v146
  %v928 = vunpack.c.h.b16 %v146
  %v929 = vunpack.c.l.b16 %v147
  %v930 = vunpack.c.h.b16 %v147
  %v931 = vunpack.c.l.b16 %v148
  %v932 = vunpack.c.h.b16 %v148
  %v933 = vunpack.c.l.b16 %v149
  %v934 = vunpack.c.h.b16 %v149
  %v935 = vunpack.c.l.b16 %v150
  %v936 = vunpack.c.h.b16 %v150
  %v937 = vunpack.c.l.b16 %v151
  %v938 = vunpack.c.h.b16 %v151
  %v939 = vunpack.c.l.b16 %v152
  %v940 = vunpack.c.h.b16 %v152
  %v941 = vunpack.c.l.b16 %v153
  %v942 = vunpack.c.h.b16 %v153
  %v943 = vunpack.c.l.b16 %v154
  %v944 = vunpack.c.h.b16 %v154
  %v945 = vunpack.c.l.b16 %v155
  %v946 = vunpack.c.h.b16 %v155
  %v947 = vunpack.c.l.b16 %v156
  %v948 = vunpack.c.h.b16 %v156
  %v949 = vunpack.c.l.b16 %v157
  %v950 = vunpack.c.h.b16 %v157
  %v951 = vunpack.c.l.b16 %v158
  %v952 = vunpack.c.h.b16 %v158
  %v953 = vunpack.c.l.b16 %v159
  %v954 = vunpack.c.h.b16 %v159
  %v955 = vunpack.c.l.b16 %v160
  %v956 = vunpack.c.h.b16 %v160
  %v957 = vunpack.c.l.b16 %v161
  %v958 = vunpack.c.h.b16 %v161
  %v959 = vunpack.c.l.b16 %v162
  %v960 = vunpack.c.h.b16 %v162
  %v961 = vunpack.c.l.b16 %v163
  %v962 = vunpack.c.h.b16 %v163
  %v963 = vunpack.c.l.b16 %v164
  %v964 = vunpack.c.h.b16 %v164
  %v965 = vunpack.c.l.b16 %v165
  %v966 = vunpack.c.h.b16 %v165
  %v967 = vunpack.c.l.b16 %v166
  %v968 = vunpack.c.h.b16 %v166
  %v969 = vunpack.c.l.b16 %v167
  %v970 = vunpack.c.h.b16 %v167
  %v971 = vunpack.c.l.b16 %v168
  %v972 = vunpack.c.h.b16 %v168
  %v973 = vunpack.c.l.b16 %v169
  %v974 = vunpack.c.h.b16 %v169
  %v975 = vunpack.c.l.b16 %v170
  %v976 = vunpack.c.h.b16 %v170
  %v977 = vunpack.c.l.b16 %v171
  %v978 = vunpack.c.h.b16 %v171
  %v979 = vunpack.c.l.b16 %v172
  %v980 = vunpack.c.h.b16 %v172
  %v981 = vunpack.c.l.b16 %v173
  %v982 = vunpack.c.h.b16 %v173
  %v983 = vunpack.c.l.b16 %v174
  %v984 = vunpack.c.h.b16 %v174
  %v985 = vunpack.c.l.b16 %v175
  %v986 = vunpack.c.h.b16 %v175
  %v987 = vunpack.c.l.b16 %v176
  %v988 = vunpack.c.h.b16 %v176
  %v989 = vunpack.c.l.b16 %v177
  %v990 = vunpack.c.h.b16 %v177
  %v991 = vunpack.c.l.b16 %v178
  %v992 = vunpack.c.h.b16 %v178
  %v993 = vunpack.c.l.b16 %v179
  %v994 = vunpack.c.h.b16 %v179
  %v995 = vunpack.c.l.b16 %v180
  %v996 = vunpack.c.h.b16 %v180
  %v997 = vunpack.c.l.b16 %v181
  %v998 = vunpack.c.h.b16 %v181
  %v999 = vunpack.c.l.b16 %v182
  %v1000 = vunpack.c.h.b16 %v182
  %v1001 = vunpack.c.l.b16 %v183
  %v1002 = vunpack.c.h.b16 %v183
  %v1003 = vunpack.c.l.b16 %v184
  %v1004 = vunpack.c.h.b16 %v184
  %v1005 = vunpack.c.l.b16 %v185
  %v1006 = vunpack.c.h.b16 %v185
  %v1007 = vunpack.c.l.b16 %v186
  %v1008 = vunpack.c.h.b16 %v186
  %v1009 = vunpack.c.l.b16 %v187
  %v1010 = vunpack.c.h.b16 %v187
  %v1011 = vunpack.c.l.b16 %v188
  %v1012 = vunpack.c.h.b16 %v188
  %v1013 = vunpack.c.l.b16 %v189
  %v1014 = vunpack.c.h.b16 %v189
  %v1015 = vunpack.c.l.b16 %v190
  %v1016 = vunpack.c.h.b16 %v190
  %v1017 = vunpack.c.l.b16 %v191
  %v1018 = vunpack.c.h.b16 %v191
  %v1019 = vunpack.c.l.b16 %v192
  %v1020 = vunpack.c.h.b16 %v192
  %v1021 = vunpack.c.l.b16 %v193
  %v1022 = vunpack.c.h.b16 %v193
  %v1023 = vunpack.c.l.b16 %v194
  %v1024 = vunpack.c.h.b16 %v194
  %v1025 = vunpack.c.l.b16 %v195
  %v1026 = vunpack.c.h.b16 %v195
  %v1027 = vunpack.c.l.b16 %v196
  %v1028 = vunpack.c.h.b16 %v196
  %v1029 = vunpack.c.l.b16 %v197
  %v1030 = vunpack.c.h.b16 %v197
  %v1031 = vunpack.c.l.b16 %v198
  %v1032 = vunpack.c.h.b16 %v198
  %v1033 = vunpack.c.l.b16 %v199
  %v1034 = vunpack.c.h.b16 %v199
  %v1035 = vunpack.c.l.b16 %v200
  %v1036 = vunpack.c.h.b16 %v200
  %v1037 = vunpack.c.l.b16 %v201
  %v1038 = vunpack.c.h.b16 %v201
  %v1039 = vunpack.c.l.b16 %v202
  %v1040 = vunpack.c.h.b16 %v202
  %v1041 = vunpack.c.l.b16 %v203
  %v1042 = vunpack.c.h.b16 %v203
  %v1043 = vunpack.c.l.b16 %v204
  %v1044 = vunpack.c.h.b16 %v204
  %v1045 = vunpack.c.l.b16 %v205
  %v1046 = vunpack.c.h.b16 %v205
  %v1047 = vunpack.c.l.b16 %v206
  %v1048 = vunpack.c.h.b16 %v206
  %v1049 = vunpack.c.l.b16 %v207
  %v1050 = vunpack.c.h.b16 %v207
  %v1051 = vunpack.c.l.b16 %v208
  %v1052 = vunpack.c.h.b16 %v208
  %v1053 = vunpack.c.l.b16 %v209
  %v1054 = vunpack.c.h.b16 %v209
  %v1055 = vunpack.c.l.b16 %v210
  %v1056 = vunpack.c.h.b16 %v210
  %v1057 = vunpack.c.l.b16 %v211
  %v1058 = vunpack.c.h.b16 %v211
  %v1059 = vunpack.c.l.b16 %v212
  %v1060 = vunpack.c.h.b16 %v212
  %v1061 = vunpack.c.l.b16 %v213
  %v1062 = vunpack.c.h.b16 %v213
  %v1063 = vunpack.c.l.b16 %v214
  %v1064 = vunpack.c.h.b16 %v214
  %v1065 = vunpack.c.l.b16 %v215
  %v1066 = vunpack.c.h.b16 %v215
  %v1067 = vunpack.c.l.b16 %v216
  %v1068 = vunpack.c.h.b16 %v216
  %v1069 = vunpack.c.l.b16 %v217
  %v1070 = vunpack.c.h.b16 %v217
  %v1071 = vunpack.c.l.b16 %v218
  %v1072 = vunpack.c.h.b16 %v218
  %v1073 = vunpack.c.l.b16 %v219
  %v1074 = vunpack.c.h.b16 %v219
  %v1075 = vunpack.c.l.b16 %v220
  %v1076 = vunpack.c.h.b16 %v220
  %v1077 = vunpack.c.l.b16 %v221
  %v1078 = vunpack.c.h.b16 %v221
  %v1079 = vunpack.c.l.b16 %v222
  %v1080 = vunpack.c.h.b16 %v222
  %v1081 = vunpack.c.l.b16 %v223
  %v1082 = vunpack.c.h.b16 %v223
  %v1083 = vunpack.c.l.b16 %v224
  %v1084 = vunpack.c.h.b16 %v224
  %v1085 = vunpack.c.l.b16 %v225
  %v1086 = vunpack.c.h.b16 %v225
  %v1087 = vunpack.c.l.b16 %v226
  %v1088 = vunpack.c.h.b16 %v226
  %v1089 = vunpack.c.l.b16 %v227
  %v1090 = vunpack.c.h.b16 %v227
  %v1091 = vunpack.c.l.b16 %v228
  %v1092 = vunpack.c.h.b16 %v228
  %v1093 = vunpack.c.l.b16 %v229
  %v1094 = vunpack.c.h.b16 %v229
  %v1095 = vunpack.c.l.b16 %v230
  %v1096 = vunpack.c.h.b16 %v230
  %v1097 = vunpack.c.l.b16 %v231
  %v1098 = vunpack.c.h.b16 %v231
  %v1099 = vunpack.c.l.b16 %v232
  %v1100 = vunpack.c.h.b16 %v232
  %v1101 = vunpack.c.l.b16 %v233
  %v1102 = vunpack.c.h.b16 %v233
  %v1103 = vunpack.c.l.b16 %v234
  %v1104 = vunpack.c.h.b16 %v234
  %v1105 = vunpack.c.l.b16 %v235
  %v1106 = vunpack.c.h.b16 %v235
  %v1107 = vunpack.c.l.b16 %v236
  %v1108 = vunpack.c.h.b16 %v236
  %v1109 = vunpack.c.l.b16 %v237
  %v1110 = vunpack.c.h.b16 %v237
  %v1111 = vunpack.c.l.b16 %v238
  %v1112 = vunpack.c.h.b16 %v238
  %v1113 = vunpack.c.l.b16 %v239
  %v1114 = vunpack.c.h.b16 %v239
  %v1115 = vunpack.c.l.b16 %v240
  %v1116 = vunpack.c.h.b16 %v240
  %v1117 = vunpack.c.l.b16 %v241
  %v1118 = vunpack.c.h.b16 %v241
  %v1119 = vunpack.c.l.b16 %v242
  %v1120 = vunpack.c.h.b16 %v242
  %v1121 = vunpack.c.l.b16 %v243
  %v1122 = vunpack.c.h.b16 %v243
  %v1123 = vunpack.c.l.b16 %v244
  %v1124 = vunpack.c.h.b16 %v244
  %v1125 = vunpack.c.l.b16 %v245
  %v1126 = vunpack.c.h.b16 %v245
  %v1127 = vunpack.c.l.b16 %v246
  %v1128 = vunpack.c.h.b16 %v246
  %v1129 = vunpack.c.l.b16 %v247
  %v1130 = vunpack.c.h.b16 %v247
  %v1131 = vunpack.c.l.b16 %v248
  %v1132 = vunpack.c.h.b16 %v248
  %v1133 = vunpack.c.l.b16 %v249
  %v1134 = vunpack.c.h.b16 %v249
  %v1135 = vunpack.c.l.b16 %v250
  %v1136 = vunpack.c.h.b16 %v250
  %v1137 = vunpack.c.l.b16 %v251
  %v1138 = vunpack.c.h.b16 %v251
  %v1139 = vunpack.c.l.b16 %v252
  %v1140 = vunpack.c.h.b16 %v252
  %v1141 = vunpack.c.l.b16 %v253
  %v1142 = vunpack.c.h.b16 %v253
  %v1143 = vunpack.c.l.b16 %v254
  %v1144 = vunpack.c.h.b16 %v254
  %v1145 = vunpack.c.l.b16 %v255
  %v1146 = vunpack.c.h.b16 %v255
  %v1147 = vunpack.c.l.b16 %v256
  %v1148 = vunpack.c.h.b16 %v256
  %v1149 = vunpack.c.l.b16 %v257
  %v1150 = vunpack.c.h.b16 %v257
  %v1151 = vunpack.c.l.b16 %v258
  %v1152 = vunpack.c.h.b16 %v258
  %v1153 = vunpack.c.l.b16 %v259
  %v1154 = vunpack.c.h.b16 %v259
  %v1155 = vunpack.c.l.b16 %v260
  %v1156 = vunpack.c.h.b16 %v260
  %v1157 = vunpack.c.l.b16 %v261
  %v1158 = vunpack.c.h.b16 %v261
  %v1159 = vunpack.c.l.b16 %v262
  %v1160 = vunpack.c.h.b16 %v262
  %v1161 = vunpack.c.l.b16 %v263
  %v1162 = vunpack.c.h.b16 %v263
  %v1163 = vunpack.c.l.b16 %v264
  %v1164 = vunpack.c.h.b16 %v264
  %v1165 = vunpack.c.l.b16 %v265
  %v1166 = vunpack.c.h.b16 %v265
  %v1167 = vunpack.c.l.b16 %v266
  %v1168 = vunpack.c.h.b16 %v266
  %v1169 = vunpack.c.l.b16 %v267
  %v1170 = vunpack.c.h.b16 %v267
  %v1171 = vunpack.c.l.b16 %v268
  %v1172 = vunpack.c.h.b16 %v268
  %v1173 = vunpack.c.l.b16 %v269
  %v1174 = vunpack.c.h.b16 %v269
  %v1175 = vunpack.c.l.b16 %v270
  %v1176 = vunpack.c.h.b16 %v270
  %v1177 = vunpack.c.l.b16 %v271
  %v1178 = vunpack.c.h.b16 %v271
  %v1179 = vunpack.c.l.b16 %v272
  %v1180 = vunpack.c.h.b16 %v272
  %v1181 = vunpack.c.l.b16 %v273
  %v1182 = vunpack.c.h.b16 %v273
  %v1183 = vunpack.c.l.b16 %v274
  %v1184 = vunpack.c.h.b16 %v274
  %v1185 = vunpack.c.l.b16 %v275
  %v1186 = vunpack.c.h.b16 %v275
  %v1187 = vunpack.c.l.b16 %v276
  %v1188 = vunpack.c.h.b16 %v276
  %v1189 = vunpack.c.l.b16 %v277
  %v1190 = vunpack.c.h.b16 %v277
  %v1191 = vunpack.c.l.b16 %v278
  %v1192 = vunpack.c.h.b16 %v278
  %v1193 = vunpack.c.l.b16 %v279
  %v1194 = vunpack.c.h.b16 %v279
  %v1195 = vunpack.c.l.b16 %v280
  %v1196 = vunpack.c.h.b16 %v280
  %v1197 = vunpack.c.l.b16 %v281
  %v1198 = vunpack.c.h.b16 %v281
  %v1199 = vunpack.c.l.b16 %v282
  %v1200 = vunpack.c.h.b16 %v282
  %v1201 = vunpack.c.l.b16 %v283
  %v1202 = vunpack.c.h.b16 %v283
  %v1203 = vunpack.c.l.b16 %v284
  %v1204 = vunpack.c.h.b16 %v284
  %v1205 = vunpack.c.l.b16 %v285
  %v1206 = vunpack.c.h.b16 %v285
  %v1207 = vunpack.c.l.b16 %v286
  %v1208 = vunpack.c.h.b16 %v286
  %v1209 = vunpack.c.l.b16 %v287
  %v1210 = vunpack.c.h.b16 %v287
  %v1211 = vunpack.c.l.b16 %v288
  %v1212 = vunpack.c.h.b16 %v288
  %v1213 = vunpack.c.l.b16 %v289
  %v1214 = vunpack.c.h.b16 %v289
  %v1215 = vunpack.c.l.b16 %v290
  %v1216 = vunpack.c.h.b16 %v290
  %v1217 = vunpack.c.l.b16 %v291
  %v1218 = vunpack.c.h.b16 %v291
  %v1219 = vunpack.c.l.b16 %v292
  %v1220 = vunpack.c.h.b16 %v292
  %v1221 = vunpack.c.l.b16 %v293
  %v1222 = vunpack.c.h.b16 %v293
  %v1223 = vunpack.c.l.b16 %v294
  %v1224 = vunpack.c.h.b16 %v294
  %v1225 = vunpack.c.l.b16 %v295
  %v1226 = vunpack.c.h.b16 %v295
  %v1227 = vunpack.c.l.b16 %v296
  %v1228 = vunpack.c.h.b16 %v296
  %v1229 = vunpack.c.l.b16 %v297
  %v1230 = vunpack.c.h.b16 %v297
  %v1231 = vunpack.c.l.b16 %v298
  %v1232 = vunpack.c.h.b16 %v298
  %v1233 = vunpack.c.l.b16 %v299
  %v1234 = vunpack.c.h.b16 %v299
  %v1235 = vunpack.c.l.b16 %v300
  %v1236 = vunpack.c.h.b16 %v300
  %v1237 = vunpack.c.l.b16 %v301
  %v1238 = vunpack.c.h.b16 %v301
  %v1239 = vunpack.c.l.b16 %v302
  %v1240 = vunpack.c.h.b16 %v302
  %v1241 = vunpack.c.l.b16 %v303
  %v1242 = vunpack.c.h.b16 %v303
  %v1243 = vunpack.c.l.b16 %v304
  %v1244 = vunpack.c.h.b16 %v304
  %v1245 = vunpack.c.l.b16 %v305
  %v1246 = vunpack.c.h.b16 %v305
  %v1247 = vunpack.c.l.b16 %v306
  %v1248 = vunpack.c.h.b16 %v306
  %v1249 = vunpack.c.l.b16 %v307
  %v1250 = vunpack.c.h.b16 %v307
  %v1251 = vunpack.c.l.b16 %v308
  %v1252 = vunpack.c.h.b16 %v308
  %v1253 = vunpack.c.l.b16 %v309
  %v1254 = vunpack.c.h.b16 %v309
  %v1255 = vunpack.c.l.b16 %v310
  %v1256 = vunpack.c.h.b16 %v310
  %v1257 = vunpack.c.l.b16 %v311
  %v1258 = vunpack.c.h.b16 %v311
  %v1259 = vunpack.c.l.b16 %v312
  %v1260 = vunpack.c.h.b16 %v312
  %v1261 = vunpack.c.l.b16 %v313
  %v1262 = vunpack.c.h.b16 %v313
  %v1263 = vunpack.c.l.b16 %v314
  %v1264 = vunpack.c.h.b16 %v314
  %v1265 = vunpack.c.l.b16 %v315
  %v1266 = vunpack.c.h.b16 %v315
  %v1267 = vunpack.c.l.b16 %v316
  %v1268 = vunpack.c.h.b16 %v316
  %v1269 = vunpack.c.l.b16 %v317
  %v1270 = vunpack.c.h.b16 %v317
  %v1271 = vunpack.c.l.b16 %v318
  %v1272 = vunpack.c.h.b16 %v318
  %v1273 = vunpack.c.l.b16 %v319
  %v1274 = vunpack.c.h.b16 %v319
  %v1275 = vunpack.c.l.b16 %v320
  %v1276 = vunpack.c.h.b16 %v320
  %v1277 = vunpack.c.l.b16 %v321
  %v1278 = vunpack.c.h.b16 %v321
  %v1279 = vunpack.c.l.b16 %v322
  %v1280 = vunpack.c.h.b16 %v322
  %v1281 = vunpack.c.l.b16 %v323
  %v1282 = vunpack.c.h.b16 %v323
  %v1283 = vunpack.c.l.b16 %v324
  %v1284 = vunpack.c.h.b16 %v324
  %v1285 = vunpack.c.l.b16 %v325
  %v1286 = vunpack.c.h.b16 %v325
  %v1287 = vunpack.c.l.b16 %v326
  %v1288 = vunpack.c.h.b16 %v326
  %v1289 = vunpack.c.l.b16 %v327
  %v1290 = vunpack.c.h.b16 %v327
  %v1291 = vunpack.c.l.b16 %v328
  %v1292 = vunpack.c.h.b16 %v328
  %v1293 = vunpack.c.l.b16 %v329
  %v1294 = vunpack.c.h.b16 %v329
  %v1295 = vunpack.c.l.b16 %v330
  %v1296 = vunpack.c.h.b16 %v330
  %v1297 = vpack.c.b16 %v725, %v721
  %v1298 = vpack.c.b16 %v726, %v722
  %v1299 = vpack.c.b16 %v727, %v723
  %v1300 = vpack.c.b16 %v728, %v724
  %v1301 = vpack.c.b16 %v733, %v729
  %v1302 = vpack.c.b16 %v734, %v730
  %v1303 = vpack.c.b16 %v735, %v731
  %v1304 = vpack.c.b16 %v736, %v732
  %v1305 = vpack.c.b16 %v741, %v737
  %v1306 = vpack.c.b16 %v742, %v738
  %v1307 = vpack.c.b16 %v743, %v739
  %v1308 = vpack.c.b16 %v744, %v740
  %v1309 = vpack.c.b16 %v749, %v745
  %v1310 = vpack.c.b16 %v750, %v746
  %v1311 = vpack.c.b16 %v751, %v747
  %v1312 = vpack.c.b16 %v752, %v748
  %v1313 = vpack.c.b16 %v757, %v753
  %v1314 = vpack.c.b16 %v758, %v754
  %v1315 = vpack.c.b16 %v759, %v755
  %v1316 = vpack.c.b16 %v760, %v756
  %v1317 = vpack.c.b16 %v765, %v761
  %v1318 = vpack.c.b16 %v766, %v762
  %v1319 = vpack.c.b16 %v767, %v763
  %v1320 = vpack.c.b16 %v768, %v764
  %v1321 = vpack.c.b16 %v773, %v769
  %v1322 = vpack.c.b16 %v774, %v770
  %v1323 = vpack.c.b16 %v775, %v771
  %v1324 = vpack.c.b16 %v776, %v772
  %v1325 = vpack.c.b16 %v781, %v777
  %v1326 = vpack.c.b16 %v782, %v778
  %v1327 = vpack.c.b16 %v783, %v779
  %v1328 = vpack.c.b16 %v784, %v780
  %v1329 = vpack.c.b16 %v789, %v785
  %v1330 = vpack.c.b16 %v790, %v786
  %v1331 = vpack.c.b16 %v791, %v787
  %v1332 = vpack.c.b16 %v792, %v788
  %v1333 = vpack.c.b16 %v797, %v793
  %v1334 = vpack.c.b16 %v798, %v794
  %v1335 = vpack.c.b16 %v799, %v795
  %v1336 = vpack.c.b16 %v800, %v796
  %v1337 = vpack.c.b16 %v805, %v801
  %v1338 = vpack.c.b16 %v806, %v802
  %v1339 = vpack.c.b16 %v807, %v803
  %v1340 = vpack.c.b16 %v808, %v804
  %v1341 = vpack.c.b16 %v813, %v809
  %v1342 = vpack.c.b16 %v814, %v810
  %v1343 = vpack.c.b16 %v815, %v811
  %v1344 = vpack.c.b16 %v816, %v812
  %v1345 = vpack.c.b16 %v821, %v817
  %v1346 = vpack.c.b16 %v822, %v818
  %v1347 = vpack.c.b16 %v823, %v819
  %v1348 = vpack.c.b16 %v824, %v820
  %v1349 = vpack.c.b16 %v829, %v825
  %v1350 = vpack.c.b16 %v830, %v826
  %v1351 = vpack.c.b16 %v831, %v827
  %v1352 = vpack.c.b16 %v832, %v828
  %v1353 = vpack.c.b16 %v837, %v833
  %v1354 = vpack.c.b16 %v838, %v834
  %v1355 = vpack.c.b16 %v839, %v835
  %v1356 = vpack.c.b16 %v840, %v836
  %v1357 = vpack.c.b16 %v845, %v841
  %v1358 = vpack.c.b16 %v846, %v842
  %v1359 = vpack.c.b16 %v847, %v843
  %v1360 = vpack.c.b16 %v848, %v844
  %v1361 = vpack.c.b16 %v853, %v849
  %v1362 = vpack.c.b16 %v854, %v850
  %v1363 = vpack.c.b16 %v855, %v851
  %v1364 = vpack.c.b16 %v856, %v852
  %v1365 = vpack.c.b16 %v861, %v857
  %v1366 = vpack.c.b16 %v862, %v858
  %v1367 = vpack.c.b16 %v863, %v859
  %v1368 = vpack.c.b16 %v864, %v860
  %v1369 = vpack.c.b16 %v869, %v865
  %v1370 = vpack.c.b16 %v870, %v866
  %v1371 = vpack.c.b16 %v871, %v867
  %v1372 = vpack.c.b16 %v872, %v868
  %v1373 = vpack.c.b16 %v877, %v873
  %v1374 = vpack.c.b16 %v878, %v874
  %v1375 = vpack.c.b16 %v879, %v875
  %v1376 = vpack.c.b16 %v880, %v876
  %v1377 = vpack.c.b16 %v885, %v881
  %v1378 = vpack.c.b16 %v886, %v882
  %v1379 = vpack.c.b16 %v887, %v883
  %v1380 = vpack.c.b16 %v888, %v884
  %v1381 = vpack.c.b16 %v893, %v889
  %v1382 = vpack.c.b16 %v894, %v890
  %v1383 = vpack.c.b16 %v895, %v891
  %v1384 = vpack.c.b16 %v896, %v892
  %v1385 = vpack.c.b16 %v901, %v897
  %v1386 = vpack.c.b16 %v902, %v898
  %v1387 = vpack.c.b16 %v903, %v899
  %v1388 = vpack.c.b16 %v904, %v900
  %v1389 = vpack.c.b16 %v909, %v905
  %v1390 = vpack.c.b16 %v910, %v906
  %v1391 = vpack.c.b16 %v911, %v907
  %v1392 = vpack.c.b16 %v912, %v908
  %v1393 = vpack.c.b16 %v917, %v913
  %v1394 = vpack.c.b16 %v918, %v914
  %v1395 = vpack.c.b16 %v919, %v915
  %v1396 = vpack.c.b16 %v920, %v916
  %v1397 = vpack.c.b16 %v925, %v921
  %v1398 = vpack.c.b16 %v926, %v922
  %v1399 = vpack.c.b16 %v927, %v923
  %v1400 = vpack.c.b16 %v928, %v924
  %v1401 = vpack.c.b16 %v933, %v929
  %v1402 = vpack.c.b16 %v934, %v930
  %v1403 = vpack.c.b16 %v935, %v931
  %v1404 = vpack.c.b16 %v936, %v932
  %v1405 = vpack.c.b16 %v941, %v937
  %v1406 = vpack.c.b16 %v942, %v938
  %v1407 = vpack.c.b16 %v943, %v939
  %v1408 = vpack.c.b16 %v944, %v940
  %v1409 = vpack.c.b16 %v949, %v945
  %v1410 = vpack.c.b16 %v950, %v946
  %v1411 = vpack.c.b16 %v951, %v947
  %v1412 = vpack.c.b16 %v952, %v948
  %v1413 = vpack.c.b16 %v957, %v953
  %v1414 = vpack.c.b16 %v958, %v954
  %v1415 = vpack.c.b16 %v959, %v955
  %v1416 = vpack.c.b16 %v960, %v956
  %v1417 = vpack.c.b16 %v965, %v961
  %v1418 = vpack.c.b16 %v966, %v962
  %v1419 = vpack.c.b16 %v967, %v963
  %v1420 = vpack.c.b16 %v968, %v964
  %v1421 = vpack.c.b16 %v973, %v969
  %v1422 = vpack.c.b16 %v974, %v970
  %v1423 = vpack.c.b16 %v975, %v971
  %v1424 = vpack.c.b16 %v976, %v972
  %v1425 = vpack.c.b16 %v981, %v977
  %v1426 = vpack.c.b16 %v982, %v978
  %v1427 = vpack.c.b16 %v983, %v979
  %v1428 = vpack.c.b16 %v984, %v980
  %v1429 = vpack.c.b16 %v989, %v985
  %v1430 = vpack.c.b16 %v990, %v986
  %v1431 = vpack.c.b16 %v991, %v987
  %v1432 = vpack.c.b16 %v992, %v988
  %v1433 = vpack.c.b16 %v997, %v993
  %v1434 = vpack.c.b16 %v998, %v994
  %v1435 = vpack.c.b16 %v999, %v995
  %v1436 = vpack.c.b16 %v1000, %v996
  %v1437 = vpack.c.b16 %v1005, %v1001
  %v1438 = vpack.c.b16 %v1006, %v1002
  %v1439 = vpack.c.b16 %v1007, %v1003
  %v1440 = vpack.c.b16 %v1008, %v1004
  %v1441 = vpack.c.b16 %v1013, %v1009
  %v1442 = vpack.c.b16 %v1014, %v1010
  %v1443 = vpack.c.b16 %v1015, %v1011
  %v1444 = vpack.c.b16 %v1016, %v1012
  %v1445 = vpack.c.b16 %v1021, %v1017
  %v1446 = vpack.c.b16 %v1022, %v1018
  %v1447 = vpack.c.b16 %v1023, %v1019
  %v1448 = vpack.c.b16 %v1024, %v1020
  %v1449 = vpack.c.b16 %v1029, %v1025
  %v1450 = vpack.c.b16 %v1030, %v1026
  %v1451 = vpack.c.b16 %v1031, %v1027
  %v1452 = vpack.c.b16 %v1032, %v1028
  %v1453 = vpack.c.b16 %v1037, %v1033
  %v1454 = vpack.c.b16 %v1038, %v1034
  %v1455 = vpack.c.b16 %v1039, %v1035
  %v1456 = vpack.c.b16 %v1040, %v1036
  %v1457 = vpack.c.b16 %v1045, %v1041
  %v1458 = vpack.c.b16 %v1046, %v1042
  %v1459 = vpack.c.b16 %v1047, %v1043
  %v1460 = vpack.c.b16 %v1048, %v1044
  %v1461 = vpack.c.b16 %v1053, %v1049
  %v1462 = vpack.c.b16 %v1054, %v1050
  %v1463 = vpack.c.b16 %v1055, %v1051
  %v1464 = vpack.c.b16 %v1056, %v1052
  %v1465 = vpack.c.b16 %v1061, %v1057
  %v1466 = vpack.c.b16 %v1062, %v1058
  %v1467 = vpack.c.b16 %v1063, %v1059
  %v1468 = vpack.c.b16 %v1064, %v1060
  %v1469 = vpack.c.b16 %v1069, %v1065
  %v1470 = vpack.c.b16 %v1070, %v1066
  %v1471 = vpack.c.b16 %v1071, %v1067
  %v1472 = vpack.c.b16 %v1072, %v1068
  %v1473 = vpack.c.b16 %v1077, %v1073
  %v1474 = vpack.c.b16 %v1078, %v1074
  %v1475 = vpack.c.b16 %v1079, %v1075
  %v1476 = vpack.c.b16 %v1080, %v1076
  %v1477 = vpack.c.b16 %v1085, %v1081
  %v1478 = vpack.c.b16 %v1086, %v1082
  %v1479 = vpack.c.b16 %v1087, %v1083
  %v1480 = vpack.c.b16 %v1088, %v1084
  %v1481 = vpack.c.b16 %v1093, %v1089
  %v1482 = vpack.c.b16 %v1094, %v1090
  %v1483 = vpack.c.b16 %v1095, %v1091
  %v1484 = vpack.c.b16 %v1096, %v1092
  %v1485 = vpack.c.b16 %v1101, %v1097
  %v1486 = vpack.c.b16 %v1102, %v1098
  %v1487 = vpack.c.b16 %v1103, %v1099
  %v1488 = vpack.c.b16 %v1104, %v1100
  %v1489 = vpack.c.b16 %v1109, %v1105
  %v1490 = vpack.c.b16 %v1110, %v1106
  %v1491 = vpack.c.b16 %v1111, %v1107
  %v1492 = vpack.c.b16 %v1112, %v1108
  %v1493 = vpack.c.b16 %v1117, %v1113
  %v1494 = vpack.c.b16 %v1118, %v1114
  %v1495 = vpack.c.b16 %v1119, %v1115
  %v1496 = vpack.c.b16 %v1120, %v1116
  %v1497 = vpack.c.b16 %v1125, %v1121
  %v1498 = vpack.c.b16 %v1126, %v1122
  %v1499 = vpack.c.b16 %v1127, %v1123
  %v1500 = vpack.c.b16 %v1128, %v1124
  %v1501 = vpack.c.b16 %v1133, %v1129
  %v1502 = vpack.c.b16 %v1134, %v1130
  %v1503 = vpack.c.b16 %v1135, %v1131
  %v1504 = vpack.c.b16 %v1136, %v1132
  %v1505 = vpack.c.b16 %v1141, %v1137
  %v1506 = vpack.c.b16 %v1142, %v1138
  %v1507 = vpack.c.b16 %v1143, %v1139
  %v1508 = vpack.c.b16 %v1144, %v1140
  %v1509 = vpack.c.b16 %v1149, %v1145
  %v1510 = vpack.c.b16 %v1150, %v1146
  %v1511 = vpack.c.b16 %v1151, %v1147
  %v1512 = vpack.c.b16 %v1152, %v1148
  %v1513 = vpack.c.b16 %v1157, %v1153
  %v1514 = vpack.c.b16 %v1158, %v1154
  %v1515 = vpack.c.b16 %v1159, %v1155
  %v1516 = vpack.c.b16 %v1160, %v1156
  %v1517 = vpack.c.b16 %v1165, %v1161
  %v1518 = vpack.c.b16 %v1166, %v1162
  %v1519 = vpack.c.b16 %v1167, %v1163
  %v1520 = vpack.c.b16 %v1168, %v1164
  %v1521 = vpack.c.b16 %v1173, %v1169
  %v1522 = vpack.c.b16 %v1174, %v1170
  %v1523 = vpack.c.b16 %v1175, %v1171
  %v1524 = vpack.c.b16 %v1176, %v1172
  %v1525 = vpack.c.b16 %v1181, %v1177
  %v1526 = vpack.c.b16 %v1182, %v1178
  %v1527 = vpack.c.b16 %v1183, %v1179
  %v1528 = vpack.c.b16 %v1184, %v1180
  %v1529 = vpack.c.b16 %v1189, %v1185
  %v1530 = vpack.c.b16 %v1190, %v1186
  %v1531 = vpack.c.b16 %v1191, %v1187
  %v1532 = vpack.c.b16 %v1192, %v1188
  %v1533 = vpack.c.b16 %v1197, %v1193
  %v1534 = vpack.c.b16 %v1198, %v1194
  %v1535 = vpack.c.b16 %v1199, %v1195
  %v1536 = vpack.c.b16 %v1200, %v1196
  %v1537 = vpack.c.b16 %v1205, %v1201
  %v1538 = vpack.c.b16 %v1206, %v1202
  %v1539 = vpack.c.b16 %v1207, %v1203
  %v1540 = vpack.c.b16 %v1208, %v1204
  %v1541 = vpack.c.b16 %v1213, %v1209
  %v1542 = vpack.c.b16 %v1214, %v1210
  %v1543 = vpack.c.b16 %v1215, %v1211
  %v1544 = vpack.c.b16 %v1216, %v1212
  %v1545 = vpack.c.b16 %v1221, %v1217
  %v1546 = vpack.c.b16 %v1222, %v1218
  %v1547 = vpack.c.b16 %v1223, %v1219
  %v1548 = vpack.c.b16 %v1224, %v1220
  %v1549 = vpack.c.b16 %v1229, %v1225
  %v1550 = vpack.c.b16 %v1230, %v1226
  %v1551 = vpack.c.b16 %v1231, %v1227
  %v1552 = vpack.c.b16 %v1232, %v1228
  %v1553 = vpack.c.b16 %v1237, %v1233
  %v1554 = vpack.c.b16 %v1238, %v1234
  %v1555 = vpack.c.b16 %v1239, %v1235
  %v1556 = vpack.c.b16 %v1240, %v1236
  %v1557 = vpack.c.b16 %v1245, %v1241
  %v1558 = vpack.c.b16 %v1246, %v1242
  %v1559 = vpack.c.b16 %v1247, %v1243
  %v1560 = vpack.c.b16 %v1248, %v1244
  %v1561 = vpack.c.b16 %v1253, %v1249
  %v1562 = vpack.c.b16 %v1254, %v1250
  %v1563 = vpack.c.b16 %v1255, %v1251
  %v1564 = vpack.c.b16 %v1256, %v1252
  %v1565 = vpack.c.b16 %v1261, %v1257
  %v1566 = vpack.c.b16 %v1262, %v1258
  %v1567 = vpack.c.b16 %v1263, %v1259
  %v1568 = vpack.c.b16 %v1264, %v1260
  %v1569 = vpack.c.b16 %v1269, %v1265
  %v1570 = vpack.c.b16 %v1270, %v1266
  %v1571 = vpack.c.b16 %v1271, %v1267
  %v1572 = vpack.c.b16 %v1272, %v1268
  %v1573 = vpack.c.b16 %v1277, %v1273
  %v1574 = vpack.c.b16 %v1278, %v1274
  %v1575 = vpack.c.b16 %v1279, %v1275
  %v1576 = vpack.c.b16 %v1280, %v1276
  %v1577 = vpack.c.b16 %v1285, %v1281
  %v1578 = vpack.c.b16 %v1286, %v1282
  %v1579 = vpack.c.b16 %v1287, %v1283
  %v1580 = vpack.c.b16 %v1288, %v1284
  %v1581 = vpack.c.b16 %v1293, %v1289
  %v1582 = vpack.c.b16 %v1294, %v1290
  %v1583 = vpack.c.b16 %v1295, %v1291
  %v1584 = vpack.c.b16 %v1296, %v1292
  %1873 = vmatpush.bf16.msra.mxu0 %v1325
  %1874 = vmatpush.bf16.msra.mxu0 %v1321
  %1875 = vmatpush.bf16.msra.mxu0 %v1317
  %1876 = vmatpush.bf16.msra.mxu0 %v1313
  %1877 = vmatpush.bf16.msra.mxu0 %v1309
  %1878 = vmatpush.bf16.msra.mxu0 %v1305
  %1879 = vmatpush.bf16.msra.mxu0 %v1301
  %1880 = vmatpush.bf16.msra.mxu0 %v1297
  %1881 = vmatmul.bf16.gmra.mxu0 %v397
  %v1882 = vpop.f32.mrf.mxu0
  %v1883 = vadd.f32 %v333, %v1882
  %v1884 = vpop.f32.mrf.mxu0
  %v1885 = vadd.f32 %v333, %v1884
  %1886 = vmatmul.bf16.gmra.mxu0 %v406
  %v1887 = vpop.f32.mrf.mxu0
  %v1888 = vadd.f32 %v333, %v1887
  %v1889 = vpop.f32.mrf.mxu0
  %v1890 = vadd.f32 %v333, %v1889
  %1891 = vdwg.mxu0
  %1892 = vmatpush.bf16.msra.mxu0 %v1357
  %1893 = vmatpush.bf16.msra.mxu0 %v1353
  %1894 = vmatpush.bf16.msra.mxu0 %v1349
  %1895 = vmatpush.bf16.msra.mxu0 %v1345
  %1896 = vmatpush.bf16.msra.mxu0 %v1341
  %1897 = vmatpush.bf16.msra.mxu0 %v1337
  %1898 = vmatpush.bf16.msra.mxu0 %v1333
  %1899 = vmatpush.bf16.msra.mxu0 %v1329
  %1900 = vmatmul.bf16.gmra.mxu0 %v398
  %v1901 = vpop.f32.mrf.mxu0
  %v1902 = vadd.f32 %v1883, %v1901
  %v1903 = vpop.f32.mrf.mxu0
  %v1904 = vadd.f32 %v1885, %v1903
  %1905 = vmatmul.bf16.gmra.mxu0 %v407
  %v1906 = vpop.f32.mrf.mxu0
  %v1907 = vadd.f32 %v1888, %v1906
  %v1908 = vpop.f32.mrf.mxu0
  %v1909 = vadd.f32 %v1890, %v1908
  %1910 = vdwg.mxu0
  %1911 = vmatpush.bf16.msra.mxu0 %v1389
  %1912 = vmatpush.bf16.msra.mxu0 %v1385
  %1913 = vmatpush.bf16.msra.mxu0 %v1381
  %1914 = vmatpush.bf16.msra.mxu0 %v1377
  %1915 = vmatpush.bf16.msra.mxu0 %v1373
  %1916 = vmatpush.bf16.msra.mxu0 %v1369
  %1917 = vmatpush.bf16.msra.mxu0 %v1365
  %1918 = vmatpush.bf16.msra.mxu0 %v1361
  %1919 = vmatmul.bf16.gmra.mxu0 %v399
  %v1920 = vpop.f32.mrf.mxu0
  %v1921 = vadd.f32 %v1902, %v1920
  %v1922 = vpop.f32.mrf.mxu0
  %v1923 = vadd.f32 %v1904, %v1922
  %1924 = vmatmul.bf16.gmra.mxu0 %v408
  %v1925 = vpop.f32.mrf.mxu0
  %v1926 = vadd.f32 %v1907, %v1925
  %v1927 = vpop.f32.mrf.mxu0
  %v1928 = vadd.f32 %v1909, %v1927
  %1929 = vdwg.mxu0
  %1930 = vmatpush.bf16.msra.mxu0 %v1421
  %1931 = vmatpush.bf16.msra.mxu0 %v1417
  %1932 = vmatpush.bf16.msra.mxu0 %v1413
  %1933 = vmatpush.bf16.msra.mxu0 %v1409
  %1934 = vmatpush.bf16.msra.mxu0 %v1405
  %1935 = vmatpush.bf16.msra.mxu0 %v1401
  %1936 = vmatpush.bf16.msra.mxu0 %v1397
  %1937 = vmatpush.bf16.msra.mxu0 %v1393
  %1938 = vmatmul.bf16.gmra.mxu0 %v400
  %v1939 = vpop.f32.mrf.mxu0
  %v1940 = vadd.f32 %v1921, %v1939
  %v1941 = vpop.f32.mrf.mxu0
  %v1942 = vadd.f32 %v1923, %v1941
  %1943 = vmatmul.bf16.gmra.mxu0 %v409
  %v1944 = vpop.f32.mrf.mxu0
  %v1945 = vadd.f32 %v1926, %v1944
  %v1946 = vpop.f32.mrf.mxu0
  %v1947 = vadd.f32 %v1928, %v1946
  %1948 = vdwg.mxu0
  %1949 = vmatpush.bf16.msra.mxu0 %v1453
  %1950 = vmatpush.bf16.msra.mxu0 %v1449
  %1951 = vmatpush.bf16.msra.mxu0 %v1445
  %1952 = vmatpush.bf16.msra.mxu0 %v1441
  %1953 = vmatpush.bf16.msra.mxu0 %v1437
  %1954 = vmatpush.bf16.msra.mxu0 %v1433
  %1955 = vmatpush.bf16.msra.mxu0 %v1429
  %1956 = vmatpush.bf16.msra.mxu0 %v1425
  %1957 = vmatmul.bf16.gmra.mxu0 %v401
  %v1958 = vpop.f32.mrf.mxu0
  %v1959 = vadd.f32 %v1940, %v1958
  %v1960 = vpop.f32.mrf.mxu0
  %v1961 = vadd.f32 %v1942, %v1960
  %1962 = vmatmul.bf16.gmra.mxu0 %v410
  %v1963 = vpop.f32.mrf.mxu0
  %v1964 = vadd.f32 %v1945, %v1963
  %v1965 = vpop.f32.mrf.mxu0
  %v1966 = vadd.f32 %v1947, %v1965
  %1967 = vdwg.mxu0
  %1968 = vmatpush.bf16.msra.mxu0 %v1485
  %1969 = vmatpush.bf16.msra.mxu0 %v1481
  %1970 = vmatpush.bf16.msra.mxu0 %v1477
  %1971 = vmatpush.bf16.msra.mxu0 %v1473
  %1972 = vmatpush.bf16.msra.mxu0 %v1469
  %1973 = vmatpush.bf16.msra.mxu0 %v1465
  %1974 = vmatpush.bf16.msra.mxu0 %v1461
  %1975 = vmatpush.bf16.msra.mxu0 %v1457
  %1976 = vmatmul.bf16.gmra.mxu0 %v402
  %v1977 = vpop.f32.mrf.mxu0
  %v1978 = vadd.f32 %v1959, %v1977
  %v1979 = vpop.f32.mrf.mxu0
  %v1980 = vadd.f32 %v1961, %v1979
  %1981 = vmatmul.bf16.gmra.mxu0 %v411
  %v1982 = vpop.f32.mrf.mxu0
  %v1983 = vadd.f32 %v1964, %v1982
  %v1984 = vpop.f32.mrf.mxu0
  %v1985 = vadd.f32 %v1966, %v1984
  %1986 = vdwg.mxu0
  %1987 = vmatpush.bf16.msra.mxu0 %v1517
  %1988 = vmatpush.bf16.msra.mxu0 %v1513
  %1989 = vmatpush.bf16.msra.mxu0 %v1509
  %1990 = vmatpush.bf16.msra.mxu0 %v1505
  %1991 = vmatpush.bf16.msra.mxu0 %v1501
  %1992 = vmatpush.bf16.msra.mxu0 %v1497
  %1993 = vmatpush.bf16.msra.mxu0 %v1493
  %1994 = vmatpush.bf16.msra.mxu0 %v1489
  %1995 = vmatmul.bf16.gmra.mxu0 %v403
  %v1996 = vpop.f32.mrf.mxu0
  %v1997 = vadd.f32 %v1978, %v1996
  %v1998 = vpop.f32.mrf.mxu0
  %v1999 = vadd.f32 %v1980, %v1998
  %2000 = vmatmul.bf16.gmra.mxu0 %v412
  %v2001 = vpop.f32.mrf.mxu0
  %v2002 = vadd.f32 %v1983, %v2001
  %v2003 = vpop.f32.mrf.mxu0
  %v2004 = vadd.f32 %v1985, %v2003
  %2005 = vdwg.mxu0
  %2006 = vmatpush.bf16.msra.mxu0 %v1549
  %2007 = vmatpush.bf16.msra.mxu0 %v1545
  %2008 = vmatpush.bf16.msra.mxu0 %v1541
  %2009 = vmatpush.bf16.msra.mxu0 %v1537
  %2010 = vmatpush.bf16.msra.mxu0 %v1533
  %2011 = vmatpush.bf16.msra.mxu0 %v1529
  %2012 = vmatpush.bf16.msra.mxu0 %v1525
  %2013 = vmatpush.bf16.msra.mxu0 %v1521
  %2014 = vmatmul.bf16.gmra.mxu0 %v404
  %v2015 = vpop.f32.mrf.mxu0
  %v2016 = vadd.f32 %v1997, %v2015
  %v2017 = vpop.f32.mrf.mxu0
  %v2018 = vadd.f32 %v1999, %v2017
  %2019 = vmatmul.bf16.gmra.mxu0 %v413
  %v2020 = vpop.f32.mrf.mxu0
  %v2021 = vadd.f32 %v2002, %v2020
  %v2022 = vpop.f32.mrf.mxu0
  %v2023 = vadd.f32 %v2004, %v2022
  %2024 = vdwg.mxu0
  %2025 = vmatpush.bf16.msra.mxu0 %v1581
  %2026 = vmatpush.bf16.msra.mxu0 %v1577
  %2027 = vmatpush.bf16.msra.mxu0 %v1573
  %2028 = vmatpush.bf16.msra.mxu0 %v1569
  %2029 = vmatpush.bf16.msra.mxu0 %v1565
  %2030 = vmatpush.bf16.msra.mxu0 %v1561
  %2031 = vmatpush.bf16.msra.mxu0 %v1557
  %2032 = vmatpush.bf16.msra.mxu0 %v1553
  %2033 = vmatmul.bf16.gmra.mxu0 %v405
  %v2034 = vpop.f32.mrf.mxu0
  %v2035 = vadd.f32 %v2016, %v2034
  %v2036 = vpop.f32.mrf.mxu0
  %v2037 = vadd.f32 %v2018, %v2036
  %2038 = vmatmul.bf16.gmra.mxu0 %v414
  %v2039 = vpop.f32.mrf.mxu0
  %v2040 = vadd.f32 %v2021, %v2039
  %v2041 = vpop.f32.mrf.mxu0
  %v2042 = vadd.f32 %v2023, %v2041
  %2043 = vdwg.mxu0
  %2044 = vmatpush.bf16.msra.mxu0 %v1326
  %2045 = vmatpush.bf16.msra.mxu0 %v1322
  %2046 = vmatpush.bf16.msra.mxu0 %v1318
  %2047 = vmatpush.bf16.msra.mxu0 %v1314
  %2048 = vmatpush.bf16.msra.mxu0 %v1310
  %2049 = vmatpush.bf16.msra.mxu0 %v1306
  %2050 = vmatpush.bf16.msra.mxu0 %v1302
  %2051 = vmatpush.bf16.msra.mxu0 %v1298
  %2052 = vmatmul.bf16.gmra.mxu0 %v397
  %v2053 = vpop.f32.mrf.mxu0
  %v2054 = vadd.f32 %v334, %v2053
  %v2055 = vpop.f32.mrf.mxu0
  %v2056 = vadd.f32 %v334, %v2055
  %2057 = vmatmul.bf16.gmra.mxu0 %v406
  %v2058 = vpop.f32.mrf.mxu0
  %v2059 = vadd.f32 %v334, %v2058
  %v2060 = vpop.f32.mrf.mxu0
  %v2061 = vadd.f32 %v334, %v2060
  %2062 = vdwg.mxu0
  %2063 = vmatpush.bf16.msra.mxu0 %v1358
  %2064 = vmatpush.bf16.msra.mxu0 %v1354
  %2065 = vmatpush.bf16.msra.mxu0 %v1350
  %2066 = vmatpush.bf16.msra.mxu0 %v1346
  %2067 = vmatpush.bf16.msra.mxu0 %v1342
  %2068 = vmatpush.bf16.msra.mxu0 %v1338
  %2069 = vmatpush.bf16.msra.mxu0 %v1334
  %2070 = vmatpush.bf16.msra.mxu0 %v1330
  %2071 = vmatmul.bf16.gmra.mxu0 %v398
  %v2072 = vpop.f32.mrf.mxu0
  %v2073 = vadd.f32 %v2054, %v2072
  %v2074 = vpop.f32.mrf.mxu0
  %v2075 = vadd.f32 %v2056, %v2074
  %2076 = vmatmul.bf16.gmra.mxu0 %v407
  %v2077 = vpop.f32.mrf.mxu0
  %v2078 = vadd.f32 %v2059, %v2077
  %v2079 = vpop.f32.mrf.mxu0
  %v2080 = vadd.f32 %v2061, %v2079
  %2081 = vdwg.mxu0
  %2082 = vmatpush.bf16.msra.mxu0 %v1390
  %2083 = vmatpush.bf16.msra.mxu0 %v1386
  %2084 = vmatpush.bf16.msra.mxu0 %v1382
  %2085 = vmatpush.bf16.msra.mxu0 %v1378
  %2086 = vmatpush.bf16.msra.mxu0 %v1374
  %2087 = vmatpush.bf16.msra.mxu0 %v1370
  %2088 = vmatpush.bf16.msra.mxu0 %v1366
  %2089 = vmatpush.bf16.msra.mxu0 %v1362
  %2090 = vmatmul.bf16.gmra.mxu0 %v399
  %v2091 = vpop.f32.mrf.mxu0
  %v2092 = vadd.f32 %v2073, %v2091
  %v2093 = vpop.f32.mrf.mxu0
  %v2094 = vadd.f32 %v2075, %v2093
  %2095 = vmatmul.bf16.gmra.mxu0 %v408
  %v2096 = vpop.f32.mrf.mxu0
  %v2097 = vadd.f32 %v2078, %v2096
  %v2098 = vpop.f32.mrf.mxu0
  %v2099 = vadd.f32 %v2080, %v2098
  %2100 = vdwg.mxu0
  %2101 = vmatpush.bf16.msra.mxu0 %v1422
  %2102 = vmatpush.bf16.msra.mxu0 %v1418
  %2103 = vmatpush.bf16.msra.mxu0 %v1414
  %2104 = vmatpush.bf16.msra.mxu0 %v1410
  %2105 = vmatpush.bf16.msra.mxu0 %v1406
  %2106 = vmatpush.bf16.msra.mxu0 %v1402
  %2107 = vmatpush.bf16.msra.mxu0 %v1398
  %2108 = vmatpush.bf16.msra.mxu0 %v1394
  %2109 = vmatmul.bf16.gmra.mxu0 %v400
  %v2110 = vpop.f32.mrf.mxu0
  %v2111 = vadd.f32 %v2092, %v2110
  %v2112 = vpop.f32.mrf.mxu0
  %v2113 = vadd.f32 %v2094, %v2112
  %2114 = vmatmul.bf16.gmra.mxu0 %v409
  %v2115 = vpop.f32.mrf.mxu0
  %v2116 = vadd.f32 %v2097, %v2115
  %v2117 = vpop.f32.mrf.mxu0
  %v2118 = vadd.f32 %v2099, %v2117
  %2119 = vdwg.mxu0
  %2120 = vmatpush.bf16.msra.mxu0 %v1454
  %2121 = vmatpush.bf16.msra.mxu0 %v1450
  %2122 = vmatpush.bf16.msra.mxu0 %v1446
  %2123 = vmatpush.bf16.msra.mxu0 %v1442
  %2124 = vmatpush.bf16.msra.mxu0 %v1438
  %2125 = vmatpush.bf16.msra.mxu0 %v1434
  %2126 = vmatpush.bf16.msra.mxu0 %v1430
  %2127 = vmatpush.bf16.msra.mxu0 %v1426
  %2128 = vmatmul.bf16.gmra.mxu0 %v401
  %v2129 = vpop.f32.mrf.mxu0
  %v2130 = vadd.f32 %v2111, %v2129
  %v2131 = vpop.f32.mrf.mxu0
  %v2132 = vadd.f32 %v2113, %v2131
  %2133 = vmatmul.bf16.gmra.mxu0 %v410
  %v2134 = vpop.f32.mrf.mxu0
  %v2135 = vadd.f32 %v2116, %v2134
  %v2136 = vpop.f32.mrf.mxu0
  %v2137 = vadd.f32 %v2118, %v2136
  %2138 = vdwg.mxu0
  %2139 = vmatpush.bf16.msra.mxu0 %v1486
  %2140 = vmatpush.bf16.msra.mxu0 %v1482
  %2141 = vmatpush.bf16.msra.mxu0 %v1478
  %2142 = vmatpush.bf16.msra.mxu0 %v1474
  %2143 = vmatpush.bf16.msra.mxu0 %v1470
  %2144 = vmatpush.bf16.msra.mxu0 %v1466
  %2145 = vmatpush.bf16.msra.mxu0 %v1462
  %2146 = vmatpush.bf16.msra.mxu0 %v1458
  %2147 = vmatmul.bf16.gmra.mxu0 %v402
  %v2148 = vpop.f32.mrf.mxu0
  %v2149 = vadd.f32 %v2130, %v2148
  %v2150 = vpop.f32.mrf.mxu0
  %v2151 = vadd.f32 %v2132, %v2150
  %2152 = vmatmul.bf16.gmra.mxu0 %v411
  %v2153 = vpop.f32.mrf.mxu0
  %v2154 = vadd.f32 %v2135, %v2153
  %v2155 = vpop.f32.mrf.mxu0
  %v2156 = vadd.f32 %v2137, %v2155
  %2157 = vdwg.mxu0
  %2158 = vmatpush.bf16.msra.mxu0 %v1518
  %2159 = vmatpush.bf16.msra.mxu0 %v1514
  %2160 = vmatpush.bf16.msra.mxu0 %v1510
  %2161 = vmatpush.bf16.msra.mxu0 %v1506
  %2162 = vmatpush.bf16.msra.mxu0 %v1502
  %2163 = vmatpush.bf16.msra.mxu0 %v1498
  %2164 = vmatpush.bf16.msra.mxu0 %v1494
  %2165 = vmatpush.bf16.msra.mxu0 %v1490
  %2166 = vmatmul.bf16.gmra.mxu0 %v403
  %v2167 = vpop.f32.mrf.mxu0
  %v2168 = vadd.f32 %v2149, %v2167
  %v2169 = vpop.f32.mrf.mxu0
  %v2170 = vadd.f32 %v2151, %v2169
  %2171 = vmatmul.bf16.gmra.mxu0 %v412
  %v2172 = vpop.f32.mrf.mxu0
  %v2173 = vadd.f32 %v2154, %v2172
  %v2174 = vpop.f32.mrf.mxu0
  %v2175 = vadd.f32 %v2156, %v2174
  %2176 = vdwg.mxu0
  %2177 = vmatpush.bf16.msra.mxu0 %v1550
  %2178 = vmatpush.bf16.msra.mxu0 %v1546
  %2179 = vmatpush.bf16.msra.mxu0 %v1542
  %2180 = vmatpush.bf16.msra.mxu0 %v1538
  %2181 = vmatpush.bf16.msra.mxu0 %v1534
  %2182 = vmatpush.bf16.msra.mxu0 %v1530
  %2183 = vmatpush.bf16.msra.mxu0 %v1526
  %2184 = vmatpush.bf16.msra.mxu0 %v1522
  %2185 = vmatmul.bf16.gmra.mxu0 %v404
  %v2186 = vpop.f32.mrf.mxu0
  %v2187 = vadd.f32 %v2168, %v2186
  %v2188 = vpop.f32.mrf.mxu0
  %v2189 = vadd.f32 %v2170, %v2188
  %2190 = vmatmul.bf16.gmra.mxu0 %v413
  %v2191 = vpop.f32.mrf.mxu0
  %v2192 = vadd.f32 %v2173, %v2191
  %v2193 = vpop.f32.mrf.mxu0
  %v2194 = vadd.f32 %v2175, %v2193
  %2195 = vdwg.mxu0
  %2196 = vmatpush.bf16.msra.mxu0 %v1582
  %2197 = vmatpush.bf16.msra.mxu0 %v1578
  %2198 = vmatpush.bf16.msra.mxu0 %v1574
  %2199 = vmatpush.bf16.msra.mxu0 %v1570
  %2200 = vmatpush.bf16.msra.mxu0 %v1566
  %2201 = vmatpush.bf16.msra.mxu0 %v1562
  %2202 = vmatpush.bf16.msra.mxu0 %v1558
  %2203 = vmatpush.bf16.msra.mxu0 %v1554
  %2204 = vmatmul.bf16.gmra.mxu0 %v405
  %v2205 = vpop.f32.mrf.mxu0
  %v2206 = vadd.f32 %v2187, %v2205
  %v2207 = vpop.f32.mrf.mxu0
  %v2208 = vadd.f32 %v2189, %v2207
  %2209 = vmatmul.bf16.gmra.mxu0 %v414
  %v2210 = vpop.f32.mrf.mxu0
  %v2211 = vadd.f32 %v2192, %v2210
  %v2212 = vpop.f32.mrf.mxu0
  %v2213 = vadd.f32 %v2194, %v2212
  %2214 = vdwg.mxu0
  %2215 = vmatpush.bf16.msra.mxu0 %v1327
  %2216 = vmatpush.bf16.msra.mxu0 %v1323
  %2217 = vmatpush.bf16.msra.mxu0 %v1319
  %2218 = vmatpush.bf16.msra.mxu0 %v1315
  %2219 = vmatpush.bf16.msra.mxu0 %v1311
  %2220 = vmatpush.bf16.msra.mxu0 %v1307
  %2221 = vmatpush.bf16.msra.mxu0 %v1303
  %2222 = vmatpush.bf16.msra.mxu0 %v1299
  %2223 = vmatmul.bf16.gmra.mxu0 %v397
  %v2224 = vpop.f32.mrf.mxu0
  %v2225 = vadd.f32 %v335, %v2224
  %v2226 = vpop.f32.mrf.mxu0
  %v2227 = vadd.f32 %v335, %v2226
  %2228 = vmatmul.bf16.gmra.mxu0 %v406
  %v2229 = vpop.f32.mrf.mxu0
  %v2230 = vadd.f32 %v335, %v2229
  %v2231 = vpop.f32.mrf.mxu0
  %v2232 = vadd.f32 %v335, %v2231
  %2233 = vdwg.mxu0
  %2234 = vmatpush.bf16.msra.mxu0 %v1359
  %2235 = vmatpush.bf16.msra.mxu0 %v1355
  %2236 = vmatpush.bf16.msra.mxu0 %v1351
  %2237 = vmatpush.bf16.msra.mxu0 %v1347
  %2238 = vmatpush.bf16.msra.mxu0 %v1343
  %2239 = vmatpush.bf16.msra.mxu0 %v1339
  %2240 = vmatpush.bf16.msra.mxu0 %v1335
  %2241 = vmatpush.bf16.msra.mxu0 %v1331
  %2242 = vmatmul.bf16.gmra.mxu0 %v398
  %v2243 = vpop.f32.mrf.mxu0
  %v2244 = vadd.f32 %v2225, %v2243
  %v2245 = vpop.f32.mrf.mxu0
  %v2246 = vadd.f32 %v2227, %v2245
  %2247 = vmatmul.bf16.gmra.mxu0 %v407
  %v2248 = vpop.f32.mrf.mxu0
  %v2249 = vadd.f32 %v2230, %v2248
  %v2250 = vpop.f32.mrf.mxu0
  %v2251 = vadd.f32 %v2232, %v2250
  %2252 = vdwg.mxu0
  %2253 = vmatpush.bf16.msra.mxu0 %v1391
  %2254 = vmatpush.bf16.msra.mxu0 %v1387
  %2255 = vmatpush.bf16.msra.mxu0 %v1383
  %2256 = vmatpush.bf16.msra.mxu0 %v1379
  %2257 = vmatpush.bf16.msra.mxu0 %v1375
  %2258 = vmatpush.bf16.msra.mxu0 %v1371
  %2259 = vmatpush.bf16.msra.mxu0 %v1367
  %2260 = vmatpush.bf16.msra.mxu0 %v1363
  %2261 = vmatmul.bf16.gmra.mxu0 %v399
  %v2262 = vpop.f32.mrf.mxu0
  %v2263 = vadd.f32 %v2244, %v2262
  %v2264 = vpop.f32.mrf.mxu0
  %v2265 = vadd.f32 %v2246, %v2264
  %2266 = vmatmul.bf16.gmra.mxu0 %v408
  %v2267 = vpop.f32.mrf.mxu0
  %v2268 = vadd.f32 %v2249, %v2267
  %v2269 = vpop.f32.mrf.mxu0
  %v2270 = vadd.f32 %v2251, %v2269
  %2271 = vdwg.mxu0
  %2272 = vmatpush.bf16.msra.mxu0 %v1423
  %2273 = vmatpush.bf16.msra.mxu0 %v1419
  %2274 = vmatpush.bf16.msra.mxu0 %v1415
  %2275 = vmatpush.bf16.msra.mxu0 %v1411
  %2276 = vmatpush.bf16.msra.mxu0 %v1407
  %2277 = vmatpush.bf16.msra.mxu0 %v1403
  %2278 = vmatpush.bf16.msra.mxu0 %v1399
  %2279 = vmatpush.bf16.msra.mxu0 %v1395
  %2280 = vmatmul.bf16.gmra.mxu0 %v400
  %v2281 = vpop.f32.mrf.mxu0
  %v2282 = vadd.f32 %v2263, %v2281
  %v2283 = vpop.f32.mrf.mxu0
  %v2284 = vadd.f32 %v2265, %v2283
  %2285 = vmatmul.bf16.gmra.mxu0 %v409
  %v2286 = vpop.f32.mrf.mxu0
  %v2287 = vadd.f32 %v2268, %v2286
  %v2288 = vpop.f32.mrf.mxu0
  %v2289 = vadd.f32 %v2270, %v2288
  %2290 = vdwg.mxu0
  %2291 = vmatpush.bf16.msra.mxu0 %v1455
  %2292 = vmatpush.bf16.msra.mxu0 %v1451
  %2293 = vmatpush.bf16.msra.mxu0 %v1447
  %2294 = vmatpush.bf16.msra.mxu0 %v1443
  %2295 = vmatpush.bf16.msra.mxu0 %v1439
  %2296 = vmatpush.bf16.msra.mxu0 %v1435
  %2297 = vmatpush.bf16.msra.mxu0 %v1431
  %2298 = vmatpush.bf16.msra.mxu0 %v1427
  %2299 = vmatmul.bf16.gmra.mxu0 %v401
  %v2300 = vpop.f32.mrf.mxu0
  %v2301 = vadd.f32 %v2282, %v2300
  %v2302 = vpop.f32.mrf.mxu0
  %v2303 = vadd.f32 %v2284, %v2302
  %2304 = vmatmul.bf16.gmra.mxu0 %v410
  %v2305 = vpop.f32.mrf.mxu0
  %v2306 = vadd.f32 %v2287, %v2305
  %v2307 = vpop.f32.mrf.mxu0
  %v2308 = vadd.f32 %v2289, %v2307
  %2309 = vdwg.mxu0
  %2310 = vmatpush.bf16.msra.mxu0 %v1487
  %2311 = vmatpush.bf16.msra.mxu0 %v1483
  %2312 = vmatpush.bf16.msra.mxu0 %v1479
  %2313 = vmatpush.bf16.msra.mxu0 %v1475
  %2314 = vmatpush.bf16.msra.mxu0 %v1471
  %2315 = vmatpush.bf16.msra.mxu0 %v1467
  %2316 = vmatpush.bf16.msra.mxu0 %v1463
  %2317 = vmatpush.bf16.msra.mxu0 %v1459
  %2318 = vmatmul.bf16.gmra.mxu0 %v402
  %v2319 = vpop.f32.mrf.mxu0
  %v2320 = vadd.f32 %v2301, %v2319
  %v2321 = vpop.f32.mrf.mxu0
  %v2322 = vadd.f32 %v2303, %v2321
  %2323 = vmatmul.bf16.gmra.mxu0 %v411
  %v2324 = vpop.f32.mrf.mxu0
  %v2325 = vadd.f32 %v2306, %v2324
  %v2326 = vpop.f32.mrf.mxu0
  %v2327 = vadd.f32 %v2308, %v2326
  %2328 = vdwg.mxu0
  %2329 = vmatpush.bf16.msra.mxu0 %v1519
  %2330 = vmatpush.bf16.msra.mxu0 %v1515
  %2331 = vmatpush.bf16.msra.mxu0 %v1511
  %2332 = vmatpush.bf16.msra.mxu0 %v1507
  %2333 = vmatpush.bf16.msra.mxu0 %v1503
  %2334 = vmatpush.bf16.msra.mxu0 %v1499
  %2335 = vmatpush.bf16.msra.mxu0 %v1495
  %2336 = vmatpush.bf16.msra.mxu0 %v1491
  %2337 = vmatmul.bf16.gmra.mxu0 %v403
  %v2338 = vpop.f32.mrf.mxu0
  %v2339 = vadd.f32 %v2320, %v2338
  %v2340 = vpop.f32.mrf.mxu0
  %v2341 = vadd.f32 %v2322, %v2340
  %2342 = vmatmul.bf16.gmra.mxu0 %v412
  %v2343 = vpop.f32.mrf.mxu0
  %v2344 = vadd.f32 %v2325, %v2343
  %v2345 = vpop.f32.mrf.mxu0
  %v2346 = vadd.f32 %v2327, %v2345
  %2347 = vdwg.mxu0
  %2348 = vmatpush.bf16.msra.mxu0 %v1551
  %2349 = vmatpush.bf16.msra.mxu0 %v1547
  %2350 = vmatpush.bf16.msra.mxu0 %v1543
  %2351 = vmatpush.bf16.msra.mxu0 %v1539
  %2352 = vmatpush.bf16.msra.mxu0 %v1535
  %2353 = vmatpush.bf16.msra.mxu0 %v1531
  %2354 = vmatpush.bf16.msra.mxu0 %v1527
  %2355 = vmatpush.bf16.msra.mxu0 %v1523
  %2356 = vmatmul.bf16.gmra.mxu0 %v404
  %v2357 = vpop.f32.mrf.mxu0
  %v2358 = vadd.f32 %v2339, %v2357
  %v2359 = vpop.f32.mrf.mxu0
  %v2360 = vadd.f32 %v2341, %v2359
  %2361 = vmatmul.bf16.gmra.mxu0 %v413
  %v2362 = vpop.f32.mrf.mxu0
  %v2363 = vadd.f32 %v2344, %v2362
  %v2364 = vpop.f32.mrf.mxu0
  %v2365 = vadd.f32 %v2346, %v2364
  %2366 = vdwg.mxu0
  %2367 = vmatpush.bf16.msra.mxu0 %v1583
  %2368 = vmatpush.bf16.msra.mxu0 %v1579
  %2369 = vmatpush.bf16.msra.mxu0 %v1575
  %2370 = vmatpush.bf16.msra.mxu0 %v1571
  %2371 = vmatpush.bf16.msra.mxu0 %v1567
  %2372 = vmatpush.bf16.msra.mxu0 %v1563
  %2373 = vmatpush.bf16.msra.mxu0 %v1559
  %2374 = vmatpush.bf16.msra.mxu0 %v1555
  %2375 = vmatmul.bf16.gmra.mxu0 %v405
  %v2376 = vpop.f32.mrf.mxu0
  %v2377 = vadd.f32 %v2358, %v2376
  %v2378 = vpop.f32.mrf.mxu0
  %v2379 = vadd.f32 %v2360, %v2378
  %2380 = vmatmul.bf16.gmra.mxu0 %v414
  %v2381 = vpop.f32.mrf.mxu0
  %v2382 = vadd.f32 %v2363, %v2381
  %v2383 = vpop.f32.mrf.mxu0
  %v2384 = vadd.f32 %v2365, %v2383
  %2385 = vdwg.mxu0
  %2386 = vmatpush.bf16.msra.mxu0 %v1328
  %2387 = vmatpush.bf16.msra.mxu0 %v1324
  %2388 = vmatpush.bf16.msra.mxu0 %v1320
  %2389 = vmatpush.bf16.msra.mxu0 %v1316
  %2390 = vmatpush.bf16.msra.mxu0 %v1312
  %2391 = vmatpush.bf16.msra.mxu0 %v1308
  %2392 = vmatpush.bf16.msra.mxu0 %v1304
  %2393 = vmatpush.bf16.msra.mxu0 %v1300
  %2394 = vmatmul.bf16.gmra.mxu0 %v397
  %v2395 = vpop.f32.mrf.mxu0
  %v2396 = vadd.f32 %v336, %v2395
  %v2397 = vpop.f32.mrf.mxu0
  %v2398 = vadd.f32 %v336, %v2397
  %2399 = vmatmul.bf16.gmra.mxu0 %v406
  %v2400 = vpop.f32.mrf.mxu0
  %v2401 = vadd.f32 %v336, %v2400
  %v2402 = vpop.f32.mrf.mxu0
  %v2403 = vadd.f32 %v336, %v2402
  %2404 = vdwg.mxu0
  %2405 = vmatpush.bf16.msra.mxu0 %v1360
  %2406 = vmatpush.bf16.msra.mxu0 %v1356
  %2407 = vmatpush.bf16.msra.mxu0 %v1352
  %2408 = vmatpush.bf16.msra.mxu0 %v1348
  %2409 = vmatpush.bf16.msra.mxu0 %v1344
  %2410 = vmatpush.bf16.msra.mxu0 %v1340
  %2411 = vmatpush.bf16.msra.mxu0 %v1336
  %2412 = vmatpush.bf16.msra.mxu0 %v1332
  %2413 = vmatmul.bf16.gmra.mxu0 %v398
  %v2414 = vpop.f32.mrf.mxu0
  %v2415 = vadd.f32 %v2396, %v2414
  %v2416 = vpop.f32.mrf.mxu0
  %v2417 = vadd.f32 %v2398, %v2416
  %2418 = vmatmul.bf16.gmra.mxu0 %v407
  %v2419 = vpop.f32.mrf.mxu0
  %v2420 = vadd.f32 %v2401, %v2419
  %v2421 = vpop.f32.mrf.mxu0
  %v2422 = vadd.f32 %v2403, %v2421
  %2423 = vdwg.mxu0
  %2424 = vmatpush.bf16.msra.mxu0 %v1392
  %2425 = vmatpush.bf16.msra.mxu0 %v1388
  %2426 = vmatpush.bf16.msra.mxu0 %v1384
  %2427 = vmatpush.bf16.msra.mxu0 %v1380
  %2428 = vmatpush.bf16.msra.mxu0 %v1376
  %2429 = vmatpush.bf16.msra.mxu0 %v1372
  %2430 = vmatpush.bf16.msra.mxu0 %v1368
  %2431 = vmatpush.bf16.msra.mxu0 %v1364
  %2432 = vmatmul.bf16.gmra.mxu0 %v399
  %v2433 = vpop.f32.mrf.mxu0
  %v2434 = vadd.f32 %v2415, %v2433
  %v2435 = vpop.f32.mrf.mxu0
  %v2436 = vadd.f32 %v2417, %v2435
  %2437 = vmatmul.bf16.gmra.mxu0 %v408
  %v2438 = vpop.f32.mrf.mxu0
  %v2439 = vadd.f32 %v2420, %v2438
  %v2440 = vpop.f32.mrf.mxu0
  %v2441 = vadd.f32 %v2422, %v2440
  %2442 = vdwg.mxu0
  %2443 = vmatpush.bf16.msra.mxu0 %v1424
  %2444 = vmatpush.bf16.msra.mxu0 %v1420
  %2445 = vmatpush.bf16.msra.mxu0 %v1416
  %2446 = vmatpush.bf16.msra.mxu0 %v1412
  %2447 = vmatpush.bf16.msra.mxu0 %v1408
  %2448 = vmatpush.bf16.msra.mxu0 %v1404
  %2449 = vmatpush.bf16.msra.mxu0 %v1400
  %2450 = vmatpush.bf16.msra.mxu0 %v1396
  %2451 = vmatmul.bf16.gmra.mxu0 %v400
  %v2452 = vpop.f32.mrf.mxu0
  %v2453 = vadd.f32 %v2434, %v2452
  %v2454 = vpop.f32.mrf.mxu0
  %v2455 = vadd.f32 %v2436, %v2454
  %2456 = vmatmul.bf16.gmra.mxu0 %v409
  %v2457 = vpop.f32.mrf.mxu0
  %v2458 = vadd.f32 %v2439, %v2457
  %v2459 = vpop.f32.mrf.mxu0
  %v2460 = vadd.f32 %v2441, %v2459
  %2461 = vdwg.mxu0
  %2462 = vmatpush.bf16.msra.mxu0 %v1456
  %2463 = vmatpush.bf16.msra.mxu0 %v1452
  %2464 = vmatpush.bf16.msra.mxu0 %v1448
  %2465 = vmatpush.bf16.msra.mxu0 %v1444
  %2466 = vmatpush.bf16.msra.mxu0 %v1440
  %2467 = vmatpush.bf16.msra.mxu0 %v1436
  %2468 = vmatpush.bf16.msra.mxu0 %v1432
  %2469 = vmatpush.bf16.msra.mxu0 %v1428
  %2470 = vmatmul.bf16.gmra.mxu0 %v401
  %v2471 = vpop.f32.mrf.mxu0
  %v2472 = vadd.f32 %v2453, %v2471
  %v2473 = vpop.f32.mrf.mxu0
  %v2474 = vadd.f32 %v2455, %v2473
  %2475 = vmatmul.bf16.gmra.mxu0 %v410
  %v2476 = vpop.f32.mrf.mxu0
  %v2477 = vadd.f32 %v2458, %v2476
  %v2478 = vpop.f32.mrf.mxu0
  %v2479 = vadd.f32 %v2460, %v2478
  %2480 = vdwg.mxu0
  %2481 = vmatpush.bf16.msra.mxu0 %v1488
  %2482 = vmatpush.bf16.msra.mxu0 %v1484
  %2483 = vmatpush.bf16.msra.mxu0 %v1480
  %2484 = vmatpush.bf16.msra.mxu0 %v1476
  %2485 = vmatpush.bf16.msra.mxu0 %v1472
  %2486 = vmatpush.bf16.msra.mxu0 %v1468
  %2487 = vmatpush.bf16.msra.mxu0 %v1464
  %2488 = vmatpush.bf16.msra.mxu0 %v1460
  %2489 = vmatmul.bf16.gmra.mxu0 %v402
  %v2490 = vpop.f32.mrf.mxu0
  %v2491 = vadd.f32 %v2472, %v2490
  %v2492 = vpop.f32.mrf.mxu0
  %v2493 = vadd.f32 %v2474, %v2492
  %2494 = vmatmul.bf16.gmra.mxu0 %v411
  %v2495 = vpop.f32.mrf.mxu0
  %v2496 = vadd.f32 %v2477, %v2495
  %v2497 = vpop.f32.mrf.mxu0
  %v2498 = vadd.f32 %v2479, %v2497
  %2499 = vdwg.mxu0
  %2500 = vmatpush.bf16.msra.mxu0 %v1520
  %2501 = vmatpush.bf16.msra.mxu0 %v1516
  %2502 = vmatpush.bf16.msra.mxu0 %v1512
  %2503 = vmatpush.bf16.msra.mxu0 %v1508
  %2504 = vmatpush.bf16.msra.mxu0 %v1504
  %2505 = vmatpush.bf16.msra.mxu0 %v1500
  %2506 = vmatpush.bf16.msra.mxu0 %v1496
  %2507 = vmatpush.bf16.msra.mxu0 %v1492
  %2508 = vmatmul.bf16.gmra.mxu0 %v403
  %v2509 = vpop.f32.mrf.mxu0
  %v2510 = vadd.f32 %v2491, %v2509
  %v2511 = vpop.f32.mrf.mxu0
  %v2512 = vadd.f32 %v2493, %v2511
  %2513 = vmatmul.bf16.gmra.mxu0 %v412
  %v2514 = vpop.f32.mrf.mxu0
  %v2515 = vadd.f32 %v2496, %v2514
  %v2516 = vpop.f32.mrf.mxu0
  %v2517 = vadd.f32 %v2498, %v2516
  %2518 = vdwg.mxu0
  %2519 = vmatpush.bf16.msra.mxu0 %v1552
  %2520 = vmatpush.bf16.msra.mxu0 %v1548
  %2521 = vmatpush.bf16.msra.mxu0 %v1544
  %2522 = vmatpush.bf16.msra.mxu0 %v1540
  %2523 = vmatpush.bf16.msra.mxu0 %v1536
  %2524 = vmatpush.bf16.msra.mxu0 %v1532
  %2525 = vmatpush.bf16.msra.mxu0 %v1528
  %2526 = vmatpush.bf16.msra.mxu0 %v1524
  %2527 = vmatmul.bf16.gmra.mxu0 %v404
  %v2528 = vpop.f32.mrf.mxu0
  %v2529 = vadd.f32 %v2510, %v2528
  %v2530 = vpop.f32.mrf.mxu0
  %v2531 = vadd.f32 %v2512, %v2530
  %2532 = vmatmul.bf16.gmra.mxu0 %v413
  %v2533 = vpop.f32.mrf.mxu0
  %v2534 = vadd.f32 %v2515, %v2533
  %v2535 = vpop.f32.mrf.mxu0
  %v2536 = vadd.f32 %v2517, %v2535
  %2537 = vdwg.mxu0
  %2538 = vmatpush.bf16.msra.mxu0 %v1584
  %2539 = vmatpush.bf16.msra.mxu0 %v1580
  %2540 = vmatpush.bf16.msra.mxu0 %v1576
  %2541 = vmatpush.bf16.msra.mxu0 %v1572
  %2542 = vmatpush.bf16.msra.mxu0 %v1568
  %2543 = vmatpush.bf16.msra.mxu0 %v1564
  %2544 = vmatpush.bf16.msra.mxu0 %v1560
  %2545 = vmatpush.bf16.msra.mxu0 %v1556
  %2546 = vmatmul.bf16.gmra.mxu0 %v405
  %v2547 = vpop.f32.mrf.mxu0
  %v2548 = vadd.f32 %v2529, %v2547
  %v2549 = vpop.f32.mrf.mxu0
  %v2550 = vadd.f32 %v2531, %v2549
  %2551 = vmatmul.bf16.gmra.mxu0 %v414
  %v2552 = vpop.f32.mrf.mxu0
  %v2553 = vadd.f32 %v2534, %v2552
  %v2554 = vpop.f32.mrf.mxu0
  %v2555 = vadd.f32 %v2536, %v2554
  %2556 = vdwg.mxu0
  %v2557 = vmax.f32 %v2035, 0.0
  %v2558 = vmax.f32 %v2206, 0.0
  %v2559 = vmax.f32 %v2037, 0.0
  %v2560 = vmax.f32 %v2208, 0.0
  %v2561 = vmax.f32 %v2040, 0.0
  %v2562 = vmax.f32 %v2211, 0.0
  %v2563 = vmax.f32 %v2042, 0.0
  %v2564 = vmax.f32 %v2213, 0.0
  %2565 = vst [vmem:[#allocation2] sm:$0xff] 0.0
  %2566 = vst [vmem:[#allocation2 + $0x8] sm:$0xff] 0.0
  %2567 = vst [vmem:[#allocation2 + $0x10] sm:$0xff] %v2557
  %2568 = vst [vmem:[#allocation2 + $0x18] sm:$0xff] %v2558
  %2569 = vst [vmem:[#allocation2 + $0x20] sm:$0xff] %v2559
  %2570 = vst [vmem:[#allocation2 + $0x28] sm:$0xff] %v2560
  %2571 = vst [vmem:[#allocation2 + $0x30] sm:$0xff] %v2561
  %2572 = vst [vmem:[#allocation2 + $0x38] sm:$0xff] %v2562
  %2573 = vst [vmem:[#allocation2 + $0x40] sm:$0xff] %v2563
  %2574 = vst [vmem:[#allocation2 + $0x48] sm:$0xff] %v2564
  %2575 = vst [vmem:[#allocation2 + $0x50] sm:$0xff] 0.0
  %2576 = vst [vmem:[#allocation2 + $0x58] sm:$0xff] 0.0
  %v2577 = vlaneseq
  %v2578 = vshrl.u32 %v2577, 7
  %v2579 = vadd.s32 %v2578, 8
  %v2580 = vadd.s32 %v2578, 16
  %v2581 = vadd.s32 %v2578, 24
  %v2582 = vand.u32 %v2578, 3
  %v2583 = vand.u32 %v2579, 3
  %v2584 = vand.u32 %v2580, 3
  %v2585 = vand.u32 %v2581, 3
  %v2586 = vshra.s32 %v2578, 2
  %v2587 = vshra.s32 %v2579, 2
  %v2588 = vshra.s32 %v2580, 2
  %v2589 = vshra.s32 %v2581, 2
  %v2590 = vand.u32 %v2586, 3
  %v2591 = vand.u32 %v2587, 3
  %v2592 = vand.u32 %v2588, 3
  %v2593 = vand.u32 %v2589, 3
  %v2594 = vld [vmem:[%s4] sm:$0x3]
  %v2596 = vperm.slane %v2594, 0
  %v2597 = vperm.slane %v2594, 1
  %v2600 = vadd.f32 %v2377, %v2596
  %v2601 = vadd.f32 %v2548, %v2597
  %v2602 = vadd.f32 %v2379, %v2596
  %v2603 = vadd.f32 %v2550, %v2597
  %v2604 = vadd.f32 %v2382, %v2596
  %v2605 = vadd.f32 %v2553, %v2597
  %v2606 = vadd.f32 %v2384, %v2596
  %v2607 = vadd.f32 %v2555, %v2597
  %v2608 = vld [vmem:[#allocation2] sm:$0xf8]
  %v2609 = vld [vmem:[#allocation2 + $0x8] sm:$0xf8]
  %v2610 = vld [vmem:[#allocation2 + $0x10] sm:$0xff]
  %v2611 = vld [vmem:[#allocation2 + $0x18] sm:$0xff]
  %v2612 = vld [vmem:[#allocation2 + $0x20] sm:$0xff]
  %v2613 = vld [vmem:[#allocation2 + $0x28] sm:$0xff]
  %v2614 = vld [vmem:[#allocation2 + $0x30] sm:$0xff]
  %v2615 = vld [vmem:[#allocation2 + $0x38] sm:$0xff]
  %v2616 = vld [vmem:[#allocation2 + $0x40] sm:$0x7]
  %v2617 = vld [vmem:[#allocation2 + $0x48] sm:$0x7]
  %v2618 = vadd.s32 %v2590, 4294967295
  %v2619 = vadd.s32 %v2591, 4294967295
  %v2620 = vadd.s32 %v2592, 4294967295
  %v2621 = vadd.s32 %v2593, 4294967295
  %vm2622 = vcmp.ge.s32.totalorder %v2618, 0
  %vm2623 = vcmp.ge.s32.totalorder %v2619, 0
  %vm2624 = vcmp.ge.s32.totalorder %v2620, 0
  %vm2625 = vcmp.ge.s32.totalorder %v2621, 0
  %vm2626 = vcmp.lt.s32.totalorder %v2618, 4
  %vm2627 = vcmp.lt.s32.totalorder %v2619, 4
  %vm2628 = vcmp.lt.s32.totalorder %v2620, 4
  %vm2629 = vcmp.lt.s32.totalorder %v2621, 4
  %vm2630 = vmand %vm2622, %vm2626
  %vm2631 = vmand %vm2623, %vm2627
  %vm2632 = vmand %vm2624, %vm2628
  %vm2633 = vmand %vm2625, %vm2629
  %v2634 = vadd.s32 %v2582, 4294967295
  %v2635 = vadd.s32 %v2583, 4294967295
  %v2636 = vadd.s32 %v2584, 4294967295
  %v2637 = vadd.s32 %v2585, 4294967295
  %vm2638 = vcmp.ge.s32.totalorder %v2634, 0
  %vm2639 = vcmp.ge.s32.totalorder %v2635, 0
  %vm2640 = vcmp.ge.s32.totalorder %v2636, 0
  %vm2641 = vcmp.ge.s32.totalorder %v2637, 0
  %vm2642 = vmand %vm2630, %vm2638
  %vm2643 = vmand %vm2631, %vm2639
  %vm2644 = vmand %vm2632, %vm2640
  %vm2645 = vmand %vm2633, %vm2641
  %vm2646 = vcmp.lt.s32.totalorder %v2634, 4
  %vm2647 = vcmp.lt.s32.totalorder %v2635, 4
  %vm2648 = vcmp.lt.s32.totalorder %v2636, 4
  %vm2649 = vcmp.lt.s32.totalorder %v2637, 4
  %vm2650 = vmand %vm2642, %vm2646
  %vm2651 = vmand %vm2643, %vm2647
  %vm2652 = vmand %vm2644, %vm2648
  %vm2653 = vmand %vm2645, %vm2649
  %v2654 = vsel %vm2650, 1, 0
  %v2655 = vsel %vm2651, 1, 0
  %v2656 = vsel %vm2652, 1, 0
  %v2657 = vsel %vm2653, 1, 0
  %v2658 = vcvt.s32.f32 %v2654
  %v2659 = vcvt.s32.f32 %v2655
  %v2660 = vcvt.s32.f32 %v2656
  %v2661 = vcvt.s32.f32 %v2657
  %vm2666 = vcmask 1042432
  %v2667 = vrot.slane %v2658, 5
  %v2668 = vrot.slane %v2659, 5
  %v2669 = vsel %vm2666, %v2667, %v2668
  %v2670 = vrot.slane %v2660, 5
  %v2671 = vsel %vm2666, %v2668, %v2670
  %v2672 = vrot.slane %v2661, 5
  %v2673 = vsel %vm2666, %v2670, %v2672
  %v2679 = vmul.f32 %v2608, %v2667
  %v2680 = vmul.f32 %v2609, %v2667
  %v2681 = vmul.f32 %v2610, %v2669
  %v2682 = vmul.f32 %v2611, %v2669
  %v2683 = vmul.f32 %v2612, %v2671
  %v2684 = vmul.f32 %v2613, %v2671
  %v2685 = vmul.f32 %v2614, %v2673
  %v2686 = vmul.f32 %v2615, %v2673
  %v2687 = vmul.f32 %v2616, %v2672
  %v2688 = vmul.f32 %v2617, %v2672
  %v2689 = vpack.c.bf16 %v2681, %v2679
  %v2690 = vpack.c.bf16 %v2682, %v2680
  %v2691 = vpack.c.bf16 %v2685, %v2683
  %v2692 = vpack.c.bf16 %v2686, %v2684
  %v2693 = vpack.c.bf16 %v2687, %v2687
  %v2694 = vpack.c.bf16 %v2688, %v2688
  %v2695 = vld [vmem:[%s3] sm:$0xff]
  %v2696 = vld [vmem:[%s3 + $0x8] sm:$0xff]
  %v2697 = vld [vmem:[%s3 + $0x10] sm:$0xff]
  %v2698 = vld [vmem:[%s3 + $0x18] sm:$0xff]
  %v2699 = vld [vmem:[%s3 + $0x20] sm:$0xff]
  %v2700 = vld [vmem:[%s3 + $0x28] sm:$0xff]
  %v2701 = vld [vmem:[%s3 + $0x30] sm:$0xff]
  %v2702 = vld [vmem:[%s3 + $0x38] sm:$0xff]
  %v2703 = vld [vmem:[%s3 + $0x40] sm:$0xff]
  %v2704 = vld [vmem:[%s3 + $0x48] sm:$0xff]
  %v2705 = vld [vmem:[%s3 + $0x50] sm:$0xff]
  %v2706 = vld [vmem:[%s3 + $0x58] sm:$0xff]
  %v2707 = vld [vmem:[%s3 + $0x60] sm:$0xff]
  %v2708 = vld [vmem:[%s3 + $0x68] sm:$0xff]
  %v2709 = vld [vmem:[%s3 + $0x70] sm:$0xff]
  %v2710 = vld [vmem:[%s3 + $0x78] sm:$0xff]
  %v2711 = vld [vmem:[%s3 + $0x80] sm:$0xff]
  %v2712 = vld [vmem:[%s3 + $0x88] sm:$0xff]
  %v2713 = vld [vmem:[%s3 + $0x90] sm:$0xff]
  %v2714 = vld [vmem:[%s3 + $0x98] sm:$0xff]
  %v2715 = vld [vmem:[%s3 + $0xa0] sm:$0xff]
  %v2716 = vld [vmem:[%s3 + $0xa8] sm:$0xff]
  %v2717 = vld [vmem:[%s3 + $0xb0] sm:$0xff]
  %v2718 = vld [vmem:[%s3 + $0xb8] sm:$0xff]
  %v2719 = vld [vmem:[%s3 + $0xc0] sm:$0xff]
  %v2720 = vld [vmem:[%s3 + $0xc8] sm:$0xff]
  %v2721 = vld [vmem:[%s3 + $0xd0] sm:$0xff]
  %v2722 = vld [vmem:[%s3 + $0xd8] sm:$0xff]
  %v2723 = vld [vmem:[%s3 + $0xe0] sm:$0xff]
  %v2724 = vld [vmem:[%s3 + $0xe8] sm:$0xff]
  %v2725 = vld [vmem:[%s3 + $0xf0] sm:$0xff]
  %v2726 = vld [vmem:[%s3 + $0xf8] sm:$0xff]
  %vm2727 = vsmask.f32 6400
  %v2729 = vshrl.u32 %v2689, 16
  %v2731 = vrot.slane %v2729, 1
  %v2732 = vshll.u32 %v2689, 16
  %v2734 = vrot.slane %v2732, 2
  %v2735 = vor.u32 %v2731, %v2734
  %v2737 = vshrl.u32 %v2691, 16
  %v2739 = vrot.slane %v2737, 1
  %v2740 = vshll.u32 %v2691, 16
  %v2742 = vrot.slane %v2740, 2
  %v2743 = vor.u32 %v2739, %v2742
  %v2744 = vsel %vm2727, %v2735, %v2743
  %v2746 = vshrl.u32 %v2690, 16
  %v2748 = vrot.slane %v2746, 1
  %v2749 = vshll.u32 %v2690, 16
  %v2751 = vrot.slane %v2749, 2
  %v2752 = vor.u32 %v2748, %v2751
  %v2754 = vshrl.u32 %v2692, 16
  %v2756 = vrot.slane %v2754, 1
  %v2757 = vshll.u32 %v2692, 16
  %v2759 = vrot.slane %v2757, 2
  %v2760 = vor.u32 %v2756, %v2759
  %v2761 = vsel %vm2727, %v2752, %v2760
  %v2763 = vshrl.u32 %v2693, 16
  %v2765 = vrot.slane %v2763, 1
  %v2766 = vshll.u32 %v2693, 16
  %v2768 = vrot.slane %v2766, 2
  %v2769 = vor.u32 %v2765, %v2768
  %v2770 = vsel %vm2727, %v2743, %v2769
  %v2772 = vshrl.u32 %v2694, 16
  %v2774 = vrot.slane %v2772, 1
  %v2775 = vshll.u32 %v2694, 16
  %v2777 = vrot.slane %v2775, 2
  %v2778 = vor.u32 %v2774, %v2777
  %v2779 = vsel %vm2727, %v2760, %v2778
  %v2816 = vunpack.c.l.b16 %v2695
  %v2817 = vunpack.c.h.b16 %v2695
  %v2818 = vunpack.c.l.b16 %v2696
  %v2819 = vunpack.c.h.b16 %v2696
  %v2820 = vunpack.c.l.b16 %v2697
  %v2821 = vunpack.c.h.b16 %v2697
  %v2822 = vunpack.c.l.b16 %v2698
  %v2823 = vunpack.c.h.b16 %v2698
  %v2824 = vunpack.c.l.b16 %v2699
  %v2825 = vunpack.c.h.b16 %v2699
  %v2826 = vunpack.c.l.b16 %v2700
  %v2827 = vunpack.c.h.b16 %v2700
  %v2828 = vunpack.c.l.b16 %v2701
  %v2829 = vunpack.c.h.b16 %v2701
  %v2830 = vunpack.c.l.b16 %v2702
  %v2831 = vunpack.c.h.b16 %v2702
  %v2832 = vunpack.c.l.b16 %v2703
  %v2833 = vunpack.c.h.b16 %v2703
  %v2834 = vunpack.c.l.b16 %v2704
  %v2835 = vunpack.c.h.b16 %v2704
  %v2836 = vunpack.c.l.b16 %v2705
  %v2837 = vunpack.c.h.b16 %v2705
  %v2838 = vunpack.c.l.b16 %v2706
  %v2839 = vunpack.c.h.b16 %v2706
  %v2840 = vunpack.c.l.b16 %v2707
  %v2841 = vunpack.c.h.b16 %v2707
  %v2842 = vunpack.c.l.b16 %v2708
  %v2843 = vunpack.c.h.b16 %v2708
  %v2844 = vunpack.c.l.b16 %v2709
  %v2845 = vunpack.c.h.b16 %v2709
  %v2846 = vunpack.c.l.b16 %v2710
  %v2847 = vunpack.c.h.b16 %v2710
  %v2848 = vunpack.c.l.b16 %v2711
  %v2849 = vunpack.c.h.b16 %v2711
  %v2850 = vunpack.c.l.b16 %v2712
  %v2851 = vunpack.c.h.b16 %v2712
  %v2852 = vunpack.c.l.b16 %v2713
  %v2853 = vunpack.c.h.b16 %v2713
  %v2854 = vunpack.c.l.b16 %v2714
  %v2855 = vunpack.c.h.b16 %v2714
  %v2856 = vunpack.c.l.b16 %v2715
  %v2857 = vunpack.c.h.b16 %v2715
  %v2858 = vunpack.c.l.b16 %v2716
  %v2859 = vunpack.c.h.b16 %v2716
  %v2860 = vunpack.c.l.b16 %v2717
  %v2861 = vunpack.c.h.b16 %v2717
  %v2862 = vunpack.c.l.b16 %v2718
  %v2863 = vunpack.c.h.b16 %v2718
  %v2864 = vunpack.c.l.b16 %v2719
  %v2865 = vunpack.c.h.b16 %v2719
  %v2866 = vunpack.c.l.b16 %v2720
  %v2867 = vunpack.c.h.b16 %v2720
  %v2868 = vunpack.c.l.b16 %v2721
  %v2869 = vunpack.c.h.b16 %v2721
  %v2870 = vunpack.c.l.b16 %v2722
  %v2871 = vunpack.c.h.b16 %v2722
  %v2872 = vunpack.c.l.b16 %v2723
  %v2873 = vunpack.c.h.b16 %v2723
  %v2874 = vunpack.c.l.b16 %v2724
  %v2875 = vunpack.c.h.b16 %v2724
  %v2876 = vunpack.c.l.b16 %v2725
  %v2877 = vunpack.c.h.b16 %v2725
  %v2878 = vunpack.c.l.b16 %v2726
  %v2879 = vunpack.c.h.b16 %v2726
  %v2880 = vpack.c.b16 %v2818, %v2816
  %v2881 = vpack.c.b16 %v2819, %v2817
  %v2882 = vpack.c.b16 %v2822, %v2820
  %v2883 = vpack.c.b16 %v2823, %v2821
  %v2884 = vpack.c.b16 %v2826, %v2824
  %v2885 = vpack.c.b16 %v2827, %v2825
  %v2886 = vpack.c.b16 %v2830, %v2828
  %v2887 = vpack.c.b16 %v2831, %v2829
  %v2888 = vpack.c.b16 %v2834, %v2832
  %v2889 = vpack.c.b16 %v2835, %v2833
  %v2890 = vpack.c.b16 %v2838, %v2836
  %v2891 = vpack.c.b16 %v2839, %v2837
  %v2892 = vpack.c.b16 %v2842, %v2840
  %v2893 = vpack.c.b16 %v2843, %v2841
  %v2894 = vpack.c.b16 %v2846, %v2844
  %v2895 = vpack.c.b16 %v2847, %v2845
  %v2896 = vpack.c.b16 %v2850, %v2848
  %v2897 = vpack.c.b16 %v2851, %v2849
  %v2898 = vpack.c.b16 %v2854, %v2852
  %v2899 = vpack.c.b16 %v2855, %v2853
  %v2900 = vpack.c.b16 %v2858, %v2856
  %v2901 = vpack.c.b16 %v2859, %v2857
  %v2902 = vpack.c.b16 %v2862, %v2860
  %v2903 = vpack.c.b16 %v2863, %v2861
  %v2904 = vpack.c.b16 %v2866, %v2864
  %v2905 = vpack.c.b16 %v2867, %v2865
  %v2906 = vpack.c.b16 %v2870, %v2868
  %v2907 = vpack.c.b16 %v2871, %v2869
  %v2908 = vpack.c.b16 %v2874, %v2872
  %v2909 = vpack.c.b16 %v2875, %v2873
  %v2910 = vpack.c.b16 %v2878, %v2876
  %v2911 = vpack.c.b16 %v2879, %v2877
  %2944 = vmatpush.bf16.msra.mxu0 %v2894
  %2945 = vmatpush.bf16.msra.mxu0 %v2892
  %2946 = vmatpush.bf16.msra.mxu0 %v2890
  %2947 = vmatpush.bf16.msra.mxu0 %v2888
  %2948 = vmatpush.bf16.msra.mxu0 %v2886
  %2949 = vmatpush.bf16.msra.mxu0 %v2884
  %2950 = vmatpush.bf16.msra.mxu0 %v2882
  %2951 = vmatpush.bf16.msra.mxu0 %v2880
  %2952 = vmatmul.bf16.gmra.mxu0 %v2744
  %v2953 = vpop.f32.mrf.mxu0
  %v2954 = vadd.f32 0.0, %v2953
  %v2955 = vpop.f32.mrf.mxu0
  %v2956 = vadd.f32 0.0, %v2955
  %2957 = vmatmul.bf16.gmra.mxu0 %v2770
  %v2958 = vpop.f32.mrf.mxu0
  %v2959 = vadd.f32 0.0, %v2958
  %v2960 = vpop.f32.mrf.mxu0
  %v2961 = vadd.f32 0.0, %v2960
  %2962 = vdwg.mxu0
  %2963 = vmatpush.bf16.msra.mxu0 %v2910
  %2964 = vmatpush.bf16.msra.mxu0 %v2908
  %2965 = vmatpush.bf16.msra.mxu0 %v2906
  %2966 = vmatpush.bf16.msra.mxu0 %v2904
  %2967 = vmatpush.bf16.msra.mxu0 %v2902
  %2968 = vmatpush.bf16.msra.mxu0 %v2900
  %2969 = vmatpush.bf16.msra.mxu0 %v2898
  %2970 = vmatpush.bf16.msra.mxu0 %v2896
  %2971 = vmatmul.bf16.gmra.mxu0 %v2761
  %v2972 = vpop.f32.mrf.mxu0
  %v2973 = vadd.f32 %v2954, %v2972
  %v2974 = vpop.f32.mrf.mxu0
  %v2975 = vadd.f32 %v2956, %v2974
  %2976 = vmatmul.bf16.gmra.mxu0 %v2779
  %v2977 = vpop.f32.mrf.mxu0
  %v2978 = vadd.f32 %v2959, %v2977
  %v2979 = vpop.f32.mrf.mxu0
  %v2980 = vadd.f32 %v2961, %v2979
  %2981 = vdwg.mxu0
  %2982 = vmatpush.bf16.msra.mxu0 %v2895
  %2983 = vmatpush.bf16.msra.mxu0 %v2893
  %2984 = vmatpush.bf16.msra.mxu0 %v2891
  %2985 = vmatpush.bf16.msra.mxu0 %v2889
  %2986 = vmatpush.bf16.msra.mxu0 %v2887
  %2987 = vmatpush.bf16.msra.mxu0 %v2885
  %2988 = vmatpush.bf16.msra.mxu0 %v2883
  %2989 = vmatpush.bf16.msra.mxu0 %v2881
  %2990 = vmatmul.bf16.gmra.mxu0 %v2744
  %v2991 = vpop.f32.mrf.mxu0
  %v2992 = vadd.f32 0.0, %v2991
  %v2993 = vpop.f32.mrf.mxu0
  %v2994 = vadd.f32 0.0, %v2993
  %2995 = vmatmul.bf16.gmra.mxu0 %v2770
  %v2996 = vpop.f32.mrf.mxu0
  %v2997 = vadd.f32 0.0, %v2996
  %v2998 = vpop.f32.mrf.mxu0
  %v2999 = vadd.f32 0.0, %v2998
  %3000 = vdwg.mxu0
  %3001 = vmatpush.bf16.msra.mxu0 %v2911
  %3002 = vmatpush.bf16.msra.mxu0 %v2909
  %3003 = vmatpush.bf16.msra.mxu0 %v2907
  %3004 = vmatpush.bf16.msra.mxu0 %v2905
  %3005 = vmatpush.bf16.msra.mxu0 %v2903
  %3006 = vmatpush.bf16.msra.mxu0 %v2901
  %3007 = vmatpush.bf16.msra.mxu0 %v2899
  %3008 = vmatpush.bf16.msra.mxu0 %v2897
  %3009 = vmatmul.bf16.gmra.mxu0 %v2761
  %v3010 = vpop.f32.mrf.mxu0
  %v3011 = vadd.f32 %v2992, %v3010
  %v3012 = vpop.f32.mrf.mxu0
  %v3013 = vadd.f32 %v2994, %v3012
  %3014 = vmatmul.bf16.gmra.mxu0 %v2779
  %v3015 = vpop.f32.mrf.mxu0
  %v3016 = vadd.f32 %v2997, %v3015
  %v3017 = vpop.f32.mrf.mxu0
  %v3018 = vadd.f32 %v2999, %v3017
  %3019 = vdwg.mxu0
  %v3020 = vadd.f32 %v2600, %v2973
  %v3021 = vadd.f32 %v2601, %v3011
  %v3022 = vadd.f32 %v2602, %v2975
  %v3023 = vadd.f32 %v2603, %v3013
  %v3024 = vadd.f32 %v2604, %v2978
  %v3025 = vadd.f32 %v2605, %v3016
  %v3026 = vadd.f32 %v2606, %v2980
  %v3027 = vadd.f32 %v2607, %v3018
  %v3028 = vld [vmem:[#allocation2] sm:$0xf0]
  %v3029 = vld [vmem:[#allocation2 + $0x8] sm:$0xf0]
  %v3030 = vld [vmem:[#allocation2 + $0x40] sm:$0xf]
  %v3031 = vld [vmem:[#allocation2 + $0x48] sm:$0xf]
  %vm3032 = vcmp.ge.s32.totalorder %v2582, 0
  %vm3033 = vcmp.ge.s32.totalorder %v2583, 0
  %vm3034 = vcmp.ge.s32.totalorder %v2584, 0
  %vm3035 = vcmp.ge.s32.totalorder %v2585, 0
  %vm3036 = vmand %vm2630, %vm3032
  %vm3037 = vmand %vm2631, %vm3033
  %vm3038 = vmand %vm2632, %vm3034
  %vm3039 = vmand %vm2633, %vm3035
  %vm3040 = vcmp.lt.s32.totalorder %v2582, 4
  %vm3041 = vcmp.lt.s32.totalorder %v2583, 4
  %vm3042 = vcmp.lt.s32.totalorder %v2584, 4
  %vm3043 = vcmp.lt.s32.totalorder %v2585, 4
  %vm3044 = vmand %vm3036, %vm3040
  %vm3045 = vmand %vm3037, %vm3041
  %vm3046 = vmand %vm3038, %vm3042
  %vm3047 = vmand %vm3039, %vm3043
  %v3048 = vsel %vm3044, 1, 0
  %v3049 = vsel %vm3045, 1, 0
  %v3050 = vsel %vm3046, 1, 0
  %v3051 = vsel %vm3047, 1, 0
  %v3052 = vcvt.s32.f32 %v3048
  %v3053 = vcvt.s32.f32 %v3049
  %v3054 = vcvt.s32.f32 %v3050
  %v3055 = vcvt.s32.f32 %v3051
  %vm3060 = vcmask 1043456
  %v3061 = vrot.slane %v3052, 4
  %v3062 = vrot.slane %v3053, 4
  %v3063 = vsel %vm3060, %v3061, %v3062
  %v3064 = vrot.slane %v3054, 4
  %v3065 = vsel %vm3060, %v3062, %v3064
  %v3066 = vrot.slane %v3055, 4
  %v3067 = vsel %vm3060, %v3064, %v3066
  %v3073 = vmul.f32 %v3028, %v3061
  %v3074 = vmul.f32 %v3029, %v3061
  %v3075 = vmul.f32 %v2610, %v3063
  %v3076 = vmul.f32 %v2611, %v3063
  %v3077 = vmul.f32 %v2612, %v3065
  %v3078 = vmul.f32 %v2613, %v3065
  %v3079 = vmul.f32 %v2614, %v3067
  %v3080 = vmul.f32 %v2615, %v3067
  %v3081 = vmul.f32 %v3030, %v3066
  %v3082 = vmul.f32 %v3031, %v3066
  %v3083 = vpack.c.bf16 %v3075, %v3073
  %v3084 = vpack.c.bf16 %v3076, %v3074
  %v3085 = vpack.c.bf16 %v3079, %v3077
  %v3086 = vpack.c.bf16 %v3080, %v3078
  %v3087 = vpack.c.bf16 %v3081, %v3081
  %v3088 = vpack.c.bf16 %v3082, %v3082
  %v3089 = vld [vmem:[%s3 + $0x100] sm:$0xff]
  %v3090 = vld [vmem:[%s3 + $0x108] sm:$0xff]
  %v3091 = vld [vmem:[%s3 + $0x110] sm:$0xff]
  %v3092 = vld [vmem:[%s3 + $0x118] sm:$0xff]
  %v3093 = vld [vmem:[%s3 + $0x120] sm:$0xff]
  %v3094 = vld [vmem:[%s3 + $0x128] sm:$0xff]
  %v3095 = vld [vmem:[%s3 + $0x130] sm:$0xff]
  %v3096 = vld [vmem:[%s3 + $0x138] sm:$0xff]
  %v3097 = vld [vmem:[%s3 + $0x140] sm:$0xff]
  %v3098 = vld [vmem:[%s3 + $0x148] sm:$0xff]
  %v3099 = vld [vmem:[%s3 + $0x150] sm:$0xff]
  %v3100 = vld [vmem:[%s3 + $0x158] sm:$0xff]
  %v3101 = vld [vmem:[%s3 + $0x160] sm:$0xff]
  %v3102 = vld [vmem:[%s3 + $0x168] sm:$0xff]
  %v3103 = vld [vmem:[%s3 + $0x170] sm:$0xff]
  %v3104 = vld [vmem:[%s3 + $0x178] sm:$0xff]
  %v3105 = vld [vmem:[%s3 + $0x180] sm:$0xff]
  %v3106 = vld [vmem:[%s3 + $0x188] sm:$0xff]
  %v3107 = vld [vmem:[%s3 + $0x190] sm:$0xff]
  %v3108 = vld [vmem:[%s3 + $0x198] sm:$0xff]
  %v3109 = vld [vmem:[%s3 + $0x1a0] sm:$0xff]
  %v3110 = vld [vmem:[%s3 + $0x1a8] sm:$0xff]
  %v3111 = vld [vmem:[%s3 + $0x1b0] sm:$0xff]
  %v3112 = vld [vmem:[%s3 + $0x1b8] sm:$0xff]
  %v3113 = vld [vmem:[%s3 + $0x1c0] sm:$0xff]
  %v3114 = vld [vmem:[%s3 + $0x1c8] sm:$0xff]
  %v3115 = vld [vmem:[%s3 + $0x1d0] sm:$0xff]
  %v3116 = vld [vmem:[%s3 + $0x1d8] sm:$0xff]
  %v3117 = vld [vmem:[%s3 + $0x1e0] sm:$0xff]
  %v3118 = vld [vmem:[%s3 + $0x1e8] sm:$0xff]
  %v3119 = vld [vmem:[%s3 + $0x1f0] sm:$0xff]
  %v3120 = vld [vmem:[%s3 + $0x1f8] sm:$0xff]
  %vm3127 = vcmask 1045504
  %v3128 = vrot.slane %v3083, 2
  %v3129 = vrot.slane %v3085, 2
  %v3130 = vsel %vm3127, %v3128, %v3129
  %v3131 = vrot.slane %v3084, 2
  %v3132 = vrot.slane %v3086, 2
  %v3133 = vsel %vm3127, %v3131, %v3132
  %v3134 = vrot.slane %v3087, 2
  %v3135 = vsel %vm3127, %v3129, %v3134
  %v3136 = vrot.slane %v3088, 2
  %v3137 = vsel %vm3127, %v3132, %v3136
  %v3174 = vunpack.c.l.b16 %v3089
  %v3175 = vunpack.c.h.b16 %v3089
  %v3176 = vunpack.c.l.b16 %v3090
  %v3177 = vunpack.c.h.b16 %v3090
  %v3178 = vunpack.c.l.b16 %v3091
  %v3179 = vunpack.c.h.b16 %v3091
  %v3180 = vunpack.c.l.b16 %v3092
  %v3181 = vunpack.c.h.b16 %v3092
  %v3182 = vunpack.c.l.b16 %v3093
  %v3183 = vunpack.c.h.b16 %v3093
  %v3184 = vunpack.c.l.b16 %v3094
  %v3185 = vunpack.c.h.b16 %v3094
  %v3186 = vunpack.c.l.b16 %v3095
  %v3187 = vunpack.c.h.b16 %v3095
  %v3188 = vunpack.c.l.b16 %v3096
  %v3189 = vunpack.c.h.b16 %v3096
  %v3190 = vunpack.c.l.b16 %v3097
  %v3191 = vunpack.c.h.b16 %v3097
  %v3192 = vunpack.c.l.b16 %v3098
  %v3193 = vunpack.c.h.b16 %v3098
  %v3194 = vunpack.c.l.b16 %v3099
  %v3195 = vunpack.c.h.b16 %v3099
  %v3196 = vunpack.c.l.b16 %v3100
  %v3197 = vunpack.c.h.b16 %v3100
  %v3198 = vunpack.c.l.b16 %v3101
  %v3199 = vunpack.c.h.b16 %v3101
  %v3200 = vunpack.c.l.b16 %v3102
  %v3201 = vunpack.c.h.b16 %v3102
  %v3202 = vunpack.c.l.b16 %v3103
  %v3203 = vunpack.c.h.b16 %v3103
  %v3204 = vunpack.c.l.b16 %v3104
  %v3205 = vunpack.c.h.b16 %v3104
  %v3206 = vunpack.c.l.b16 %v3105
  %v3207 = vunpack.c.h.b16 %v3105
  %v3208 = vunpack.c.l.b16 %v3106
  %v3209 = vunpack.c.h.b16 %v3106
  %v3210 = vunpack.c.l.b16 %v3107
  %v3211 = vunpack.c.h.b16 %v3107
  %v3212 = vunpack.c.l.b16 %v3108
  %v3213 = vunpack.c.h.b16 %v3108
  %v3214 = vunpack.c.l.b16 %v3109
  %v3215 = vunpack.c.h.b16 %v3109
  %v3216 = vunpack.c.l.b16 %v3110
  %v3217 = vunpack.c.h.b16 %v3110
  %v3218 = vunpack.c.l.b16 %v3111
  %v3219 = vunpack.c.h.b16 %v3111
  %v3220 = vunpack.c.l.b16 %v3112
  %v3221 = vunpack.c.h.b16 %v3112
  %v3222 = vunpack.c.l.b16 %v3113
  %v3223 = vunpack.c.h.b16 %v3113
  %v3224 = vunpack.c.l.b16 %v3114
  %v3225 = vunpack.c.h.b16 %v3114
  %v3226 = vunpack.c.l.b16 %v3115
  %v3227 = vunpack.c.h.b16 %v3115
  %v3228 = vunpack.c.l.b16 %v3116
  %v3229 = vunpack.c.h.b16 %v3116
  %v3230 = vunpack.c.l.b16 %v3117
  %v3231 = vunpack.c.h.b16 %v3117
  %v3232 = vunpack.c.l.b16 %v3118
  %v3233 = vunpack.c.h.b16 %v3118
  %v3234 = vunpack.c.l.b16 %v3119
  %v3235 = vunpack.c.h.b16 %v3119
  %v3236 = vunpack.c.l.b16 %v3120
  %v3237 = vunpack.c.h.b16 %v3120
  %v3238 = vpack.c.b16 %v3176, %v3174
  %v3239 = vpack.c.b16 %v3177, %v3175
  %v3240 = vpack.c.b16 %v3180, %v3178
  %v3241 = vpack.c.b16 %v3181, %v3179
  %v3242 = vpack.c.b16 %v3184, %v3182
  %v3243 = vpack.c.b16 %v3185, %v3183
  %v3244 = vpack.c.b16 %v3188, %v3186
  %v3245 = vpack.c.b16 %v3189, %v3187
  %v3246 = vpack.c.b16 %v3192, %v3190
  %v3247 = vpack.c.b16 %v3193, %v3191
  %v3248 = vpack.c.b16 %v3196, %v3194
  %v3249 = vpack.c.b16 %v3197, %v3195
  %v3250 = vpack.c.b16 %v3200, %v3198
  %v3251 = vpack.c.b16 %v3201, %v3199
  %v3252 = vpack.c.b16 %v3204, %v3202
  %v3253 = vpack.c.b16 %v3205, %v3203
  %v3254 = vpack.c.b16 %v3208, %v3206
  %v3255 = vpack.c.b16 %v3209, %v3207
  %v3256 = vpack.c.b16 %v3212, %v3210
  %v3257 = vpack.c.b16 %v3213, %v3211
  %v3258 = vpack.c.b16 %v3216, %v3214
  %v3259 = vpack.c.b16 %v3217, %v3215
  %v3260 = vpack.c.b16 %v3220, %v3218
  %v3261 = vpack.c.b16 %v3221, %v3219
  %v3262 = vpack.c.b16 %v3224, %v3222
  %v3263 = vpack.c.b16 %v3225, %v3223
  %v3264 = vpack.c.b16 %v3228, %v3226
  %v3265 = vpack.c.b16 %v3229, %v3227
  %v3266 = vpack.c.b16 %v3232, %v3230
  %v3267 = vpack.c.b16 %v3233, %v3231
  %v3268 = vpack.c.b16 %v3236, %v3234
  %v3269 = vpack.c.b16 %v3237, %v3235
  %3302 = vmatpush.bf16.msra.mxu0 %v3252
  %3303 = vmatpush.bf16.msra.mxu0 %v3250
  %3304 = vmatpush.bf16.msra.mxu0 %v3248
  %3305 = vmatpush.bf16.msra.mxu0 %v3246
  %3306 = vmatpush.bf16.msra.mxu0 %v3244
  %3307 = vmatpush.bf16.msra.mxu0 %v3242
  %3308 = vmatpush.bf16.msra.mxu0 %v3240
  %3309 = vmatpush.bf16.msra.mxu0 %v3238
  %3310 = vmatmul.bf16.gmra.mxu0 %v3130
  %v3311 = vpop.f32.mrf.mxu0
  %v3312 = vadd.f32 0.0, %v3311
  %v3313 = vpop.f32.mrf.mxu0
  %v3314 = vadd.f32 0.0, %v3313
  %3315 = vmatmul.bf16.gmra.mxu0 %v3135
  %v3316 = vpop.f32.mrf.mxu0
  %v3317 = vadd.f32 0.0, %v3316
  %v3318 = vpop.f32.mrf.mxu0
  %v3319 = vadd.f32 0.0, %v3318
  %3320 = vdwg.mxu0
  %3321 = vmatpush.bf16.msra.mxu0 %v3268
  %3322 = vmatpush.bf16.msra.mxu0 %v3266
  %3323 = vmatpush.bf16.msra.mxu0 %v3264
  %3324 = vmatpush.bf16.msra.mxu0 %v3262
  %3325 = vmatpush.bf16.msra.mxu0 %v3260
  %3326 = vmatpush.bf16.msra.mxu0 %v3258
  %3327 = vmatpush.bf16.msra.mxu0 %v3256
  %3328 = vmatpush.bf16.msra.mxu0 %v3254
  %3329 = vmatmul.bf16.gmra.mxu0 %v3133
  %v3330 = vpop.f32.mrf.mxu0
  %v3331 = vadd.f32 %v3312, %v3330
  %v3332 = vpop.f32.mrf.mxu0
  %v3333 = vadd.f32 %v3314, %v3332
  %3334 = vmatmul.bf16.gmra.mxu0 %v3137
  %v3335 = vpop.f32.mrf.mxu0
  %v3336 = vadd.f32 %v3317, %v3335
  %v3337 = vpop.f32.mrf.mxu0
  %v3338 = vadd.f32 %v3319, %v3337
  %3339 = vdwg.mxu0
  %3340 = vmatpush.bf16.msra.mxu0 %v3253
  %3341 = vmatpush.bf16.msra.mxu0 %v3251
  %3342 = vmatpush.bf16.msra.mxu0 %v3249
  %3343 = vmatpush.bf16.msra.mxu0 %v3247
  %3344 = vmatpush.bf16.msra.mxu0 %v3245
  %3345 = vmatpush.bf16.msra.mxu0 %v3243
  %3346 = vmatpush.bf16.msra.mxu0 %v3241
  %3347 = vmatpush.bf16.msra.mxu0 %v3239
  %3348 = vmatmul.bf16.gmra.mxu0 %v3130
  %v3349 = vpop.f32.mrf.mxu0
  %v3350 = vadd.f32 0.0, %v3349
  %v3351 = vpop.f32.mrf.mxu0
  %v3352 = vadd.f32 0.0, %v3351
  %3353 = vmatmul.bf16.gmra.mxu0 %v3135
  %v3354 = vpop.f32.mrf.mxu0
  %v3355 = vadd.f32 0.0, %v3354
  %v3356 = vpop.f32.mrf.mxu0
  %v3357 = vadd.f32 0.0, %v3356
  %3358 = vdwg.mxu0
  %3359 = vmatpush.bf16.msra.mxu0 %v3269
  %3360 = vmatpush.bf16.msra.mxu0 %v3267
  %3361 = vmatpush.bf16.msra.mxu0 %v3265
  %3362 = vmatpush.bf16.msra.mxu0 %v3263
  %3363 = vmatpush.bf16.msra.mxu0 %v3261
  %3364 = vmatpush.bf16.msra.mxu0 %v3259
  %3365 = vmatpush.bf16.msra.mxu0 %v3257
  %3366 = vmatpush.bf16.msra.mxu0 %v3255
  %3367 = vmatmul.bf16.gmra.mxu0 %v3133
  %v3368 = vpop.f32.mrf.mxu0
  %v3369 = vadd.f32 %v3350, %v3368
  %v3370 = vpop.f32.mrf.mxu0
  %v3371 = vadd.f32 %v3352, %v3370
  %3372 = vmatmul.bf16.gmra.mxu0 %v3137
  %v3373 = vpop.f32.mrf.mxu0
  %v3374 = vadd.f32 %v3355, %v3373
  %v3375 = vpop.f32.mrf.mxu0
  %v3376 = vadd.f32 %v3357, %v3375
  %3377 = vdwg.mxu0
  %v3378 = vadd.f32 %v3020, %v3331
  %v3379 = vadd.f32 %v3021, %v3369
  %v3380 = vadd.f32 %v3022, %v3333
  %v3381 = vadd.f32 %v3023, %v3371
  %v3382 = vadd.f32 %v3024, %v3336
  %v3383 = vadd.f32 %v3025, %v3374
  %v3384 = vadd.f32 %v3026, %v3338
  %v3385 = vadd.f32 %v3027, %v3376
  %v3386 = vld [vmem:[#allocation2] sm:$0xe0]
  %v3387 = vld [vmem:[#allocation2 + $0x8] sm:$0xe0]
  %v3388 = vld [vmem:[#allocation2 + $0x40] sm:$0x1f]
  %v3389 = vld [vmem:[#allocation2 + $0x48] sm:$0x1f]
  %v3390 = vadd.s32 %v2582, 1
  %v3391 = vadd.s32 %v2583, 1
  %v3392 = vadd.s32 %v2584, 1
  %v3393 = vadd.s32 %v2585, 1
  %vm3394 = vcmp.ge.s32.totalorder %v3390, 0
  %vm3395 = vcmp.ge.s32.totalorder %v3391, 0
  %vm3396 = vcmp.ge.s32.totalorder %v3392, 0
  %vm3397 = vcmp.ge.s32.totalorder %v3393, 0
  %vm3398 = vmand %vm2630, %vm3394
  %vm3399 = vmand %vm2631, %vm3395
  %vm3400 = vmand %vm2632, %vm3396
  %vm3401 = vmand %vm2633, %vm3397
  %vm3402 = vcmp.lt.s32.totalorder %v3390, 4
  %vm3403 = vcmp.lt.s32.totalorder %v3391, 4
  %vm3404 = vcmp.lt.s32.totalorder %v3392, 4
  %vm3405 = vcmp.lt.s32.totalorder %v3393, 4
  %vm3406 = vmand %vm3398, %vm3402
  %vm3407 = vmand %vm3399, %vm3403
  %vm3408 = vmand %vm3400, %vm3404
  %vm3409 = vmand %vm3401, %vm3405
  %v3410 = vsel %vm3406, 1, 0
  %v3411 = vsel %vm3407, 1, 0
  %v3412 = vsel %vm3408, 1, 0
  %v3413 = vsel %vm3409, 1, 0
  %v3414 = vcvt.s32.f32 %v3410
  %v3415 = vcvt.s32.f32 %v3411
  %v3416 = vcvt.s32.f32 %v3412
  %v3417 = vcvt.s32.f32 %v3413
  %vm3422 = vcmask 1044480
  %v3423 = vrot.slane %v3414, 3
  %v3424 = vrot.slane %v3415, 3
  %v3425 = vsel %vm3422, %v3423, %v3424
  %v3426 = vrot.slane %v3416, 3
  %v3427 = vsel %vm3422, %v3424, %v3426
  %v3428 = vrot.slane %v3417, 3
  %v3429 = vsel %vm3422, %v3426, %v3428
  %v3435 = vmul.f32 %v3386, %v3423
  %v3436 = vmul.f32 %v3387, %v3423
  %v3437 = vmul.f32 %v2610, %v3425
  %v3438 = vmul.f32 %v2611, %v3425
  %v3439 = vmul.f32 %v2612, %v3427
  %v3440 = vmul.f32 %v2613, %v3427
  %v3441 = vmul.f32 %v2614, %v3429
  %v3442 = vmul.f32 %v2615, %v3429
  %v3443 = vmul.f32 %v3388, %v3428
  %v3444 = vmul.f32 %v3389, %v3428
  %v3445 = vpack.c.bf16 %v3437, %v3435
  %v3446 = vpack.c.bf16 %v3438, %v3436
  %v3447 = vpack.c.bf16 %v3441, %v3439
  %v3448 = vpack.c.bf16 %v3442, %v3440
  %v3449 = vpack.c.bf16 %v3443, %v3443
  %v3450 = vpack.c.bf16 %v3444, %v3444
  %v3451 = vld [vmem:[%s3 + $0x200] sm:$0xff]
  %v3452 = vld [vmem:[%s3 + $0x208] sm:$0xff]
  %v3453 = vld [vmem:[%s3 + $0x210] sm:$0xff]
  %v3454 = vld [vmem:[%s3 + $0x218] sm:$0xff]
  %v3455 = vld [vmem:[%s3 + $0x220] sm:$0xff]
  %v3456 = vld [vmem:[%s3 + $0x228] sm:$0xff]
  %v3457 = vld [vmem:[%s3 + $0x230] sm:$0xff]
  %v3458 = vld [vmem:[%s3 + $0x238] sm:$0xff]
  %v3459 = vld [vmem:[%s3 + $0x240] sm:$0xff]
  %v3460 = vld [vmem:[%s3 + $0x248] sm:$0xff]
  %v3461 = vld [vmem:[%s3 + $0x250] sm:$0xff]
  %v3462 = vld [vmem:[%s3 + $0x258] sm:$0xff]
  %v3463 = vld [vmem:[%s3 + $0x260] sm:$0xff]
  %v3464 = vld [vmem:[%s3 + $0x268] sm:$0xff]
  %v3465 = vld [vmem:[%s3 + $0x270] sm:$0xff]
  %v3466 = vld [vmem:[%s3 + $0x278] sm:$0xff]
  %v3467 = vld [vmem:[%s3 + $0x280] sm:$0xff]
  %v3468 = vld [vmem:[%s3 + $0x288] sm:$0xff]
  %v3469 = vld [vmem:[%s3 + $0x290] sm:$0xff]
  %v3470 = vld [vmem:[%s3 + $0x298] sm:$0xff]
  %v3471 = vld [vmem:[%s3 + $0x2a0] sm:$0xff]
  %v3472 = vld [vmem:[%s3 + $0x2a8] sm:$0xff]
  %v3473 = vld [vmem:[%s3 + $0x2b0] sm:$0xff]
  %v3474 = vld [vmem:[%s3 + $0x2b8] sm:$0xff]
  %v3475 = vld [vmem:[%s3 + $0x2c0] sm:$0xff]
  %v3476 = vld [vmem:[%s3 + $0x2c8] sm:$0xff]
  %v3477 = vld [vmem:[%s3 + $0x2d0] sm:$0xff]
  %v3478 = vld [vmem:[%s3 + $0x2d8] sm:$0xff]
  %v3479 = vld [vmem:[%s3 + $0x2e0] sm:$0xff]
  %v3480 = vld [vmem:[%s3 + $0x2e8] sm:$0xff]
  %v3481 = vld [vmem:[%s3 + $0x2f0] sm:$0xff]
  %v3482 = vld [vmem:[%s3 + $0x2f8] sm:$0xff]
  %vm3483 = vsmask.f32 5376
  %v3485 = vshrl.u32 %v3445, 16
  %v3487 = vrot.slane %v3485, 2
  %v3488 = vshll.u32 %v3445, 16
  %v3490 = vrot.slane %v3488, 3
  %v3491 = vor.u32 %v3487, %v3490
  %v3493 = vshrl.u32 %v3447, 16
  %v3495 = vrot.slane %v3493, 2
  %v3496 = vshll.u32 %v3447, 16
  %v3498 = vrot.slane %v3496, 3
  %v3499 = vor.u32 %v3495, %v3498
  %v3500 = vsel %vm3483, %v3491, %v3499
  %v3502 = vshrl.u32 %v3446, 16
  %v3504 = vrot.slane %v3502, 2
  %v3505 = vshll.u32 %v3446, 16
  %v3507 = vrot.slane %v3505, 3
  %v3508 = vor.u32 %v3504, %v3507
  %v3510 = vshrl.u32 %v3448, 16
  %v3512 = vrot.slane %v3510, 2
  %v3513 = vshll.u32 %v3448, 16
  %v3515 = vrot.slane %v3513, 3
  %v3516 = vor.u32 %v3512, %v3515
  %v3517 = vsel %vm3483, %v3508, %v3516
  %v3519 = vshrl.u32 %v3449, 16
  %v3521 = vrot.slane %v3519, 2
  %v3522 = vshll.u32 %v3449, 16
  %v3524 = vrot.slane %v3522, 3
  %v3525 = vor.u32 %v3521, %v3524
  %v3526 = vsel %vm3483, %v3499, %v3525
  %v3528 = vshrl.u32 %v3450, 16
  %v3530 = vrot.slane %v3528, 2
  %v3531 = vshll.u32 %v3450, 16
  %v3533 = vrot.slane %v3531, 3
  %v3534 = vor.u32 %v3530, %v3533
  %v3535 = vsel %vm3483, %v3516, %v3534
  %v3572 = vunpack.c.l.b16 %v3451
  %v3573 = vunpack.c.h.b16 %v3451
  %v3574 = vunpack.c.l.b16 %v3452
  %v3575 = vunpack.c.h.b16 %v3452
  %v3576 = vunpack.c.l.b16 %v3453
  %v3577 = vunpack.c.h.b16 %v3453
  %v3578 = vunpack.c.l.b16 %v3454
  %v3579 = vunpack.c.h.b16 %v3454
  %v3580 = vunpack.c.l.b16 %v3455
  %v3581 = vunpack.c.h.b16 %v3455
  %v3582 = vunpack.c.l.b16 %v3456
  %v3583 = vunpack.c.h.b16 %v3456
  %v3584 = vunpack.c.l.b16 %v3457
  %v3585 = vunpack.c.h.b16 %v3457
  %v3586 = vunpack.c.l.b16 %v3458
  %v3587 = vunpack.c.h.b16 %v3458
  %v3588 = vunpack.c.l.b16 %v3459
  %v3589 = vunpack.c.h.b16 %v3459
  %v3590 = vunpack.c.l.b16 %v3460
  %v3591 = vunpack.c.h.b16 %v3460
  %v3592 = vunpack.c.l.b16 %v3461
  %v3593 = vunpack.c.h.b16 %v3461
  %v3594 = vunpack.c.l.b16 %v3462
  %v3595 = vunpack.c.h.b16 %v3462
  %v3596 = vunpack.c.l.b16 %v3463
  %v3597 = vunpack.c.h.b16 %v3463
  %v3598 = vunpack.c.l.b16 %v3464
  %v3599 = vunpack.c.h.b16 %v3464
  %v3600 = vunpack.c.l.b16 %v3465
  %v3601 = vunpack.c.h.b16 %v3465
  %v3602 = vunpack.c.l.b16 %v3466
  %v3603 = vunpack.c.h.b16 %v3466
  %v3604 = vunpack.c.l.b16 %v3467
  %v3605 = vunpack.c.h.b16 %v3467
  %v3606 = vunpack.c.l.b16 %v3468
  %v3607 = vunpack.c.h.b16 %v3468
  %v3608 = vunpack.c.l.b16 %v3469
  %v3609 = vunpack.c.h.b16 %v3469
  %v3610 = vunpack.c.l.b16 %v3470
  %v3611 = vunpack.c.h.b16 %v3470
  %v3612 = vunpack.c.l.b16 %v3471
  %v3613 = vunpack.c.h.b16 %v3471
  %v3614 = vunpack.c.l.b16 %v3472
  %v3615 = vunpack.c.h.b16 %v3472
  %v3616 = vunpack.c.l.b16 %v3473
  %v3617 = vunpack.c.h.b16 %v3473
  %v3618 = vunpack.c.l.b16 %v3474
  %v3619 = vunpack.c.h.b16 %v3474
  %v3620 = vunpack.c.l.b16 %v3475
  %v3621 = vunpack.c.h.b16 %v3475
  %v3622 = vunpack.c.l.b16 %v3476
  %v3623 = vunpack.c.h.b16 %v3476
  %v3624 = vunpack.c.l.b16 %v3477
  %v3625 = vunpack.c.h.b16 %v3477
  %v3626 = vunpack.c.l.b16 %v3478
  %v3627 = vunpack.c.h.b16 %v3478
  %v3628 = vunpack.c.l.b16 %v3479
  %v3629 = vunpack.c.h.b16 %v3479
  %v3630 = vunpack.c.l.b16 %v3480
  %v3631 = vunpack.c.h.b16 %v3480
  %v3632 = vunpack.c.l.b16 %v3481
  %v3633 = vunpack.c.h.b16 %v3481
  %v3634 = vunpack.c.l.b16 %v3482
  %v3635 = vunpack.c.h.b16 %v3482
  %v3636 = vpack.c.b16 %v3574, %v3572
  %v3637 = vpack.c.b16 %v3575, %v3573
  %v3638 = vpack.c.b16 %v3578, %v3576
  %v3639 = vpack.c.b16 %v3579, %v3577
  %v3640 = vpack.c.b16 %v3582, %v3580
  %v3641 = vpack.c.b16 %v3583, %v3581
  %v3642 = vpack.c.b16 %v3586, %v3584
  %v3643 = vpack.c.b16 %v3587, %v3585
  %v3644 = vpack.c.b16 %v3590, %v3588
  %v3645 = vpack.c.b16 %v3591, %v3589
  %v3646 = vpack.c.b16 %v3594, %v3592
  %v3647 = vpack.c.b16 %v3595, %v3593
  %v3648 = vpack.c.b16 %v3598, %v3596
  %v3649 = vpack.c.b16 %v3599, %v3597
  %v3650 = vpack.c.b16 %v3602, %v3600
  %v3651 = vpack.c.b16 %v3603, %v3601
  %v3652 = vpack.c.b16 %v3606, %v3604
  %v3653 = vpack.c.b16 %v3607, %v3605
  %v3654 = vpack.c.b16 %v3610, %v3608
  %v3655 = vpack.c.b16 %v3611, %v3609
  %v3656 = vpack.c.b16 %v3614, %v3612
  %v3657 = vpack.c.b16 %v3615, %v3613
  %v3658 = vpack.c.b16 %v3618, %v3616
  %v3659 = vpack.c.b16 %v3619, %v3617
  %v3660 = vpack.c.b16 %v3622, %v3620
  %v3661 = vpack.c.b16 %v3623, %v3621
  %v3662 = vpack.c.b16 %v3626, %v3624
  %v3663 = vpack.c.b16 %v3627, %v3625
  %v3664 = vpack.c.b16 %v3630, %v3628
  %v3665 = vpack.c.b16 %v3631, %v3629
  %v3666 = vpack.c.b16 %v3634, %v3632
  %v3667 = vpack.c.b16 %v3635, %v3633
  %3700 = vmatpush.bf16.msra.mxu0 %v3650
  %3701 = vmatpush.bf16.msra.mxu0 %v3648
  %3702 = vmatpush.bf16.msra.mxu0 %v3646
  %3703 = vmatpush.bf16.msra.mxu0 %v3644
  %3704 = vmatpush.bf16.msra.mxu0 %v3642
  %3705 = vmatpush.bf16.msra.mxu0 %v3640
  %3706 = vmatpush.bf16.msra.mxu0 %v3638
  %3707 = vmatpush.bf16.msra.mxu0 %v3636
  %3708 = vmatmul.bf16.gmra.mxu0 %v3500
  %v3709 = vpop.f32.mrf.mxu0
  %v3710 = vadd.f32 0.0, %v3709
  %v3711 = vpop.f32.mrf.mxu0
  %v3712 = vadd.f32 0.0, %v3711
  %3713 = vmatmul.bf16.gmra.mxu0 %v3526
  %v3714 = vpop.f32.mrf.mxu0
  %v3715 = vadd.f32 0.0, %v3714
  %v3716 = vpop.f32.mrf.mxu0
  %v3717 = vadd.f32 0.0, %v3716
  %3718 = vdwg.mxu0
  %3719 = vmatpush.bf16.msra.mxu0 %v3666
  %3720 = vmatpush.bf16.msra.mxu0 %v3664
  %3721 = vmatpush.bf16.msra.mxu0 %v3662
  %3722 = vmatpush.bf16.msra.mxu0 %v3660
  %3723 = vmatpush.bf16.msra.mxu0 %v3658
  %3724 = vmatpush.bf16.msra.mxu0 %v3656
  %3725 = vmatpush.bf16.msra.mxu0 %v3654
  %3726 = vmatpush.bf16.msra.mxu0 %v3652
  %3727 = vmatmul.bf16.gmra.mxu0 %v3517
  %v3728 = vpop.f32.mrf.mxu0
  %v3729 = vadd.f32 %v3710, %v3728
  %v3730 = vpop.f32.mrf.mxu0
  %v3731 = vadd.f32 %v3712, %v3730
  %3732 = vmatmul.bf16.gmra.mxu0 %v3535
  %v3733 = vpop.f32.mrf.mxu0
  %v3734 = vadd.f32 %v3715, %v3733
  %v3735 = vpop.f32.mrf.mxu0
  %v3736 = vadd.f32 %v3717, %v3735
  %3737 = vdwg.mxu0
  %3738 = vmatpush.bf16.msra.mxu0 %v3651
  %3739 = vmatpush.bf16.msra.mxu0 %v3649
  %3740 = vmatpush.bf16.msra.mxu0 %v3647
  %3741 = vmatpush.bf16.msra.mxu0 %v3645
  %3742 = vmatpush.bf16.msra.mxu0 %v3643
  %3743 = vmatpush.bf16.msra.mxu0 %v3641
  %3744 = vmatpush.bf16.msra.mxu0 %v3639
  %3745 = vmatpush.bf16.msra.mxu0 %v3637
  %3746 = vmatmul.bf16.gmra.mxu0 %v3500
  %v3747 = vpop.f32.mrf.mxu0
  %v3748 = vadd.f32 0.0, %v3747
  %v3749 = vpop.f32.mrf.mxu0
  %v3750 = vadd.f32 0.0, %v3749
  %3751 = vmatmul.bf16.gmra.mxu0 %v3526
  %v3752 = vpop.f32.mrf.mxu0
  %v3753 = vadd.f32 0.0, %v3752
  %v3754 = vpop.f32.mrf.mxu0
  %v3755 = vadd.f32 0.0, %v3754
  %3756 = vdwg.mxu0
  %3757 = vmatpush.bf16.msra.mxu0 %v3667
  %3758 = vmatpush.bf16.msra.mxu0 %v3665
  %3759 = vmatpush.bf16.msra.mxu0 %v3663
  %3760 = vmatpush.bf16.msra.mxu0 %v3661
  %3761 = vmatpush.bf16.msra.mxu0 %v3659
  %3762 = vmatpush.bf16.msra.mxu0 %v3657
  %3763 = vmatpush.bf16.msra.mxu0 %v3655
  %3764 = vmatpush.bf16.msra.mxu0 %v3653
  %3765 = vmatmul.bf16.gmra.mxu0 %v3517
  %v3766 = vpop.f32.mrf.mxu0
  %v3767 = vadd.f32 %v3748, %v3766
  %v3768 = vpop.f32.mrf.mxu0
  %v3769 = vadd.f32 %v3750, %v3768
  %3770 = vmatmul.bf16.gmra.mxu0 %v3535
  %v3771 = vpop.f32.mrf.mxu0
  %v3772 = vadd.f32 %v3753, %v3771
  %v3773 = vpop.f32.mrf.mxu0
  %v3774 = vadd.f32 %v3755, %v3773
  %3775 = vdwg.mxu0
  %v3776 = vadd.f32 %v3378, %v3729
  %v3777 = vadd.f32 %v3379, %v3767
  %v3778 = vadd.f32 %v3380, %v3731
  %v3779 = vadd.f32 %v3381, %v3769
  %v3780 = vadd.f32 %v3382, %v3734
  %v3781 = vadd.f32 %v3383, %v3772
  %v3782 = vadd.f32 %v3384, %v3736
  %v3783 = vadd.f32 %v3385, %v3774
  %v3784 = vld [vmem:[#allocation2] sm:$0x80]
  %v3785 = vld [vmem:[#allocation2 + $0x8] sm:$0x80]
  %v3786 = vld [vmem:[#allocation2 + $0x40] sm:$0x7f]
  %v3787 = vld [vmem:[#allocation2 + $0x48] sm:$0x7f]
  %vm3788 = vcmp.ge.s32.totalorder %v2590, 0
  %vm3789 = vcmp.ge.s32.totalorder %v2591, 0
  %vm3790 = vcmp.ge.s32.totalorder %v2592, 0
  %vm3791 = vcmp.ge.s32.totalorder %v2593, 0
  %vm3792 = vcmp.lt.s32.totalorder %v2590, 4
  %vm3793 = vcmp.lt.s32.totalorder %v2591, 4
  %vm3794 = vcmp.lt.s32.totalorder %v2592, 4
  %vm3795 = vcmp.lt.s32.totalorder %v2593, 4
  %vm3796 = vmand %vm3788, %vm3792
  %vm3797 = vmand %vm3789, %vm3793
  %vm3798 = vmand %vm3790, %vm3794
  %vm3799 = vmand %vm3791, %vm3795
  %vm3800 = vmand %vm3796, %vm2638
  %vm3801 = vmand %vm3797, %vm2639
  %vm3802 = vmand %vm3798, %vm2640
  %vm3803 = vmand %vm3799, %vm2641
  %vm3804 = vmand %vm3800, %vm2646
  %vm3805 = vmand %vm3801, %vm2647
  %vm3806 = vmand %vm3802, %vm2648
  %vm3807 = vmand %vm3803, %vm2649
  %v3808 = vsel %vm3804, 1, 0
  %v3809 = vsel %vm3805, 1, 0
  %v3810 = vsel %vm3806, 1, 0
  %v3811 = vsel %vm3807, 1, 0
  %v3812 = vcvt.s32.f32 %v3808
  %v3813 = vcvt.s32.f32 %v3809
  %v3814 = vcvt.s32.f32 %v3810
  %v3815 = vcvt.s32.f32 %v3811
  %vm3820 = vcmask 1046528
  %v3821 = vrot.slane %v3812, 1
  %v3822 = vrot.slane %v3813, 1
  %v3823 = vsel %vm3820, %v3821, %v3822
  %v3824 = vrot.slane %v3814, 1
  %v3825 = vsel %vm3820, %v3822, %v3824
  %v3826 = vrot.slane %v3815, 1
  %v3827 = vsel %vm3820, %v3824, %v3826
  %v3833 = vmul.f32 %v3784, %v3821
  %v3834 = vmul.f32 %v3785, %v3821
  %v3835 = vmul.f32 %v2610, %v3823
  %v3836 = vmul.f32 %v2611, %v3823
  %v3837 = vmul.f32 %v2612, %v3825
  %v3838 = vmul.f32 %v2613, %v3825
  %v3839 = vmul.f32 %v2614, %v3827
  %v3840 = vmul.f32 %v2615, %v3827
  %v3841 = vmul.f32 %v3786, %v3826
  %v3842 = vmul.f32 %v3787, %v3826
  %v3843 = vpack.c.bf16 %v3835, %v3833
  %v3844 = vpack.c.bf16 %v3836, %v3834
  %v3845 = vpack.c.bf16 %v3839, %v3837
  %v3846 = vpack.c.bf16 %v3840, %v3838
  %v3847 = vpack.c.bf16 %v3841, %v3841
  %v3848 = vpack.c.bf16 %v3842, %v3842
  %v3849 = vld [vmem:[%s3 + $0x300] sm:$0xff]
  %v3850 = vld [vmem:[%s3 + $0x308] sm:$0xff]
  %v3851 = vld [vmem:[%s3 + $0x310] sm:$0xff]
  %v3852 = vld [vmem:[%s3 + $0x318] sm:$0xff]
  %v3853 = vld [vmem:[%s3 + $0x320] sm:$0xff]
  %v3854 = vld [vmem:[%s3 + $0x328] sm:$0xff]
  %v3855 = vld [vmem:[%s3 + $0x330] sm:$0xff]
  %v3856 = vld [vmem:[%s3 + $0x338] sm:$0xff]
  %v3857 = vld [vmem:[%s3 + $0x340] sm:$0xff]
  %v3858 = vld [vmem:[%s3 + $0x348] sm:$0xff]
  %v3859 = vld [vmem:[%s3 + $0x350] sm:$0xff]
  %v3860 = vld [vmem:[%s3 + $0x358] sm:$0xff]
  %v3861 = vld [vmem:[%s3 + $0x360] sm:$0xff]
  %v3862 = vld [vmem:[%s3 + $0x368] sm:$0xff]
  %v3863 = vld [vmem:[%s3 + $0x370] sm:$0xff]
  %v3864 = vld [vmem:[%s3 + $0x378] sm:$0xff]
  %v3865 = vld [vmem:[%s3 + $0x380] sm:$0xff]
  %v3866 = vld [vmem:[%s3 + $0x388] sm:$0xff]
  %v3867 = vld [vmem:[%s3 + $0x390] sm:$0xff]
  %v3868 = vld [vmem:[%s3 + $0x398] sm:$0xff]
  %v3869 = vld [vmem:[%s3 + $0x3a0] sm:$0xff]
  %v3870 = vld [vmem:[%s3 + $0x3a8] sm:$0xff]
  %v3871 = vld [vmem:[%s3 + $0x3b0] sm:$0xff]
  %v3872 = vld [vmem:[%s3 + $0x3b8] sm:$0xff]
  %v3873 = vld [vmem:[%s3 + $0x3c0] sm:$0xff]
  %v3874 = vld [vmem:[%s3 + $0x3c8] sm:$0xff]
  %v3875 = vld [vmem:[%s3 + $0x3d0] sm:$0xff]
  %v3876 = vld [vmem:[%s3 + $0x3d8] sm:$0xff]
  %v3877 = vld [vmem:[%s3 + $0x3e0] sm:$0xff]
  %v3878 = vld [vmem:[%s3 + $0x3e8] sm:$0xff]
  %v3879 = vld [vmem:[%s3 + $0x3f0] sm:$0xff]
  %v3880 = vld [vmem:[%s3 + $0x3f8] sm:$0xff]
  %vm3881 = vsmask.f32 4352
  %v3883 = vshrl.u32 %v3843, 16
  %v3885 = vrot.slane %v3883, 3
  %v3886 = vshll.u32 %v3843, 16
  %v3888 = vrot.slane %v3886, 4
  %v3889 = vor.u32 %v3885, %v3888
  %v3891 = vshrl.u32 %v3845, 16
  %v3893 = vrot.slane %v3891, 3
  %v3894 = vshll.u32 %v3845, 16
  %v3896 = vrot.slane %v3894, 4
  %v3897 = vor.u32 %v3893, %v3896
  %v3898 = vsel %vm3881, %v3889, %v3897
  %v3900 = vshrl.u32 %v3844, 16
  %v3902 = vrot.slane %v3900, 3
  %v3903 = vshll.u32 %v3844, 16
  %v3905 = vrot.slane %v3903, 4
  %v3906 = vor.u32 %v3902, %v3905
  %v3908 = vshrl.u32 %v3846, 16
  %v3910 = vrot.slane %v3908, 3
  %v3911 = vshll.u32 %v3846, 16
  %v3913 = vrot.slane %v3911, 4
  %v3914 = vor.u32 %v3910, %v3913
  %v3915 = vsel %vm3881, %v3906, %v3914
  %v3917 = vshrl.u32 %v3847, 16
  %v3919 = vrot.slane %v3917, 3
  %v3920 = vshll.u32 %v3847, 16
  %v3922 = vrot.slane %v3920, 4
  %v3923 = vor.u32 %v3919, %v3922
  %v3924 = vsel %vm3881, %v3897, %v3923
  %v3926 = vshrl.u32 %v3848, 16
  %v3928 = vrot.slane %v3926, 3
  %v3929 = vshll.u32 %v3848, 16
  %v3931 = vrot.slane %v3929, 4
  %v3932 = vor.u32 %v3928, %v3931
  %v3933 = vsel %vm3881, %v3914, %v3932
  %v3970 = vunpack.c.l.b16 %v3849
  %v3971 = vunpack.c.h.b16 %v3849
  %v3972 = vunpack.c.l.b16 %v3850
  %v3973 = vunpack.c.h.b16 %v3850
  %v3974 = vunpack.c.l.b16 %v3851
  %v3975 = vunpack.c.h.b16 %v3851
  %v3976 = vunpack.c.l.b16 %v3852
  %v3977 = vunpack.c.h.b16 %v3852
  %v3978 = vunpack.c.l.b16 %v3853
  %v3979 = vunpack.c.h.b16 %v3853
  %v3980 = vunpack.c.l.b16 %v3854
  %v3981 = vunpack.c.h.b16 %v3854
  %v3982 = vunpack.c.l.b16 %v3855
  %v3983 = vunpack.c.h.b16 %v3855
  %v3984 = vunpack.c.l.b16 %v3856
  %v3985 = vunpack.c.h.b16 %v3856
  %v3986 = vunpack.c.l.b16 %v3857
  %v3987 = vunpack.c.h.b16 %v3857
  %v3988 = vunpack.c.l.b16 %v3858
  %v3989 = vunpack.c.h.b16 %v3858
  %v3990 = vunpack.c.l.b16 %v3859
  %v3991 = vunpack.c.h.b16 %v3859
  %v3992 = vunpack.c.l.b16 %v3860
  %v3993 = vunpack.c.h.b16 %v3860
  %v3994 = vunpack.c.l.b16 %v3861
  %v3995 = vunpack.c.h.b16 %v3861
  %v3996 = vunpack.c.l.b16 %v3862
  %v3997 = vunpack.c.h.b16 %v3862
  %v3998 = vunpack.c.l.b16 %v3863
  %v3999 = vunpack.c.h.b16 %v3863
  %v4000 = vunpack.c.l.b16 %v3864
  %v4001 = vunpack.c.h.b16 %v3864
  %v4002 = vunpack.c.l.b16 %v3865
  %v4003 = vunpack.c.h.b16 %v3865
  %v4004 = vunpack.c.l.b16 %v3866
  %v4005 = vunpack.c.h.b16 %v3866
  %v4006 = vunpack.c.l.b16 %v3867
  %v4007 = vunpack.c.h.b16 %v3867
  %v4008 = vunpack.c.l.b16 %v3868
  %v4009 = vunpack.c.h.b16 %v3868
  %v4010 = vunpack.c.l.b16 %v3869
  %v4011 = vunpack.c.h.b16 %v3869
  %v4012 = vunpack.c.l.b16 %v3870
  %v4013 = vunpack.c.h.b16 %v3870
  %v4014 = vunpack.c.l.b16 %v3871
  %v4015 = vunpack.c.h.b16 %v3871
  %v4016 = vunpack.c.l.b16 %v3872
  %v4017 = vunpack.c.h.b16 %v3872
  %v4018 = vunpack.c.l.b16 %v3873
  %v4019 = vunpack.c.h.b16 %v3873
  %v4020 = vunpack.c.l.b16 %v3874
  %v4021 = vunpack.c.h.b16 %v3874
  %v4022 = vunpack.c.l.b16 %v3875
  %v4023 = vunpack.c.h.b16 %v3875
  %v4024 = vunpack.c.l.b16 %v3876
  %v4025 = vunpack.c.h.b16 %v3876
  %v4026 = vunpack.c.l.b16 %v3877
  %v4027 = vunpack.c.h.b16 %v3877
  %v4028 = vunpack.c.l.b16 %v3878
  %v4029 = vunpack.c.h.b16 %v3878
  %v4030 = vunpack.c.l.b16 %v3879
  %v4031 = vunpack.c.h.b16 %v3879
  %v4032 = vunpack.c.l.b16 %v3880
  %v4033 = vunpack.c.h.b16 %v3880
  %v4034 = vpack.c.b16 %v3972, %v3970
  %v4035 = vpack.c.b16 %v3973, %v3971
  %v4036 = vpack.c.b16 %v3976, %v3974
  %v4037 = vpack.c.b16 %v3977, %v3975
  %v4038 = vpack.c.b16 %v3980, %v3978
  %v4039 = vpack.c.b16 %v3981, %v3979
  %v4040 = vpack.c.b16 %v3984, %v3982
  %v4041 = vpack.c.b16 %v3985, %v3983
  %v4042 = vpack.c.b16 %v3988, %v3986
  %v4043 = vpack.c.b16 %v3989, %v3987
  %v4044 = vpack.c.b16 %v3992, %v3990
  %v4045 = vpack.c.b16 %v3993, %v3991
  %v4046 = vpack.c.b16 %v3996, %v3994
  %v4047 = vpack.c.b16 %v3997, %v3995
  %v4048 = vpack.c.b16 %v4000, %v3998
  %v4049 = vpack.c.b16 %v4001, %v3999
  %v4050 = vpack.c.b16 %v4004, %v4002
  %v4051 = vpack.c.b16 %v4005, %v4003
  %v4052 = vpack.c.b16 %v4008, %v4006
  %v4053 = vpack.c.b16 %v4009, %v4007
  %v4054 = vpack.c.b16 %v4012, %v4010
  %v4055 = vpack.c.b16 %v4013, %v4011
  %v4056 = vpack.c.b16 %v4016, %v4014
  %v4057 = vpack.c.b16 %v4017, %v4015
  %v4058 = vpack.c.b16 %v4020, %v4018
  %v4059 = vpack.c.b16 %v4021, %v4019
  %v4060 = vpack.c.b16 %v4024, %v4022
  %v4061 = vpack.c.b16 %v4025, %v4023
  %v4062 = vpack.c.b16 %v4028, %v4026
  %v4063 = vpack.c.b16 %v4029, %v4027
  %v4064 = vpack.c.b16 %v4032, %v4030
  %v4065 = vpack.c.b16 %v4033, %v4031
  %4098 = vmatpush.bf16.msra.mxu0 %v4048
  %4099 = vmatpush.bf16.msra.mxu0 %v4046
  %4100 = vmatpush.bf16.msra.mxu0 %v4044
  %4101 = vmatpush.bf16.msra.mxu0 %v4042
  %4102 = vmatpush.bf16.msra.mxu0 %v4040
  %4103 = vmatpush.bf16.msra.mxu0 %v4038
  %4104 = vmatpush.bf16.msra.mxu0 %v4036
  %4105 = vmatpush.bf16.msra.mxu0 %v4034
  %4106 = vmatmul.bf16.gmra.mxu0 %v3898
  %v4107 = vpop.f32.mrf.mxu0
  %v4108 = vadd.f32 0.0, %v4107
  %v4109 = vpop.f32.mrf.mxu0
  %v4110 = vadd.f32 0.0, %v4109
  %4111 = vmatmul.bf16.gmra.mxu0 %v3924
  %v4112 = vpop.f32.mrf.mxu0
  %v4113 = vadd.f32 0.0, %v4112
  %v4114 = vpop.f32.mrf.mxu0
  %v4115 = vadd.f32 0.0, %v4114
  %4116 = vdwg.mxu0
  %4117 = vmatpush.bf16.msra.mxu0 %v4064
  %4118 = vmatpush.bf16.msra.mxu0 %v4062
  %4119 = vmatpush.bf16.msra.mxu0 %v4060
  %4120 = vmatpush.bf16.msra.mxu0 %v4058
  %4121 = vmatpush.bf16.msra.mxu0 %v4056
  %4122 = vmatpush.bf16.msra.mxu0 %v4054
  %4123 = vmatpush.bf16.msra.mxu0 %v4052
  %4124 = vmatpush.bf16.msra.mxu0 %v4050
  %4125 = vmatmul.bf16.gmra.mxu0 %v3915
  %v4126 = vpop.f32.mrf.mxu0
  %v4127 = vadd.f32 %v4108, %v4126
  %v4128 = vpop.f32.mrf.mxu0
  %v4129 = vadd.f32 %v4110, %v4128
  %4130 = vmatmul.bf16.gmra.mxu0 %v3933
  %v4131 = vpop.f32.mrf.mxu0
  %v4132 = vadd.f32 %v4113, %v4131
  %v4133 = vpop.f32.mrf.mxu0
  %v4134 = vadd.f32 %v4115, %v4133
  %4135 = vdwg.mxu0
  %4136 = vmatpush.bf16.msra.mxu0 %v4049
  %4137 = vmatpush.bf16.msra.mxu0 %v4047
  %4138 = vmatpush.bf16.msra.mxu0 %v4045
  %4139 = vmatpush.bf16.msra.mxu0 %v4043
  %4140 = vmatpush.bf16.msra.mxu0 %v4041
  %4141 = vmatpush.bf16.msra.mxu0 %v4039
  %4142 = vmatpush.bf16.msra.mxu0 %v4037
  %4143 = vmatpush.bf16.msra.mxu0 %v4035
  %4144 = vmatmul.bf16.gmra.mxu0 %v3898
  %v4145 = vpop.f32.mrf.mxu0
  %v4146 = vadd.f32 0.0, %v4145
  %v4147 = vpop.f32.mrf.mxu0
  %v4148 = vadd.f32 0.0, %v4147
  %4149 = vmatmul.bf16.gmra.mxu0 %v3924
  %v4150 = vpop.f32.mrf.mxu0
  %v4151 = vadd.f32 0.0, %v4150
  %v4152 = vpop.f32.mrf.mxu0
  %v4153 = vadd.f32 0.0, %v4152
  %4154 = vdwg.mxu0
  %4155 = vmatpush.bf16.msra.mxu0 %v4065
  %4156 = vmatpush.bf16.msra.mxu0 %v4063
  %4157 = vmatpush.bf16.msra.mxu0 %v4061
  %4158 = vmatpush.bf16.msra.mxu0 %v4059
  %4159 = vmatpush.bf16.msra.mxu0 %v4057
  %4160 = vmatpush.bf16.msra.mxu0 %v4055
  %4161 = vmatpush.bf16.msra.mxu0 %v4053
  %4162 = vmatpush.bf16.msra.mxu0 %v4051
  %4163 = vmatmul.bf16.gmra.mxu0 %v3915
  %v4164 = vpop.f32.mrf.mxu0
  %v4165 = vadd.f32 %v4146, %v4164
  %v4166 = vpop.f32.mrf.mxu0
  %v4167 = vadd.f32 %v4148, %v4166
  %4168 = vmatmul.bf16.gmra.mxu0 %v3933
  %v4169 = vpop.f32.mrf.mxu0
  %v4170 = vadd.f32 %v4151, %v4169
  %v4171 = vpop.f32.mrf.mxu0
  %v4172 = vadd.f32 %v4153, %v4171
  %4173 = vdwg.mxu0
  %v4174 = vadd.f32 %v3776, %v4127
  %v4175 = vadd.f32 %v3777, %v4165
  %v4176 = vadd.f32 %v3778, %v4129
  %v4177 = vadd.f32 %v3779, %v4167
  %v4178 = vadd.f32 %v3780, %v4132
  %v4179 = vadd.f32 %v3781, %v4170
  %v4180 = vadd.f32 %v3782, %v4134
  %v4181 = vadd.f32 %v3783, %v4172
  %v4182 = vld [vmem:[#allocation2 + $0x40] sm:$0xff]
  %v4183 = vld [vmem:[#allocation2 + $0x48] sm:$0xff]
  %vm4184 = vmand %vm3796, %vm3032
  %vm4185 = vmand %vm3797, %vm3033
  %vm4186 = vmand %vm3798, %vm3034
  %vm4187 = vmand %vm3799, %vm3035
  %vm4188 = vmand %vm4184, %vm3040
  %vm4189 = vmand %vm4185, %vm3041
  %vm4190 = vmand %vm4186, %vm3042
  %vm4191 = vmand %vm4187, %vm3043
  %v4192 = vsel %vm4188, 1, 0
  %v4193 = vsel %vm4189, 1, 0
  %v4194 = vsel %vm4190, 1, 0
  %v4195 = vsel %vm4191, 1, 0
  %v4196 = vcvt.s32.f32 %v4192
  %v4197 = vcvt.s32.f32 %v4193
  %v4198 = vcvt.s32.f32 %v4194
  %v4199 = vcvt.s32.f32 %v4195
  %v4200 = vmul.f32 %v2610, %v4196
  %v4201 = vmul.f32 %v2611, %v4196
  %v4202 = vmul.f32 %v2612, %v4197
  %v4203 = vmul.f32 %v2613, %v4197
  %v4204 = vmul.f32 %v2614, %v4198
  %v4205 = vmul.f32 %v2615, %v4198
  %v4206 = vmul.f32 %v4182, %v4199
  %v4207 = vmul.f32 %v4183, %v4199
  %v4208 = vpack.c.bf16 %v4202, %v4200
  %v4209 = vpack.c.bf16 %v4203, %v4201
  %v4210 = vpack.c.bf16 %v4206, %v4204
  %v4211 = vpack.c.bf16 %v4207, %v4205
  %v4212 = vld [vmem:[%s3 + $0x400] sm:$0xff]
  %v4213 = vld [vmem:[%s3 + $0x408] sm:$0xff]
  %v4214 = vld [vmem:[%s3 + $0x410] sm:$0xff]
  %v4215 = vld [vmem:[%s3 + $0x418] sm:$0xff]
  %v4216 = vld [vmem:[%s3 + $0x420] sm:$0xff]
  %v4217 = vld [vmem:[%s3 + $0x428] sm:$0xff]
  %v4218 = vld [vmem:[%s3 + $0x430] sm:$0xff]
  %v4219 = vld [vmem:[%s3 + $0x438] sm:$0xff]
  %v4220 = vld [vmem:[%s3 + $0x440] sm:$0xff]
  %v4221 = vld [vmem:[%s3 + $0x448] sm:$0xff]
  %v4222 = vld [vmem:[%s3 + $0x450] sm:$0xff]
  %v4223 = vld [vmem:[%s3 + $0x458] sm:$0xff]
  %v4224 = vld [vmem:[%s3 + $0x460] sm:$0xff]
  %v4225 = vld [vmem:[%s3 + $0x468] sm:$0xff]
  %v4226 = vld [vmem:[%s3 + $0x470] sm:$0xff]
  %v4227 = vld [vmem:[%s3 + $0x478] sm:$0xff]
  %v4228 = vld [vmem:[%s3 + $0x480] sm:$0xff]
  %v4229 = vld [vmem:[%s3 + $0x488] sm:$0xff]
  %v4230 = vld [vmem:[%s3 + $0x490] sm:$0xff]
  %v4231 = vld [vmem:[%s3 + $0x498] sm:$0xff]
  %v4232 = vld [vmem:[%s3 + $0x4a0] sm:$0xff]
  %v4233 = vld [vmem:[%s3 + $0x4a8] sm:$0xff]
  %v4234 = vld [vmem:[%s3 + $0x4b0] sm:$0xff]
  %v4235 = vld [vmem:[%s3 + $0x4b8] sm:$0xff]
  %v4236 = vld [vmem:[%s3 + $0x4c0] sm:$0xff]
  %v4237 = vld [vmem:[%s3 + $0x4c8] sm:$0xff]
  %v4238 = vld [vmem:[%s3 + $0x4d0] sm:$0xff]
  %v4239 = vld [vmem:[%s3 + $0x4d8] sm:$0xff]
  %v4240 = vld [vmem:[%s3 + $0x4e0] sm:$0xff]
  %v4241 = vld [vmem:[%s3 + $0x4e8] sm:$0xff]
  %v4242 = vld [vmem:[%s3 + $0x4f0] sm:$0xff]
  %v4243 = vld [vmem:[%s3 + $0x4f8] sm:$0xff]
  %v4276 = vunpack.c.l.b16 %v4212
  %v4277 = vunpack.c.h.b16 %v4212
  %v4278 = vunpack.c.l.b16 %v4213
  %v4279 = vunpack.c.h.b16 %v4213
  %v4280 = vunpack.c.l.b16 %v4214
  %v4281 = vunpack.c.h.b16 %v4214
  %v4282 = vunpack.c.l.b16 %v4215
  %v4283 = vunpack.c.h.b16 %v4215
  %v4284 = vunpack.c.l.b16 %v4216
  %v4285 = vunpack.c.h.b16 %v4216
  %v4286 = vunpack.c.l.b16 %v4217
  %v4287 = vunpack.c.h.b16 %v4217
  %v4288 = vunpack.c.l.b16 %v4218
  %v4289 = vunpack.c.h.b16 %v4218
  %v4290 = vunpack.c.l.b16 %v4219
  %v4291 = vunpack.c.h.b16 %v4219
  %v4292 = vunpack.c.l.b16 %v4220
  %v4293 = vunpack.c.h.b16 %v4220
  %v4294 = vunpack.c.l.b16 %v4221
  %v4295 = vunpack.c.h.b16 %v4221
  %v4296 = vunpack.c.l.b16 %v4222
  %v4297 = vunpack.c.h.b16 %v4222
  %v4298 = vunpack.c.l.b16 %v4223
  %v4299 = vunpack.c.h.b16 %v4223
  %v4300 = vunpack.c.l.b16 %v4224
  %v4301 = vunpack.c.h.b16 %v4224
  %v4302 = vunpack.c.l.b16 %v4225
  %v4303 = vunpack.c.h.b16 %v4225
  %v4304 = vunpack.c.l.b16 %v4226
  %v4305 = vunpack.c.h.b16 %v4226
  %v4306 = vunpack.c.l.b16 %v4227
  %v4307 = vunpack.c.h.b16 %v4227
  %v4308 = vunpack.c.l.b16 %v4228
  %v4309 = vunpack.c.h.b16 %v4228
  %v4310 = vunpack.c.l.b16 %v4229
  %v4311 = vunpack.c.h.b16 %v4229
  %v4312 = vunpack.c.l.b16 %v4230
  %v4313 = vunpack.c.h.b16 %v4230
  %v4314 = vunpack.c.l.b16 %v4231
  %v4315 = vunpack.c.h.b16 %v4231
  %v4316 = vunpack.c.l.b16 %v4232
  %v4317 = vunpack.c.h.b16 %v4232
  %v4318 = vunpack.c.l.b16 %v4233
  %v4319 = vunpack.c.h.b16 %v4233
  %v4320 = vunpack.c.l.b16 %v4234
  %v4321 = vunpack.c.h.b16 %v4234
  %v4322 = vunpack.c.l.b16 %v4235
  %v4323 = vunpack.c.h.b16 %v4235
  %v4324 = vunpack.c.l.b16 %v4236
  %v4325 = vunpack.c.h.b16 %v4236
  %v4326 = vunpack.c.l.b16 %v4237
  %v4327 = vunpack.c.h.b16 %v4237
  %v4328 = vunpack.c.l.b16 %v4238
  %v4329 = vunpack.c.h.b16 %v4238
  %v4330 = vunpack.c.l.b16 %v4239
  %v4331 = vunpack.c.h.b16 %v4239
  %v4332 = vunpack.c.l.b16 %v4240
  %v4333 = vunpack.c.h.b16 %v4240
  %v4334 = vunpack.c.l.b16 %v4241
  %v4335 = vunpack.c.h.b16 %v4241
  %v4336 = vunpack.c.l.b16 %v4242
  %v4337 = vunpack.c.h.b16 %v4242
  %v4338 = vunpack.c.l.b16 %v4243
  %v4339 = vunpack.c.h.b16 %v4243
  %v4340 = vpack.c.b16 %v4278, %v4276
  %v4341 = vpack.c.b16 %v4279, %v4277
  %v4342 = vpack.c.b16 %v4282, %v4280
  %v4343 = vpack.c.b16 %v4283, %v4281
  %v4344 = vpack.c.b16 %v4286, %v4284
  %v4345 = vpack.c.b16 %v4287, %v4285
  %v4346 = vpack.c.b16 %v4290, %v4288
  %v4347 = vpack.c.b16 %v4291, %v4289
  %v4348 = vpack.c.b16 %v4294, %v4292
  %v4349 = vpack.c.b16 %v4295, %v4293
  %v4350 = vpack.c.b16 %v4298, %v4296
  %v4351 = vpack.c.b16 %v4299, %v4297
  %v4352 = vpack.c.b16 %v4302, %v4300
  %v4353 = vpack.c.b16 %v4303, %v4301
  %v4354 = vpack.c.b16 %v4306, %v4304
  %v4355 = vpack.c.b16 %v4307, %v4305
  %v4356 = vpack.c.b16 %v4310, %v4308
  %v4357 = vpack.c.b16 %v4311, %v4309
  %v4358 = vpack.c.b16 %v4314, %v4312
  %v4359 = vpack.c.b16 %v4315, %v4313
  %v4360 = vpack.c.b16 %v4318, %v4316
  %v4361 = vpack.c.b16 %v4319, %v4317
  %v4362 = vpack.c.b16 %v4322, %v4320
  %v4363 = vpack.c.b16 %v4323, %v4321
  %v4364 = vpack.c.b16 %v4326, %v4324
  %v4365 = vpack.c.b16 %v4327, %v4325
  %v4366 = vpack.c.b16 %v4330, %v4328
  %v4367 = vpack.c.b16 %v4331, %v4329
  %v4368 = vpack.c.b16 %v4334, %v4332
  %v4369 = vpack.c.b16 %v4335, %v4333
  %v4370 = vpack.c.b16 %v4338, %v4336
  %v4371 = vpack.c.b16 %v4339, %v4337
  %4404 = vmatpush.bf16.msra.mxu0 %v4354
  %4405 = vmatpush.bf16.msra.mxu0 %v4352
  %4406 = vmatpush.bf16.msra.mxu0 %v4350
  %4407 = vmatpush.bf16.msra.mxu0 %v4348
  %4408 = vmatpush.bf16.msra.mxu0 %v4346
  %4409 = vmatpush.bf16.msra.mxu0 %v4344
  %4410 = vmatpush.bf16.msra.mxu0 %v4342
  %4411 = vmatpush.bf16.msra.mxu0 %v4340
  %4412 = vmatmul.bf16.gmra.mxu0 %v4208
  %v4413 = vpop.f32.mrf.mxu0
  %v4414 = vadd.f32 0.0, %v4413
  %v4415 = vpop.f32.mrf.mxu0
  %v4416 = vadd.f32 0.0, %v4415
  %4417 = vmatmul.bf16.gmra.mxu0 %v4210
  %v4418 = vpop.f32.mrf.mxu0
  %v4419 = vadd.f32 0.0, %v4418
  %v4420 = vpop.f32.mrf.mxu0
  %v4421 = vadd.f32 0.0, %v4420
  %4422 = vdwg.mxu0
  %4423 = vmatpush.bf16.msra.mxu0 %v4370
  %4424 = vmatpush.bf16.msra.mxu0 %v4368
  %4425 = vmatpush.bf16.msra.mxu0 %v4366
  %4426 = vmatpush.bf16.msra.mxu0 %v4364
  %4427 = vmatpush.bf16.msra.mxu0 %v4362
  %4428 = vmatpush.bf16.msra.mxu0 %v4360
  %4429 = vmatpush.bf16.msra.mxu0 %v4358
  %4430 = vmatpush.bf16.msra.mxu0 %v4356
  %4431 = vmatmul.bf16.gmra.mxu0 %v4209
  %v4432 = vpop.f32.mrf.mxu0
  %v4433 = vadd.f32 %v4414, %v4432
  %v4434 = vpop.f32.mrf.mxu0
  %v4435 = vadd.f32 %v4416, %v4434
  %4436 = vmatmul.bf16.gmra.mxu0 %v4211
  %v4437 = vpop.f32.mrf.mxu0
  %v4438 = vadd.f32 %v4419, %v4437
  %v4439 = vpop.f32.mrf.mxu0
  %v4440 = vadd.f32 %v4421, %v4439
  %4441 = vdwg.mxu0
  %4442 = vmatpush.bf16.msra.mxu0 %v4355
  %4443 = vmatpush.bf16.msra.mxu0 %v4353
  %4444 = vmatpush.bf16.msra.mxu0 %v4351
  %4445 = vmatpush.bf16.msra.mxu0 %v4349
  %4446 = vmatpush.bf16.msra.mxu0 %v4347
  %4447 = vmatpush.bf16.msra.mxu0 %v4345
  %4448 = vmatpush.bf16.msra.mxu0 %v4343
  %4449 = vmatpush.bf16.msra.mxu0 %v4341
  %4450 = vmatmul.bf16.gmra.mxu0 %v4208
  %v4451 = vpop.f32.mrf.mxu0
  %v4452 = vadd.f32 0.0, %v4451
  %v4453 = vpop.f32.mrf.mxu0
  %v4454 = vadd.f32 0.0, %v4453
  %4455 = vmatmul.bf16.gmra.mxu0 %v4210
  %v4456 = vpop.f32.mrf.mxu0
  %v4457 = vadd.f32 0.0, %v4456
  %v4458 = vpop.f32.mrf.mxu0
  %v4459 = vadd.f32 0.0, %v4458
  %4460 = vdwg.mxu0
  %4461 = vmatpush.bf16.msra.mxu0 %v4371
  %4462 = vmatpush.bf16.msra.mxu0 %v4369
  %4463 = vmatpush.bf16.msra.mxu0 %v4367
  %4464 = vmatpush.bf16.msra.mxu0 %v4365
  %4465 = vmatpush.bf16.msra.mxu0 %v4363
  %4466 = vmatpush.bf16.msra.mxu0 %v4361
  %4467 = vmatpush.bf16.msra.mxu0 %v4359
  %4468 = vmatpush.bf16.msra.mxu0 %v4357
  %4469 = vmatmul.bf16.gmra.mxu0 %v4209
  %v4470 = vpop.f32.mrf.mxu0
  %v4471 = vadd.f32 %v4452, %v4470
  %v4472 = vpop.f32.mrf.mxu0
  %v4473 = vadd.f32 %v4454, %v4472
  %4474 = vmatmul.bf16.gmra.mxu0 %v4211
  %v4475 = vpop.f32.mrf.mxu0
  %v4476 = vadd.f32 %v4457, %v4475
  %v4477 = vpop.f32.mrf.mxu0
  %v4478 = vadd.f32 %v4459, %v4477
  %4479 = vdwg.mxu0
  %v4480 = vadd.f32 %v4174, %v4433
  %v4481 = vadd.f32 %v4175, %v4471
  %v4482 = vadd.f32 %v4176, %v4435
  %v4483 = vadd.f32 %v4177, %v4473
  %v4484 = vadd.f32 %v4178, %v4438
  %v4485 = vadd.f32 %v4179, %v4476
  %v4486 = vadd.f32 %v4180, %v4440
  %v4487 = vadd.f32 %v4181, %v4478
  %v4488 = vld [vmem:[#allocation2 + $0x10] sm:$0xfe]
  %v4489 = vld [vmem:[#allocation2 + $0x18] sm:$0xfe]
  %v4490 = vld [vmem:[#allocation2 + $0x20] sm:$0xff]
  %v4491 = vld [vmem:[#allocation2 + $0x28] sm:$0xff]
  %v4492 = vld [vmem:[#allocation2 + $0x30] sm:$0xff]
  %v4493 = vld [vmem:[#allocation2 + $0x38] sm:$0xff]
  %v4494 = vld [vmem:[#allocation2 + $0x40] sm:$0xff]
  %v4495 = vld [vmem:[#allocation2 + $0x48] sm:$0xff]
  %v4496 = vld [vmem:[#allocation2 + $0x50] sm:$0x1]
  %v4497 = vld [vmem:[#allocation2 + $0x58] sm:$0x1]
  %vm4498 = vmand %vm3796, %vm3394
  %vm4499 = vmand %vm3797, %vm3395
  %vm4500 = vmand %vm3798, %vm3396
  %vm4501 = vmand %vm3799, %vm3397
  %vm4502 = vmand %vm4498, %vm3402
  %vm4503 = vmand %vm4499, %vm3403
  %vm4504 = vmand %vm4500, %vm3404
  %vm4505 = vmand %vm4501, %vm3405
  %v4506 = vsel %vm4502, 1, 0
  %v4507 = vsel %vm4503, 1, 0
  %v4508 = vsel %vm4504, 1, 0
  %v4509 = vsel %vm4505, 1, 0
  %v4510 = vcvt.s32.f32 %v4506
  %v4511 = vcvt.s32.f32 %v4507
  %v4512 = vcvt.s32.f32 %v4508
  %v4513 = vcvt.s32.f32 %v4509
  %vm4518 = vcmask 1040384
  %v4519 = vrot.slane %v4510, 7
  %v4520 = vrot.slane %v4511, 7
  %v4521 = vsel %vm4518, %v4519, %v4520
  %v4522 = vrot.slane %v4512, 7
  %v4523 = vsel %vm4518, %v4520, %v4522
  %v4524 = vrot.slane %v4513, 7
  %v4525 = vsel %vm4518, %v4522, %v4524
  %v4531 = vmul.f32 %v4488, %v4519
  %v4532 = vmul.f32 %v4489, %v4519
  %v4533 = vmul.f32 %v4490, %v4521
  %v4534 = vmul.f32 %v4491, %v4521
  %v4535 = vmul.f32 %v4492, %v4523
  %v4536 = vmul.f32 %v4493, %v4523
  %v4537 = vmul.f32 %v4494, %v4525
  %v4538 = vmul.f32 %v4495, %v4525
  %v4539 = vmul.f32 %v4496, %v4524
  %v4540 = vmul.f32 %v4497, %v4524
  %v4541 = vpack.c.bf16 %v4533, %v4531
  %v4542 = vpack.c.bf16 %v4534, %v4532
  %v4543 = vpack.c.bf16 %v4537, %v4535
  %v4544 = vpack.c.bf16 %v4538, %v4536
  %v4545 = vpack.c.bf16 %v4539, %v4539
  %v4546 = vpack.c.bf16 %v4540, %v4540
  %v4547 = vld [vmem:[%s3 + $0x500] sm:$0xff]
  %v4548 = vld [vmem:[%s3 + $0x508] sm:$0xff]
  %v4549 = vld [vmem:[%s3 + $0x510] sm:$0xff]
  %v4550 = vld [vmem:[%s3 + $0x518] sm:$0xff]
  %v4551 = vld [vmem:[%s3 + $0x520] sm:$0xff]
  %v4552 = vld [vmem:[%s3 + $0x528] sm:$0xff]
  %v4553 = vld [vmem:[%s3 + $0x530] sm:$0xff]
  %v4554 = vld [vmem:[%s3 + $0x538] sm:$0xff]
  %v4555 = vld [vmem:[%s3 + $0x540] sm:$0xff]
  %v4556 = vld [vmem:[%s3 + $0x548] sm:$0xff]
  %v4557 = vld [vmem:[%s3 + $0x550] sm:$0xff]
  %v4558 = vld [vmem:[%s3 + $0x558] sm:$0xff]
  %v4559 = vld [vmem:[%s3 + $0x560] sm:$0xff]
  %v4560 = vld [vmem:[%s3 + $0x568] sm:$0xff]
  %v4561 = vld [vmem:[%s3 + $0x570] sm:$0xff]
  %v4562 = vld [vmem:[%s3 + $0x578] sm:$0xff]
  %v4563 = vld [vmem:[%s3 + $0x580] sm:$0xff]
  %v4564 = vld [vmem:[%s3 + $0x588] sm:$0xff]
  %v4565 = vld [vmem:[%s3 + $0x590] sm:$0xff]
  %v4566 = vld [vmem:[%s3 + $0x598] sm:$0xff]
  %v4567 = vld [vmem:[%s3 + $0x5a0] sm:$0xff]
  %v4568 = vld [vmem:[%s3 + $0x5a8] sm:$0xff]
  %v4569 = vld [vmem:[%s3 + $0x5b0] sm:$0xff]
  %v4570 = vld [vmem:[%s3 + $0x5b8] sm:$0xff]
  %v4571 = vld [vmem:[%s3 + $0x5c0] sm:$0xff]
  %v4572 = vld [vmem:[%s3 + $0x5c8] sm:$0xff]
  %v4573 = vld [vmem:[%s3 + $0x5d0] sm:$0xff]
  %v4574 = vld [vmem:[%s3 + $0x5d8] sm:$0xff]
  %v4575 = vld [vmem:[%s3 + $0x5e0] sm:$0xff]
  %v4576 = vld [vmem:[%s3 + $0x5e8] sm:$0xff]
  %v4577 = vld [vmem:[%s3 + $0x5f0] sm:$0xff]
  %v4578 = vld [vmem:[%s3 + $0x5f8] sm:$0xff]
  %vm4579 = vsmask.f32 7424
  %v4581 = vshrl.u32 %v4541, 16
  %v4583 = vshll.u32 %v4541, 16
  %v4585 = vrot.slane %v4583, 1
  %v4586 = vor.u32 %v4581, %v4585
  %v4588 = vshll.u32 %v4543, 16
  %v4590 = vrot.slane %v4588, 1
  %v4591 = vsel %vm4579, %v4586, %v4590
  %v4593 = vshrl.u32 %v4542, 16
  %v4595 = vshll.u32 %v4542, 16
  %v4597 = vrot.slane %v4595, 1
  %v4598 = vor.u32 %v4593, %v4597
  %v4600 = vshll.u32 %v4544, 16
  %v4602 = vrot.slane %v4600, 1
  %v4603 = vsel %vm4579, %v4598, %v4602
  %v4604 = vshrl.u32 %v4543, 16
  %v4606 = vor.u32 %v4604, %v4590
  %v4608 = vshll.u32 %v4545, 16
  %v4610 = vrot.slane %v4608, 1
  %v4611 = vsel %vm4579, %v4606, %v4610
  %v4612 = vshrl.u32 %v4544, 16
  %v4614 = vor.u32 %v4612, %v4602
  %v4616 = vshll.u32 %v4546, 16
  %v4618 = vrot.slane %v4616, 1
  %v4619 = vsel %vm4579, %v4614, %v4618
  %v4656 = vunpack.c.l.b16 %v4547
  %v4657 = vunpack.c.h.b16 %v4547
  %v4658 = vunpack.c.l.b16 %v4548
  %v4659 = vunpack.c.h.b16 %v4548
  %v4660 = vunpack.c.l.b16 %v4549
  %v4661 = vunpack.c.h.b16 %v4549
  %v4662 = vunpack.c.l.b16 %v4550
  %v4663 = vunpack.c.h.b16 %v4550
  %v4664 = vunpack.c.l.b16 %v4551
  %v4665 = vunpack.c.h.b16 %v4551
  %v4666 = vunpack.c.l.b16 %v4552
  %v4667 = vunpack.c.h.b16 %v4552
  %v4668 = vunpack.c.l.b16 %v4553
  %v4669 = vunpack.c.h.b16 %v4553
  %v4670 = vunpack.c.l.b16 %v4554
  %v4671 = vunpack.c.h.b16 %v4554
  %v4672 = vunpack.c.l.b16 %v4555
  %v4673 = vunpack.c.h.b16 %v4555
  %v4674 = vunpack.c.l.b16 %v4556
  %v4675 = vunpack.c.h.b16 %v4556
  %v4676 = vunpack.c.l.b16 %v4557
  %v4677 = vunpack.c.h.b16 %v4557
  %v4678 = vunpack.c.l.b16 %v4558
  %v4679 = vunpack.c.h.b16 %v4558
  %v4680 = vunpack.c.l.b16 %v4559
  %v4681 = vunpack.c.h.b16 %v4559
  %v4682 = vunpack.c.l.b16 %v4560
  %v4683 = vunpack.c.h.b16 %v4560
  %v4684 = vunpack.c.l.b16 %v4561
  %v4685 = vunpack.c.h.b16 %v4561
  %v4686 = vunpack.c.l.b16 %v4562
  %v4687 = vunpack.c.h.b16 %v4562
  %v4688 = vunpack.c.l.b16 %v4563
  %v4689 = vunpack.c.h.b16 %v4563
  %v4690 = vunpack.c.l.b16 %v4564
  %v4691 = vunpack.c.h.b16 %v4564
  %v4692 = vunpack.c.l.b16 %v4565
  %v4693 = vunpack.c.h.b16 %v4565
  %v4694 = vunpack.c.l.b16 %v4566
  %v4695 = vunpack.c.h.b16 %v4566
  %v4696 = vunpack.c.l.b16 %v4567
  %v4697 = vunpack.c.h.b16 %v4567
  %v4698 = vunpack.c.l.b16 %v4568
  %v4699 = vunpack.c.h.b16 %v4568
  %v4700 = vunpack.c.l.b16 %v4569
  %v4701 = vunpack.c.h.b16 %v4569
  %v4702 = vunpack.c.l.b16 %v4570
  %v4703 = vunpack.c.h.b16 %v4570
  %v4704 = vunpack.c.l.b16 %v4571
  %v4705 = vunpack.c.h.b16 %v4571
  %v4706 = vunpack.c.l.b16 %v4572
  %v4707 = vunpack.c.h.b16 %v4572
  %v4708 = vunpack.c.l.b16 %v4573
  %v4709 = vunpack.c.h.b16 %v4573
  %v4710 = vunpack.c.l.b16 %v4574
  %v4711 = vunpack.c.h.b16 %v4574
  %v4712 = vunpack.c.l.b16 %v4575
  %v4713 = vunpack.c.h.b16 %v4575
  %v4714 = vunpack.c.l.b16 %v4576
  %v4715 = vunpack.c.h.b16 %v4576
  %v4716 = vunpack.c.l.b16 %v4577
  %v4717 = vunpack.c.h.b16 %v4577
  %v4718 = vunpack.c.l.b16 %v4578
  %v4719 = vunpack.c.h.b16 %v4578
  %v4720 = vpack.c.b16 %v4658, %v4656
  %v4721 = vpack.c.b16 %v4659, %v4657
  %v4722 = vpack.c.b16 %v4662, %v4660
  %v4723 = vpack.c.b16 %v4663, %v4661
  %v4724 = vpack.c.b16 %v4666, %v4664
  %v4725 = vpack.c.b16 %v4667, %v4665
  %v4726 = vpack.c.b16 %v4670, %v4668
  %v4727 = vpack.c.b16 %v4671, %v4669
  %v4728 = vpack.c.b16 %v4674, %v4672
  %v4729 = vpack.c.b16 %v4675, %v4673
  %v4730 = vpack.c.b16 %v4678, %v4676
  %v4731 = vpack.c.b16 %v4679, %v4677
  %v4732 = vpack.c.b16 %v4682, %v4680
  %v4733 = vpack.c.b16 %v4683, %v4681
  %v4734 = vpack.c.b16 %v4686, %v4684
  %v4735 = vpack.c.b16 %v4687, %v4685
  %v4736 = vpack.c.b16 %v4690, %v4688
  %v4737 = vpack.c.b16 %v4691, %v4689
  %v4738 = vpack.c.b16 %v4694, %v4692
  %v4739 = vpack.c.b16 %v4695, %v4693
  %v4740 = vpack.c.b16 %v4698, %v4696
  %v4741 = vpack.c.b16 %v4699, %v4697
  %v4742 = vpack.c.b16 %v4702, %v4700
  %v4743 = vpack.c.b16 %v4703, %v4701
  %v4744 = vpack.c.b16 %v4706, %v4704
  %v4745 = vpack.c.b16 %v4707, %v4705
  %v4746 = vpack.c.b16 %v4710, %v4708
  %v4747 = vpack.c.b16 %v4711, %v4709
  %v4748 = vpack.c.b16 %v4714, %v4712
  %v4749 = vpack.c.b16 %v4715, %v4713
  %v4750 = vpack.c.b16 %v4718, %v4716
  %v4751 = vpack.c.b16 %v4719, %v4717
  %4784 = vmatpush.bf16.msra.mxu0 %v4734
  %4785 = vmatpush.bf16.msra.mxu0 %v4732
  %4786 = vmatpush.bf16.msra.mxu0 %v4730
  %4787 = vmatpush.bf16.msra.mxu0 %v4728
  %4788 = vmatpush.bf16.msra.mxu0 %v4726
  %4789 = vmatpush.bf16.msra.mxu0 %v4724
  %4790 = vmatpush.bf16.msra.mxu0 %v4722
  %4791 = vmatpush.bf16.msra.mxu0 %v4720
  %4792 = vmatmul.bf16.gmra.mxu0 %v4591
  %v4793 = vpop.f32.mrf.mxu0
  %v4794 = vadd.f32 0.0, %v4793
  %v4795 = vpop.f32.mrf.mxu0
  %v4796 = vadd.f32 0.0, %v4795
  %4797 = vmatmul.bf16.gmra.mxu0 %v4611
  %v4798 = vpop.f32.mrf.mxu0
  %v4799 = vadd.f32 0.0, %v4798
  %v4800 = vpop.f32.mrf.mxu0
  %v4801 = vadd.f32 0.0, %v4800
  %4802 = vdwg.mxu0
  %4803 = vmatpush.bf16.msra.mxu0 %v4750
  %4804 = vmatpush.bf16.msra.mxu0 %v4748
  %4805 = vmatpush.bf16.msra.mxu0 %v4746
  %4806 = vmatpush.bf16.msra.mxu0 %v4744
  %4807 = vmatpush.bf16.msra.mxu0 %v4742
  %4808 = vmatpush.bf16.msra.mxu0 %v4740
  %4809 = vmatpush.bf16.msra.mxu0 %v4738
  %4810 = vmatpush.bf16.msra.mxu0 %v4736
  %4811 = vmatmul.bf16.gmra.mxu0 %v4603
  %v4812 = vpop.f32.mrf.mxu0
  %v4813 = vadd.f32 %v4794, %v4812
  %v4814 = vpop.f32.mrf.mxu0
  %v4815 = vadd.f32 %v4796, %v4814
  %4816 = vmatmul.bf16.gmra.mxu0 %v4619
  %v4817 = vpop.f32.mrf.mxu0
  %v4818 = vadd.f32 %v4799, %v4817
  %v4819 = vpop.f32.mrf.mxu0
  %v4820 = vadd.f32 %v4801, %v4819
  %4821 = vdwg.mxu0
  %4822 = vmatpush.bf16.msra.mxu0 %v4735
  %4823 = vmatpush.bf16.msra.mxu0 %v4733
  %4824 = vmatpush.bf16.msra.mxu0 %v4731
  %4825 = vmatpush.bf16.msra.mxu0 %v4729
  %4826 = vmatpush.bf16.msra.mxu0 %v4727
  %4827 = vmatpush.bf16.msra.mxu0 %v4725
  %4828 = vmatpush.bf16.msra.mxu0 %v4723
  %4829 = vmatpush.bf16.msra.mxu0 %v4721
  %4830 = vmatmul.bf16.gmra.mxu0 %v4591
  %v4831 = vpop.f32.mrf.mxu0
  %v4832 = vadd.f32 0.0, %v4831
  %v4833 = vpop.f32.mrf.mxu0
  %v4834 = vadd.f32 0.0, %v4833
  %4835 = vmatmul.bf16.gmra.mxu0 %v4611
  %v4836 = vpop.f32.mrf.mxu0
  %v4837 = vadd.f32 0.0, %v4836
  %v4838 = vpop.f32.mrf.mxu0
  %v4839 = vadd.f32 0.0, %v4838
  %4840 = vdwg.mxu0
  %4841 = vmatpush.bf16.msra.mxu0 %v4751
  %4842 = vmatpush.bf16.msra.mxu0 %v4749
  %4843 = vmatpush.bf16.msra.mxu0 %v4747
  %4844 = vmatpush.bf16.msra.mxu0 %v4745
  %4845 = vmatpush.bf16.msra.mxu0 %v4743
  %4846 = vmatpush.bf16.msra.mxu0 %v4741
  %4847 = vmatpush.bf16.msra.mxu0 %v4739
  %4848 = vmatpush.bf16.msra.mxu0 %v4737
  %4849 = vmatmul.bf16.gmra.mxu0 %v4603
  %v4850 = vpop.f32.mrf.mxu0
  %v4851 = vadd.f32 %v4832, %v4850
  %v4852 = vpop.f32.mrf.mxu0
  %v4853 = vadd.f32 %v4834, %v4852
  %4854 = vmatmul.bf16.gmra.mxu0 %v4619
  %v4855 = vpop.f32.mrf.mxu0
  %v4856 = vadd.f32 %v4837, %v4855
  %v4857 = vpop.f32.mrf.mxu0
  %v4858 = vadd.f32 %v4839, %v4857
  %4859 = vdwg.mxu0
  %v4860 = vadd.f32 %v4480, %v4813
  %v4861 = vadd.f32 %v4481, %v4851
  %v4862 = vadd.f32 %v4482, %v4815
  %v4863 = vadd.f32 %v4483, %v4853
  %v4864 = vadd.f32 %v4484, %v4818
  %v4865 = vadd.f32 %v4485, %v4856
  %v4866 = vadd.f32 %v4486, %v4820
  %v4867 = vadd.f32 %v4487, %v4858
  %v4868 = vld [vmem:[#allocation2 + $0x10] sm:$0xf8]
  %v4869 = vld [vmem:[#allocation2 + $0x18] sm:$0xf8]
  %v4870 = vld [vmem:[#allocation2 + $0x50] sm:$0x7]
  %v4871 = vld [vmem:[#allocation2 + $0x58] sm:$0x7]
  %v4872 = vadd.s32 %v2590, 1
  %v4873 = vadd.s32 %v2591, 1
  %v4874 = vadd.s32 %v2592, 1
  %v4875 = vadd.s32 %v2593, 1
  %vm4876 = vcmp.ge.s32.totalorder %v4872, 0
  %vm4877 = vcmp.ge.s32.totalorder %v4873, 0
  %vm4878 = vcmp.ge.s32.totalorder %v4874, 0
  %vm4879 = vcmp.ge.s32.totalorder %v4875, 0
  %vm4880 = vcmp.lt.s32.totalorder %v4872, 4
  %vm4881 = vcmp.lt.s32.totalorder %v4873, 4
  %vm4882 = vcmp.lt.s32.totalorder %v4874, 4
  %vm4883 = vcmp.lt.s32.totalorder %v4875, 4
  %vm4884 = vmand %vm4876, %vm4880
  %vm4885 = vmand %vm4877, %vm4881
  %vm4886 = vmand %vm4878, %vm4882
  %vm4887 = vmand %vm4879, %vm4883
  %vm4888 = vmand %vm4884, %vm2638
  %vm4889 = vmand %vm4885, %vm2639
  %vm4890 = vmand %vm4886, %vm2640
  %vm4891 = vmand %vm4887, %vm2641
  %vm4892 = vmand %vm4888, %vm2646
  %vm4893 = vmand %vm4889, %vm2647
  %vm4894 = vmand %vm4890, %vm2648
  %vm4895 = vmand %vm4891, %vm2649
  %v4896 = vsel %vm4892, 1, 0
  %v4897 = vsel %vm4893, 1, 0
  %v4898 = vsel %vm4894, 1, 0
  %v4899 = vsel %vm4895, 1, 0
  %v4900 = vcvt.s32.f32 %v4896
  %v4901 = vcvt.s32.f32 %v4897
  %v4902 = vcvt.s32.f32 %v4898
  %v4903 = vcvt.s32.f32 %v4899
  %v4908 = vrot.slane %v4900, 5
  %v4909 = vrot.slane %v4901, 5
  %v4910 = vsel %vm2666, %v4908, %v4909
  %v4911 = vrot.slane %v4902, 5
  %v4912 = vsel %vm2666, %v4909, %v4911
  %v4913 = vrot.slane %v4903, 5
  %v4914 = vsel %vm2666, %v4911, %v4913
  %v4920 = vmul.f32 %v4868, %v4908
  %v4921 = vmul.f32 %v4869, %v4908
  %v4922 = vmul.f32 %v4490, %v4910
  %v4923 = vmul.f32 %v4491, %v4910
  %v4924 = vmul.f32 %v4492, %v4912
  %v4925 = vmul.f32 %v4493, %v4912
  %v4926 = vmul.f32 %v4494, %v4914
  %v4927 = vmul.f32 %v4495, %v4914
  %v4928 = vmul.f32 %v4870, %v4913
  %v4929 = vmul.f32 %v4871, %v4913
  %v4930 = vpack.c.bf16 %v4922, %v4920
  %v4931 = vpack.c.bf16 %v4923, %v4921
  %v4932 = vpack.c.bf16 %v4926, %v4924
  %v4933 = vpack.c.bf16 %v4927, %v4925
  %v4934 = vpack.c.bf16 %v4928, %v4928
  %v4935 = vpack.c.bf16 %v4929, %v4929
  %v4936 = vld [vmem:[%s3 + $0x600] sm:$0xff]
  %v4937 = vld [vmem:[%s3 + $0x608] sm:$0xff]
  %v4938 = vld [vmem:[%s3 + $0x610] sm:$0xff]
  %v4939 = vld [vmem:[%s3 + $0x618] sm:$0xff]
  %v4940 = vld [vmem:[%s3 + $0x620] sm:$0xff]
  %v4941 = vld [vmem:[%s3 + $0x628] sm:$0xff]
  %v4942 = vld [vmem:[%s3 + $0x630] sm:$0xff]
  %v4943 = vld [vmem:[%s3 + $0x638] sm:$0xff]
  %v4944 = vld [vmem:[%s3 + $0x640] sm:$0xff]
  %v4945 = vld [vmem:[%s3 + $0x648] sm:$0xff]
  %v4946 = vld [vmem:[%s3 + $0x650] sm:$0xff]
  %v4947 = vld [vmem:[%s3 + $0x658] sm:$0xff]
  %v4948 = vld [vmem:[%s3 + $0x660] sm:$0xff]
  %v4949 = vld [vmem:[%s3 + $0x668] sm:$0xff]
  %v4950 = vld [vmem:[%s3 + $0x670] sm:$0xff]
  %v4951 = vld [vmem:[%s3 + $0x678] sm:$0xff]
  %v4952 = vld [vmem:[%s3 + $0x680] sm:$0xff]
  %v4953 = vld [vmem:[%s3 + $0x688] sm:$0xff]
  %v4954 = vld [vmem:[%s3 + $0x690] sm:$0xff]
  %v4955 = vld [vmem:[%s3 + $0x698] sm:$0xff]
  %v4956 = vld [vmem:[%s3 + $0x6a0] sm:$0xff]
  %v4957 = vld [vmem:[%s3 + $0x6a8] sm:$0xff]
  %v4958 = vld [vmem:[%s3 + $0x6b0] sm:$0xff]
  %v4959 = vld [vmem:[%s3 + $0x6b8] sm:$0xff]
  %v4960 = vld [vmem:[%s3 + $0x6c0] sm:$0xff]
  %v4961 = vld [vmem:[%s3 + $0x6c8] sm:$0xff]
  %v4962 = vld [vmem:[%s3 + $0x6d0] sm:$0xff]
  %v4963 = vld [vmem:[%s3 + $0x6d8] sm:$0xff]
  %v4964 = vld [vmem:[%s3 + $0x6e0] sm:$0xff]
  %v4965 = vld [vmem:[%s3 + $0x6e8] sm:$0xff]
  %v4966 = vld [vmem:[%s3 + $0x6f0] sm:$0xff]
  %v4967 = vld [vmem:[%s3 + $0x6f8] sm:$0xff]
  %v4969 = vshrl.u32 %v4930, 16
  %v4971 = vrot.slane %v4969, 1
  %v4972 = vshll.u32 %v4930, 16
  %v4974 = vrot.slane %v4972, 2
  %v4975 = vor.u32 %v4971, %v4974
  %v4977 = vshrl.u32 %v4932, 16
  %v4979 = vrot.slane %v4977, 1
  %v4980 = vshll.u32 %v4932, 16
  %v4982 = vrot.slane %v4980, 2
  %v4983 = vor.u32 %v4979, %v4982
  %v4984 = vsel %vm2727, %v4975, %v4983
  %v4986 = vshrl.u32 %v4931, 16
  %v4988 = vrot.slane %v4986, 1
  %v4989 = vshll.u32 %v4931, 16
  %v4991 = vrot.slane %v4989, 2
  %v4992 = vor.u32 %v4988, %v4991
  %v4994 = vshrl.u32 %v4933, 16
  %v4996 = vrot.slane %v4994, 1
  %v4997 = vshll.u32 %v4933, 16
  %v4999 = vrot.slane %v4997, 2
  %v5000 = vor.u32 %v4996, %v4999
  %v5001 = vsel %vm2727, %v4992, %v5000
  %v5003 = vshrl.u32 %v4934, 16
  %v5005 = vrot.slane %v5003, 1
  %v5006 = vshll.u32 %v4934, 16
  %v5008 = vrot.slane %v5006, 2
  %v5009 = vor.u32 %v5005, %v5008
  %v5010 = vsel %vm2727, %v4983, %v5009
  %v5012 = vshrl.u32 %v4935, 16
  %v5014 = vrot.slane %v5012, 1
  %v5015 = vshll.u32 %v4935, 16
  %v5017 = vrot.slane %v5015, 2
  %v5018 = vor.u32 %v5014, %v5017
  %v5019 = vsel %vm2727, %v5000, %v5018
  %v5056 = vunpack.c.l.b16 %v4936
  %v5057 = vunpack.c.h.b16 %v4936
  %v5058 = vunpack.c.l.b16 %v4937
  %v5059 = vunpack.c.h.b16 %v4937
  %v5060 = vunpack.c.l.b16 %v4938
  %v5061 = vunpack.c.h.b16 %v4938
  %v5062 = vunpack.c.l.b16 %v4939
  %v5063 = vunpack.c.h.b16 %v4939
  %v5064 = vunpack.c.l.b16 %v4940
  %v5065 = vunpack.c.h.b16 %v4940
  %v5066 = vunpack.c.l.b16 %v4941
  %v5067 = vunpack.c.h.b16 %v4941
  %v5068 = vunpack.c.l.b16 %v4942
  %v5069 = vunpack.c.h.b16 %v4942
  %v5070 = vunpack.c.l.b16 %v4943
  %v5071 = vunpack.c.h.b16 %v4943
  %v5072 = vunpack.c.l.b16 %v4944
  %v5073 = vunpack.c.h.b16 %v4944
  %v5074 = vunpack.c.l.b16 %v4945
  %v5075 = vunpack.c.h.b16 %v4945
  %v5076 = vunpack.c.l.b16 %v4946
  %v5077 = vunpack.c.h.b16 %v4946
  %v5078 = vunpack.c.l.b16 %v4947
  %v5079 = vunpack.c.h.b16 %v4947
  %v5080 = vunpack.c.l.b16 %v4948
  %v5081 = vunpack.c.h.b16 %v4948
  %v5082 = vunpack.c.l.b16 %v4949
  %v5083 = vunpack.c.h.b16 %v4949
  %v5084 = vunpack.c.l.b16 %v4950
  %v5085 = vunpack.c.h.b16 %v4950
  %v5086 = vunpack.c.l.b16 %v4951
  %v5087 = vunpack.c.h.b16 %v4951
  %v5088 = vunpack.c.l.b16 %v4952
  %v5089 = vunpack.c.h.b16 %v4952
  %v5090 = vunpack.c.l.b16 %v4953
  %v5091 = vunpack.c.h.b16 %v4953
  %v5092 = vunpack.c.l.b16 %v4954
  %v5093 = vunpack.c.h.b16 %v4954
  %v5094 = vunpack.c.l.b16 %v4955
  %v5095 = vunpack.c.h.b16 %v4955
  %v5096 = vunpack.c.l.b16 %v4956
  %v5097 = vunpack.c.h.b16 %v4956
  %v5098 = vunpack.c.l.b16 %v4957
  %v5099 = vunpack.c.h.b16 %v4957
  %v5100 = vunpack.c.l.b16 %v4958
  %v5101 = vunpack.c.h.b16 %v4958
  %v5102 = vunpack.c.l.b16 %v4959
  %v5103 = vunpack.c.h.b16 %v4959
  %v5104 = vunpack.c.l.b16 %v4960
  %v5105 = vunpack.c.h.b16 %v4960
  %v5106 = vunpack.c.l.b16 %v4961
  %v5107 = vunpack.c.h.b16 %v4961
  %v5108 = vunpack.c.l.b16 %v4962
  %v5109 = vunpack.c.h.b16 %v4962
  %v5110 = vunpack.c.l.b16 %v4963
  %v5111 = vunpack.c.h.b16 %v4963
  %v5112 = vunpack.c.l.b16 %v4964
  %v5113 = vunpack.c.h.b16 %v4964
  %v5114 = vunpack.c.l.b16 %v4965
  %v5115 = vunpack.c.h.b16 %v4965
  %v5116 = vunpack.c.l.b16 %v4966
  %v5117 = vunpack.c.h.b16 %v4966
  %v5118 = vunpack.c.l.b16 %v4967
  %v5119 = vunpack.c.h.b16 %v4967
  %v5120 = vpack.c.b16 %v5058, %v5056
  %v5121 = vpack.c.b16 %v5059, %v5057
  %v5122 = vpack.c.b16 %v5062, %v5060
  %v5123 = vpack.c.b16 %v5063, %v5061
  %v5124 = vpack.c.b16 %v5066, %v5064
  %v5125 = vpack.c.b16 %v5067, %v5065
  %v5126 = vpack.c.b16 %v5070, %v5068
  %v5127 = vpack.c.b16 %v5071, %v5069
  %v5128 = vpack.c.b16 %v5074, %v5072
  %v5129 = vpack.c.b16 %v5075, %v5073
  %v5130 = vpack.c.b16 %v5078, %v5076
  %v5131 = vpack.c.b16 %v5079, %v5077
  %v5132 = vpack.c.b16 %v5082, %v5080
  %v5133 = vpack.c.b16 %v5083, %v5081
  %v5134 = vpack.c.b16 %v5086, %v5084
  %v5135 = vpack.c.b16 %v5087, %v5085
  %v5136 = vpack.c.b16 %v5090, %v5088
  %v5137 = vpack.c.b16 %v5091, %v5089
  %v5138 = vpack.c.b16 %v5094, %v5092
  %v5139 = vpack.c.b16 %v5095, %v5093
  %v5140 = vpack.c.b16 %v5098, %v5096
  %v5141 = vpack.c.b16 %v5099, %v5097
  %v5142 = vpack.c.b16 %v5102, %v5100
  %v5143 = vpack.c.b16 %v5103, %v5101
  %v5144 = vpack.c.b16 %v5106, %v5104
  %v5145 = vpack.c.b16 %v5107, %v5105
  %v5146 = vpack.c.b16 %v5110, %v5108
  %v5147 = vpack.c.b16 %v5111, %v5109
  %v5148 = vpack.c.b16 %v5114, %v5112
  %v5149 = vpack.c.b16 %v5115, %v5113
  %v5150 = vpack.c.b16 %v5118, %v5116
  %v5151 = vpack.c.b16 %v5119, %v5117
  %5184 = vmatpush.bf16.msra.mxu0 %v5134
  %5185 = vmatpush.bf16.msra.mxu0 %v5132
  %5186 = vmatpush.bf16.msra.mxu0 %v5130
  %5187 = vmatpush.bf16.msra.mxu0 %v5128
  %5188 = vmatpush.bf16.msra.mxu0 %v5126
  %5189 = vmatpush.bf16.msra.mxu0 %v5124
  %5190 = vmatpush.bf16.msra.mxu0 %v5122
  %5191 = vmatpush.bf16.msra.mxu0 %v5120
  %5192 = vmatmul.bf16.gmra.mxu0 %v4984
  %v5193 = vpop.f32.mrf.mxu0
  %v5194 = vadd.f32 0.0, %v5193
  %v5195 = vpop.f32.mrf.mxu0
  %v5196 = vadd.f32 0.0, %v5195
  %5197 = vmatmul.bf16.gmra.mxu0 %v5010
  %v5198 = vpop.f32.mrf.mxu0
  %v5199 = vadd.f32 0.0, %v5198
  %v5200 = vpop.f32.mrf.mxu0
  %v5201 = vadd.f32 0.0, %v5200
  %5202 = vdwg.mxu0
  %5203 = vmatpush.bf16.msra.mxu0 %v5150
  %5204 = vmatpush.bf16.msra.mxu0 %v5148
  %5205 = vmatpush.bf16.msra.mxu0 %v5146
  %5206 = vmatpush.bf16.msra.mxu0 %v5144
  %5207 = vmatpush.bf16.msra.mxu0 %v5142
  %5208 = vmatpush.bf16.msra.mxu0 %v5140
  %5209 = vmatpush.bf16.msra.mxu0 %v5138
  %5210 = vmatpush.bf16.msra.mxu0 %v5136
  %5211 = vmatmul.bf16.gmra.mxu0 %v5001
  %v5212 = vpop.f32.mrf.mxu0
  %v5213 = vadd.f32 %v5194, %v5212
  %v5214 = vpop.f32.mrf.mxu0
  %v5215 = vadd.f32 %v5196, %v5214
  %5216 = vmatmul.bf16.gmra.mxu0 %v5019
  %v5217 = vpop.f32.mrf.mxu0
  %v5218 = vadd.f32 %v5199, %v5217
  %v5219 = vpop.f32.mrf.mxu0
  %v5220 = vadd.f32 %v5201, %v5219
  %5221 = vdwg.mxu0
  %5222 = vmatpush.bf16.msra.mxu0 %v5135
  %5223 = vmatpush.bf16.msra.mxu0 %v5133
  %5224 = vmatpush.bf16.msra.mxu0 %v5131
  %5225 = vmatpush.bf16.msra.mxu0 %v5129
  %5226 = vmatpush.bf16.msra.mxu0 %v5127
  %5227 = vmatpush.bf16.msra.mxu0 %v5125
  %5228 = vmatpush.bf16.msra.mxu0 %v5123
  %5229 = vmatpush.bf16.msra.mxu0 %v5121
  %5230 = vmatmul.bf16.gmra.mxu0 %v4984
  %v5231 = vpop.f32.mrf.mxu0
  %v5232 = vadd.f32 0.0, %v5231
  %v5233 = vpop.f32.mrf.mxu0
  %v5234 = vadd.f32 0.0, %v5233
  %5235 = vmatmul.bf16.gmra.mxu0 %v5010
  %v5236 = vpop.f32.mrf.mxu0
  %v5237 = vadd.f32 0.0, %v5236
  %v5238 = vpop.f32.mrf.mxu0
  %v5239 = vadd.f32 0.0, %v5238
  %5240 = vdwg.mxu0
  %5241 = vmatpush.bf16.msra.mxu0 %v5151
  %5242 = vmatpush.bf16.msra.mxu0 %v5149
  %5243 = vmatpush.bf16.msra.mxu0 %v5147
  %5244 = vmatpush.bf16.msra.mxu0 %v5145
  %5245 = vmatpush.bf16.msra.mxu0 %v5143
  %5246 = vmatpush.bf16.msra.mxu0 %v5141
  %5247 = vmatpush.bf16.msra.mxu0 %v5139
  %5248 = vmatpush.bf16.msra.mxu0 %v5137
  %5249 = vmatmul.bf16.gmra.mxu0 %v5001
  %v5250 = vpop.f32.mrf.mxu0
  %v5251 = vadd.f32 %v5232, %v5250
  %v5252 = vpop.f32.mrf.mxu0
  %v5253 = vadd.f32 %v5234, %v5252
  %5254 = vmatmul.bf16.gmra.mxu0 %v5019
  %v5255 = vpop.f32.mrf.mxu0
  %v5256 = vadd.f32 %v5237, %v5255
  %v5257 = vpop.f32.mrf.mxu0
  %v5258 = vadd.f32 %v5239, %v5257
  %5259 = vdwg.mxu0
  %v5260 = vadd.f32 %v4860, %v5213
  %v5261 = vadd.f32 %v4861, %v5251
  %v5262 = vadd.f32 %v4862, %v5215
  %v5263 = vadd.f32 %v4863, %v5253
  %v5264 = vadd.f32 %v4864, %v5218
  %v5265 = vadd.f32 %v4865, %v5256
  %v5266 = vadd.f32 %v4866, %v5220
  %v5267 = vadd.f32 %v4867, %v5258
  %v5268 = vld [vmem:[#allocation2 + $0x10] sm:$0xf0]
  %v5269 = vld [vmem:[#allocation2 + $0x18] sm:$0xf0]
  %v5270 = vld [vmem:[#allocation2 + $0x50] sm:$0xf]
  %v5271 = vld [vmem:[#allocation2 + $0x58] sm:$0xf]
  %vm5272 = vmand %vm4884, %vm3032
  %vm5273 = vmand %vm4885, %vm3033
  %vm5274 = vmand %vm4886, %vm3034
  %vm5275 = vmand %vm4887, %vm3035
  %vm5276 = vmand %vm5272, %vm3040
  %vm5277 = vmand %vm5273, %vm3041
  %vm5278 = vmand %vm5274, %vm3042
  %vm5279 = vmand %vm5275, %vm3043
  %v5280 = vsel %vm5276, 1, 0
  %v5281 = vsel %vm5277, 1, 0
  %v5282 = vsel %vm5278, 1, 0
  %v5283 = vsel %vm5279, 1, 0
  %v5284 = vcvt.s32.f32 %v5280
  %v5285 = vcvt.s32.f32 %v5281
  %v5286 = vcvt.s32.f32 %v5282
  %v5287 = vcvt.s32.f32 %v5283
  %v5292 = vrot.slane %v5284, 4
  %v5293 = vrot.slane %v5285, 4
  %v5294 = vsel %vm3060, %v5292, %v5293
  %v5295 = vrot.slane %v5286, 4
  %v5296 = vsel %vm3060, %v5293, %v5295
  %v5297 = vrot.slane %v5287, 4
  %v5298 = vsel %vm3060, %v5295, %v5297
  %v5304 = vmul.f32 %v5268, %v5292
  %v5305 = vmul.f32 %v5269, %v5292
  %v5306 = vmul.f32 %v4490, %v5294
  %v5307 = vmul.f32 %v4491, %v5294
  %v5308 = vmul.f32 %v4492, %v5296
  %v5309 = vmul.f32 %v4493, %v5296
  %v5310 = vmul.f32 %v4494, %v5298
  %v5311 = vmul.f32 %v4495, %v5298
  %v5312 = vmul.f32 %v5270, %v5297
  %v5313 = vmul.f32 %v5271, %v5297
  %v5314 = vpack.c.bf16 %v5306, %v5304
  %v5315 = vpack.c.bf16 %v5307, %v5305
  %v5316 = vpack.c.bf16 %v5310, %v5308
  %v5317 = vpack.c.bf16 %v5311, %v5309
  %v5318 = vpack.c.bf16 %v5312, %v5312
  %v5319 = vpack.c.bf16 %v5313, %v5313
  %v5320 = vld [vmem:[%s3 + $0x700] sm:$0xff]
  %v5321 = vld [vmem:[%s3 + $0x708] sm:$0xff]
  %v5322 = vld [vmem:[%s3 + $0x710] sm:$0xff]
  %v5323 = vld [vmem:[%s3 + $0x718] sm:$0xff]
  %v5324 = vld [vmem:[%s3 + $0x720] sm:$0xff]
  %v5325 = vld [vmem:[%s3 + $0x728] sm:$0xff]
  %v5326 = vld [vmem:[%s3 + $0x730] sm:$0xff]
  %v5327 = vld [vmem:[%s3 + $0x738] sm:$0xff]
  %v5328 = vld [vmem:[%s3 + $0x740] sm:$0xff]
  %v5329 = vld [vmem:[%s3 + $0x748] sm:$0xff]
  %v5330 = vld [vmem:[%s3 + $0x750] sm:$0xff]
  %v5331 = vld [vmem:[%s3 + $0x758] sm:$0xff]
  %v5332 = vld [vmem:[%s3 + $0x760] sm:$0xff]
  %v5333 = vld [vmem:[%s3 + $0x768] sm:$0xff]
  %v5334 = vld [vmem:[%s3 + $0x770] sm:$0xff]
  %v5335 = vld [vmem:[%s3 + $0x778] sm:$0xff]
  %v5336 = vld [vmem:[%s3 + $0x780] sm:$0xff]
  %v5337 = vld [vmem:[%s3 + $0x788] sm:$0xff]
  %v5338 = vld [vmem:[%s3 + $0x790] sm:$0xff]
  %v5339 = vld [vmem:[%s3 + $0x798] sm:$0xff]
  %v5340 = vld [vmem:[%s3 + $0x7a0] sm:$0xff]
  %v5341 = vld [vmem:[%s3 + $0x7a8] sm:$0xff]
  %v5342 = vld [vmem:[%s3 + $0x7b0] sm:$0xff]
  %v5343 = vld [vmem:[%s3 + $0x7b8] sm:$0xff]
  %v5344 = vld [vmem:[%s3 + $0x7c0] sm:$0xff]
  %v5345 = vld [vmem:[%s3 + $0x7c8] sm:$0xff]
  %v5346 = vld [vmem:[%s3 + $0x7d0] sm:$0xff]
  %v5347 = vld [vmem:[%s3 + $0x7d8] sm:$0xff]
  %v5348 = vld [vmem:[%s3 + $0x7e0] sm:$0xff]
  %v5349 = vld [vmem:[%s3 + $0x7e8] sm:$0xff]
  %v5350 = vld [vmem:[%s3 + $0x7f0] sm:$0xff]
  %v5351 = vld [vmem:[%s3 + $0x7f8] sm:$0xff]
  %v5358 = vrot.slane %v5314, 2
  %v5359 = vrot.slane %v5316, 2
  %v5360 = vsel %vm3127, %v5358, %v5359
  %v5361 = vrot.slane %v5315, 2
  %v5362 = vrot.slane %v5317, 2
  %v5363 = vsel %vm3127, %v5361, %v5362
  %v5364 = vrot.slane %v5318, 2
  %v5365 = vsel %vm3127, %v5359, %v5364
  %v5366 = vrot.slane %v5319, 2
  %v5367 = vsel %vm3127, %v5362, %v5366
  %v5404 = vunpack.c.l.b16 %v5320
  %v5405 = vunpack.c.h.b16 %v5320
  %v5406 = vunpack.c.l.b16 %v5321
  %v5407 = vunpack.c.h.b16 %v5321
  %v5408 = vunpack.c.l.b16 %v5322
  %v5409 = vunpack.c.h.b16 %v5322
  %v5410 = vunpack.c.l.b16 %v5323
  %v5411 = vunpack.c.h.b16 %v5323
  %v5412 = vunpack.c.l.b16 %v5324
  %v5413 = vunpack.c.h.b16 %v5324
  %v5414 = vunpack.c.l.b16 %v5325
  %v5415 = vunpack.c.h.b16 %v5325
  %v5416 = vunpack.c.l.b16 %v5326
  %v5417 = vunpack.c.h.b16 %v5326
  %v5418 = vunpack.c.l.b16 %v5327
  %v5419 = vunpack.c.h.b16 %v5327
  %v5420 = vunpack.c.l.b16 %v5328
  %v5421 = vunpack.c.h.b16 %v5328
  %v5422 = vunpack.c.l.b16 %v5329
  %v5423 = vunpack.c.h.b16 %v5329
  %v5424 = vunpack.c.l.b16 %v5330
  %v5425 = vunpack.c.h.b16 %v5330
  %v5426 = vunpack.c.l.b16 %v5331
  %v5427 = vunpack.c.h.b16 %v5331
  %v5428 = vunpack.c.l.b16 %v5332
  %v5429 = vunpack.c.h.b16 %v5332
  %v5430 = vunpack.c.l.b16 %v5333
  %v5431 = vunpack.c.h.b16 %v5333
  %v5432 = vunpack.c.l.b16 %v5334
  %v5433 = vunpack.c.h.b16 %v5334
  %v5434 = vunpack.c.l.b16 %v5335
  %v5435 = vunpack.c.h.b16 %v5335
  %v5436 = vunpack.c.l.b16 %v5336
  %v5437 = vunpack.c.h.b16 %v5336
  %v5438 = vunpack.c.l.b16 %v5337
  %v5439 = vunpack.c.h.b16 %v5337
  %v5440 = vunpack.c.l.b16 %v5338
  %v5441 = vunpack.c.h.b16 %v5338
  %v5442 = vunpack.c.l.b16 %v5339
  %v5443 = vunpack.c.h.b16 %v5339
  %v5444 = vunpack.c.l.b16 %v5340
  %v5445 = vunpack.c.h.b16 %v5340
  %v5446 = vunpack.c.l.b16 %v5341
  %v5447 = vunpack.c.h.b16 %v5341
  %v5448 = vunpack.c.l.b16 %v5342
  %v5449 = vunpack.c.h.b16 %v5342
  %v5450 = vunpack.c.l.b16 %v5343
  %v5451 = vunpack.c.h.b16 %v5343
  %v5452 = vunpack.c.l.b16 %v5344
  %v5453 = vunpack.c.h.b16 %v5344
  %v5454 = vunpack.c.l.b16 %v5345
  %v5455 = vunpack.c.h.b16 %v5345
  %v5456 = vunpack.c.l.b16 %v5346
  %v5457 = vunpack.c.h.b16 %v5346
  %v5458 = vunpack.c.l.b16 %v5347
  %v5459 = vunpack.c.h.b16 %v5347
  %v5460 = vunpack.c.l.b16 %v5348
  %v5461 = vunpack.c.h.b16 %v5348
  %v5462 = vunpack.c.l.b16 %v5349
  %v5463 = vunpack.c.h.b16 %v5349
  %v5464 = vunpack.c.l.b16 %v5350
  %v5465 = vunpack.c.h.b16 %v5350
  %v5466 = vunpack.c.l.b16 %v5351
  %v5467 = vunpack.c.h.b16 %v5351
  %v5468 = vpack.c.b16 %v5406, %v5404
  %v5469 = vpack.c.b16 %v5407, %v5405
  %v5470 = vpack.c.b16 %v5410, %v5408
  %v5471 = vpack.c.b16 %v5411, %v5409
  %v5472 = vpack.c.b16 %v5414, %v5412
  %v5473 = vpack.c.b16 %v5415, %v5413
  %v5474 = vpack.c.b16 %v5418, %v5416
  %v5475 = vpack.c.b16 %v5419, %v5417
  %v5476 = vpack.c.b16 %v5422, %v5420
  %v5477 = vpack.c.b16 %v5423, %v5421
  %v5478 = vpack.c.b16 %v5426, %v5424
  %v5479 = vpack.c.b16 %v5427, %v5425
  %v5480 = vpack.c.b16 %v5430, %v5428
  %v5481 = vpack.c.b16 %v5431, %v5429
  %v5482 = vpack.c.b16 %v5434, %v5432
  %v5483 = vpack.c.b16 %v5435, %v5433
  %v5484 = vpack.c.b16 %v5438, %v5436
  %v5485 = vpack.c.b16 %v5439, %v5437
  %v5486 = vpack.c.b16 %v5442, %v5440
  %v5487 = vpack.c.b16 %v5443, %v5441
  %v5488 = vpack.c.b16 %v5446, %v5444
  %v5489 = vpack.c.b16 %v5447, %v5445
  %v5490 = vpack.c.b16 %v5450, %v5448
  %v5491 = vpack.c.b16 %v5451, %v5449
  %v5492 = vpack.c.b16 %v5454, %v5452
  %v5493 = vpack.c.b16 %v5455, %v5453
  %v5494 = vpack.c.b16 %v5458, %v5456
  %v5495 = vpack.c.b16 %v5459, %v5457
  %v5496 = vpack.c.b16 %v5462, %v5460
  %v5497 = vpack.c.b16 %v5463, %v5461
  %v5498 = vpack.c.b16 %v5466, %v5464
  %v5499 = vpack.c.b16 %v5467, %v5465
  %5532 = vmatpush.bf16.msra.mxu0 %v5482
  %5533 = vmatpush.bf16.msra.mxu0 %v5480
  %5534 = vmatpush.bf16.msra.mxu0 %v5478
  %5535 = vmatpush.bf16.msra.mxu0 %v5476
  %5536 = vmatpush.bf16.msra.mxu0 %v5474
  %5537 = vmatpush.bf16.msra.mxu0 %v5472
  %5538 = vmatpush.bf16.msra.mxu0 %v5470
  %5539 = vmatpush.bf16.msra.mxu0 %v5468
  %5540 = vmatmul.bf16.gmra.mxu0 %v5360
  %v5541 = vpop.f32.mrf.mxu0
  %v5542 = vadd.f32 0.0, %v5541
  %v5543 = vpop.f32.mrf.mxu0
  %v5544 = vadd.f32 0.0, %v5543
  %5545 = vmatmul.bf16.gmra.mxu0 %v5365
  %v5546 = vpop.f32.mrf.mxu0
  %v5547 = vadd.f32 0.0, %v5546
  %v5548 = vpop.f32.mrf.mxu0
  %v5549 = vadd.f32 0.0, %v5548
  %5550 = vdwg.mxu0
  %5551 = vmatpush.bf16.msra.mxu0 %v5498
  %5552 = vmatpush.bf16.msra.mxu0 %v5496
  %5553 = vmatpush.bf16.msra.mxu0 %v5494
  %5554 = vmatpush.bf16.msra.mxu0 %v5492
  %5555 = vmatpush.bf16.msra.mxu0 %v5490
  %5556 = vmatpush.bf16.msra.mxu0 %v5488
  %5557 = vmatpush.bf16.msra.mxu0 %v5486
  %5558 = vmatpush.bf16.msra.mxu0 %v5484
  %5559 = vmatmul.bf16.gmra.mxu0 %v5363
  %v5560 = vpop.f32.mrf.mxu0
  %v5561 = vadd.f32 %v5542, %v5560
  %v5562 = vpop.f32.mrf.mxu0
  %v5563 = vadd.f32 %v5544, %v5562
  %5564 = vmatmul.bf16.gmra.mxu0 %v5367
  %v5565 = vpop.f32.mrf.mxu0
  %v5566 = vadd.f32 %v5547, %v5565
  %v5567 = vpop.f32.mrf.mxu0
  %v5568 = vadd.f32 %v5549, %v5567
  %5569 = vdwg.mxu0
  %5570 = vmatpush.bf16.msra.mxu0 %v5483
  %5571 = vmatpush.bf16.msra.mxu0 %v5481
  %5572 = vmatpush.bf16.msra.mxu0 %v5479
  %5573 = vmatpush.bf16.msra.mxu0 %v5477
  %5574 = vmatpush.bf16.msra.mxu0 %v5475
  %5575 = vmatpush.bf16.msra.mxu0 %v5473
  %5576 = vmatpush.bf16.msra.mxu0 %v5471
  %5577 = vmatpush.bf16.msra.mxu0 %v5469
  %5578 = vmatmul.bf16.gmra.mxu0 %v5360
  %v5579 = vpop.f32.mrf.mxu0
  %v5580 = vadd.f32 0.0, %v5579
  %v5581 = vpop.f32.mrf.mxu0
  %v5582 = vadd.f32 0.0, %v5581
  %5583 = vmatmul.bf16.gmra.mxu0 %v5365
  %v5584 = vpop.f32.mrf.mxu0
  %v5585 = vadd.f32 0.0, %v5584
  %v5586 = vpop.f32.mrf.mxu0
  %v5587 = vadd.f32 0.0, %v5586
  %5588 = vdwg.mxu0
  %5589 = vmatpush.bf16.msra.mxu0 %v5499
  %5590 = vmatpush.bf16.msra.mxu0 %v5497
  %5591 = vmatpush.bf16.msra.mxu0 %v5495
  %5592 = vmatpush.bf16.msra.mxu0 %v5493
  %5593 = vmatpush.bf16.msra.mxu0 %v5491
  %5594 = vmatpush.bf16.msra.mxu0 %v5489
  %5595 = vmatpush.bf16.msra.mxu0 %v5487
  %5596 = vmatpush.bf16.msra.mxu0 %v5485
  %5597 = vmatmul.bf16.gmra.mxu0 %v5363
  %v5598 = vpop.f32.mrf.mxu0
  %v5599 = vadd.f32 %v5580, %v5598
  %v5600 = vpop.f32.mrf.mxu0
  %v5601 = vadd.f32 %v5582, %v5600
  %5602 = vmatmul.bf16.gmra.mxu0 %v5367
  %v5603 = vpop.f32.mrf.mxu0
  %v5604 = vadd.f32 %v5585, %v5603
  %v5605 = vpop.f32.mrf.mxu0
  %v5606 = vadd.f32 %v5587, %v5605
  %5607 = vdwg.mxu0
  %v5608 = vadd.f32 %v5260, %v5561
  %v5609 = vadd.f32 %v5261, %v5599
  %v5610 = vadd.f32 %v5262, %v5563
  %v5611 = vadd.f32 %v5263, %v5601
  %v5612 = vadd.f32 %v5264, %v5566
  %v5613 = vadd.f32 %v5265, %v5604
  %v5614 = vadd.f32 %v5266, %v5568
  %v5615 = vadd.f32 %v5267, %v5606
  %v5616 = vld [vmem:[#allocation2 + $0x10] sm:$0xe0]
  %v5617 = vld [vmem:[#allocation2 + $0x18] sm:$0xe0]
  %v5618 = vld [vmem:[#allocation2 + $0x50] sm:$0x1f]
  %v5619 = vld [vmem:[#allocation2 + $0x58] sm:$0x1f]
  %vm5620 = vmand %vm4884, %vm3394
  %vm5621 = vmand %vm4885, %vm3395
  %vm5622 = vmand %vm4886, %vm3396
  %vm5623 = vmand %vm4887, %vm3397
  %vm5624 = vmand %vm5620, %vm3402
  %vm5625 = vmand %vm5621, %vm3403
  %vm5626 = vmand %vm5622, %vm3404
  %vm5627 = vmand %vm5623, %vm3405
  %v5628 = vsel %vm5624, 1, 0
  %v5629 = vsel %vm5625, 1, 0
  %v5630 = vsel %vm5626, 1, 0
  %v5631 = vsel %vm5627, 1, 0
  %v5632 = vcvt.s32.f32 %v5628
  %v5633 = vcvt.s32.f32 %v5629
  %v5634 = vcvt.s32.f32 %v5630
  %v5635 = vcvt.s32.f32 %v5631
  %v5640 = vrot.slane %v5632, 3
  %v5641 = vrot.slane %v5633, 3
  %v5642 = vsel %vm3422, %v5640, %v5641
  %v5643 = vrot.slane %v5634, 3
  %v5644 = vsel %vm3422, %v5641, %v5643
  %v5645 = vrot.slane %v5635, 3
  %v5646 = vsel %vm3422, %v5643, %v5645
  %v5652 = vmul.f32 %v5616, %v5640
  %v5653 = vmul.f32 %v5617, %v5640
  %v5654 = vmul.f32 %v4490, %v5642
  %v5655 = vmul.f32 %v4491, %v5642
  %v5656 = vmul.f32 %v4492, %v5644
  %v5657 = vmul.f32 %v4493, %v5644
  %v5658 = vmul.f32 %v4494, %v5646
  %v5659 = vmul.f32 %v4495, %v5646
  %v5660 = vmul.f32 %v5618, %v5645
  %v5661 = vmul.f32 %v5619, %v5645
  %v5662 = vpack.c.bf16 %v5654, %v5652
  %v5663 = vpack.c.bf16 %v5655, %v5653
  %v5664 = vpack.c.bf16 %v5658, %v5656
  %v5665 = vpack.c.bf16 %v5659, %v5657
  %v5666 = vpack.c.bf16 %v5660, %v5660
  %v5667 = vpack.c.bf16 %v5661, %v5661
  %v5668 = vld [vmem:[%s3 + $0x800] sm:$0xff]
  %v5669 = vld [vmem:[%s3 + $0x808] sm:$0xff]
  %v5670 = vld [vmem:[%s3 + $0x810] sm:$0xff]
  %v5671 = vld [vmem:[%s3 + $0x818] sm:$0xff]
  %v5672 = vld [vmem:[%s3 + $0x820] sm:$0xff]
  %v5673 = vld [vmem:[%s3 + $0x828] sm:$0xff]
  %v5674 = vld [vmem:[%s3 + $0x830] sm:$0xff]
  %v5675 = vld [vmem:[%s3 + $0x838] sm:$0xff]
  %v5676 = vld [vmem:[%s3 + $0x840] sm:$0xff]
  %v5677 = vld [vmem:[%s3 + $0x848] sm:$0xff]
  %v5678 = vld [vmem:[%s3 + $0x850] sm:$0xff]
  %v5679 = vld [vmem:[%s3 + $0x858] sm:$0xff]
  %v5680 = vld [vmem:[%s3 + $0x860] sm:$0xff]
  %v5681 = vld [vmem:[%s3 + $0x868] sm:$0xff]
  %v5682 = vld [vmem:[%s3 + $0x870] sm:$0xff]
  %v5683 = vld [vmem:[%s3 + $0x878] sm:$0xff]
  %v5684 = vld [vmem:[%s3 + $0x880] sm:$0xff]
  %v5685 = vld [vmem:[%s3 + $0x888] sm:$0xff]
  %v5686 = vld [vmem:[%s3 + $0x890] sm:$0xff]
  %v5687 = vld [vmem:[%s3 + $0x898] sm:$0xff]
  %v5688 = vld [vmem:[%s3 + $0x8a0] sm:$0xff]
  %v5689 = vld [vmem:[%s3 + $0x8a8] sm:$0xff]
  %v5690 = vld [vmem:[%s3 + $0x8b0] sm:$0xff]
  %v5691 = vld [vmem:[%s3 + $0x8b8] sm:$0xff]
  %v5692 = vld [vmem:[%s3 + $0x8c0] sm:$0xff]
  %v5693 = vld [vmem:[%s3 + $0x8c8] sm:$0xff]
  %v5694 = vld [vmem:[%s3 + $0x8d0] sm:$0xff]
  %v5695 = vld [vmem:[%s3 + $0x8d8] sm:$0xff]
  %v5696 = vld [vmem:[%s3 + $0x8e0] sm:$0xff]
  %v5697 = vld [vmem:[%s3 + $0x8e8] sm:$0xff]
  %v5698 = vld [vmem:[%s3 + $0x8f0] sm:$0xff]
  %v5699 = vld [vmem:[%s3 + $0x8f8] sm:$0xff]
  %v5701 = vshrl.u32 %v5662, 16
  %v5703 = vrot.slane %v5701, 2
  %v5704 = vshll.u32 %v5662, 16
  %v5706 = vrot.slane %v5704, 3
  %v5707 = vor.u32 %v5703, %v5706
  %v5709 = vshrl.u32 %v5664, 16
  %v5711 = vrot.slane %v5709, 2
  %v5712 = vshll.u32 %v5664, 16
  %v5714 = vrot.slane %v5712, 3
  %v5715 = vor.u32 %v5711, %v5714
  %v5716 = vsel %vm3483, %v5707, %v5715
  %v5718 = vshrl.u32 %v5663, 16
  %v5720 = vrot.slane %v5718, 2
  %v5721 = vshll.u32 %v5663, 16
  %v5723 = vrot.slane %v5721, 3
  %v5724 = vor.u32 %v5720, %v5723
  %v5726 = vshrl.u32 %v5665, 16
  %v5728 = vrot.slane %v5726, 2
  %v5729 = vshll.u32 %v5665, 16
  %v5731 = vrot.slane %v5729, 3
  %v5732 = vor.u32 %v5728, %v5731
  %v5733 = vsel %vm3483, %v5724, %v5732
  %v5735 = vshrl.u32 %v5666, 16
  %v5737 = vrot.slane %v5735, 2
  %v5738 = vshll.u32 %v5666, 16
  %v5740 = vrot.slane %v5738, 3
  %v5741 = vor.u32 %v5737, %v5740
  %v5742 = vsel %vm3483, %v5715, %v5741
  %v5744 = vshrl.u32 %v5667, 16
  %v5746 = vrot.slane %v5744, 2
  %v5747 = vshll.u32 %v5667, 16
  %v5749 = vrot.slane %v5747, 3
  %v5750 = vor.u32 %v5746, %v5749
  %v5751 = vsel %vm3483, %v5732, %v5750
  %v5788 = vunpack.c.l.b16 %v5668
  %v5789 = vunpack.c.h.b16 %v5668
  %v5790 = vunpack.c.l.b16 %v5669
  %v5791 = vunpack.c.h.b16 %v5669
  %v5792 = vunpack.c.l.b16 %v5670
  %v5793 = vunpack.c.h.b16 %v5670
  %v5794 = vunpack.c.l.b16 %v5671
  %v5795 = vunpack.c.h.b16 %v5671
  %v5796 = vunpack.c.l.b16 %v5672
  %v5797 = vunpack.c.h.b16 %v5672
  %v5798 = vunpack.c.l.b16 %v5673
  %v5799 = vunpack.c.h.b16 %v5673
  %v5800 = vunpack.c.l.b16 %v5674
  %v5801 = vunpack.c.h.b16 %v5674
  %v5802 = vunpack.c.l.b16 %v5675
  %v5803 = vunpack.c.h.b16 %v5675
  %v5804 = vunpack.c.l.b16 %v5676
  %v5805 = vunpack.c.h.b16 %v5676
  %v5806 = vunpack.c.l.b16 %v5677
  %v5807 = vunpack.c.h.b16 %v5677
  %v5808 = vunpack.c.l.b16 %v5678
  %v5809 = vunpack.c.h.b16 %v5678
  %v5810 = vunpack.c.l.b16 %v5679
  %v5811 = vunpack.c.h.b16 %v5679
  %v5812 = vunpack.c.l.b16 %v5680
  %v5813 = vunpack.c.h.b16 %v5680
  %v5814 = vunpack.c.l.b16 %v5681
  %v5815 = vunpack.c.h.b16 %v5681
  %v5816 = vunpack.c.l.b16 %v5682
  %v5817 = vunpack.c.h.b16 %v5682
  %v5818 = vunpack.c.l.b16 %v5683
  %v5819 = vunpack.c.h.b16 %v5683
  %v5820 = vunpack.c.l.b16 %v5684
  %v5821 = vunpack.c.h.b16 %v5684
  %v5822 = vunpack.c.l.b16 %v5685
  %v5823 = vunpack.c.h.b16 %v5685
  %v5824 = vunpack.c.l.b16 %v5686
  %v5825 = vunpack.c.h.b16 %v5686
  %v5826 = vunpack.c.l.b16 %v5687
  %v5827 = vunpack.c.h.b16 %v5687
  %v5828 = vunpack.c.l.b16 %v5688
  %v5829 = vunpack.c.h.b16 %v5688
  %v5830 = vunpack.c.l.b16 %v5689
  %v5831 = vunpack.c.h.b16 %v5689
  %v5832 = vunpack.c.l.b16 %v5690
  %v5833 = vunpack.c.h.b16 %v5690
  %v5834 = vunpack.c.l.b16 %v5691
  %v5835 = vunpack.c.h.b16 %v5691
  %v5836 = vunpack.c.l.b16 %v5692
  %v5837 = vunpack.c.h.b16 %v5692
  %v5838 = vunpack.c.l.b16 %v5693
  %v5839 = vunpack.c.h.b16 %v5693
  %v5840 = vunpack.c.l.b16 %v5694
  %v5841 = vunpack.c.h.b16 %v5694
  %v5842 = vunpack.c.l.b16 %v5695
  %v5843 = vunpack.c.h.b16 %v5695
  %v5844 = vunpack.c.l.b16 %v5696
  %v5845 = vunpack.c.h.b16 %v5696
  %v5846 = vunpack.c.l.b16 %v5697
  %v5847 = vunpack.c.h.b16 %v5697
  %v5848 = vunpack.c.l.b16 %v5698
  %v5849 = vunpack.c.h.b16 %v5698
  %v5850 = vunpack.c.l.b16 %v5699
  %v5851 = vunpack.c.h.b16 %v5699
  %v5852 = vpack.c.b16 %v5790, %v5788
  %v5853 = vpack.c.b16 %v5791, %v5789
  %v5854 = vpack.c.b16 %v5794, %v5792
  %v5855 = vpack.c.b16 %v5795, %v5793
  %v5856 = vpack.c.b16 %v5798, %v5796
  %v5857 = vpack.c.b16 %v5799, %v5797
  %v5858 = vpack.c.b16 %v5802, %v5800
  %v5859 = vpack.c.b16 %v5803, %v5801
  %v5860 = vpack.c.b16 %v5806, %v5804
  %v5861 = vpack.c.b16 %v5807, %v5805
  %v5862 = vpack.c.b16 %v5810, %v5808
  %v5863 = vpack.c.b16 %v5811, %v5809
  %v5864 = vpack.c.b16 %v5814, %v5812
  %v5865 = vpack.c.b16 %v5815, %v5813
  %v5866 = vpack.c.b16 %v5818, %v5816
  %v5867 = vpack.c.b16 %v5819, %v5817
  %v5868 = vpack.c.b16 %v5822, %v5820
  %v5869 = vpack.c.b16 %v5823, %v5821
  %v5870 = vpack.c.b16 %v5826, %v5824
  %v5871 = vpack.c.b16 %v5827, %v5825
  %v5872 = vpack.c.b16 %v5830, %v5828
  %v5873 = vpack.c.b16 %v5831, %v5829
  %v5874 = vpack.c.b16 %v5834, %v5832
  %v5875 = vpack.c.b16 %v5835, %v5833
  %v5876 = vpack.c.b16 %v5838, %v5836
  %v5877 = vpack.c.b16 %v5839, %v5837
  %v5878 = vpack.c.b16 %v5842, %v5840
  %v5879 = vpack.c.b16 %v5843, %v5841
  %v5880 = vpack.c.b16 %v5846, %v5844
  %v5881 = vpack.c.b16 %v5847, %v5845
  %v5882 = vpack.c.b16 %v5850, %v5848
  %v5883 = vpack.c.b16 %v5851, %v5849
  %5916 = vmatpush.bf16.msra.mxu0 %v5866
  %5917 = vmatpush.bf16.msra.mxu0 %v5864
  %5918 = vmatpush.bf16.msra.mxu0 %v5862
  %5919 = vmatpush.bf16.msra.mxu0 %v5860
  %5920 = vmatpush.bf16.msra.mxu0 %v5858
  %5921 = vmatpush.bf16.msra.mxu0 %v5856
  %5922 = vmatpush.bf16.msra.mxu0 %v5854
  %5923 = vmatpush.bf16.msra.mxu0 %v5852
  %5924 = vmatmul.bf16.gmra.mxu0 %v5716
  %v5925 = vpop.f32.mrf.mxu0
  %v5926 = vadd.f32 0.0, %v5925
  %v5927 = vpop.f32.mrf.mxu0
  %v5928 = vadd.f32 0.0, %v5927
  %5929 = vmatmul.bf16.gmra.mxu0 %v5742
  %v5930 = vpop.f32.mrf.mxu0
  %v5931 = vadd.f32 0.0, %v5930
  %v5932 = vpop.f32.mrf.mxu0
  %v5933 = vadd.f32 0.0, %v5932
  %5934 = vdwg.mxu0
  %5935 = vmatpush.bf16.msra.mxu0 %v5882
  %5936 = vmatpush.bf16.msra.mxu0 %v5880
  %5937 = vmatpush.bf16.msra.mxu0 %v5878
  %5938 = vmatpush.bf16.msra.mxu0 %v5876
  %5939 = vmatpush.bf16.msra.mxu0 %v5874
  %5940 = vmatpush.bf16.msra.mxu0 %v5872
  %5941 = vmatpush.bf16.msra.mxu0 %v5870
  %5942 = vmatpush.bf16.msra.mxu0 %v5868
  %5943 = vmatmul.bf16.gmra.mxu0 %v5733
  %v5944 = vpop.f32.mrf.mxu0
  %v5945 = vadd.f32 %v5926, %v5944
  %v5946 = vpop.f32.mrf.mxu0
  %v5947 = vadd.f32 %v5928, %v5946
  %5948 = vmatmul.bf16.gmra.mxu0 %v5751
  %v5949 = vpop.f32.mrf.mxu0
  %v5950 = vadd.f32 %v5931, %v5949
  %v5951 = vpop.f32.mrf.mxu0
  %v5952 = vadd.f32 %v5933, %v5951
  %5953 = vdwg.mxu0
  %5954 = vmatpush.bf16.msra.mxu0 %v5867
  %5955 = vmatpush.bf16.msra.mxu0 %v5865
  %5956 = vmatpush.bf16.msra.mxu0 %v5863
  %5957 = vmatpush.bf16.msra.mxu0 %v5861
  %5958 = vmatpush.bf16.msra.mxu0 %v5859
  %5959 = vmatpush.bf16.msra.mxu0 %v5857
  %5960 = vmatpush.bf16.msra.mxu0 %v5855
  %5961 = vmatpush.bf16.msra.mxu0 %v5853
  %5962 = vmatmul.bf16.gmra.mxu0 %v5716
  %v5963 = vpop.f32.mrf.mxu0
  %v5964 = vadd.f32 0.0, %v5963
  %v5965 = vpop.f32.mrf.mxu0
  %v5966 = vadd.f32 0.0, %v5965
  %5967 = vmatmul.bf16.gmra.mxu0 %v5742
  %v5968 = vpop.f32.mrf.mxu0
  %v5969 = vadd.f32 0.0, %v5968
  %v5970 = vpop.f32.mrf.mxu0
  %v5971 = vadd.f32 0.0, %v5970
  %5972 = vdwg.mxu0
  %5973 = vmatpush.bf16.msra.mxu0 %v5883
  %5974 = vmatpush.bf16.msra.mxu0 %v5881
  %5975 = vmatpush.bf16.msra.mxu0 %v5879
  %5976 = vmatpush.bf16.msra.mxu0 %v5877
  %5977 = vmatpush.bf16.msra.mxu0 %v5875
  %5978 = vmatpush.bf16.msra.mxu0 %v5873
  %5979 = vmatpush.bf16.msra.mxu0 %v5871
  %5980 = vmatpush.bf16.msra.mxu0 %v5869
  %5981 = vmatmul.bf16.gmra.mxu0 %v5733
  %v5982 = vpop.f32.mrf.mxu0
  %v5983 = vadd.f32 %v5964, %v5982
  %v5984 = vpop.f32.mrf.mxu0
  %v5985 = vadd.f32 %v5966, %v5984
  %5986 = vmatmul.bf16.gmra.mxu0 %v5751
  %v5987 = vpop.f32.mrf.mxu0
  %v5988 = vadd.f32 %v5969, %v5987
  %v5989 = vpop.f32.mrf.mxu0
  %v5990 = vadd.f32 %v5971, %v5989
  %5991 = vdwg.mxu0
  %v5992 = vadd.f32 %v5608, %v5945
  %v5993 = vadd.f32 %v5609, %v5983
  %v5994 = vadd.f32 %v5610, %v5947
  %v5995 = vadd.f32 %v5611, %v5985
  %v5996 = vadd.f32 %v5612, %v5950
  %v5997 = vadd.f32 %v5613, %v5988
  %v5998 = vadd.f32 %v5614, %v5952
  %v5999 = vadd.f32 %v5615, %v5990
  %v6000 = vmax.f32 %v5992, 0.0
  %v6001 = vmax.f32 %v5993, 0.0
  %v6002 = vmax.f32 %v5994, 0.0
  %v6003 = vmax.f32 %v5995, 0.0
  %v6004 = vmax.f32 %v5996, 0.0
  %v6005 = vmax.f32 %v5997, 0.0
  %v6006 = vmax.f32 %v5998, 0.0
  %v6007 = vmax.f32 %v5999, 0.0
  %v6008 = vld [vmem:[%s5] sm:$0xff]
  %vm6009 = vcmask 261120
  %v6011 = vsel %vm6009, %v6008, 0
  %6013 = vmatpush.msra.mxu0 0.0
  %6014 = vmatpush.msra.mxu0 0.0
  %6015 = vmatpush.msra.mxu0 0.0
  %6016 = vmatpush.msra.mxu0 0.0
  %6017 = vmatpush.msra.mxu0 0.0
  %6018 = vmatpush.msra.mxu0 0.0
  %6019 = vmatpush.msra.mxu0 0.0
  %6020 = vmatpush.msra.mxu0 0.0
  %6021 = vmatpush.msra.mxu0 0.0
  %6022 = vmatpush.msra.mxu0 0.0
  %6023 = vmatpush.msra.mxu0 0.0
  %6024 = vmatpush.msra.mxu0 0.0
  %6025 = vmatpush.msra.mxu0 %v6006
  %6026 = vmatpush.msra.mxu0 %v6004
  %6027 = vmatpush.msra.mxu0 %v6002
  %6028 = vmatpush.msra.mxu0 %v6000
  %6029 = vmatmul.f32.gmra.mxu0 %v6011
  %v6030 = vpop.f32.mrf.mxu0
  %v6031 = vadd.f32 0.0, %v6030
  %6032 = vdwg.mxu0
  %6033 = vmatpush.msra.mxu0 0.0
  %6034 = vmatpush.msra.mxu0 0.0
  %6035 = vmatpush.msra.mxu0 0.0
  %6036 = vmatpush.msra.mxu0 0.0
  %6037 = vmatpush.msra.mxu0 0.0
  %6038 = vmatpush.msra.mxu0 0.0
  %6039 = vmatpush.msra.mxu0 0.0
  %6040 = vmatpush.msra.mxu0 0.0
  %6041 = vmatpush.msra.mxu0 0.0
  %6042 = vmatpush.msra.mxu0 0.0
  %6043 = vmatpush.msra.mxu0 0.0
  %6044 = vmatpush.msra.mxu0 0.0
  %6045 = vmatpush.msra.mxu0 %v6007
  %6046 = vmatpush.msra.mxu0 %v6005
  %6047 = vmatpush.msra.mxu0 %v6003
  %6048 = vmatpush.msra.mxu0 %v6001
  %6049 = vmatmul.f32.gmra.mxu0 %v6011
  %v6050 = vpop.f32.mrf.mxu0
  %v6051 = vadd.f32 0.0, %v6050
  %6052 = vdwg.mxu0
  %6053 = vst [vmem:[%s6] sm:$0xff] %v6031
  %6054 = vst [vmem:[%s6 + $0x8] sm:$0xff] %v6051
  // Predicated region
  $region26: #{resnet_forward.5} parent=0 // pred_check
    _
  $region27: #{resnet_forward.5} parent=0 // pred_check_branch
    %6056 = sbr.rel (0) target = $region29
  $region28: #{resnet_forward.5} parent=0 // pred_region
    _
  $region29: #{resnet_forward.5} parent=0 // pred_fallthru
    _
  // Predicated region
  $region30: #{resnet_forward.5} parent=0 // pred_check
    _
  $region31: #{resnet_forward.5} parent=0 // pred_check_branch
    %6058 = sbr.rel (0) target = $region33
  $region32: #{resnet_forward.5} parent=0 // pred_region
    _
  $region33: #{resnet_forward.5} parent=0 // pred_fallthru
    _

</llo_original>
